<compile_context>
chip_gen: v6e
topology: v6e:2x2x1
jax: 0.10.0
libtpu: 0.0.40
codegen_flags: <defaults>
</compile_context>

<pallas_src>
import functools
from math import sqrt

import jax
import jax.numpy as jnp
from jax.experimental import pallas as pl
from jax.experimental.pallas import tpu as pltpu

LANE = 128


def _round_up(x, m):
    return ((x + m - 1) // m) * m


def _act(x):
    # ReLU surrogate for the spiking activation (see TODO above).
    return jnp.maximum(x, 0.0)


# ----------------------------------------------------------------------------
# Whole-layer fused kernel
# ----------------------------------------------------------------------------
def _layer_kernel(x_ref, *rest, nblocks, downsample, cin, planes, ho, wo, nb,
                  coutp):
    w_refs = rest[:2 * nblocks]
    o_ref = rest[2 * nblocks]
    pin_ref, pad_ref = rest[2 * nblocks + 1:]

    M = nb * ho * wo
    bf16 = jnp.bfloat16

    # Zero the scratch halos EVERY grid step (no program_id gating), so the
    # kernel stays correct when the "parallel" batch axis is split across
    # TensorCores (v7x megacore).  The centres are overwritten below.
    pin_ref[...] = jnp.zeros_like(pin_ref)
    pad_ref[...] = jnp.zeros_like(pad_ref)

    def conv3x3_s1(pad_sref, act4d, w_ref, extra4d=None, residual=None):
        """3x3 stride-1 conv (+ optional fused 1x1-shortcut columns), one matmul.

        K-folded im2col: the 9 taps (and the shortcut input, if any) are
        concatenated along lanes so the conv is a single lane-dense
        (M, Kp) @ (Kp, Coutp) MXU matmul with f32 accumulation.
        """
        kp = w_ref.shape[0]
        pad_sref[:, 1:ho + 1, 1:wo + 1, :] = act4d          # halo stays zero
        pieces = [pad_sref[:, dh:dh + ho, dw:dw + wo, :]
                  for dh in range(3) for dw in range(3)]
        if extra4d is not None:
            pieces.append(extra4d)
        kreal = sum(p.shape[-1] for p in pieces)
        assert kreal <= kp
        if kreal < kp:
            pieces.append(jnp.zeros((nb, ho, wo, kp - kreal), bf16))
        cols = jnp.concatenate(pieces, axis=-1).reshape(M, kp)
        acc = jnp.dot(cols, w_ref[...], preferred_element_type=jnp.float32)
        if residual is not None:
            acc = acc + residual
        return acc

    # ------------------ block 0 : conv1 (stride 2 or 1) ----------------------
    if downsample:
        # x_ref is a pure reshape of NHWC x: (nb, H/2, 2, W/2, 2*cin).  The
        # H-parity is an ordinary (non-minor) index and the W-parity a lane
        # sub-range, so the 2x2 space-to-depth of the zero-padded input is done
        # here with static slices only.  Phase p = 2*h_parity + w_parity of the
        # padded input, each plane (ho+1, wo+1) with a zero border.
        pin_ref[:, 0, 1:ho + 1, 1:wo + 1, :] = x_ref[:, :, 1, :, cin:2 * cin]
        pin_ref[:, 1, 1:ho + 1, 0:wo, :] = x_ref[:, :, 1, :, 0:cin]
        pin_ref[:, 2, 0:ho, 1:wo + 1, :] = x_ref[:, :, 0, :, cin:2 * cin]
        pin_ref[:, 3, 0:ho, 0:wo, :] = x_ref[:, :, 0, :, 0:cin]

        kp1 = w_refs[0].shape[0]
        pieces = []
        for dh in range(3):
            for dw in range(3):
                p = (dh % 2) * 2 + (dw % 2)
                r0, c0 = dh // 2, dw // 2
                pieces.append(pin_ref[:, p, r0:r0 + ho, c0:c0 + wo, :])
        sc4d = pieces[4]   # x[2i, 2j] == centre tap -> 1x1 stride-2 shortcut in
        kreal = 9 * cin
        if kreal < kp1:
            pieces.append(jnp.zeros((nb, ho, wo, kp1 - kreal), bf16))
        cols1 = jnp.concatenate(pieces, axis=-1).reshape(M, kp1)
        acc1 = jnp.dot(cols1, w_refs[0][...], preferred_element_type=jnp.float32)
        has_sc = True
        residual0 = None
    else:
        x4d = x_ref[...]                                    # (nb, H, W, cin)
        acc1 = conv3x3_s1(pin_ref, x4d, w_refs[0])
        has_sc = cin != planes
        if has_sc:
            sc4d = x4d                                      # 1x1 stride-1 shortcut input
            residual0 = None
        else:
            sc4d = None
            x2d = x4d.reshape(M, cin).astype(jnp.float32)
            residual0 = (jnp.concatenate(
                [x2d, jnp.zeros((M, coutp - cin), jnp.float32)], axis=-1)
                if coutp > cin else x2d)

    a1 = _act(acc1).astype(bf16).reshape(nb, ho, wo, coutp)[..., :planes]

    # ------------------ block 0 : conv2 (+ shortcut folded into its K) -------
    acc2 = conv3x3_s1(pad_ref, a1, w_refs[1],
                      extra4d=sc4d if has_sc else None, residual=residual0)
    out = _act(acc2)                                        # (M, coutp) f32

    # ------------------ blocks 1..n-1 : stride 1, identity residual ----------
    for blk in range(1, nblocks):
        act_in = out.astype(bf16).reshape(nb, ho, wo, coutp)[..., :planes]
        h = _act(conv3x3_s1(pad_ref, act_in, w_refs[2 * blk]))
        h = h.astype(bf16).reshape(nb, ho, wo, coutp)[..., :planes]
        out = _act(conv3x3_s1(pad_ref, h, w_refs[2 * blk + 1], residual=out))

    o_ref[...] = out.reshape(nb, ho, wo, coutp)[..., :planes].astype(o_ref.dtype)


_COMPILER_PARAMS = pltpu.CompilerParams(
    dimension_semantics=("parallel",),          # batch tiles -> both TCs on v7x
    vmem_limit_bytes=32 * 1024 * 1024,          # far above what we use; v7x-safe
)


def _pick_batch_block(n, out_pixels, target_rows=512):
    """Largest divisor of n keeping the matmul M = nb*Ho*Wo <= target."""
    nb = 1
    for d in range(1, n + 1):
        if n % d == 0 and d * out_pixels <= max(out_pixels, target_rows):
            nb = d
    return nb


# ----------------------------------------------------------------------------
# Parameter init + dense K-major packing (done once, not per forward)
# ----------------------------------------------------------------------------
def _init_conv(key, out_ch, in_ch, k):
    fan_in = in_ch * k * k
    bound = 1.0 / sqrt(fan_in)
    return jax.random.uniform(key, (out_ch, in_ch, k, k), jnp.float32,
                              minval=-bound, maxval=bound)


def _pack_block(w3_oihw, wsc_oihw, coutp):
    """Pack conv weights for the K-folded im2col matmul.

    Row (dh*3+dw)*Cin + c holds W[:, c, dh, dw]; if a 1x1 shortcut is fused,
    its Cin rows follow the 9*Cin conv rows.  K is padded to a multiple of 128
    and Cout to `coutp`, so the matmul is fully lane-dense on the MXU.
    """
    o, i, kh, kw = w3_oihw.shape
    w = jnp.transpose(w3_oihw, (2, 3, 1, 0)).reshape(kh * kw * i, o)
    if wsc_oihw is not None:
        w = jnp.concatenate([w, wsc_oihw[:, :, 0, 0].T], axis=0)
    kreal = w.shape[0]
    kp = _round_up(kreal, LANE)
    w = jnp.pad(w, ((0, kp - kreal), (0, coutp - o)))
    return w.astype(jnp.bfloat16)


def init_block_layer(key, in_planes, planes, num_block, downsample):
    coutp = _round_up(planes, LANE)
    strides = [2 if downsample else 1] + [1] * (num_block - 1)
    in_chs = [in_planes] + [planes] * (num_block - 1)
    weights, raw = [], []
    for ip, s in zip(in_chs, strides):
        key, k1, k2, k3 = jax.random.split(key, 4)
        w1 = _init_conv(k1, planes, ip, 3)
        w2 = _init_conv(k2, planes, planes, 3)
        has_sc = (s != 1) or (ip != planes)
        wsc = _init_conv(k3, planes, ip, 1) if has_sc else None
        weights.append(_pack_block(w1, None, coutp))
        weights.append(_pack_block(w2, wsc, coutp))
        raw.append({"w1": w1, "w2": w2, "wsc": wsc, "stride": s})
    return {"weights": weights, "raw": raw, "in_planes": in_planes,
            "planes": planes, "num_block": num_block, "downsample": downsample}


# ----------------------------------------------------------------------------
# Forward (glue: layout plumbing only)
# ----------------------------------------------------------------------------
def block_layer_forward(x_nchw, params):
    weights = params["weights"]
    cin = params["in_planes"]
    planes = params["planes"]
    nblocks = params["num_block"]
    downsample = params["downsample"]
    coutp = weights[0].shape[1]

    N, C, H, W = x_nchw.shape
    assert C == cin

    # NCHW (PyTorch) -> NHWC bf16 at the REAL channel count.
    x = jnp.transpose(x_nchw, (0, 2, 3, 1)).astype(jnp.bfloat16)

    if downsample:
        assert H % 2 == 0 and W % 2 == 0, "stride-2 block needs even H, W"
        ho, wo = H // 2, W // 2
    else:
        ho, wo = H, W

    nb = _pick_batch_block(N, ho * wo)
    grid = (N // nb,)

    if downsample:
        # Pure row-major reshape (free, no pad/transpose HBM pass): exposes the
        # W parity as a lane sub-range and the H parity as its own axis.
        x_in = x.reshape(N, ho, 2, wo, 2 * cin)
        x_spec = pl.BlockSpec((nb, ho, 2, wo, 2 * cin),
                              lambda g: (g, 0, 0, 0, 0))
        pin_scratch = pltpu.VMEM(
            (nb, 4, ho + 1, _round_up(wo + 1, 8), cin), jnp.bfloat16)
    else:
        x_in = x
        x_spec = pl.BlockSpec((nb, H, W, cin), lambda g: (g, 0, 0, 0))
        pin_scratch = pltpu.VMEM(
            (nb, H + 2, _round_up(W + 2, 8), cin), jnp.bfloat16)

    pad_scratch = pltpu.VMEM(
        (nb, ho + 2, _round_up(wo + 2, 8), planes), jnp.bfloat16)

    w_specs = [pl.BlockSpec(w.shape, lambda g: (0, 0)) for w in weights]

    kernel = functools.partial(
        _layer_kernel, nblocks=nblocks, downsample=downsample, cin=cin,
        planes=planes, ho=ho, wo=wo, nb=nb, coutp=coutp)

    out = pl.pallas_call(
        kernel,
        out_shape=jax.ShapeDtypeStruct((N, ho, wo, planes), jnp.bfloat16),
        grid=grid,
        in_specs=[x_spec] + w_specs,
        out_specs=pl.BlockSpec((nb, ho, wo, planes), lambda g: (g, 0, 0, 0)),
        scratch_shapes=[pin_scratch, pad_scratch],
        compiler_params=_COMPILER_PARAMS,
    )(x_in, *weights)

    return jnp.transpose(out.astype(jnp.float32), (0, 3, 1, 2))


# ----------------------------------------------------------------------------
# Pure-JAX f32 reference (same ReLU-surrogate semantics), for validation
# ----------------------------------------------------------------------------
def reference_forward(x_nchw, params):
    def conv(x, w, stride, pad):
        return jax.lax.conv_general_dilated(
            x, w, window_strides=(stride, stride), padding=pad,
            dimension_numbers=("NCHW", "OIHW", "NCHW"))

    out = x_nchw
    for blk in params["raw"]:
        s = blk["stride"]
        h = jnp.maximum(conv(out, blk["w1"], s, ((1, 1), (1, 1))), 0.0)
        h = conv(h, blk["w2"], 1, ((1, 1), (1, 1)))
        sc = (conv(out, blk["wsc"], s, ((0, 0), (0, 0)))
              if blk["wsc"] is not None else out)
        out = jnp.maximum(h + sc, 0.0)
    return out


# ----------------------------------------------------------------------------
if __name__ == "__main__":
    key = jax.random.PRNGKey(0)
    kx, kparam = jax.random.split(key)

    # BLock_Layer(block=BasicBlock, in_planes=4, planes=8, num_block=2,
    #             timestep=5, downsample=True, modified=False)
    in_planes, planes, num_block, downsample = 4, 8, 2, True
    params = init_block_layer(kparam, in_planes, planes, num_block, downsample)

    x = jax.random.normal(kx, (2, in_planes, 16, 16), jnp.float32)   # NCHW

    fwd = jax.jit(lambda inp: block_layer_forward(inp, params))
    y = jax.block_until_ready(fwd(x))

    expected = (2, planes, 8, 8)   # stride-2 first block halves spatial dims
    assert y.shape == expected, (y.shape, expected)
    assert bool(jnp.all(jnp.isfinite(y)))

    # Numerical check against the pure-JAX f32 reference (bf16 MXU tolerance).
    y_ref = reference_forward(x, params)
    err = float(jnp.max(jnp.abs(y - y_ref)))
    assert err < 1e-1, f"max abs error vs reference: {err}"

    print("KERNEL_OK")
</pallas_src>

<mosaic_0001>
module attributes {stable_mosaic.version = 11 : i64} {
  func.func @_layer_kernel(%arg0: i32, %arg1: memref<2x8x2x8x8xbf16, #tpu.memory_space<vmem>>, %arg2: memref<128x128xbf16, #tpu.memory_space<vmem>>, %arg3: memref<128x128xbf16, #tpu.memory_space<vmem>>, %arg4: memref<128x128xbf16, #tpu.memory_space<vmem>>, %arg5: memref<128x128xbf16, #tpu.memory_space<vmem>>, %arg6: memref<2x8x8x8xbf16, #tpu.memory_space<vmem>>, %arg7: memref<2x4x9x16x4xbf16, #tpu.memory_space<vmem>>, %arg8: memref<2x10x16x8xbf16, #tpu.memory_space<vmem>>) attributes {dimension_semantics = [#tpu.dimension_semantics<parallel>], iteration_bounds = array<i64: 1>, scalar_prefetch = 0 : i64, scratch_operands = 2 : i64, tpu.core_type = #tpu.core_type<tc>, window_params = [{transform_indices = @transform_0, window_bounds = array<i64: 2, 8, 2, 8, 8>}, {pipeline_mode = #tpu.pipeline_mode<synchronous>, transform_indices = @transform_1, window_bounds = array<i64: 128, 128>}, {pipeline_mode = #tpu.pipeline_mode<synchronous>, transform_indices = @transform_2, window_bounds = array<i64: 128, 128>}, {pipeline_mode = #tpu.pipeline_mode<synchronous>, transform_indices = @transform_3, window_bounds = array<i64: 128, 128>}, {pipeline_mode = #tpu.pipeline_mode<synchronous>, transform_indices = @transform_4, window_bounds = array<i64: 128, 128>}, {transform_indices = @transform_5, window_bounds = array<i64: 2, 8, 8, 8>}]} {
    %cst = arith.constant 0.000000e+00 : bf16
    %0 = vector.broadcast %cst : bf16 to vector<2x4x9x16x4xbf16>
    %c0 = arith.constant 0 : index
    %c0_0 = arith.constant 0 : index
    %c0_1 = arith.constant 0 : index
    %c0_2 = arith.constant 0 : index
    %c0_3 = arith.constant 0 : index
    %1 = vector.load %arg7[%c0, %c0_0, %c0_1, %c0_2, %c0_3] : memref<2x4x9x16x4xbf16, #tpu.memory_space<vmem>>, vector<2x4x9x16x4xbf16>
    tpu.vector_store %arg7[%c0, %c0_0, %c0_1, %c0_2, %c0_3], %0 {strides = array<i32>} : memref<2x4x9x16x4xbf16, #tpu.memory_space<vmem>>, vector<2x4x9x16x4xbf16>,
    %cst_4 = arith.constant 0.000000e+00 : bf16
    %2 = vector.broadcast %cst_4 : bf16 to vector<2x10x16x8xbf16>
    %c0_5 = arith.constant 0 : index
    %c0_6 = arith.constant 0 : index
    %c0_7 = arith.constant 0 : index
    %c0_8 = arith.constant 0 : index
    %3 = vector.load %arg8[%c0_5, %c0_6, %c0_7, %c0_8] : memref<2x10x16x8xbf16, #tpu.memory_space<vmem>>, vector<2x10x16x8xbf16>
    tpu.vector_store %arg8[%c0_5, %c0_6, %c0_7, %c0_8], %2 {strides = array<i32>} : memref<2x10x16x8xbf16, #tpu.memory_space<vmem>>, vector<2x10x16x8xbf16>,
    %c0_9 = arith.constant 0 : index
    %c0_10 = arith.constant 0 : index
    %c1 = arith.constant 1 : index
    %c0_11 = arith.constant 0 : index
    %c4 = arith.constant 4 : index
    %4 = vector.load %arg1[%c0_9, %c0_10, %c1, %c0_11, %c4] : memref<2x8x2x8x8xbf16, #tpu.memory_space<vmem>>, vector<2x8x1x8x4xbf16>
    %5 = vector.shape_cast %4 : vector<2x8x1x8x4xbf16> to vector<2x8x8x4xbf16>
    %c0_12 = arith.constant 0 : index
    %c0_13 = arith.constant 0 : index
    %c1_14 = arith.constant 1 : index
    %c1_15 = arith.constant 1 : index
    %c0_16 = arith.constant 0 : index
    %6 = vector.load %arg7[%c0_12, %c0_13, %c1_14, %c1_15, %c0_16] : memref<2x4x9x16x4xbf16, #tpu.memory_space<vmem>>, vector<2x1x8x8x4xbf16>
    %7 = vector.shape_cast %6 : vector<2x1x8x8x4xbf16> to vector<2x8x8x4xbf16>
    %8 = vector.shape_cast %5 : vector<2x8x8x4xbf16> to vector<2x1x8x8x4xbf16>
    tpu.vector_store %arg7[%c0_12, %c0_13, %c1_14, %c1_15, %c0_16], %8 {strides = array<i32>} : memref<2x4x9x16x4xbf16, #tpu.memory_space<vmem>>, vector<2x1x8x8x4xbf16>,
    %c0_17 = arith.constant 0 : index
    %c0_18 = arith.constant 0 : index
    %c1_19 = arith.constant 1 : index
    %c0_20 = arith.constant 0 : index
    %c0_21 = arith.constant 0 : index
    %9 = vector.load %arg1[%c0_17, %c0_18, %c1_19, %c0_20, %c0_21] : memref<2x8x2x8x8xbf16, #tpu.memory_space<vmem>>, vector<2x8x1x8x4xbf16>
    %10 = vector.shape_cast %9 : vector<2x8x1x8x4xbf16> to vector<2x8x8x4xbf16>
    %c0_22 = arith.constant 0 : index
    %c1_23 = arith.constant 1 : index
    %c1_24 = arith.constant 1 : index
    %c0_25 = arith.constant 0 : index
    %c0_26 = arith.constant 0 : index
    %11 = vector.load %arg7[%c0_22, %c1_23, %c1_24, %c0_25, %c0_26] : memref<2x4x9x16x4xbf16, #tpu.memory_space<vmem>>, vector<2x1x8x8x4xbf16>
    %12 = vector.shape_cast %11 : vector<2x1x8x8x4xbf16> to vector<2x8x8x4xbf16>
    %13 = vector.shape_cast %10 : vector<2x8x8x4xbf16> to vector<2x1x8x8x4xbf16>
    tpu.vector_store %arg7[%c0_22, %c1_23, %c1_24, %c0_25, %c0_26], %13 {strides = array<i32>} : memref<2x4x9x16x4xbf16, #tpu.memory_space<vmem>>, vector<2x1x8x8x4xbf16>,
    %c0_27 = arith.constant 0 : index
    %c0_28 = arith.constant 0 : index
    %c0_29 = arith.constant 0 : index
    %c0_30 = arith.constant 0 : index
    %c4_31 = arith.constant 4 : index
    %14 = vector.load %arg1[%c0_27, %c0_28, %c0_29, %c0_30, %c4_31] : memref<2x8x2x8x8xbf16, #tpu.memory_space<vmem>>, vector<2x8x1x8x4xbf16>
    %15 = vector.shape_cast %14 : vector<2x8x1x8x4xbf16> to vector<2x8x8x4xbf16>
    %c0_32 = arith.constant 0 : index
    %c2 = arith.constant 2 : index
    %c0_33 = arith.constant 0 : index
    %c1_34 = arith.constant 1 : index
    %c0_35 = arith.constant 0 : index
    %16 = vector.load %arg7[%c0_32, %c2, %c0_33, %c1_34, %c0_35] : memref<2x4x9x16x4xbf16, #tpu.memory_space<vmem>>, vector<2x1x8x8x4xbf16>
    %17 = vector.shape_cast %16 : vector<2x1x8x8x4xbf16> to vector<2x8x8x4xbf16>
    %18 = vector.shape_cast %15 : vector<2x8x8x4xbf16> to vector<2x1x8x8x4xbf16>
    tpu.vector_store %arg7[%c0_32, %c2, %c0_33, %c1_34, %c0_35], %18 {strides = array<i32>} : memref<2x4x9x16x4xbf16, #tpu.memory_space<vmem>>, vector<2x1x8x8x4xbf16>,
    %c0_36 = arith.constant 0 : index
    %c0_37 = arith.constant 0 : index
    %c0_38 = arith.constant 0 : index
    %c0_39 = arith.constant 0 : index
    %c0_40 = arith.constant 0 : index
    %19 = vector.load %arg1[%c0_36, %c0_37, %c0_38, %c0_39, %c0_40] : memref<2x8x2x8x8xbf16, #tpu.memory_space<vmem>>, vector<2x8x1x8x4xbf16>
    %20 = vector.shape_cast %19 : vector<2x8x1x8x4xbf16> to vector<2x8x8x4xbf16>
    %c0_41 = arith.constant 0 : index
    %c3 = arith.constant 3 : index
    %c0_42 = arith.constant 0 : index
    %c0_43 = arith.constant 0 : index
    %c0_44 = arith.constant 0 : index
    %21 = vector.load %arg7[%c0_41, %c3, %c0_42, %c0_43, %c0_44] : memref<2x4x9x16x4xbf16, #tpu.memory_space<vmem>>, vector<2x1x8x8x4xbf16>
    %22 = vector.shape_cast %21 : vector<2x1x8x8x4xbf16> to vector<2x8x8x4xbf16>
    %23 = vector.shape_cast %20 : vector<2x8x8x4xbf16> to vector<2x1x8x8x4xbf16>
    tpu.vector_store %arg7[%c0_41, %c3, %c0_42, %c0_43, %c0_44], %23 {strides = array<i32>} : memref<2x4x9x16x4xbf16, #tpu.memory_space<vmem>>, vector<2x1x8x8x4xbf16>,
    %c0_45 = arith.constant 0 : index
    %c0_46 = arith.constant 0 : index
    %c0_47 = arith.constant 0 : index
    %c0_48 = arith.constant 0 : index
    %c0_49 = arith.constant 0 : index
    %24 = vector.load %arg7[%c0_45, %c0_46, %c0_47, %c0_48, %c0_49] : memref<2x4x9x16x4xbf16, #tpu.memory_space<vmem>>, vector<2x1x8x8x4xbf16>
    %25 = vector.shape_cast %24 : vector<2x1x8x8x4xbf16> to vector<2x8x8x4xbf16>
    %c0_50 = arith.constant 0 : index
    %c1_51 = arith.constant 1 : index
    %c0_52 = arith.constant 0 : index
    %c0_53 = arith.constant 0 : index
    %c0_54 = arith.constant 0 : index
    %26 = vector.load %arg7[%c0_50, %c1_51, %c0_52, %c0_53, %c0_54] : memref<2x4x9x16x4xbf16, #tpu.memory_space<vmem>>, vector<2x1x8x8x4xbf16>
    %27 = vector.shape_cast %26 : vector<2x1x8x8x4xbf16> to vector<2x8x8x4xbf16>
    %c0_55 = arith.constant 0 : index
    %c0_56 = arith.constant 0 : index
    %c0_57 = arith.constant 0 : index
    %c1_58 = arith.constant 1 : index
    %c0_59 = arith.constant 0 : index
    %28 = vector.load %arg7[%c0_55, %c0_56, %c0_57, %c1_58, %c0_59] : memref<2x4x9x16x4xbf16, #tpu.memory_space<vmem>>, vector<2x1x8x8x4xbf16>
    %29 = vector.shape_cast %28 : vector<2x1x8x8x4xbf16> to vector<2x8x8x4xbf16>
    %c0_60 = arith.constant 0 : index
    %c2_61 = arith.constant 2 : index
    %c0_62 = arith.constant 0 : index
    %c0_63 = arith.constant 0 : index
    %c0_64 = arith.constant 0 : index
    %30 = vector.load %arg7[%c0_60, %c2_61, %c0_62, %c0_63, %c0_64] : memref<2x4x9x16x4xbf16, #tpu.memory_space<vmem>>, vector<2x1x8x8x4xbf16>
    %31 = vector.shape_cast %30 : vector<2x1x8x8x4xbf16> to vector<2x8x8x4xbf16>
    %c0_65 = arith.constant 0 : index
    %c3_66 = arith.constant 3 : index
    %c0_67 = arith.constant 0 : index
    %c0_68 = arith.constant 0 : index
    %c0_69 = arith.constant 0 : index
    %32 = vector.load %arg7[%c0_65, %c3_66, %c0_67, %c0_68, %c0_69] : memref<2x4x9x16x4xbf16, #tpu.memory_space<vmem>>, vector<2x1x8x8x4xbf16>
    %33 = vector.shape_cast %32 : vector<2x1x8x8x4xbf16> to vector<2x8x8x4xbf16>
    %c0_70 = arith.constant 0 : index
    %c2_71 = arith.constant 2 : index
    %c0_72 = arith.constant 0 : index
    %c1_73 = arith.constant 1 : index
    %c0_74 = arith.constant 0 : index
    %34 = vector.load %arg7[%c0_70, %c2_71, %c0_72, %c1_73, %c0_74] : memref<2x4x9x16x4xbf16, #tpu.memory_space<vmem>>, vector<2x1x8x8x4xbf16>
    %35 = vector.shape_cast %34 : vector<2x1x8x8x4xbf16> to vector<2x8x8x4xbf16>
    %c0_75 = arith.constant 0 : index
    %c0_76 = arith.constant 0 : index
    %c1_77 = arith.constant 1 : index
    %c0_78 = arith.constant 0 : index
    %c0_79 = arith.constant 0 : index
    %36 = vector.load %arg7[%c0_75, %c0_76, %c1_77, %c0_78, %c0_79] : memref<2x4x9x16x4xbf16, #tpu.memory_space<vmem>>, vector<2x1x8x8x4xbf16>
    %37 = vector.shape_cast %36 : vector<2x1x8x8x4xbf16> to vector<2x8x8x4xbf16>
    %c0_80 = arith.constant 0 : index
    %c1_81 = arith.constant 1 : index
    %c1_82 = arith.constant 1 : index
    %c0_83 = arith.constant 0 : index
    %c0_84 = arith.constant 0 : index
    %38 = vector.load %arg7[%c0_80, %c1_81, %c1_82, %c0_83, %c0_84] : memref<2x4x9x16x4xbf16, #tpu.memory_space<vmem>>, vector<2x1x8x8x4xbf16>
    %39 = vector.shape_cast %38 : vector<2x1x8x8x4xbf16> to vector<2x8x8x4xbf16>
    %c0_85 = arith.constant 0 : index
    %c0_86 = arith.constant 0 : index
    %c1_87 = arith.constant 1 : index
    %c1_88 = arith.constant 1 : index
    %c0_89 = arith.constant 0 : index
    %40 = vector.load %arg7[%c0_85, %c0_86, %c1_87, %c1_88, %c0_89] : memref<2x4x9x16x4xbf16, #tpu.memory_space<vmem>>, vector<2x1x8x8x4xbf16>
    %41 = vector.shape_cast %40 : vector<2x1x8x8x4xbf16> to vector<2x8x8x4xbf16>
    %cst_90 = arith.constant 0.000000e+00 : bf16
    %42 = vector.broadcast %cst_90 : bf16 to vector<2x8x8x92xbf16>
    %43 = tpu.concatenate %25, %27, %29, %31, %33, %35, %37, %39, %41, %42 in 3 : vector<2x8x8x4xbf16>, vector<2x8x8x4xbf16>, vector<2x8x8x4xbf16>, vector<2x8x8x4xbf16>, vector<2x8x8x4xbf16>, vector<2x8x8x4xbf16>, vector<2x8x8x4xbf16>, vector<2x8x8x4xbf16>, vector<2x8x8x4xbf16>, vector<2x8x8x92xbf16> -> vector<2x8x8x128xbf16>
    %44 = vector.shape_cast %43 : vector<2x8x8x128xbf16> to vector<128x128xbf16>
    %c0_91 = arith.constant 0 : index
    %c0_92 = arith.constant 0 : index
    %45 = vector.load %arg2[%c0_91, %c0_92] : memref<128x128xbf16, #tpu.memory_space<vmem>>, vector<128x128xbf16>
    %cst_93 = arith.constant dense<0.000000e+00> : vector<128x128xf32>
    %46 = tpu.matmul %44, %45, %cst_93 {dimension_numbers = #tpu.dot_dimension_numbers<[1], [0], [0], [1], [0, 0, 1, 1], [], []>} : vector<128x128xbf16>, vector<128x128xbf16>, vector<128x128xf32> -> vector<128x128xf32>
    %cst_94 = arith.constant 0.000000e+00 : f32
    %47 = vector.broadcast %cst_94 : f32 to vector<128x128xf32>
    %48 = arith.maximumf %46, %47 : vector<128x128xf32>
    %49 = arith.truncf %48 : vector<128x128xf32> to vector<128x128xbf16>
    %50 = vector.shape_cast %49 : vector<128x128xbf16> to vector<2x8x8x128xbf16>
    %51 = vector.extract_strided_slice %50 {offsets = [0, 0, 0, 0], sizes = [2, 8, 8, 8], strides = [1, 1, 1, 1]} : vector<2x8x8x128xbf16> to vector<2x8x8x8xbf16>
    %c0_95 = arith.constant 0 : index
    %c1_96 = arith.constant 1 : index
    %c1_97 = arith.constant 1 : index
    %c0_98 = arith.constant 0 : index
    %52 = vector.load %arg8[%c0_95, %c1_96, %c1_97, %c0_98] : memref<2x10x16x8xbf16, #tpu.memory_space<vmem>>, vector<2x8x8x8xbf16>
    tpu.vector_store %arg8[%c0_95, %c1_96, %c1_97, %c0_98], %51 {strides = array<i32>} : memref<2x10x16x8xbf16, #tpu.memory_space<vmem>>, vector<2x8x8x8xbf16>,
    %c0_99 = arith.constant 0 : index
    %c0_100 = arith.constant 0 : index
    %c0_101 = arith.constant 0 : index
    %c0_102 = arith.constant 0 : index
    %53 = vector.load %arg8[%c0_99, %c0_100, %c0_101, %c0_102] : memref<2x10x16x8xbf16, #tpu.memory_space<vmem>>, vector<2x8x8x8xbf16>
    %c0_103 = arith.constant 0 : index
    %c0_104 = arith.constant 0 : index
    %c1_105 = arith.constant 1 : index
    %c0_106 = arith.constant 0 : index
    %54 = vector.load %arg8[%c0_103, %c0_104, %c1_105, %c0_106] : memref<2x10x16x8xbf16, #tpu.memory_space<vmem>>, vector<2x8x8x8xbf16>
    %c0_107 = arith.constant 0 : index
    %c0_108 = arith.constant 0 : index
    %c2_109 = arith.constant 2 : index
    %c0_110 = arith.constant 0 : index
    %55 = vector.load %arg8[%c0_107, %c0_108, %c2_109, %c0_110] : memref<2x10x16x8xbf16, #tpu.memory_space<vmem>>, vector<2x8x8x8xbf16>
    %c0_111 = arith.constant 0 : index
    %c1_112 = arith.constant 1 : index
    %c0_113 = arith.constant 0 : index
    %c0_114 = arith.constant 0 : index
    %56 = vector.load %arg8[%c0_111, %c1_112, %c0_113, %c0_114] : memref<2x10x16x8xbf16, #tpu.memory_space<vmem>>, vector<2x8x8x8xbf16>
    %c0_115 = arith.constant 0 : index
    %c1_116 = arith.constant 1 : index
    %c1_117 = arith.constant 1 : index
    %c0_118 = arith.constant 0 : index
    %57 = vector.load %arg8[%c0_115, %c1_116, %c1_117, %c0_118] : memref<2x10x16x8xbf16, #tpu.memory_space<vmem>>, vector<2x8x8x8xbf16>
    %c0_119 = arith.constant 0 : index
    %c1_120 = arith.constant 1 : index
    %c2_121 = arith.constant 2 : index
    %c0_122 = arith.constant 0 : index
    %58 = vector.load %arg8[%c0_119, %c1_120, %c2_121, %c0_122] : memref<2x10x16x8xbf16, #tpu.memory_space<vmem>>, vector<2x8x8x8xbf16>
    %c0_123 = arith.constant 0 : index
    %c2_124 = arith.constant 2 : index
    %c0_125 = arith.constant 0 : index
    %c0_126 = arith.constant 0 : index
    %59 = vector.load %arg8[%c0_123, %c2_124, %c0_125, %c0_126] : memref<2x10x16x8xbf16, #tpu.memory_space<vmem>>, vector<2x8x8x8xbf16>
    %c0_127 = arith.constant 0 : index
    %c2_128 = arith.constant 2 : index
    %c1_129 = arith.constant 1 : index
    %c0_130 = arith.constant 0 : index
    %60 = vector.load %arg8[%c0_127, %c2_128, %c1_129, %c0_130] : memref<2x10x16x8xbf16, #tpu.memory_space<vmem>>, vector<2x8x8x8xbf16>
    %c0_131 = arith.constant 0 : index
    %c2_132 = arith.constant 2 : index
    %c2_133 = arith.constant 2 : index
    %c0_134 = arith.constant 0 : index
    %61 = vector.load %arg8[%c0_131, %c2_132, %c2_133, %c0_134] : memref<2x10x16x8xbf16, #tpu.memory_space<vmem>>, vector<2x8x8x8xbf16>
    %cst_135 = arith.constant 0.000000e+00 : bf16
    %62 = vector.broadcast %cst_135 : bf16 to vector<2x8x8x52xbf16>
    %63 = tpu.concatenate %53, %54, %55, %56, %57, %58, %59, %60, %61, %33, %62 in 3 : vector<2x8x8x8xbf16>, vector<2x8x8x8xbf16>, vector<2x8x8x8xbf16>, vector<2x8x8x8xbf16>, vector<2x8x8x8xbf16>, vector<2x8x8x8xbf16>, vector<2x8x8x8xbf16>, vector<2x8x8x8xbf16>, vector<2x8x8x8xbf16>, vector<2x8x8x4xbf16>, vector<2x8x8x52xbf16> -> vector<2x8x8x128xbf16>
    %64 = vector.shape_cast %63 : vector<2x8x8x128xbf16> to vector<128x128xbf16>
    %c0_136 = arith.constant 0 : index
    %c0_137 = arith.constant 0 : index
    %65 = vector.load %arg3[%c0_136, %c0_137] : memref<128x128xbf16, #tpu.memory_space<vmem>>, vector<128x128xbf16>
    %cst_138 = arith.constant dense<0.000000e+00> : vector<128x128xf32>
    %66 = tpu.matmul %64, %65, %cst_138 {dimension_numbers = #tpu.dot_dimension_numbers<[1], [0], [0], [1], [0, 0, 1, 1], [], []>} : vector<128x128xbf16>, vector<128x128xbf16>, vector<128x128xf32> -> vector<128x128xf32>
    %cst_139 = arith.constant 0.000000e+00 : f32
    %67 = vector.broadcast %cst_139 : f32 to vector<128x128xf32>
    %68 = arith.maximumf %66, %67 : vector<128x128xf32>
    %69 = arith.truncf %68 : vector<128x128xf32> to vector<128x128xbf16>
    %70 = vector.shape_cast %69 : vector<128x128xbf16> to vector<2x8x8x128xbf16>
    %71 = vector.extract_strided_slice %70 {offsets = [0, 0, 0, 0], sizes = [2, 8, 8, 8], strides = [1, 1, 1, 1]} : vector<2x8x8x128xbf16> to vector<2x8x8x8xbf16>
    %c0_140 = arith.constant 0 : index
    %c1_141 = arith.constant 1 : index
    %c1_142 = arith.constant 1 : index
    %c0_143 = arith.constant 0 : index
    %72 = vector.load %arg8[%c0_140, %c1_141, %c1_142, %c0_143] : memref<2x10x16x8xbf16, #tpu.memory_space<vmem>>, vector<2x8x8x8xbf16>
    tpu.vector_store %arg8[%c0_140, %c1_141, %c1_142, %c0_143], %71 {strides = array<i32>} : memref<2x10x16x8xbf16, #tpu.memory_space<vmem>>, vector<2x8x8x8xbf16>,
    %c0_144 = arith.constant 0 : index
    %c0_145 = arith.constant 0 : index
    %c0_146 = arith.constant 0 : index
    %c0_147 = arith.constant 0 : index
    %73 = vector.load %arg8[%c0_144, %c0_145, %c0_146, %c0_147] : memref<2x10x16x8xbf16, #tpu.memory_space<vmem>>, vector<2x8x8x8xbf16>
    %c0_148 = arith.constant 0 : index
    %c0_149 = arith.constant 0 : index
    %c1_150 = arith.constant 1 : index
    %c0_151 = arith.constant 0 : index
    %74 = vector.load %arg8[%c0_148, %c0_149, %c1_150, %c0_151] : memref<2x10x16x8xbf16, #tpu.memory_space<vmem>>, vector<2x8x8x8xbf16>
    %c0_152 = arith.constant 0 : index
    %c0_153 = arith.constant 0 : index
    %c2_154 = arith.constant 2 : index
    %c0_155 = arith.constant 0 : index
    %75 = vector.load %arg8[%c0_152, %c0_153, %c2_154, %c0_155] : memref<2x10x16x8xbf16, #tpu.memory_space<vmem>>, vector<2x8x8x8xbf16>
    %c0_156 = arith.constant 0 : index
    %c1_157 = arith.constant 1 : index
    %c0_158 = arith.constant 0 : index
    %c0_159 = arith.constant 0 : index
    %76 = vector.load %arg8[%c0_156, %c1_157, %c0_158, %c0_159] : memref<2x10x16x8xbf16, #tpu.memory_space<vmem>>, vector<2x8x8x8xbf16>
    %c0_160 = arith.constant 0 : index
    %c1_161 = arith.constant 1 : index
    %c1_162 = arith.constant 1 : index
    %c0_163 = arith.constant 0 : index
    %77 = vector.load %arg8[%c0_160, %c1_161, %c1_162, %c0_163] : memref<2x10x16x8xbf16, #tpu.memory_space<vmem>>, vector<2x8x8x8xbf16>
    %c0_164 = arith.constant 0 : index
    %c1_165 = arith.constant 1 : index
    %c2_166 = arith.constant 2 : index
    %c0_167 = arith.constant 0 : index
    %78 = vector.load %arg8[%c0_164, %c1_165, %c2_166, %c0_167] : memref<2x10x16x8xbf16, #tpu.memory_space<vmem>>, vector<2x8x8x8xbf16>
    %c0_168 = arith.constant 0 : index
    %c2_169 = arith.constant 2 : index
    %c0_170 = arith.constant 0 : index
    %c0_171 = arith.constant 0 : index
    %79 = vector.load %arg8[%c0_168, %c2_169, %c0_170, %c0_171] : memref<2x10x16x8xbf16, #tpu.memory_space<vmem>>, vector<2x8x8x8xbf16>
    %c0_172 = arith.constant 0 : index
    %c2_173 = arith.constant 2 : index
    %c1_174 = arith.constant 1 : index
    %c0_175 = arith.constant 0 : index
    %80 = vector.load %arg8[%c0_172, %c2_173, %c1_174, %c0_175] : memref<2x10x16x8xbf16, #tpu.memory_space<vmem>>, vector<2x8x8x8xbf16>
    %c0_176 = arith.constant 0 : index
    %c2_177 = arith.constant 2 : index
    %c2_178 = arith.constant 2 : index
    %c0_179 = arith.constant 0 : index
    %81 = vector.load %arg8[%c0_176, %c2_177, %c2_178, %c0_179] : memref<2x10x16x8xbf16, #tpu.memory_space<vmem>>, vector<2x8x8x8xbf16>
    %cst_180 = arith.constant 0.000000e+00 : bf16
    %82 = vector.broadcast %cst_180 : bf16 to vector<2x8x8x56xbf16>
    %83 = tpu.concatenate %73, %74, %75, %76, %77, %78, %79, %80, %81, %82 in 3 : vector<2x8x8x8xbf16>, vector<2x8x8x8xbf16>, vector<2x8x8x8xbf16>, vector<2x8x8x8xbf16>, vector<2x8x8x8xbf16>, vector<2x8x8x8xbf16>, vector<2x8x8x8xbf16>, vector<2x8x8x8xbf16>, vector<2x8x8x8xbf16>, vector<2x8x8x56xbf16> -> vector<2x8x8x128xbf16>
    %84 = vector.shape_cast %83 : vector<2x8x8x128xbf16> to vector<128x128xbf16>
    %c0_181 = arith.constant 0 : index
    %c0_182 = arith.constant 0 : index
    %85 = vector.load %arg4[%c0_181, %c0_182] : memref<128x128xbf16, #tpu.memory_space<vmem>>, vector<128x128xbf16>
    %cst_183 = arith.constant dense<0.000000e+00> : vector<128x128xf32>
    %86 = tpu.matmul %84, %85, %cst_183 {dimension_numbers = #tpu.dot_dimension_numbers<[1], [0], [0], [1], [0, 0, 1, 1], [], []>} : vector<128x128xbf16>, vector<128x128xbf16>, vector<128x128xf32> -> vector<128x128xf32>
    %cst_184 = arith.constant 0.000000e+00 : f32
    %87 = vector.broadcast %cst_184 : f32 to vector<128x128xf32>
    %88 = arith.maximumf %86, %87 : vector<128x128xf32>
    %89 = arith.truncf %88 : vector<128x128xf32> to vector<128x128xbf16>
    %90 = vector.shape_cast %89 : vector<128x128xbf16> to vector<2x8x8x128xbf16>
    %91 = vector.extract_strided_slice %90 {offsets = [0, 0, 0, 0], sizes = [2, 8, 8, 8], strides = [1, 1, 1, 1]} : vector<2x8x8x128xbf16> to vector<2x8x8x8xbf16>
    %c0_185 = arith.constant 0 : index
    %c1_186 = arith.constant 1 : index
    %c1_187 = arith.constant 1 : index
    %c0_188 = arith.constant 0 : index
    %92 = vector.load %arg8[%c0_185, %c1_186, %c1_187, %c0_188] : memref<2x10x16x8xbf16, #tpu.memory_space<vmem>>, vector<2x8x8x8xbf16>
    tpu.vector_store %arg8[%c0_185, %c1_186, %c1_187, %c0_188], %91 {strides = array<i32>} : memref<2x10x16x8xbf16, #tpu.memory_space<vmem>>, vector<2x8x8x8xbf16>,
    %c0_189 = arith.constant 0 : index
    %c0_190 = arith.constant 0 : index
    %c0_191 = arith.constant 0 : index
    %c0_192 = arith.constant 0 : index
    %93 = vector.load %arg8[%c0_189, %c0_190, %c0_191, %c0_192] : memref<2x10x16x8xbf16, #tpu.memory_space<vmem>>, vector<2x8x8x8xbf16>
    %c0_193 = arith.constant 0 : index
    %c0_194 = arith.constant 0 : index
    %c1_195 = arith.constant 1 : index
    %c0_196 = arith.constant 0 : index
    %94 = vector.load %arg8[%c0_193, %c0_194, %c1_195, %c0_196] : memref<2x10x16x8xbf16, #tpu.memory_space<vmem>>, vector<2x8x8x8xbf16>
    %c0_197 = arith.constant 0 : index
    %c0_198 = arith.constant 0 : index
    %c2_199 = arith.constant 2 : index
    %c0_200 = arith.constant 0 : index
    %95 = vector.load %arg8[%c0_197, %c0_198, %c2_199, %c0_200] : memref<2x10x16x8xbf16, #tpu.memory_space<vmem>>, vector<2x8x8x8xbf16>
    %c0_201 = arith.constant 0 : index
    %c1_202 = arith.constant 1 : index
    %c0_203 = arith.constant 0 : index
    %c0_204 = arith.constant 0 : index
    %96 = vector.load %arg8[%c0_201, %c1_202, %c0_203, %c0_204] : memref<2x10x16x8xbf16, #tpu.memory_space<vmem>>, vector<2x8x8x8xbf16>
    %c0_205 = arith.constant 0 : index
    %c1_206 = arith.constant 1 : index
    %c1_207 = arith.constant 1 : index
    %c0_208 = arith.constant 0 : index
    %97 = vector.load %arg8[%c0_205, %c1_206, %c1_207, %c0_208] : memref<2x10x16x8xbf16, #tpu.memory_space<vmem>>, vector<2x8x8x8xbf16>
    %c0_209 = arith.constant 0 : index
    %c1_210 = arith.constant 1 : index
    %c2_211 = arith.constant 2 : index
    %c0_212 = arith.constant 0 : index
    %98 = vector.load %arg8[%c0_209, %c1_210, %c2_211, %c0_212] : memref<2x10x16x8xbf16, #tpu.memory_space<vmem>>, vector<2x8x8x8xbf16>
    %c0_213 = arith.constant 0 : index
    %c2_214 = arith.constant 2 : index
    %c0_215 = arith.constant 0 : index
    %c0_216 = arith.constant 0 : index
    %99 = vector.load %arg8[%c0_213, %c2_214, %c0_215, %c0_216] : memref<2x10x16x8xbf16, #tpu.memory_space<vmem>>, vector<2x8x8x8xbf16>
    %c0_217 = arith.constant 0 : index
    %c2_218 = arith.constant 2 : index
    %c1_219 = arith.constant 1 : index
    %c0_220 = arith.constant 0 : index
    %100 = vector.load %arg8[%c0_217, %c2_218, %c1_219, %c0_220] : memref<2x10x16x8xbf16, #tpu.memory_space<vmem>>, vector<2x8x8x8xbf16>
    %c0_221 = arith.constant 0 : index
    %c2_222 = arith.constant 2 : index
    %c2_223 = arith.constant 2 : index
    %c0_224 = arith.constant 0 : index
    %101 = vector.load %arg8[%c0_221, %c2_222, %c2_223, %c0_224] : memref<2x10x16x8xbf16, #tpu.memory_space<vmem>>, vector<2x8x8x8xbf16>
    %cst_225 = arith.constant 0.000000e+00 : bf16
    %102 = vector.broadcast %cst_225 : bf16 to vector<2x8x8x56xbf16>
    %103 = tpu.concatenate %93, %94, %95, %96, %97, %98, %99, %100, %101, %102 in 3 : vector<2x8x8x8xbf16>, vector<2x8x8x8xbf16>, vector<2x8x8x8xbf16>, vector<2x8x8x8xbf16>, vector<2x8x8x8xbf16>, vector<2x8x8x8xbf16>, vector<2x8x8x8xbf16>, vector<2x8x8x8xbf16>, vector<2x8x8x8xbf16>, vector<2x8x8x56xbf16> -> vector<2x8x8x128xbf16>
    %104 = vector.shape_cast %103 : vector<2x8x8x128xbf16> to vector<128x128xbf16>
    %c0_226 = arith.constant 0 : index
    %c0_227 = arith.constant 0 : index
    %105 = vector.load %arg5[%c0_226, %c0_227] : memref<128x128xbf16, #tpu.memory_space<vmem>>, vector<128x128xbf16>
    %cst_228 = arith.constant dense<0.000000e+00> : vector<128x128xf32>
    %106 = tpu.matmul %104, %105, %cst_228 {dimension_numbers = #tpu.dot_dimension_numbers<[1], [0], [0], [1], [0, 0, 1, 1], [], []>} : vector<128x128xbf16>, vector<128x128xbf16>, vector<128x128xf32> -> vector<128x128xf32>
    %107 = arith.addf %106, %68 : vector<128x128xf32>
    %cst_229 = arith.constant 0.000000e+00 : f32
    %108 = vector.broadcast %cst_229 : f32 to vector<128x128xf32>
    %109 = arith.maximumf %107, %108 : vector<128x128xf32>
    %110 = vector.shape_cast %109 : vector<128x128xf32> to vector<2x8x8x128xf32>
    %111 = vector.extract_strided_slice %110 {offsets = [0, 0, 0, 0], sizes = [2, 8, 8, 8], strides = [1, 1, 1, 1]} : vector<2x8x8x128xf32> to vector<2x8x8x8xf32>
    %112 = arith.truncf %111 : vector<2x8x8x8xf32> to vector<2x8x8x8xbf16>
    %c0_230 = arith.constant 0 : index
    %c0_231 = arith.constant 0 : index
    %c0_232 = arith.constant 0 : index
    %c0_233 = arith.constant 0 : index
    %113 = vector.load %arg6[%c0_230, %c0_231, %c0_232, %c0_233] : memref<2x8x8x8xbf16, #tpu.memory_space<vmem>>, vector<2x8x8x8xbf16>
    tpu.vector_store %arg6[%c0_230, %c0_231, %c0_232, %c0_233], %112 {strides = array<i32>} : memref<2x8x8x8xbf16, #tpu.memory_space<vmem>>, vector<2x8x8x8xbf16>,
    return
  }
  func.func @transform_0(%arg0: i32) -> (i32, i32, i32, i32, i32) {
    %c0_i32 = arith.constant 0 : i32
    %c0_i32_0 = arith.constant 0 : i32
    %c0_i32_1 = arith.constant 0 : i32
    %c0_i32_2 = arith.constant 0 : i32
    %c0_i32_3 = arith.constant 0 : i32
    return %arg0, %c0_i32, %c0_i32_0, %c0_i32_1, %c0_i32_2 : i32, i32, i32, i32, i32
  }
  func.func @transform_1(%arg0: i32) -> (i32, i32) {
    %c0_i32 = arith.constant 0 : i32
    %c0_i32_0 = arith.constant 0 : i32
    %c0_i32_1 = arith.constant 0 : i32
    return %c0_i32, %c0_i32_0 : i32, i32
  }
  func.func @transform_2(%arg0: i32) -> (i32, i32) {
    %c0_i32 = arith.constant 0 : i32
    %c0_i32_0 = arith.constant 0 : i32
    %c0_i32_1 = arith.constant 0 : i32
    return %c0_i32, %c0_i32_0 : i32, i32
  }
  func.func @transform_3(%arg0: i32) -> (i32, i32) {
    %c0_i32 = arith.constant 0 : i32
    %c0_i32_0 = arith.constant 0 : i32
    %c0_i32_1 = arith.constant 0 : i32
    return %c0_i32, %c0_i32_0 : i32, i32
  }
  func.func @transform_4(%arg0: i32) -> (i32, i32) {
    %c0_i32 = arith.constant 0 : i32
    %c0_i32_0 = arith.constant 0 : i32
    %c0_i32_1 = arith.constant 0 : i32
    return %c0_i32, %c0_i32_0 : i32, i32
  }
  func.func @transform_5(%arg0: i32) -> (i32, i32, i32, i32) {
    %c0_i32 = arith.constant 0 : i32
    %c0_i32_0 = arith.constant 0 : i32
    %c0_i32_1 = arith.constant 0 : i32
    %c0_i32_2 = arith.constant 0 : i32
    return %arg0, %c0_i32, %c0_i32_0, %c0_i32_1 : i32, i32, i32, i32
  }
}

</mosaic_0001>

<llo_original>
// kernel: _lambda_.1
$region0: #{_lambda_.1}
  #allocation0 [shape = 'u32[]', space=smem, size = 0x4, offset = 0x4, fixed_abs, tag = 'smem constant byte address 0x4 - core index']
  #allocation1 [shape = 'u32[144,128]{1,0:T(1,128)}', space=vmem, size = 0x12000, scoped, tag = 'internal scratch']
  #allocation2 [shape = 'bf16[2,4,9,16,4]{4,3,2,1,0:T(8,128)(2,1)}', space=vmem, size = 0x48000, scoped, tag = 'scratch operand']
  #allocation3 [shape = 'bf16[2,10,16,8]{3,2,1,0:T(8,128)(2,1)}', space=vmem, size = 0x14000, scoped, tag = 'scratch operand']
  %s0 = inlined_call_operand.vmem [shape: bf16[2,8,2,8,8], index: 0, kind: input, shape index: {}]
  %s1 = inlined_call_operand.vmem [shape: bf16[128,128], index: 1, kind: input, shape index: {}]
  %s2 = inlined_call_operand.vmem [shape: bf16[128,128], index: 2, kind: input, shape index: {}]
  %s3 = inlined_call_operand.vmem [shape: bf16[128,128], index: 3, kind: input, shape index: {}]
  %s4 = inlined_call_operand.vmem [shape: bf16[128,128], index: 4, kind: input, shape index: {}]
  %s5 = inlined_call_operand.vmem [shape: bf16[2,8,8,8], index: 5, kind: output, shape index: {}]
  %s6 = sld [smem:[#allocation0]]
  $region30: #{_lambda_.1} parent=0
    _
  %s8 = ssub.s32 1, %s6
  %s9 = scalar_select 0, %s8, %s6
  // Predicated region
  $region2: #{_lambda_.1} parent=0 // pred_check
    _
  $region3: #{_lambda_.1} parent=0 // pred_check_branch
    %11 = sbr.rel (0) target = $region5
  $region4: #{_lambda_.1} parent=0 // pred_region
    _
  $region5: #{_lambda_.1} parent=0 // pred_fallthru
    _
  // Predicated region
  $region6: #{_lambda_.1} parent=0 // pred_check
    _
  $region7: #{_lambda_.1} parent=0 // pred_check_branch
    %13 = sbr.rel (0) target = $region9
  $region8: #{_lambda_.1} parent=0 // pred_region
    _
  $region9: #{_lambda_.1} parent=0 // pred_fallthru
    _
  // Predicated region
  $region10: #{_lambda_.1} parent=0 // pred_check
    _
  $region11: #{_lambda_.1} parent=0 // pred_check_branch
    %15 = sbr.rel (0) target = $region13
  $region12: #{_lambda_.1} parent=0 // pred_region
    _
  $region13: #{_lambda_.1} parent=0 // pred_fallthru
    _
  // Predicated region
  $region14: #{_lambda_.1} parent=0 // pred_check
    _
  $region15: #{_lambda_.1} parent=0 // pred_check_branch
    %17 = sbr.rel (0) target = $region17
  $region16: #{_lambda_.1} parent=0 // pred_region
    _
  $region17: #{_lambda_.1} parent=0 // pred_fallthru
    _
  // Predicated region
  $region18: #{_lambda_.1} parent=0 // pred_check
    _
  $region19: #{_lambda_.1} parent=0 // pred_check_branch
    %19 = sbr.rel (0) target = $region21
  $region20: #{_lambda_.1} parent=0 // pred_region
    _
  $region21: #{_lambda_.1} parent=0 // pred_fallthru
    _
  %vm21 = vcmask 27648
  %22 = vst.msk [vmem:[#allocation2] sm:$0xf] %vm21, 0
  %23 = vst.msk [vmem:[#allocation2 + $0x4] sm:$0xf] %vm21, 0
  %24 = vst.msk [vmem:[#allocation2 + $0x8] sm:$0xf] %vm21, 0
  %25 = vst.msk [vmem:[#allocation2 + $0xc] sm:$0xf] %vm21, 0
  %26 = vst.msk [vmem:[#allocation2 + $0x10] sm:$0xf] %vm21, 0
  %27 = vst.msk [vmem:[#allocation2 + $0x14] sm:$0xf] %vm21, 0
  %28 = vst.msk [vmem:[#allocation2 + $0x18] sm:$0xf] %vm21, 0
  %29 = vst.msk [vmem:[#allocation2 + $0x1c] sm:$0xf] %vm21, 0
  %30 = vst.msk [vmem:[#allocation2 + $0x20] sm:$0xf] %vm21, 0
  %31 = vst.msk [vmem:[#allocation2 + $0x24] sm:$0xf] %vm21, 0
  %32 = vst.msk [vmem:[#allocation2 + $0x28] sm:$0xf] %vm21, 0
  %33 = vst.msk [vmem:[#allocation2 + $0x2c] sm:$0xf] %vm21, 0
  %34 = vst.msk [vmem:[#allocation2 + $0x30] sm:$0xf] %vm21, 0
  %35 = vst.msk [vmem:[#allocation2 + $0x34] sm:$0xf] %vm21, 0
  %36 = vst.msk [vmem:[#allocation2 + $0x38] sm:$0xf] %vm21, 0
  %37 = vst.msk [vmem:[#allocation2 + $0x3c] sm:$0xf] %vm21, 0
  %38 = vst.msk [vmem:[#allocation2 + $0x40] sm:$0xf] %vm21, 0
  %39 = vst.msk [vmem:[#allocation2 + $0x44] sm:$0xf] %vm21, 0
  %40 = vst.msk [vmem:[#allocation2 + $0x48] sm:$0xf] %vm21, 0
  %41 = vst.msk [vmem:[#allocation2 + $0x4c] sm:$0xf] %vm21, 0
  %42 = vst.msk [vmem:[#allocation2 + $0x50] sm:$0xf] %vm21, 0
  %43 = vst.msk [vmem:[#allocation2 + $0x54] sm:$0xf] %vm21, 0
  %44 = vst.msk [vmem:[#allocation2 + $0x58] sm:$0xf] %vm21, 0
  %45 = vst.msk [vmem:[#allocation2 + $0x5c] sm:$0xf] %vm21, 0
  %46 = vst.msk [vmem:[#allocation2 + $0x60] sm:$0xf] %vm21, 0
  %47 = vst.msk [vmem:[#allocation2 + $0x64] sm:$0xf] %vm21, 0
  %48 = vst.msk [vmem:[#allocation2 + $0x68] sm:$0xf] %vm21, 0
  %49 = vst.msk [vmem:[#allocation2 + $0x6c] sm:$0xf] %vm21, 0
  %50 = vst.msk [vmem:[#allocation2 + $0x70] sm:$0xf] %vm21, 0
  %51 = vst.msk [vmem:[#allocation2 + $0x74] sm:$0xf] %vm21, 0
  %52 = vst.msk [vmem:[#allocation2 + $0x78] sm:$0xf] %vm21, 0
  %53 = vst.msk [vmem:[#allocation2 + $0x7c] sm:$0xf] %vm21, 0
  %54 = vst.msk [vmem:[#allocation2 + $0x80] sm:$0xf] %vm21, 0
  %55 = vst.msk [vmem:[#allocation2 + $0x84] sm:$0xf] %vm21, 0
  %56 = vst.msk [vmem:[#allocation2 + $0x88] sm:$0xf] %vm21, 0
  %57 = vst.msk [vmem:[#allocation2 + $0x8c] sm:$0xf] %vm21, 0
  %58 = vst.msk [vmem:[#allocation2 + $0x90] sm:$0xf] %vm21, 0
  %59 = vst.msk [vmem:[#allocation2 + $0x94] sm:$0xf] %vm21, 0
  %60 = vst.msk [vmem:[#allocation2 + $0x98] sm:$0xf] %vm21, 0
  %61 = vst.msk [vmem:[#allocation2 + $0x9c] sm:$0xf] %vm21, 0
  %62 = vst.msk [vmem:[#allocation2 + $0xa0] sm:$0xf] %vm21, 0
  %63 = vst.msk [vmem:[#allocation2 + $0xa4] sm:$0xf] %vm21, 0
  %64 = vst.msk [vmem:[#allocation2 + $0xa8] sm:$0xf] %vm21, 0
  %65 = vst.msk [vmem:[#allocation2 + $0xac] sm:$0xf] %vm21, 0
  %66 = vst.msk [vmem:[#allocation2 + $0xb0] sm:$0xf] %vm21, 0
  %67 = vst.msk [vmem:[#allocation2 + $0xb4] sm:$0xf] %vm21, 0
  %68 = vst.msk [vmem:[#allocation2 + $0xb8] sm:$0xf] %vm21, 0
  %69 = vst.msk [vmem:[#allocation2 + $0xbc] sm:$0xf] %vm21, 0
  %70 = vst.msk [vmem:[#allocation2 + $0xc0] sm:$0xf] %vm21, 0
  %71 = vst.msk [vmem:[#allocation2 + $0xc4] sm:$0xf] %vm21, 0
  %72 = vst.msk [vmem:[#allocation2 + $0xc8] sm:$0xf] %vm21, 0
  %73 = vst.msk [vmem:[#allocation2 + $0xcc] sm:$0xf] %vm21, 0
  %74 = vst.msk [vmem:[#allocation2 + $0xd0] sm:$0xf] %vm21, 0
  %75 = vst.msk [vmem:[#allocation2 + $0xd4] sm:$0xf] %vm21, 0
  %76 = vst.msk [vmem:[#allocation2 + $0xd8] sm:$0xf] %vm21, 0
  %77 = vst.msk [vmem:[#allocation2 + $0xdc] sm:$0xf] %vm21, 0
  %78 = vst.msk [vmem:[#allocation2 + $0xe0] sm:$0xf] %vm21, 0
  %79 = vst.msk [vmem:[#allocation2 + $0xe4] sm:$0xf] %vm21, 0
  %80 = vst.msk [vmem:[#allocation2 + $0xe8] sm:$0xf] %vm21, 0
  %81 = vst.msk [vmem:[#allocation2 + $0xec] sm:$0xf] %vm21, 0
  %82 = vst.msk [vmem:[#allocation2 + $0xf0] sm:$0xf] %vm21, 0
  %83 = vst.msk [vmem:[#allocation2 + $0xf4] sm:$0xf] %vm21, 0
  %84 = vst.msk [vmem:[#allocation2 + $0xf8] sm:$0xf] %vm21, 0
  %85 = vst.msk [vmem:[#allocation2 + $0xfc] sm:$0xf] %vm21, 0
  %86 = vst.msk [vmem:[#allocation2 + $0x100] sm:$0xf] %vm21, 0
  %87 = vst.msk [vmem:[#allocation2 + $0x104] sm:$0xf] %vm21, 0
  %88 = vst.msk [vmem:[#allocation2 + $0x108] sm:$0xf] %vm21, 0
  %89 = vst.msk [vmem:[#allocation2 + $0x10c] sm:$0xf] %vm21, 0
  %90 = vst.msk [vmem:[#allocation2 + $0x110] sm:$0xf] %vm21, 0
  %91 = vst.msk [vmem:[#allocation2 + $0x114] sm:$0xf] %vm21, 0
  %92 = vst.msk [vmem:[#allocation2 + $0x118] sm:$0xf] %vm21, 0
  %93 = vst.msk [vmem:[#allocation2 + $0x11c] sm:$0xf] %vm21, 0
  %94 = vst.msk [vmem:[#allocation2 + $0x120] sm:$0xf] %vm21, 0
  %95 = vst.msk [vmem:[#allocation2 + $0x124] sm:$0xf] %vm21, 0
  %96 = vst.msk [vmem:[#allocation2 + $0x128] sm:$0xf] %vm21, 0
  %97 = vst.msk [vmem:[#allocation2 + $0x12c] sm:$0xf] %vm21, 0
  %98 = vst.msk [vmem:[#allocation2 + $0x130] sm:$0xf] %vm21, 0
  %99 = vst.msk [vmem:[#allocation2 + $0x134] sm:$0xf] %vm21, 0
  %100 = vst.msk [vmem:[#allocation2 + $0x138] sm:$0xf] %vm21, 0
  %101 = vst.msk [vmem:[#allocation2 + $0x13c] sm:$0xf] %vm21, 0
  %102 = vst.msk [vmem:[#allocation2 + $0x140] sm:$0xf] %vm21, 0
  %103 = vst.msk [vmem:[#allocation2 + $0x144] sm:$0xf] %vm21, 0
  %104 = vst.msk [vmem:[#allocation2 + $0x148] sm:$0xf] %vm21, 0
  %105 = vst.msk [vmem:[#allocation2 + $0x14c] sm:$0xf] %vm21, 0
  %106 = vst.msk [vmem:[#allocation2 + $0x150] sm:$0xf] %vm21, 0
  %107 = vst.msk [vmem:[#allocation2 + $0x154] sm:$0xf] %vm21, 0
  %108 = vst.msk [vmem:[#allocation2 + $0x158] sm:$0xf] %vm21, 0
  %109 = vst.msk [vmem:[#allocation2 + $0x15c] sm:$0xf] %vm21, 0
  %110 = vst.msk [vmem:[#allocation2 + $0x160] sm:$0xf] %vm21, 0
  %111 = vst.msk [vmem:[#allocation2 + $0x164] sm:$0xf] %vm21, 0
  %112 = vst.msk [vmem:[#allocation2 + $0x168] sm:$0xf] %vm21, 0
  %113 = vst.msk [vmem:[#allocation2 + $0x16c] sm:$0xf] %vm21, 0
  %114 = vst.msk [vmem:[#allocation2 + $0x170] sm:$0xf] %vm21, 0
  %115 = vst.msk [vmem:[#allocation2 + $0x174] sm:$0xf] %vm21, 0
  %116 = vst.msk [vmem:[#allocation2 + $0x178] sm:$0xf] %vm21, 0
  %117 = vst.msk [vmem:[#allocation2 + $0x17c] sm:$0xf] %vm21, 0
  %118 = vst.msk [vmem:[#allocation2 + $0x180] sm:$0xf] %vm21, 0
  %119 = vst.msk [vmem:[#allocation2 + $0x184] sm:$0xf] %vm21, 0
  %120 = vst.msk [vmem:[#allocation2 + $0x188] sm:$0xf] %vm21, 0
  %121 = vst.msk [vmem:[#allocation2 + $0x18c] sm:$0xf] %vm21, 0
  %122 = vst.msk [vmem:[#allocation2 + $0x190] sm:$0xf] %vm21, 0
  %123 = vst.msk [vmem:[#allocation2 + $0x194] sm:$0xf] %vm21, 0
  %124 = vst.msk [vmem:[#allocation2 + $0x198] sm:$0xf] %vm21, 0
  %125 = vst.msk [vmem:[#allocation2 + $0x19c] sm:$0xf] %vm21, 0
  %126 = vst.msk [vmem:[#allocation2 + $0x1a0] sm:$0xf] %vm21, 0
  %127 = vst.msk [vmem:[#allocation2 + $0x1a4] sm:$0xf] %vm21, 0
  %128 = vst.msk [vmem:[#allocation2 + $0x1a8] sm:$0xf] %vm21, 0
  %129 = vst.msk [vmem:[#allocation2 + $0x1ac] sm:$0xf] %vm21, 0
  %130 = vst.msk [vmem:[#allocation2 + $0x1b0] sm:$0xf] %vm21, 0
  %131 = vst.msk [vmem:[#allocation2 + $0x1b4] sm:$0xf] %vm21, 0
  %132 = vst.msk [vmem:[#allocation2 + $0x1b8] sm:$0xf] %vm21, 0
  %133 = vst.msk [vmem:[#allocation2 + $0x1bc] sm:$0xf] %vm21, 0
  %134 = vst.msk [vmem:[#allocation2 + $0x1c0] sm:$0xf] %vm21, 0
  %135 = vst.msk [vmem:[#allocation2 + $0x1c4] sm:$0xf] %vm21, 0
  %136 = vst.msk [vmem:[#allocation2 + $0x1c8] sm:$0xf] %vm21, 0
  %137 = vst.msk [vmem:[#allocation2 + $0x1cc] sm:$0xf] %vm21, 0
  %138 = vst.msk [vmem:[#allocation2 + $0x1d0] sm:$0xf] %vm21, 0
  %139 = vst.msk [vmem:[#allocation2 + $0x1d4] sm:$0xf] %vm21, 0
  %140 = vst.msk [vmem:[#allocation2 + $0x1d8] sm:$0xf] %vm21, 0
  %141 = vst.msk [vmem:[#allocation2 + $0x1dc] sm:$0xf] %vm21, 0
  %142 = vst.msk [vmem:[#allocation2 + $0x1e0] sm:$0xf] %vm21, 0
  %143 = vst.msk [vmem:[#allocation2 + $0x1e4] sm:$0xf] %vm21, 0
  %144 = vst.msk [vmem:[#allocation2 + $0x1e8] sm:$0xf] %vm21, 0
  %145 = vst.msk [vmem:[#allocation2 + $0x1ec] sm:$0xf] %vm21, 0
  %146 = vst.msk [vmem:[#allocation2 + $0x1f0] sm:$0xf] %vm21, 0
  %147 = vst.msk [vmem:[#allocation2 + $0x1f4] sm:$0xf] %vm21, 0
  %148 = vst.msk [vmem:[#allocation2 + $0x1f8] sm:$0xf] %vm21, 0
  %149 = vst.msk [vmem:[#allocation2 + $0x1fc] sm:$0xf] %vm21, 0
  %150 = vst.msk [vmem:[#allocation2 + $0x200] sm:$0xf] %vm21, 0
  %151 = vst.msk [vmem:[#allocation2 + $0x204] sm:$0xf] %vm21, 0
  %152 = vst.msk [vmem:[#allocation2 + $0x208] sm:$0xf] %vm21, 0
  %153 = vst.msk [vmem:[#allocation2 + $0x20c] sm:$0xf] %vm21, 0
  %154 = vst.msk [vmem:[#allocation2 + $0x210] sm:$0xf] %vm21, 0
  %155 = vst.msk [vmem:[#allocation2 + $0x214] sm:$0xf] %vm21, 0
  %156 = vst.msk [vmem:[#allocation2 + $0x218] sm:$0xf] %vm21, 0
  %157 = vst.msk [vmem:[#allocation2 + $0x21c] sm:$0xf] %vm21, 0
  %158 = vst.msk [vmem:[#allocation2 + $0x220] sm:$0xf] %vm21, 0
  %159 = vst.msk [vmem:[#allocation2 + $0x224] sm:$0xf] %vm21, 0
  %160 = vst.msk [vmem:[#allocation2 + $0x228] sm:$0xf] %vm21, 0
  %161 = vst.msk [vmem:[#allocation2 + $0x22c] sm:$0xf] %vm21, 0
  %162 = vst.msk [vmem:[#allocation2 + $0x230] sm:$0xf] %vm21, 0
  %163 = vst.msk [vmem:[#allocation2 + $0x234] sm:$0xf] %vm21, 0
  %164 = vst.msk [vmem:[#allocation2 + $0x238] sm:$0xf] %vm21, 0
  %165 = vst.msk [vmem:[#allocation2 + $0x23c] sm:$0xf] %vm21, 0
  %vm166 = vcmask 60416
  %167 = vst.msk [vmem:[#allocation3] sm:$0xf] %vm166, 0
  %168 = vst.msk [vmem:[#allocation3 + $0x4] sm:$0xf] %vm166, 0
  %169 = vst.msk [vmem:[#allocation3 + $0x8] sm:$0xf] %vm166, 0
  %170 = vst.msk [vmem:[#allocation3 + $0xc] sm:$0xf] %vm166, 0
  %171 = vst.msk [vmem:[#allocation3 + $0x10] sm:$0xf] %vm166, 0
  %172 = vst.msk [vmem:[#allocation3 + $0x14] sm:$0xf] %vm166, 0
  %173 = vst.msk [vmem:[#allocation3 + $0x18] sm:$0xf] %vm166, 0
  %174 = vst.msk [vmem:[#allocation3 + $0x1c] sm:$0xf] %vm166, 0
  %175 = vst.msk [vmem:[#allocation3 + $0x20] sm:$0xf] %vm166, 0
  %176 = vst.msk [vmem:[#allocation3 + $0x24] sm:$0xf] %vm166, 0
  %177 = vst.msk [vmem:[#allocation3 + $0x28] sm:$0xf] %vm166, 0
  %178 = vst.msk [vmem:[#allocation3 + $0x2c] sm:$0xf] %vm166, 0
  %179 = vst.msk [vmem:[#allocation3 + $0x30] sm:$0xf] %vm166, 0
  %180 = vst.msk [vmem:[#allocation3 + $0x34] sm:$0xf] %vm166, 0
  %181 = vst.msk [vmem:[#allocation3 + $0x38] sm:$0xf] %vm166, 0
  %182 = vst.msk [vmem:[#allocation3 + $0x3c] sm:$0xf] %vm166, 0
  %183 = vst.msk [vmem:[#allocation3 + $0x40] sm:$0xf] %vm166, 0
  %184 = vst.msk [vmem:[#allocation3 + $0x44] sm:$0xf] %vm166, 0
  %185 = vst.msk [vmem:[#allocation3 + $0x48] sm:$0xf] %vm166, 0
  %186 = vst.msk [vmem:[#allocation3 + $0x4c] sm:$0xf] %vm166, 0
  %187 = vst.msk [vmem:[#allocation3 + $0x50] sm:$0xf] %vm166, 0
  %188 = vst.msk [vmem:[#allocation3 + $0x54] sm:$0xf] %vm166, 0
  %189 = vst.msk [vmem:[#allocation3 + $0x58] sm:$0xf] %vm166, 0
  %190 = vst.msk [vmem:[#allocation3 + $0x5c] sm:$0xf] %vm166, 0
  %191 = vst.msk [vmem:[#allocation3 + $0x60] sm:$0xf] %vm166, 0
  %192 = vst.msk [vmem:[#allocation3 + $0x64] sm:$0xf] %vm166, 0
  %193 = vst.msk [vmem:[#allocation3 + $0x68] sm:$0xf] %vm166, 0
  %194 = vst.msk [vmem:[#allocation3 + $0x6c] sm:$0xf] %vm166, 0
  %195 = vst.msk [vmem:[#allocation3 + $0x70] sm:$0xf] %vm166, 0
  %196 = vst.msk [vmem:[#allocation3 + $0x74] sm:$0xf] %vm166, 0
  %197 = vst.msk [vmem:[#allocation3 + $0x78] sm:$0xf] %vm166, 0
  %198 = vst.msk [vmem:[#allocation3 + $0x7c] sm:$0xf] %vm166, 0
  %199 = vst.msk [vmem:[#allocation3 + $0x80] sm:$0xf] %vm166, 0
  %200 = vst.msk [vmem:[#allocation3 + $0x84] sm:$0xf] %vm166, 0
  %201 = vst.msk [vmem:[#allocation3 + $0x88] sm:$0xf] %vm166, 0
  %202 = vst.msk [vmem:[#allocation3 + $0x8c] sm:$0xf] %vm166, 0
  %203 = vst.msk [vmem:[#allocation3 + $0x90] sm:$0xf] %vm166, 0
  %204 = vst.msk [vmem:[#allocation3 + $0x94] sm:$0xf] %vm166, 0
  %205 = vst.msk [vmem:[#allocation3 + $0x98] sm:$0xf] %vm166, 0
  %206 = vst.msk [vmem:[#allocation3 + $0x9c] sm:$0xf] %vm166, 0
  %s207 = scalar_lea.vmem %s0, 4
  %v208 = vld [vmem:[%s207] sm:$0xf]
  %v209 = vld [vmem:[%s207 + $0x8] sm:$0xf]
  %v210 = vld [vmem:[%s207 + $0x10] sm:$0xf]
  %v211 = vld [vmem:[%s207 + $0x18] sm:$0xf]
  %v212 = vld [vmem:[%s207 + $0x20] sm:$0xf]
  %v213 = vld [vmem:[%s207 + $0x28] sm:$0xf]
  %v214 = vld [vmem:[%s207 + $0x30] sm:$0xf]
  %v215 = vld [vmem:[%s207 + $0x38] sm:$0xf]
  %v216 = vld [vmem:[%s207 + $0x40] sm:$0xf]
  %v217 = vld [vmem:[%s207 + $0x48] sm:$0xf]
  %v218 = vld [vmem:[%s207 + $0x50] sm:$0xf]
  %v219 = vld [vmem:[%s207 + $0x58] sm:$0xf]
  %v220 = vld [vmem:[%s207 + $0x60] sm:$0xf]
  %v221 = vld [vmem:[%s207 + $0x68] sm:$0xf]
  %v222 = vld [vmem:[%s207 + $0x70] sm:$0xf]
  %v223 = vld [vmem:[%s207 + $0x78] sm:$0xf]
  %v225 = vshrl.u32 %v208, 16
  %v227 = vrot.slane %v225, 7
  %v228 = vshll.u32 %v208, 16
  %v230 = vor.u32 %v227, %v228
  %v231 = vrot.slane %v227, 4
  %v233 = vshrl.u32 %v209, 16
  %v235 = vrot.slane %v233, 7
  %v236 = vshll.u32 %v209, 16
  %v238 = vor.u32 %v235, %v236
  %v239 = vrot.slane %v235, 4
  %v241 = vshrl.u32 %v210, 16
  %v243 = vrot.slane %v241, 7
  %v244 = vshll.u32 %v210, 16
  %v246 = vor.u32 %v243, %v244
  %v247 = vrot.slane %v243, 4
  %v249 = vshrl.u32 %v211, 16
  %v251 = vrot.slane %v249, 7
  %v252 = vshll.u32 %v211, 16
  %v254 = vor.u32 %v251, %v252
  %v255 = vrot.slane %v251, 4
  %v257 = vshrl.u32 %v212, 16
  %v259 = vrot.slane %v257, 7
  %v260 = vshll.u32 %v212, 16
  %v262 = vor.u32 %v259, %v260
  %v263 = vrot.slane %v259, 4
  %v265 = vshrl.u32 %v213, 16
  %v267 = vrot.slane %v265, 7
  %v268 = vshll.u32 %v213, 16
  %v270 = vor.u32 %v267, %v268
  %v271 = vrot.slane %v267, 4
  %v273 = vshrl.u32 %v214, 16
  %v275 = vrot.slane %v273, 7
  %v276 = vshll.u32 %v214, 16
  %v278 = vor.u32 %v275, %v276
  %v279 = vrot.slane %v275, 4
  %v281 = vshrl.u32 %v215, 16
  %v283 = vrot.slane %v281, 7
  %v284 = vshll.u32 %v215, 16
  %v286 = vor.u32 %v283, %v284
  %v287 = vrot.slane %v283, 4
  %v289 = vshrl.u32 %v216, 16
  %v291 = vrot.slane %v289, 7
  %v292 = vshll.u32 %v216, 16
  %v294 = vor.u32 %v291, %v292
  %v295 = vrot.slane %v291, 4
  %v297 = vshrl.u32 %v217, 16
  %v299 = vrot.slane %v297, 7
  %v300 = vshll.u32 %v217, 16
  %v302 = vor.u32 %v299, %v300
  %v303 = vrot.slane %v299, 4
  %v305 = vshrl.u32 %v218, 16
  %v307 = vrot.slane %v305, 7
  %v308 = vshll.u32 %v218, 16
  %v310 = vor.u32 %v307, %v308
  %v311 = vrot.slane %v307, 4
  %v313 = vshrl.u32 %v219, 16
  %v315 = vrot.slane %v313, 7
  %v316 = vshll.u32 %v219, 16
  %v318 = vor.u32 %v315, %v316
  %v319 = vrot.slane %v315, 4
  %v321 = vshrl.u32 %v220, 16
  %v323 = vrot.slane %v321, 7
  %v324 = vshll.u32 %v220, 16
  %v326 = vor.u32 %v323, %v324
  %v327 = vrot.slane %v323, 4
  %v329 = vshrl.u32 %v221, 16
  %v331 = vrot.slane %v329, 7
  %v332 = vshll.u32 %v221, 16
  %v334 = vor.u32 %v331, %v332
  %v335 = vrot.slane %v331, 4
  %v337 = vshrl.u32 %v222, 16
  %v339 = vrot.slane %v337, 7
  %v340 = vshll.u32 %v222, 16
  %v342 = vor.u32 %v339, %v340
  %v343 = vrot.slane %v339, 4
  %v345 = vshrl.u32 %v223, 16
  %v347 = vrot.slane %v345, 7
  %v348 = vshll.u32 %v223, 16
  %v350 = vor.u32 %v347, %v348
  %v351 = vrot.slane %v347, 4
  %352 = vrot.lane.b32.xlu0 %v230, 124
  %v353 = vpop.permute.xlu0 %352
  %354 = vrot.lane.b32.xlu0 %v231, 124
  %v355 = vpop.permute.xlu0 %354
  %356 = vrot.lane.b32.xlu0 %v238, 124
  %v357 = vpop.permute.xlu0 %356
  %358 = vrot.lane.b32.xlu0 %v239, 124
  %v359 = vpop.permute.xlu0 %358
  %360 = vrot.lane.b32.xlu0 %v246, 124
  %v361 = vpop.permute.xlu0 %360
  %362 = vrot.lane.b32.xlu0 %v247, 124
  %v363 = vpop.permute.xlu0 %362
  %364 = vrot.lane.b32.xlu0 %v254, 124
  %v365 = vpop.permute.xlu0 %364
  %366 = vrot.lane.b32.xlu0 %v255, 124
  %v367 = vpop.permute.xlu0 %366
  %368 = vrot.lane.b32.xlu0 %v262, 124
  %v369 = vpop.permute.xlu0 %368
  %370 = vrot.lane.b32.xlu0 %v263, 124
  %v371 = vpop.permute.xlu0 %370
  %372 = vrot.lane.b32.xlu0 %v270, 124
  %v373 = vpop.permute.xlu0 %372
  %374 = vrot.lane.b32.xlu0 %v271, 124
  %v375 = vpop.permute.xlu0 %374
  %376 = vrot.lane.b32.xlu0 %v278, 124
  %v377 = vpop.permute.xlu0 %376
  %378 = vrot.lane.b32.xlu0 %v279, 124
  %v379 = vpop.permute.xlu0 %378
  %380 = vrot.lane.b32.xlu0 %v286, 124
  %v381 = vpop.permute.xlu0 %380
  %382 = vrot.lane.b32.xlu0 %v287, 124
  %v383 = vpop.permute.xlu0 %382
  %384 = vrot.lane.b32.xlu0 %v294, 124
  %v385 = vpop.permute.xlu0 %384
  %386 = vrot.lane.b32.xlu0 %v295, 124
  %v387 = vpop.permute.xlu0 %386
  %388 = vrot.lane.b32.xlu0 %v302, 124
  %v389 = vpop.permute.xlu0 %388
  %390 = vrot.lane.b32.xlu0 %v303, 124
  %v391 = vpop.permute.xlu0 %390
  %392 = vrot.lane.b32.xlu0 %v310, 124
  %v393 = vpop.permute.xlu0 %392
  %394 = vrot.lane.b32.xlu0 %v311, 124
  %v395 = vpop.permute.xlu0 %394
  %396 = vrot.lane.b32.xlu0 %v318, 124
  %v397 = vpop.permute.xlu0 %396
  %398 = vrot.lane.b32.xlu0 %v319, 124
  %v399 = vpop.permute.xlu0 %398
  %400 = vrot.lane.b32.xlu0 %v326, 124
  %v401 = vpop.permute.xlu0 %400
  %402 = vrot.lane.b32.xlu0 %v327, 124
  %v403 = vpop.permute.xlu0 %402
  %404 = vrot.lane.b32.xlu0 %v334, 124
  %v405 = vpop.permute.xlu0 %404
  %406 = vrot.lane.b32.xlu0 %v335, 124
  %v407 = vpop.permute.xlu0 %406
  %408 = vrot.lane.b32.xlu0 %v342, 124
  %v409 = vpop.permute.xlu0 %408
  %410 = vrot.lane.b32.xlu0 %v343, 124
  %v411 = vpop.permute.xlu0 %410
  %412 = vrot.lane.b32.xlu0 %v350, 124
  %v413 = vpop.permute.xlu0 %412
  %414 = vrot.lane.b32.xlu0 %v351, 124
  %v415 = vpop.permute.xlu0 %414
  %s448 = scalar_lea.vmem [#allocation2], 8
  %vm449 = vcmask 27648
  %vm450 = vsmask.f32 7938
  %vm451 = vmand %vm449, %vm450
  %v452 = vld [vmem:[%s448] sm:$0xf]
  %v453 = vsel %vm451, %v353, %v452
  %454 = vst [vmem:[%s448] sm:$0xf] %v453
  %vm455 = vcmask 24576
  %vm456 = vsmask.f32 256
  %vm457 = vmand %vm455, %vm456
  %v458 = vld [vmem:[%s448 + $0x4] sm:$0x1]
  %v459 = vsel %vm457, %v355, %v458
  %460 = vst [vmem:[%s448 + $0x4] sm:$0x1] %v459
  %v461 = vld [vmem:[%s448 + $0x8] sm:$0xf]
  %v462 = vsel %vm451, %v357, %v461
  %463 = vst [vmem:[%s448 + $0x8] sm:$0xf] %v462
  %v464 = vld [vmem:[%s448 + $0xc] sm:$0x1]
  %v465 = vsel %vm457, %v359, %v464
  %466 = vst [vmem:[%s448 + $0xc] sm:$0x1] %v465
  %v467 = vld [vmem:[%s448 + $0x10] sm:$0xf]
  %v468 = vsel %vm451, %v361, %v467
  %469 = vst [vmem:[%s448 + $0x10] sm:$0xf] %v468
  %v470 = vld [vmem:[%s448 + $0x14] sm:$0x1]
  %v471 = vsel %vm457, %v363, %v470
  %472 = vst [vmem:[%s448 + $0x14] sm:$0x1] %v471
  %v473 = vld [vmem:[%s448 + $0x18] sm:$0xf]
  %v474 = vsel %vm451, %v365, %v473
  %475 = vst [vmem:[%s448 + $0x18] sm:$0xf] %v474
  %v476 = vld [vmem:[%s448 + $0x1c] sm:$0x1]
  %v477 = vsel %vm457, %v367, %v476
  %478 = vst [vmem:[%s448 + $0x1c] sm:$0x1] %v477
  %v479 = vld [vmem:[%s448 + $0x20] sm:$0xf]
  %v480 = vsel %vm451, %v369, %v479
  %481 = vst [vmem:[%s448 + $0x20] sm:$0xf] %v480
  %v482 = vld [vmem:[%s448 + $0x24] sm:$0x1]
  %v483 = vsel %vm457, %v371, %v482
  %484 = vst [vmem:[%s448 + $0x24] sm:$0x1] %v483
  %v485 = vld [vmem:[%s448 + $0x28] sm:$0xf]
  %v486 = vsel %vm451, %v373, %v485
  %487 = vst [vmem:[%s448 + $0x28] sm:$0xf] %v486
  %v488 = vld [vmem:[%s448 + $0x2c] sm:$0x1]
  %v489 = vsel %vm457, %v375, %v488
  %490 = vst [vmem:[%s448 + $0x2c] sm:$0x1] %v489
  %v491 = vld [vmem:[%s448 + $0x30] sm:$0xf]
  %v492 = vsel %vm451, %v377, %v491
  %493 = vst [vmem:[%s448 + $0x30] sm:$0xf] %v492
  %v494 = vld [vmem:[%s448 + $0x34] sm:$0x1]
  %v495 = vsel %vm457, %v379, %v494
  %496 = vst [vmem:[%s448 + $0x34] sm:$0x1] %v495
  %v497 = vld [vmem:[%s448 + $0x38] sm:$0xf]
  %v498 = vsel %vm451, %v381, %v497
  %499 = vst [vmem:[%s448 + $0x38] sm:$0xf] %v498
  %v500 = vld [vmem:[%s448 + $0x3c] sm:$0x1]
  %v501 = vsel %vm457, %v383, %v500
  %502 = vst [vmem:[%s448 + $0x3c] sm:$0x1] %v501
  %v503 = vld [vmem:[%s448 + $0x120] sm:$0xf]
  %v504 = vsel %vm451, %v385, %v503
  %505 = vst [vmem:[%s448 + $0x120] sm:$0xf] %v504
  %v506 = vld [vmem:[%s448 + $0x124] sm:$0x1]
  %v507 = vsel %vm457, %v387, %v506
  %508 = vst [vmem:[%s448 + $0x124] sm:$0x1] %v507
  %v509 = vld [vmem:[%s448 + $0x128] sm:$0xf]
  %v510 = vsel %vm451, %v389, %v509
  %511 = vst [vmem:[%s448 + $0x128] sm:$0xf] %v510
  %v512 = vld [vmem:[%s448 + $0x12c] sm:$0x1]
  %v513 = vsel %vm457, %v391, %v512
  %514 = vst [vmem:[%s448 + $0x12c] sm:$0x1] %v513
  %v515 = vld [vmem:[%s448 + $0x130] sm:$0xf]
  %v516 = vsel %vm451, %v393, %v515
  %517 = vst [vmem:[%s448 + $0x130] sm:$0xf] %v516
  %v518 = vld [vmem:[%s448 + $0x134] sm:$0x1]
  %v519 = vsel %vm457, %v395, %v518
  %520 = vst [vmem:[%s448 + $0x134] sm:$0x1] %v519
  %v521 = vld [vmem:[%s448 + $0x138] sm:$0xf]
  %v522 = vsel %vm451, %v397, %v521
  %523 = vst [vmem:[%s448 + $0x138] sm:$0xf] %v522
  %v524 = vld [vmem:[%s448 + $0x13c] sm:$0x1]
  %v525 = vsel %vm457, %v399, %v524
  %526 = vst [vmem:[%s448 + $0x13c] sm:$0x1] %v525
  %v527 = vld [vmem:[%s448 + $0x140] sm:$0xf]
  %v528 = vsel %vm451, %v401, %v527
  %529 = vst [vmem:[%s448 + $0x140] sm:$0xf] %v528
  %v530 = vld [vmem:[%s448 + $0x144] sm:$0x1]
  %v531 = vsel %vm457, %v403, %v530
  %532 = vst [vmem:[%s448 + $0x144] sm:$0x1] %v531
  %v533 = vld [vmem:[%s448 + $0x148] sm:$0xf]
  %v534 = vsel %vm451, %v405, %v533
  %535 = vst [vmem:[%s448 + $0x148] sm:$0xf] %v534
  %v536 = vld [vmem:[%s448 + $0x14c] sm:$0x1]
  %v537 = vsel %vm457, %v407, %v536
  %538 = vst [vmem:[%s448 + $0x14c] sm:$0x1] %v537
  %v539 = vld [vmem:[%s448 + $0x150] sm:$0xf]
  %v540 = vsel %vm451, %v409, %v539
  %541 = vst [vmem:[%s448 + $0x150] sm:$0xf] %v540
  %v542 = vld [vmem:[%s448 + $0x154] sm:$0x1]
  %v543 = vsel %vm457, %v411, %v542
  %544 = vst [vmem:[%s448 + $0x154] sm:$0x1] %v543
  %v545 = vld [vmem:[%s448 + $0x158] sm:$0xf]
  %v546 = vsel %vm451, %v413, %v545
  %547 = vst [vmem:[%s448 + $0x158] sm:$0xf] %v546
  %v548 = vld [vmem:[%s448 + $0x15c] sm:$0x1]
  %v549 = vsel %vm457, %v415, %v548
  %550 = vst [vmem:[%s448 + $0x15c] sm:$0x1] %v549
  %v551 = vld [vmem:[%s207] sm:$0xf]
  %v552 = vld [vmem:[%s207 + $0x8] sm:$0xf]
  %v553 = vld [vmem:[%s207 + $0x10] sm:$0xf]
  %v554 = vld [vmem:[%s207 + $0x18] sm:$0xf]
  %v555 = vld [vmem:[%s207 + $0x20] sm:$0xf]
  %v556 = vld [vmem:[%s207 + $0x28] sm:$0xf]
  %v557 = vld [vmem:[%s207 + $0x30] sm:$0xf]
  %v558 = vld [vmem:[%s207 + $0x38] sm:$0xf]
  %v559 = vld [vmem:[%s207 + $0x40] sm:$0xf]
  %v560 = vld [vmem:[%s207 + $0x48] sm:$0xf]
  %v561 = vld [vmem:[%s207 + $0x50] sm:$0xf]
  %v562 = vld [vmem:[%s207 + $0x58] sm:$0xf]
  %v563 = vld [vmem:[%s207 + $0x60] sm:$0xf]
  %v564 = vld [vmem:[%s207 + $0x68] sm:$0xf]
  %v565 = vld [vmem:[%s207 + $0x70] sm:$0xf]
  %v566 = vld [vmem:[%s207 + $0x78] sm:$0xf]
  %s567 = scalar_lea.vmem [#allocation2], 80
  %568 = vst.msk [vmem:[%s567] sm:$0xf] %vm21, %v551
  %569 = vst.msk [vmem:[%s567 + $0x8] sm:$0xf] %vm21, %v552
  %570 = vst.msk [vmem:[%s567 + $0x10] sm:$0xf] %vm21, %v553
  %571 = vst.msk [vmem:[%s567 + $0x18] sm:$0xf] %vm21, %v554
  %572 = vst.msk [vmem:[%s567 + $0x20] sm:$0xf] %vm21, %v555
  %573 = vst.msk [vmem:[%s567 + $0x28] sm:$0xf] %vm21, %v556
  %574 = vst.msk [vmem:[%s567 + $0x30] sm:$0xf] %vm21, %v557
  %575 = vst.msk [vmem:[%s567 + $0x38] sm:$0xf] %vm21, %v558
  %576 = vst.msk [vmem:[%s567 + $0x120] sm:$0xf] %vm21, %v559
  %577 = vst.msk [vmem:[%s567 + $0x128] sm:$0xf] %vm21, %v560
  %578 = vst.msk [vmem:[%s567 + $0x130] sm:$0xf] %vm21, %v561
  %579 = vst.msk [vmem:[%s567 + $0x138] sm:$0xf] %vm21, %v562
  %580 = vst.msk [vmem:[%s567 + $0x140] sm:$0xf] %vm21, %v563
  %581 = vst.msk [vmem:[%s567 + $0x148] sm:$0xf] %vm21, %v564
  %582 = vst.msk [vmem:[%s567 + $0x150] sm:$0xf] %vm21, %v565
  %583 = vst.msk [vmem:[%s567 + $0x158] sm:$0xf] %vm21, %v566
  %v584 = vld [vmem:[%s0] sm:$0xf]
  %v585 = vld [vmem:[%s0 + $0x8] sm:$0xf]
  %v586 = vld [vmem:[%s0 + $0x10] sm:$0xf]
  %v587 = vld [vmem:[%s0 + $0x18] sm:$0xf]
  %v588 = vld [vmem:[%s0 + $0x20] sm:$0xf]
  %v589 = vld [vmem:[%s0 + $0x28] sm:$0xf]
  %v590 = vld [vmem:[%s0 + $0x30] sm:$0xf]
  %v591 = vld [vmem:[%s0 + $0x38] sm:$0xf]
  %v592 = vld [vmem:[%s0 + $0x40] sm:$0xf]
  %v593 = vld [vmem:[%s0 + $0x48] sm:$0xf]
  %v594 = vld [vmem:[%s0 + $0x50] sm:$0xf]
  %v595 = vld [vmem:[%s0 + $0x58] sm:$0xf]
  %v596 = vld [vmem:[%s0 + $0x60] sm:$0xf]
  %v597 = vld [vmem:[%s0 + $0x68] sm:$0xf]
  %v598 = vld [vmem:[%s0 + $0x70] sm:$0xf]
  %v599 = vld [vmem:[%s0 + $0x78] sm:$0xf]
  %v601 = vshrl.u32 %v584, 16
  %v603 = vrot.slane %v601, 7
  %v604 = vshll.u32 %v584, 16
  %v606 = vor.u32 %v603, %v604
  %v607 = vrot.slane %v603, 4
  %v609 = vshrl.u32 %v585, 16
  %v611 = vrot.slane %v609, 7
  %v612 = vshll.u32 %v585, 16
  %v614 = vor.u32 %v611, %v612
  %v615 = vrot.slane %v611, 4
  %v617 = vshrl.u32 %v586, 16
  %v619 = vrot.slane %v617, 7
  %v620 = vshll.u32 %v586, 16
  %v622 = vor.u32 %v619, %v620
  %v623 = vrot.slane %v619, 4
  %v625 = vshrl.u32 %v587, 16
  %v627 = vrot.slane %v625, 7
  %v628 = vshll.u32 %v587, 16
  %v630 = vor.u32 %v627, %v628
  %v631 = vrot.slane %v627, 4
  %v633 = vshrl.u32 %v588, 16
  %v635 = vrot.slane %v633, 7
  %v636 = vshll.u32 %v588, 16
  %v638 = vor.u32 %v635, %v636
  %v639 = vrot.slane %v635, 4
  %v641 = vshrl.u32 %v589, 16
  %v643 = vrot.slane %v641, 7
  %v644 = vshll.u32 %v589, 16
  %v646 = vor.u32 %v643, %v644
  %v647 = vrot.slane %v643, 4
  %v649 = vshrl.u32 %v590, 16
  %v651 = vrot.slane %v649, 7
  %v652 = vshll.u32 %v590, 16
  %v654 = vor.u32 %v651, %v652
  %v655 = vrot.slane %v651, 4
  %v657 = vshrl.u32 %v591, 16
  %v659 = vrot.slane %v657, 7
  %v660 = vshll.u32 %v591, 16
  %v662 = vor.u32 %v659, %v660
  %v663 = vrot.slane %v659, 4
  %v665 = vshrl.u32 %v592, 16
  %v667 = vrot.slane %v665, 7
  %v668 = vshll.u32 %v592, 16
  %v670 = vor.u32 %v667, %v668
  %v671 = vrot.slane %v667, 4
  %v673 = vshrl.u32 %v593, 16
  %v675 = vrot.slane %v673, 7
  %v676 = vshll.u32 %v593, 16
  %v678 = vor.u32 %v675, %v676
  %v679 = vrot.slane %v675, 4
  %v681 = vshrl.u32 %v594, 16
  %v683 = vrot.slane %v681, 7
  %v684 = vshll.u32 %v594, 16
  %v686 = vor.u32 %v683, %v684
  %v687 = vrot.slane %v683, 4
  %v689 = vshrl.u32 %v595, 16
  %v691 = vrot.slane %v689, 7
  %v692 = vshll.u32 %v595, 16
  %v694 = vor.u32 %v691, %v692
  %v695 = vrot.slane %v691, 4
  %v697 = vshrl.u32 %v596, 16
  %v699 = vrot.slane %v697, 7
  %v700 = vshll.u32 %v596, 16
  %v702 = vor.u32 %v699, %v700
  %v703 = vrot.slane %v699, 4
  %v705 = vshrl.u32 %v597, 16
  %v707 = vrot.slane %v705, 7
  %v708 = vshll.u32 %v597, 16
  %v710 = vor.u32 %v707, %v708
  %v711 = vrot.slane %v707, 4
  %v713 = vshrl.u32 %v598, 16
  %v715 = vrot.slane %v713, 7
  %v716 = vshll.u32 %v598, 16
  %v718 = vor.u32 %v715, %v716
  %v719 = vrot.slane %v715, 4
  %v721 = vshrl.u32 %v599, 16
  %v723 = vrot.slane %v721, 7
  %v724 = vshll.u32 %v599, 16
  %v726 = vor.u32 %v723, %v724
  %v727 = vrot.slane %v723, 4
  %728 = vrot.lane.b32.xlu0 %v606, 124
  %v729 = vpop.permute.xlu0 %728
  %730 = vrot.lane.b32.xlu0 %v607, 124
  %v731 = vpop.permute.xlu0 %730
  %732 = vrot.lane.b32.xlu0 %v614, 124
  %v733 = vpop.permute.xlu0 %732
  %734 = vrot.lane.b32.xlu0 %v615, 124
  %v735 = vpop.permute.xlu0 %734
  %736 = vrot.lane.b32.xlu0 %v622, 124
  %v737 = vpop.permute.xlu0 %736
  %738 = vrot.lane.b32.xlu0 %v623, 124
  %v739 = vpop.permute.xlu0 %738
  %740 = vrot.lane.b32.xlu0 %v630, 124
  %v741 = vpop.permute.xlu0 %740
  %742 = vrot.lane.b32.xlu0 %v631, 124
  %v743 = vpop.permute.xlu0 %742
  %744 = vrot.lane.b32.xlu0 %v638, 124
  %v745 = vpop.permute.xlu0 %744
  %746 = vrot.lane.b32.xlu0 %v639, 124
  %v747 = vpop.permute.xlu0 %746
  %748 = vrot.lane.b32.xlu0 %v646, 124
  %v749 = vpop.permute.xlu0 %748
  %750 = vrot.lane.b32.xlu0 %v647, 124
  %v751 = vpop.permute.xlu0 %750
  %752 = vrot.lane.b32.xlu0 %v654, 124
  %v753 = vpop.permute.xlu0 %752
  %754 = vrot.lane.b32.xlu0 %v655, 124
  %v755 = vpop.permute.xlu0 %754
  %756 = vrot.lane.b32.xlu0 %v662, 124
  %v757 = vpop.permute.xlu0 %756
  %758 = vrot.lane.b32.xlu0 %v663, 124
  %v759 = vpop.permute.xlu0 %758
  %760 = vrot.lane.b32.xlu0 %v670, 124
  %v761 = vpop.permute.xlu0 %760
  %762 = vrot.lane.b32.xlu0 %v671, 124
  %v763 = vpop.permute.xlu0 %762
  %764 = vrot.lane.b32.xlu0 %v678, 124
  %v765 = vpop.permute.xlu0 %764
  %766 = vrot.lane.b32.xlu0 %v679, 124
  %v767 = vpop.permute.xlu0 %766
  %768 = vrot.lane.b32.xlu0 %v686, 124
  %v769 = vpop.permute.xlu0 %768
  %770 = vrot.lane.b32.xlu0 %v687, 124
  %v771 = vpop.permute.xlu0 %770
  %772 = vrot.lane.b32.xlu0 %v694, 124
  %v773 = vpop.permute.xlu0 %772
  %774 = vrot.lane.b32.xlu0 %v695, 124
  %v775 = vpop.permute.xlu0 %774
  %776 = vrot.lane.b32.xlu0 %v702, 124
  %v777 = vpop.permute.xlu0 %776
  %778 = vrot.lane.b32.xlu0 %v703, 124
  %v779 = vpop.permute.xlu0 %778
  %780 = vrot.lane.b32.xlu0 %v710, 124
  %v781 = vpop.permute.xlu0 %780
  %782 = vrot.lane.b32.xlu0 %v711, 124
  %v783 = vpop.permute.xlu0 %782
  %784 = vrot.lane.b32.xlu0 %v718, 124
  %v785 = vpop.permute.xlu0 %784
  %786 = vrot.lane.b32.xlu0 %v719, 124
  %v787 = vpop.permute.xlu0 %786
  %788 = vrot.lane.b32.xlu0 %v726, 124
  %v789 = vpop.permute.xlu0 %788
  %790 = vrot.lane.b32.xlu0 %v727, 124
  %v791 = vpop.permute.xlu0 %790
  %s824 = scalar_lea.vmem [#allocation2], 144
  %v825 = vld [vmem:[%s824] sm:$0xf]
  %v826 = vsel %vm451, %v729, %v825
  %827 = vst [vmem:[%s824] sm:$0xf] %v826
  %v828 = vld [vmem:[%s824 + $0x4] sm:$0x1]
  %v829 = vsel %vm457, %v731, %v828
  %830 = vst [vmem:[%s824 + $0x4] sm:$0x1] %v829
  %v831 = vld [vmem:[%s824 + $0x8] sm:$0xf]
  %v832 = vsel %vm451, %v733, %v831
  %833 = vst [vmem:[%s824 + $0x8] sm:$0xf] %v832
  %v834 = vld [vmem:[%s824 + $0xc] sm:$0x1]
  %v835 = vsel %vm457, %v735, %v834
  %836 = vst [vmem:[%s824 + $0xc] sm:$0x1] %v835
  %v837 = vld [vmem:[%s824 + $0x10] sm:$0xf]
  %v838 = vsel %vm451, %v737, %v837
  %839 = vst [vmem:[%s824 + $0x10] sm:$0xf] %v838
  %v840 = vld [vmem:[%s824 + $0x14] sm:$0x1]
  %v841 = vsel %vm457, %v739, %v840
  %842 = vst [vmem:[%s824 + $0x14] sm:$0x1] %v841
  %v843 = vld [vmem:[%s824 + $0x18] sm:$0xf]
  %v844 = vsel %vm451, %v741, %v843
  %845 = vst [vmem:[%s824 + $0x18] sm:$0xf] %v844
  %v846 = vld [vmem:[%s824 + $0x1c] sm:$0x1]
  %v847 = vsel %vm457, %v743, %v846
  %848 = vst [vmem:[%s824 + $0x1c] sm:$0x1] %v847
  %v849 = vld [vmem:[%s824 + $0x20] sm:$0xf]
  %v850 = vsel %vm451, %v745, %v849
  %851 = vst [vmem:[%s824 + $0x20] sm:$0xf] %v850
  %v852 = vld [vmem:[%s824 + $0x24] sm:$0x1]
  %v853 = vsel %vm457, %v747, %v852
  %854 = vst [vmem:[%s824 + $0x24] sm:$0x1] %v853
  %v855 = vld [vmem:[%s824 + $0x28] sm:$0xf]
  %v856 = vsel %vm451, %v749, %v855
  %857 = vst [vmem:[%s824 + $0x28] sm:$0xf] %v856
  %v858 = vld [vmem:[%s824 + $0x2c] sm:$0x1]
  %v859 = vsel %vm457, %v751, %v858
  %860 = vst [vmem:[%s824 + $0x2c] sm:$0x1] %v859
  %v861 = vld [vmem:[%s824 + $0x30] sm:$0xf]
  %v862 = vsel %vm451, %v753, %v861
  %863 = vst [vmem:[%s824 + $0x30] sm:$0xf] %v862
  %v864 = vld [vmem:[%s824 + $0x34] sm:$0x1]
  %v865 = vsel %vm457, %v755, %v864
  %866 = vst [vmem:[%s824 + $0x34] sm:$0x1] %v865
  %v867 = vld [vmem:[%s824 + $0x38] sm:$0xf]
  %v868 = vsel %vm451, %v757, %v867
  %869 = vst [vmem:[%s824 + $0x38] sm:$0xf] %v868
  %v870 = vld [vmem:[%s824 + $0x3c] sm:$0x1]
  %v871 = vsel %vm457, %v759, %v870
  %872 = vst [vmem:[%s824 + $0x3c] sm:$0x1] %v871
  %v873 = vld [vmem:[%s824 + $0x120] sm:$0xf]
  %v874 = vsel %vm451, %v761, %v873
  %875 = vst [vmem:[%s824 + $0x120] sm:$0xf] %v874
  %v876 = vld [vmem:[%s824 + $0x124] sm:$0x1]
  %v877 = vsel %vm457, %v763, %v876
  %878 = vst [vmem:[%s824 + $0x124] sm:$0x1] %v877
  %v879 = vld [vmem:[%s824 + $0x128] sm:$0xf]
  %v880 = vsel %vm451, %v765, %v879
  %881 = vst [vmem:[%s824 + $0x128] sm:$0xf] %v880
  %v882 = vld [vmem:[%s824 + $0x12c] sm:$0x1]
  %v883 = vsel %vm457, %v767, %v882
  %884 = vst [vmem:[%s824 + $0x12c] sm:$0x1] %v883
  %v885 = vld [vmem:[%s824 + $0x130] sm:$0xf]
  %v886 = vsel %vm451, %v769, %v885
  %887 = vst [vmem:[%s824 + $0x130] sm:$0xf] %v886
  %v888 = vld [vmem:[%s824 + $0x134] sm:$0x1]
  %v889 = vsel %vm457, %v771, %v888
  %890 = vst [vmem:[%s824 + $0x134] sm:$0x1] %v889
  %v891 = vld [vmem:[%s824 + $0x138] sm:$0xf]
  %v892 = vsel %vm451, %v773, %v891
  %893 = vst [vmem:[%s824 + $0x138] sm:$0xf] %v892
  %v894 = vld [vmem:[%s824 + $0x13c] sm:$0x1]
  %v895 = vsel %vm457, %v775, %v894
  %896 = vst [vmem:[%s824 + $0x13c] sm:$0x1] %v895
  %v897 = vld [vmem:[%s824 + $0x140] sm:$0xf]
  %v898 = vsel %vm451, %v777, %v897
  %899 = vst [vmem:[%s824 + $0x140] sm:$0xf] %v898
  %v900 = vld [vmem:[%s824 + $0x144] sm:$0x1]
  %v901 = vsel %vm457, %v779, %v900
  %902 = vst [vmem:[%s824 + $0x144] sm:$0x1] %v901
  %v903 = vld [vmem:[%s824 + $0x148] sm:$0xf]
  %v904 = vsel %vm451, %v781, %v903
  %905 = vst [vmem:[%s824 + $0x148] sm:$0xf] %v904
  %v906 = vld [vmem:[%s824 + $0x14c] sm:$0x1]
  %v907 = vsel %vm457, %v783, %v906
  %908 = vst [vmem:[%s824 + $0x14c] sm:$0x1] %v907
  %v909 = vld [vmem:[%s824 + $0x150] sm:$0xf]
  %v910 = vsel %vm451, %v785, %v909
  %911 = vst [vmem:[%s824 + $0x150] sm:$0xf] %v910
  %v912 = vld [vmem:[%s824 + $0x154] sm:$0x1]
  %v913 = vsel %vm457, %v787, %v912
  %914 = vst [vmem:[%s824 + $0x154] sm:$0x1] %v913
  %v915 = vld [vmem:[%s824 + $0x158] sm:$0xf]
  %v916 = vsel %vm451, %v789, %v915
  %917 = vst [vmem:[%s824 + $0x158] sm:$0xf] %v916
  %v918 = vld [vmem:[%s824 + $0x15c] sm:$0x1]
  %v919 = vsel %vm457, %v791, %v918
  %920 = vst [vmem:[%s824 + $0x15c] sm:$0x1] %v919
  %v921 = vld [vmem:[%s0] sm:$0xf]
  %v922 = vld [vmem:[%s0 + $0x8] sm:$0xf]
  %v923 = vld [vmem:[%s0 + $0x10] sm:$0xf]
  %v924 = vld [vmem:[%s0 + $0x18] sm:$0xf]
  %v925 = vld [vmem:[%s0 + $0x20] sm:$0xf]
  %v926 = vld [vmem:[%s0 + $0x28] sm:$0xf]
  %v927 = vld [vmem:[%s0 + $0x30] sm:$0xf]
  %v928 = vld [vmem:[%s0 + $0x38] sm:$0xf]
  %v929 = vld [vmem:[%s0 + $0x40] sm:$0xf]
  %v930 = vld [vmem:[%s0 + $0x48] sm:$0xf]
  %v931 = vld [vmem:[%s0 + $0x50] sm:$0xf]
  %v932 = vld [vmem:[%s0 + $0x58] sm:$0xf]
  %v933 = vld [vmem:[%s0 + $0x60] sm:$0xf]
  %v934 = vld [vmem:[%s0 + $0x68] sm:$0xf]
  %v935 = vld [vmem:[%s0 + $0x70] sm:$0xf]
  %v936 = vld [vmem:[%s0 + $0x78] sm:$0xf]
  %s937 = scalar_lea.vmem [#allocation2], 216
  %938 = vst.msk [vmem:[%s937] sm:$0xf] %vm21, %v921
  %939 = vst.msk [vmem:[%s937 + $0x8] sm:$0xf] %vm21, %v922
  %940 = vst.msk [vmem:[%s937 + $0x10] sm:$0xf] %vm21, %v923
  %941 = vst.msk [vmem:[%s937 + $0x18] sm:$0xf] %vm21, %v924
  %942 = vst.msk [vmem:[%s937 + $0x20] sm:$0xf] %vm21, %v925
  %943 = vst.msk [vmem:[%s937 + $0x28] sm:$0xf] %vm21, %v926
  %944 = vst.msk [vmem:[%s937 + $0x30] sm:$0xf] %vm21, %v927
  %945 = vst.msk [vmem:[%s937 + $0x38] sm:$0xf] %vm21, %v928
  %946 = vst.msk [vmem:[%s937 + $0x120] sm:$0xf] %vm21, %v929
  %947 = vst.msk [vmem:[%s937 + $0x128] sm:$0xf] %vm21, %v930
  %948 = vst.msk [vmem:[%s937 + $0x130] sm:$0xf] %vm21, %v931
  %949 = vst.msk [vmem:[%s937 + $0x138] sm:$0xf] %vm21, %v932
  %950 = vst.msk [vmem:[%s937 + $0x140] sm:$0xf] %vm21, %v933
  %951 = vst.msk [vmem:[%s937 + $0x148] sm:$0xf] %vm21, %v934
  %952 = vst.msk [vmem:[%s937 + $0x150] sm:$0xf] %vm21, %v935
  %953 = vst.msk [vmem:[%s937 + $0x158] sm:$0xf] %vm21, %v936
  %v954 = vld [vmem:[#allocation2] sm:$0xf]
  %v955 = vld [vmem:[#allocation2 + $0x8] sm:$0xf]
  %v956 = vld [vmem:[#allocation2 + $0x10] sm:$0xf]
  %v957 = vld [vmem:[#allocation2 + $0x18] sm:$0xf]
  %v958 = vld [vmem:[#allocation2 + $0x20] sm:$0xf]
  %v959 = vld [vmem:[#allocation2 + $0x28] sm:$0xf]
  %v960 = vld [vmem:[#allocation2 + $0x30] sm:$0xf]
  %v961 = vld [vmem:[#allocation2 + $0x38] sm:$0xf]
  %v962 = vld [vmem:[#allocation2 + $0x120] sm:$0xf]
  %v963 = vld [vmem:[#allocation2 + $0x128] sm:$0xf]
  %v964 = vld [vmem:[#allocation2 + $0x130] sm:$0xf]
  %v965 = vld [vmem:[#allocation2 + $0x138] sm:$0xf]
  %v966 = vld [vmem:[#allocation2 + $0x140] sm:$0xf]
  %v967 = vld [vmem:[#allocation2 + $0x148] sm:$0xf]
  %v968 = vld [vmem:[#allocation2 + $0x150] sm:$0xf]
  %v969 = vld [vmem:[#allocation2 + $0x158] sm:$0xf]
  %s970 = scalar_lea.vmem [#allocation2], 72
  %v971 = vld [vmem:[%s970] sm:$0xf]
  %v972 = vld [vmem:[%s970 + $0x8] sm:$0xf]
  %v973 = vld [vmem:[%s970 + $0x10] sm:$0xf]
  %v974 = vld [vmem:[%s970 + $0x18] sm:$0xf]
  %v975 = vld [vmem:[%s970 + $0x20] sm:$0xf]
  %v976 = vld [vmem:[%s970 + $0x28] sm:$0xf]
  %v977 = vld [vmem:[%s970 + $0x30] sm:$0xf]
  %v978 = vld [vmem:[%s970 + $0x38] sm:$0xf]
  %v979 = vld [vmem:[%s970 + $0x120] sm:$0xf]
  %v980 = vld [vmem:[%s970 + $0x128] sm:$0xf]
  %v981 = vld [vmem:[%s970 + $0x130] sm:$0xf]
  %v982 = vld [vmem:[%s970 + $0x138] sm:$0xf]
  %v983 = vld [vmem:[%s970 + $0x140] sm:$0xf]
  %v984 = vld [vmem:[%s970 + $0x148] sm:$0xf]
  %v985 = vld [vmem:[%s970 + $0x150] sm:$0xf]
  %v986 = vld [vmem:[%s970 + $0x158] sm:$0xf]
  %v987 = vld [vmem:[#allocation2 + $0x4] sm:$0x1]
  %v988 = vld [vmem:[#allocation2 + $0xc] sm:$0x1]
  %v989 = vld [vmem:[#allocation2 + $0x14] sm:$0x1]
  %v990 = vld [vmem:[#allocation2 + $0x1c] sm:$0x1]
  %v991 = vld [vmem:[#allocation2 + $0x24] sm:$0x1]
  %v992 = vld [vmem:[#allocation2 + $0x2c] sm:$0x1]
  %v993 = vld [vmem:[#allocation2 + $0x34] sm:$0x1]
  %v994 = vld [vmem:[#allocation2 + $0x3c] sm:$0x1]
  %v995 = vld [vmem:[#allocation2 + $0x124] sm:$0x1]
  %v996 = vld [vmem:[#allocation2 + $0x12c] sm:$0x1]
  %v997 = vld [vmem:[#allocation2 + $0x134] sm:$0x1]
  %v998 = vld [vmem:[#allocation2 + $0x13c] sm:$0x1]
  %v999 = vld [vmem:[#allocation2 + $0x144] sm:$0x1]
  %v1000 = vld [vmem:[#allocation2 + $0x14c] sm:$0x1]
  %v1001 = vld [vmem:[#allocation2 + $0x154] sm:$0x1]
  %v1002 = vld [vmem:[#allocation2 + $0x15c] sm:$0x1]
  %v1003 = vld [vmem:[%s824] sm:$0xf]
  %v1004 = vld [vmem:[%s824 + $0x8] sm:$0xf]
  %v1005 = vld [vmem:[%s824 + $0x10] sm:$0xf]
  %v1006 = vld [vmem:[%s824 + $0x18] sm:$0xf]
  %v1007 = vld [vmem:[%s824 + $0x20] sm:$0xf]
  %v1008 = vld [vmem:[%s824 + $0x28] sm:$0xf]
  %v1009 = vld [vmem:[%s824 + $0x30] sm:$0xf]
  %v1010 = vld [vmem:[%s824 + $0x38] sm:$0xf]
  %v1011 = vld [vmem:[%s824 + $0x120] sm:$0xf]
  %v1012 = vld [vmem:[%s824 + $0x128] sm:$0xf]
  %v1013 = vld [vmem:[%s824 + $0x130] sm:$0xf]
  %v1014 = vld [vmem:[%s824 + $0x138] sm:$0xf]
  %v1015 = vld [vmem:[%s824 + $0x140] sm:$0xf]
  %v1016 = vld [vmem:[%s824 + $0x148] sm:$0xf]
  %v1017 = vld [vmem:[%s824 + $0x150] sm:$0xf]
  %v1018 = vld [vmem:[%s824 + $0x158] sm:$0xf]
  %v1019 = vld [vmem:[%s937] sm:$0xf]
  %v1020 = vld [vmem:[%s937 + $0x8] sm:$0xf]
  %v1021 = vld [vmem:[%s937 + $0x10] sm:$0xf]
  %v1022 = vld [vmem:[%s937 + $0x18] sm:$0xf]
  %v1023 = vld [vmem:[%s937 + $0x20] sm:$0xf]
  %v1024 = vld [vmem:[%s937 + $0x28] sm:$0xf]
  %v1025 = vld [vmem:[%s937 + $0x30] sm:$0xf]
  %v1026 = vld [vmem:[%s937 + $0x38] sm:$0xf]
  %v1027 = vld [vmem:[%s937 + $0x120] sm:$0xf]
  %v1028 = vld [vmem:[%s937 + $0x128] sm:$0xf]
  %v1029 = vld [vmem:[%s937 + $0x130] sm:$0xf]
  %v1030 = vld [vmem:[%s937 + $0x138] sm:$0xf]
  %v1031 = vld [vmem:[%s937 + $0x140] sm:$0xf]
  %v1032 = vld [vmem:[%s937 + $0x148] sm:$0xf]
  %v1033 = vld [vmem:[%s937 + $0x150] sm:$0xf]
  %v1034 = vld [vmem:[%s937 + $0x158] sm:$0xf]
  %v1035 = vld [vmem:[%s824 + $0x4] sm:$0x1]
  %v1036 = vld [vmem:[%s824 + $0xc] sm:$0x1]
  %v1037 = vld [vmem:[%s824 + $0x14] sm:$0x1]
  %v1038 = vld [vmem:[%s824 + $0x1c] sm:$0x1]
  %v1039 = vld [vmem:[%s824 + $0x24] sm:$0x1]
  %v1040 = vld [vmem:[%s824 + $0x2c] sm:$0x1]
  %v1041 = vld [vmem:[%s824 + $0x34] sm:$0x1]
  %v1042 = vld [vmem:[%s824 + $0x3c] sm:$0x1]
  %v1043 = vld [vmem:[%s824 + $0x124] sm:$0x1]
  %v1044 = vld [vmem:[%s824 + $0x12c] sm:$0x1]
  %v1045 = vld [vmem:[%s824 + $0x134] sm:$0x1]
  %v1046 = vld [vmem:[%s824 + $0x13c] sm:$0x1]
  %v1047 = vld [vmem:[%s824 + $0x144] sm:$0x1]
  %v1048 = vld [vmem:[%s824 + $0x14c] sm:$0x1]
  %v1049 = vld [vmem:[%s824 + $0x154] sm:$0x1]
  %v1050 = vld [vmem:[%s824 + $0x15c] sm:$0x1]
  %v1051 = vld [vmem:[%s448] sm:$0xf]
  %v1052 = vld [vmem:[%s448 + $0x8] sm:$0xf]
  %v1053 = vld [vmem:[%s448 + $0x10] sm:$0xf]
  %v1054 = vld [vmem:[%s448 + $0x18] sm:$0xf]
  %v1055 = vld [vmem:[%s448 + $0x20] sm:$0xf]
  %v1056 = vld [vmem:[%s448 + $0x28] sm:$0xf]
  %v1057 = vld [vmem:[%s448 + $0x30] sm:$0xf]
  %v1058 = vld [vmem:[%s448 + $0x38] sm:$0xf]
  %v1059 = vld [vmem:[%s448 + $0x120] sm:$0xf]
  %v1060 = vld [vmem:[%s448 + $0x128] sm:$0xf]
  %v1061 = vld [vmem:[%s448 + $0x130] sm:$0xf]
  %v1062 = vld [vmem:[%s448 + $0x138] sm:$0xf]
  %v1063 = vld [vmem:[%s448 + $0x140] sm:$0xf]
  %v1064 = vld [vmem:[%s448 + $0x148] sm:$0xf]
  %v1065 = vld [vmem:[%s448 + $0x150] sm:$0xf]
  %v1066 = vld [vmem:[%s448 + $0x158] sm:$0xf]
  %v1067 = vld [vmem:[%s567] sm:$0xf]
  %v1068 = vld [vmem:[%s567 + $0x8] sm:$0xf]
  %v1069 = vld [vmem:[%s567 + $0x10] sm:$0xf]
  %v1070 = vld [vmem:[%s567 + $0x18] sm:$0xf]
  %v1071 = vld [vmem:[%s567 + $0x20] sm:$0xf]
  %v1072 = vld [vmem:[%s567 + $0x28] sm:$0xf]
  %v1073 = vld [vmem:[%s567 + $0x30] sm:$0xf]
  %v1074 = vld [vmem:[%s567 + $0x38] sm:$0xf]
  %v1075 = vld [vmem:[%s567 + $0x120] sm:$0xf]
  %v1076 = vld [vmem:[%s567 + $0x128] sm:$0xf]
  %v1077 = vld [vmem:[%s567 + $0x130] sm:$0xf]
  %v1078 = vld [vmem:[%s567 + $0x138] sm:$0xf]
  %v1079 = vld [vmem:[%s567 + $0x140] sm:$0xf]
  %v1080 = vld [vmem:[%s567 + $0x148] sm:$0xf]
  %v1081 = vld [vmem:[%s567 + $0x150] sm:$0xf]
  %v1082 = vld [vmem:[%s567 + $0x158] sm:$0xf]
  %v1083 = vld [vmem:[%s448 + $0x4] sm:$0x1]
  %v1084 = vld [vmem:[%s448 + $0xc] sm:$0x1]
  %v1085 = vld [vmem:[%s448 + $0x14] sm:$0x1]
  %v1086 = vld [vmem:[%s448 + $0x1c] sm:$0x1]
  %v1087 = vld [vmem:[%s448 + $0x24] sm:$0x1]
  %v1088 = vld [vmem:[%s448 + $0x2c] sm:$0x1]
  %v1089 = vld [vmem:[%s448 + $0x34] sm:$0x1]
  %v1090 = vld [vmem:[%s448 + $0x3c] sm:$0x1]
  %v1091 = vld [vmem:[%s448 + $0x124] sm:$0x1]
  %v1092 = vld [vmem:[%s448 + $0x12c] sm:$0x1]
  %v1093 = vld [vmem:[%s448 + $0x134] sm:$0x1]
  %v1094 = vld [vmem:[%s448 + $0x13c] sm:$0x1]
  %v1095 = vld [vmem:[%s448 + $0x144] sm:$0x1]
  %v1096 = vld [vmem:[%s448 + $0x14c] sm:$0x1]
  %v1097 = vld [vmem:[%s448 + $0x154] sm:$0x1]
  %v1098 = vld [vmem:[%s448 + $0x15c] sm:$0x1]
  %v1115 = vunpack.c.l.b16 %v971
  %v1116 = vunpack.c.l.b16 %v972
  %v1117 = vunpack.c.l.b16 %v973
  %v1118 = vunpack.c.l.b16 %v974
  %v1119 = vunpack.c.l.b16 %v975
  %v1120 = vunpack.c.l.b16 %v976
  %v1121 = vunpack.c.l.b16 %v977
  %v1122 = vunpack.c.l.b16 %v978
  %v1123 = vunpack.c.l.b16 %v979
  %v1124 = vunpack.c.l.b16 %v980
  %v1125 = vunpack.c.l.b16 %v981
  %v1126 = vunpack.c.l.b16 %v982
  %v1127 = vunpack.c.l.b16 %v983
  %v1128 = vunpack.c.l.b16 %v984
  %v1129 = vunpack.c.l.b16 %v985
  %v1130 = vunpack.c.l.b16 %v986
  %v1131 = vpack.c.b16 %v1115, %v1115
  %v1132 = vpack.c.b16 %v1116, %v1116
  %v1133 = vpack.c.b16 %v1117, %v1117
  %v1134 = vpack.c.b16 %v1118, %v1118
  %v1135 = vpack.c.b16 %v1119, %v1119
  %v1136 = vpack.c.b16 %v1120, %v1120
  %v1137 = vpack.c.b16 %v1121, %v1121
  %v1138 = vpack.c.b16 %v1122, %v1122
  %v1139 = vpack.c.b16 %v1123, %v1123
  %v1140 = vpack.c.b16 %v1124, %v1124
  %v1141 = vpack.c.b16 %v1125, %v1125
  %v1142 = vpack.c.b16 %v1126, %v1126
  %v1143 = vpack.c.b16 %v1127, %v1127
  %v1144 = vpack.c.b16 %v1128, %v1128
  %v1145 = vpack.c.b16 %v1129, %v1129
  %v1146 = vpack.c.b16 %v1130, %v1130
  %1147 = vrot.lane.b32.xlu0 %v1131, 4
  %v1148 = vpop.permute.xlu0 %1147
  %1149 = vrot.lane.b32.xlu0 %v1132, 4
  %v1150 = vpop.permute.xlu0 %1149
  %1151 = vrot.lane.b32.xlu0 %v1133, 4
  %v1152 = vpop.permute.xlu0 %1151
  %1153 = vrot.lane.b32.xlu0 %v1134, 4
  %v1154 = vpop.permute.xlu0 %1153
  %1155 = vrot.lane.b32.xlu0 %v1135, 4
  %v1156 = vpop.permute.xlu0 %1155
  %1157 = vrot.lane.b32.xlu0 %v1136, 4
  %v1158 = vpop.permute.xlu0 %1157
  %1159 = vrot.lane.b32.xlu0 %v1137, 4
  %v1160 = vpop.permute.xlu0 %1159
  %1161 = vrot.lane.b32.xlu0 %v1138, 4
  %v1162 = vpop.permute.xlu0 %1161
  %1163 = vrot.lane.b32.xlu0 %v1139, 4
  %v1164 = vpop.permute.xlu0 %1163
  %1165 = vrot.lane.b32.xlu0 %v1140, 4
  %v1166 = vpop.permute.xlu0 %1165
  %1167 = vrot.lane.b32.xlu0 %v1141, 4
  %v1168 = vpop.permute.xlu0 %1167
  %1169 = vrot.lane.b32.xlu0 %v1142, 4
  %v1170 = vpop.permute.xlu0 %1169
  %1171 = vrot.lane.b32.xlu0 %v1143, 4
  %v1172 = vpop.permute.xlu0 %1171
  %1173 = vrot.lane.b32.xlu0 %v1144, 4
  %v1174 = vpop.permute.xlu0 %1173
  %1175 = vrot.lane.b32.xlu0 %v1145, 4
  %v1176 = vpop.permute.xlu0 %1175
  %1177 = vrot.lane.b32.xlu0 %v1146, 4
  %v1178 = vpop.permute.xlu0 %1177
  %v1211 = vunpack.c.l.b16 %v954
  %v1212 = vunpack.c.l.b16 %v987
  %v1213 = vunpack.c.l.b16 %v955
  %v1214 = vunpack.c.l.b16 %v988
  %v1215 = vunpack.c.l.b16 %v956
  %v1216 = vunpack.c.l.b16 %v989
  %v1217 = vunpack.c.l.b16 %v957
  %v1218 = vunpack.c.l.b16 %v990
  %v1219 = vunpack.c.l.b16 %v958
  %v1220 = vunpack.c.l.b16 %v991
  %v1221 = vunpack.c.l.b16 %v959
  %v1222 = vunpack.c.l.b16 %v992
  %v1223 = vunpack.c.l.b16 %v960
  %v1224 = vunpack.c.l.b16 %v993
  %v1225 = vunpack.c.l.b16 %v961
  %v1226 = vunpack.c.l.b16 %v994
  %v1227 = vunpack.c.l.b16 %v962
  %v1228 = vunpack.c.l.b16 %v995
  %v1229 = vunpack.c.l.b16 %v963
  %v1230 = vunpack.c.l.b16 %v996
  %v1231 = vunpack.c.l.b16 %v964
  %v1232 = vunpack.c.l.b16 %v997
  %v1233 = vunpack.c.l.b16 %v965
  %v1234 = vunpack.c.l.b16 %v998
  %v1235 = vunpack.c.l.b16 %v966
  %v1236 = vunpack.c.l.b16 %v999
  %v1237 = vunpack.c.l.b16 %v967
  %v1238 = vunpack.c.l.b16 %v1000
  %v1239 = vunpack.c.l.b16 %v968
  %v1240 = vunpack.c.l.b16 %v1001
  %v1241 = vunpack.c.l.b16 %v969
  %v1242 = vunpack.c.l.b16 %v1002
  %v1243 = vpack.c.b16 %v1212, %v1211
  %v1244 = vpack.c.b16 %v1214, %v1213
  %v1245 = vpack.c.b16 %v1216, %v1215
  %v1246 = vpack.c.b16 %v1218, %v1217
  %v1247 = vpack.c.b16 %v1220, %v1219
  %v1248 = vpack.c.b16 %v1222, %v1221
  %v1249 = vpack.c.b16 %v1224, %v1223
  %v1250 = vpack.c.b16 %v1226, %v1225
  %v1251 = vpack.c.b16 %v1228, %v1227
  %v1252 = vpack.c.b16 %v1230, %v1229
  %v1253 = vpack.c.b16 %v1232, %v1231
  %v1254 = vpack.c.b16 %v1234, %v1233
  %v1255 = vpack.c.b16 %v1236, %v1235
  %v1256 = vpack.c.b16 %v1238, %v1237
  %v1257 = vpack.c.b16 %v1240, %v1239
  %v1258 = vpack.c.b16 %v1242, %v1241
  %v1260 = vshrl.u32 %v1243, 16
  %v1262 = vshll.u32 %v1243, 16
  %v1264 = vrot.slane %v1262, 1
  %v1265 = vor.u32 %v1260, %v1264
  %v1267 = vshrl.u32 %v1244, 16
  %v1269 = vshll.u32 %v1244, 16
  %v1271 = vrot.slane %v1269, 1
  %v1272 = vor.u32 %v1267, %v1271
  %v1274 = vshrl.u32 %v1245, 16
  %v1276 = vshll.u32 %v1245, 16
  %v1278 = vrot.slane %v1276, 1
  %v1279 = vor.u32 %v1274, %v1278
  %v1281 = vshrl.u32 %v1246, 16
  %v1283 = vshll.u32 %v1246, 16
  %v1285 = vrot.slane %v1283, 1
  %v1286 = vor.u32 %v1281, %v1285
  %v1288 = vshrl.u32 %v1247, 16
  %v1290 = vshll.u32 %v1247, 16
  %v1292 = vrot.slane %v1290, 1
  %v1293 = vor.u32 %v1288, %v1292
  %v1295 = vshrl.u32 %v1248, 16
  %v1297 = vshll.u32 %v1248, 16
  %v1299 = vrot.slane %v1297, 1
  %v1300 = vor.u32 %v1295, %v1299
  %v1302 = vshrl.u32 %v1249, 16
  %v1304 = vshll.u32 %v1249, 16
  %v1306 = vrot.slane %v1304, 1
  %v1307 = vor.u32 %v1302, %v1306
  %v1309 = vshrl.u32 %v1250, 16
  %v1311 = vshll.u32 %v1250, 16
  %v1313 = vrot.slane %v1311, 1
  %v1314 = vor.u32 %v1309, %v1313
  %v1316 = vshrl.u32 %v1251, 16
  %v1318 = vshll.u32 %v1251, 16
  %v1320 = vrot.slane %v1318, 1
  %v1321 = vor.u32 %v1316, %v1320
  %v1323 = vshrl.u32 %v1252, 16
  %v1325 = vshll.u32 %v1252, 16
  %v1327 = vrot.slane %v1325, 1
  %v1328 = vor.u32 %v1323, %v1327
  %v1330 = vshrl.u32 %v1253, 16
  %v1332 = vshll.u32 %v1253, 16
  %v1334 = vrot.slane %v1332, 1
  %v1335 = vor.u32 %v1330, %v1334
  %v1337 = vshrl.u32 %v1254, 16
  %v1339 = vshll.u32 %v1254, 16
  %v1341 = vrot.slane %v1339, 1
  %v1342 = vor.u32 %v1337, %v1341
  %v1344 = vshrl.u32 %v1255, 16
  %v1346 = vshll.u32 %v1255, 16
  %v1348 = vrot.slane %v1346, 1
  %v1349 = vor.u32 %v1344, %v1348
  %v1351 = vshrl.u32 %v1256, 16
  %v1353 = vshll.u32 %v1256, 16
  %v1355 = vrot.slane %v1353, 1
  %v1356 = vor.u32 %v1351, %v1355
  %v1358 = vshrl.u32 %v1257, 16
  %v1360 = vshll.u32 %v1257, 16
  %v1362 = vrot.slane %v1360, 1
  %v1363 = vor.u32 %v1358, %v1362
  %v1365 = vshrl.u32 %v1258, 16
  %v1367 = vshll.u32 %v1258, 16
  %v1369 = vrot.slane %v1367, 1
  %v1370 = vor.u32 %v1365, %v1369
  %1371 = vrot.lane.b32.xlu0 %v1265, 8
  %v1372 = vpop.permute.xlu0 %1371
  %1373 = vrot.lane.b32.xlu0 %v1272, 8
  %v1374 = vpop.permute.xlu0 %1373
  %1375 = vrot.lane.b32.xlu0 %v1279, 8
  %v1376 = vpop.permute.xlu0 %1375
  %1377 = vrot.lane.b32.xlu0 %v1286, 8
  %v1378 = vpop.permute.xlu0 %1377
  %1379 = vrot.lane.b32.xlu0 %v1293, 8
  %v1380 = vpop.permute.xlu0 %1379
  %1381 = vrot.lane.b32.xlu0 %v1300, 8
  %v1382 = vpop.permute.xlu0 %1381
  %1383 = vrot.lane.b32.xlu0 %v1307, 8
  %v1384 = vpop.permute.xlu0 %1383
  %1385 = vrot.lane.b32.xlu0 %v1314, 8
  %v1386 = vpop.permute.xlu0 %1385
  %1387 = vrot.lane.b32.xlu0 %v1321, 8
  %v1388 = vpop.permute.xlu0 %1387
  %1389 = vrot.lane.b32.xlu0 %v1328, 8
  %v1390 = vpop.permute.xlu0 %1389
  %1391 = vrot.lane.b32.xlu0 %v1335, 8
  %v1392 = vpop.permute.xlu0 %1391
  %1393 = vrot.lane.b32.xlu0 %v1342, 8
  %v1394 = vpop.permute.xlu0 %1393
  %1395 = vrot.lane.b32.xlu0 %v1349, 8
  %v1396 = vpop.permute.xlu0 %1395
  %1397 = vrot.lane.b32.xlu0 %v1356, 8
  %v1398 = vpop.permute.xlu0 %1397
  %1399 = vrot.lane.b32.xlu0 %v1363, 8
  %v1400 = vpop.permute.xlu0 %1399
  %1401 = vrot.lane.b32.xlu0 %v1370, 8
  %v1402 = vpop.permute.xlu0 %1401
  %v1419 = vunpack.c.l.b16 %v1003
  %v1420 = vunpack.c.l.b16 %v1004
  %v1421 = vunpack.c.l.b16 %v1005
  %v1422 = vunpack.c.l.b16 %v1006
  %v1423 = vunpack.c.l.b16 %v1007
  %v1424 = vunpack.c.l.b16 %v1008
  %v1425 = vunpack.c.l.b16 %v1009
  %v1426 = vunpack.c.l.b16 %v1010
  %v1427 = vunpack.c.l.b16 %v1011
  %v1428 = vunpack.c.l.b16 %v1012
  %v1429 = vunpack.c.l.b16 %v1013
  %v1430 = vunpack.c.l.b16 %v1014
  %v1431 = vunpack.c.l.b16 %v1015
  %v1432 = vunpack.c.l.b16 %v1016
  %v1433 = vunpack.c.l.b16 %v1017
  %v1434 = vunpack.c.l.b16 %v1018
  %v1435 = vpack.c.b16 %v1419, %v1419
  %v1436 = vpack.c.b16 %v1420, %v1420
  %v1437 = vpack.c.b16 %v1421, %v1421
  %v1438 = vpack.c.b16 %v1422, %v1422
  %v1439 = vpack.c.b16 %v1423, %v1423
  %v1440 = vpack.c.b16 %v1424, %v1424
  %v1441 = vpack.c.b16 %v1425, %v1425
  %v1442 = vpack.c.b16 %v1426, %v1426
  %v1443 = vpack.c.b16 %v1427, %v1427
  %v1444 = vpack.c.b16 %v1428, %v1428
  %v1445 = vpack.c.b16 %v1429, %v1429
  %v1446 = vpack.c.b16 %v1430, %v1430
  %v1447 = vpack.c.b16 %v1431, %v1431
  %v1448 = vpack.c.b16 %v1432, %v1432
  %v1449 = vpack.c.b16 %v1433, %v1433
  %v1450 = vpack.c.b16 %v1434, %v1434
  %1451 = vrot.lane.b32.xlu0 %v1435, 12
  %v1452 = vpop.permute.xlu0 %1451
  %1453 = vrot.lane.b32.xlu0 %v1436, 12
  %v1454 = vpop.permute.xlu0 %1453
  %1455 = vrot.lane.b32.xlu0 %v1437, 12
  %v1456 = vpop.permute.xlu0 %1455
  %1457 = vrot.lane.b32.xlu0 %v1438, 12
  %v1458 = vpop.permute.xlu0 %1457
  %1459 = vrot.lane.b32.xlu0 %v1439, 12
  %v1460 = vpop.permute.xlu0 %1459
  %1461 = vrot.lane.b32.xlu0 %v1440, 12
  %v1462 = vpop.permute.xlu0 %1461
  %1463 = vrot.lane.b32.xlu0 %v1441, 12
  %v1464 = vpop.permute.xlu0 %1463
  %1465 = vrot.lane.b32.xlu0 %v1442, 12
  %v1466 = vpop.permute.xlu0 %1465
  %1467 = vrot.lane.b32.xlu0 %v1443, 12
  %v1468 = vpop.permute.xlu0 %1467
  %1469 = vrot.lane.b32.xlu0 %v1444, 12
  %v1470 = vpop.permute.xlu0 %1469
  %1471 = vrot.lane.b32.xlu0 %v1445, 12
  %v1472 = vpop.permute.xlu0 %1471
  %1473 = vrot.lane.b32.xlu0 %v1446, 12
  %v1474 = vpop.permute.xlu0 %1473
  %1475 = vrot.lane.b32.xlu0 %v1447, 12
  %v1476 = vpop.permute.xlu0 %1475
  %1477 = vrot.lane.b32.xlu0 %v1448, 12
  %v1478 = vpop.permute.xlu0 %1477
  %1479 = vrot.lane.b32.xlu0 %v1449, 12
  %v1480 = vpop.permute.xlu0 %1479
  %1481 = vrot.lane.b32.xlu0 %v1450, 12
  %v1482 = vpop.permute.xlu0 %1481
  %v1499 = vunpack.c.l.b16 %v1019
  %v1500 = vunpack.c.l.b16 %v1020
  %v1501 = vunpack.c.l.b16 %v1021
  %v1502 = vunpack.c.l.b16 %v1022
  %v1503 = vunpack.c.l.b16 %v1023
  %v1504 = vunpack.c.l.b16 %v1024
  %v1505 = vunpack.c.l.b16 %v1025
  %v1506 = vunpack.c.l.b16 %v1026
  %v1507 = vunpack.c.l.b16 %v1027
  %v1508 = vunpack.c.l.b16 %v1028
  %v1509 = vunpack.c.l.b16 %v1029
  %v1510 = vunpack.c.l.b16 %v1030
  %v1511 = vunpack.c.l.b16 %v1031
  %v1512 = vunpack.c.l.b16 %v1032
  %v1513 = vunpack.c.l.b16 %v1033
  %v1514 = vunpack.c.l.b16 %v1034
  %v1515 = vpack.c.b16 %v1499, %v1499
  %v1516 = vpack.c.b16 %v1500, %v1500
  %v1517 = vpack.c.b16 %v1501, %v1501
  %v1518 = vpack.c.b16 %v1502, %v1502
  %v1519 = vpack.c.b16 %v1503, %v1503
  %v1520 = vpack.c.b16 %v1504, %v1504
  %v1521 = vpack.c.b16 %v1505, %v1505
  %v1522 = vpack.c.b16 %v1506, %v1506
  %v1523 = vpack.c.b16 %v1507, %v1507
  %v1524 = vpack.c.b16 %v1508, %v1508
  %v1525 = vpack.c.b16 %v1509, %v1509
  %v1526 = vpack.c.b16 %v1510, %v1510
  %v1527 = vpack.c.b16 %v1511, %v1511
  %v1528 = vpack.c.b16 %v1512, %v1512
  %v1529 = vpack.c.b16 %v1513, %v1513
  %v1530 = vpack.c.b16 %v1514, %v1514
  %1531 = vrot.lane.b32.xlu0 %v1515, 16
  %v1532 = vpop.permute.xlu0 %1531
  %1533 = vrot.lane.b32.xlu0 %v1516, 16
  %v1534 = vpop.permute.xlu0 %1533
  %1535 = vrot.lane.b32.xlu0 %v1517, 16
  %v1536 = vpop.permute.xlu0 %1535
  %1537 = vrot.lane.b32.xlu0 %v1518, 16
  %v1538 = vpop.permute.xlu0 %1537
  %1539 = vrot.lane.b32.xlu0 %v1519, 16
  %v1540 = vpop.permute.xlu0 %1539
  %1541 = vrot.lane.b32.xlu0 %v1520, 16
  %v1542 = vpop.permute.xlu0 %1541
  %1543 = vrot.lane.b32.xlu0 %v1521, 16
  %v1544 = vpop.permute.xlu0 %1543
  %1545 = vrot.lane.b32.xlu0 %v1522, 16
  %v1546 = vpop.permute.xlu0 %1545
  %1547 = vrot.lane.b32.xlu0 %v1523, 16
  %v1548 = vpop.permute.xlu0 %1547
  %1549 = vrot.lane.b32.xlu0 %v1524, 16
  %v1550 = vpop.permute.xlu0 %1549
  %1551 = vrot.lane.b32.xlu0 %v1525, 16
  %v1552 = vpop.permute.xlu0 %1551
  %1553 = vrot.lane.b32.xlu0 %v1526, 16
  %v1554 = vpop.permute.xlu0 %1553
  %1555 = vrot.lane.b32.xlu0 %v1527, 16
  %v1556 = vpop.permute.xlu0 %1555
  %1557 = vrot.lane.b32.xlu0 %v1528, 16
  %v1558 = vpop.permute.xlu0 %1557
  %1559 = vrot.lane.b32.xlu0 %v1529, 16
  %v1560 = vpop.permute.xlu0 %1559
  %1561 = vrot.lane.b32.xlu0 %v1530, 16
  %v1562 = vpop.permute.xlu0 %1561
  %v1579 = vunpack.c.l.b16 %v1035
  %v1580 = vunpack.c.l.b16 %v1036
  %v1581 = vunpack.c.l.b16 %v1037
  %v1582 = vunpack.c.l.b16 %v1038
  %v1583 = vunpack.c.l.b16 %v1039
  %v1584 = vunpack.c.l.b16 %v1040
  %v1585 = vunpack.c.l.b16 %v1041
  %v1586 = vunpack.c.l.b16 %v1042
  %v1587 = vunpack.c.l.b16 %v1043
  %v1588 = vunpack.c.l.b16 %v1044
  %v1589 = vunpack.c.l.b16 %v1045
  %v1590 = vunpack.c.l.b16 %v1046
  %v1591 = vunpack.c.l.b16 %v1047
  %v1592 = vunpack.c.l.b16 %v1048
  %v1593 = vunpack.c.l.b16 %v1049
  %v1594 = vunpack.c.l.b16 %v1050
  %v1595 = vpack.c.b16 %v1579, %v1419
  %v1596 = vpack.c.b16 %v1580, %v1420
  %v1597 = vpack.c.b16 %v1581, %v1421
  %v1598 = vpack.c.b16 %v1582, %v1422
  %v1599 = vpack.c.b16 %v1583, %v1423
  %v1600 = vpack.c.b16 %v1584, %v1424
  %v1601 = vpack.c.b16 %v1585, %v1425
  %v1602 = vpack.c.b16 %v1586, %v1426
  %v1603 = vpack.c.b16 %v1587, %v1427
  %v1604 = vpack.c.b16 %v1588, %v1428
  %v1605 = vpack.c.b16 %v1589, %v1429
  %v1606 = vpack.c.b16 %v1590, %v1430
  %v1607 = vpack.c.b16 %v1591, %v1431
  %v1608 = vpack.c.b16 %v1592, %v1432
  %v1609 = vpack.c.b16 %v1593, %v1433
  %v1610 = vpack.c.b16 %v1594, %v1434
  %v1612 = vshrl.u32 %v1595, 16
  %v1614 = vshll.u32 %v1595, 16
  %v1616 = vrot.slane %v1614, 1
  %v1617 = vor.u32 %v1612, %v1616
  %v1619 = vshrl.u32 %v1596, 16
  %v1621 = vshll.u32 %v1596, 16
  %v1623 = vrot.slane %v1621, 1
  %v1624 = vor.u32 %v1619, %v1623
  %v1626 = vshrl.u32 %v1597, 16
  %v1628 = vshll.u32 %v1597, 16
  %v1630 = vrot.slane %v1628, 1
  %v1631 = vor.u32 %v1626, %v1630
  %v1633 = vshrl.u32 %v1598, 16
  %v1635 = vshll.u32 %v1598, 16
  %v1637 = vrot.slane %v1635, 1
  %v1638 = vor.u32 %v1633, %v1637
  %v1640 = vshrl.u32 %v1599, 16
  %v1642 = vshll.u32 %v1599, 16
  %v1644 = vrot.slane %v1642, 1
  %v1645 = vor.u32 %v1640, %v1644
  %v1647 = vshrl.u32 %v1600, 16
  %v1649 = vshll.u32 %v1600, 16
  %v1651 = vrot.slane %v1649, 1
  %v1652 = vor.u32 %v1647, %v1651
  %v1654 = vshrl.u32 %v1601, 16
  %v1656 = vshll.u32 %v1601, 16
  %v1658 = vrot.slane %v1656, 1
  %v1659 = vor.u32 %v1654, %v1658
  %v1661 = vshrl.u32 %v1602, 16
  %v1663 = vshll.u32 %v1602, 16
  %v1665 = vrot.slane %v1663, 1
  %v1666 = vor.u32 %v1661, %v1665
  %v1668 = vshrl.u32 %v1603, 16
  %v1670 = vshll.u32 %v1603, 16
  %v1672 = vrot.slane %v1670, 1
  %v1673 = vor.u32 %v1668, %v1672
  %v1675 = vshrl.u32 %v1604, 16
  %v1677 = vshll.u32 %v1604, 16
  %v1679 = vrot.slane %v1677, 1
  %v1680 = vor.u32 %v1675, %v1679
  %v1682 = vshrl.u32 %v1605, 16
  %v1684 = vshll.u32 %v1605, 16
  %v1686 = vrot.slane %v1684, 1
  %v1687 = vor.u32 %v1682, %v1686
  %v1689 = vshrl.u32 %v1606, 16
  %v1691 = vshll.u32 %v1606, 16
  %v1693 = vrot.slane %v1691, 1
  %v1694 = vor.u32 %v1689, %v1693
  %v1696 = vshrl.u32 %v1607, 16
  %v1698 = vshll.u32 %v1607, 16
  %v1700 = vrot.slane %v1698, 1
  %v1701 = vor.u32 %v1696, %v1700
  %v1703 = vshrl.u32 %v1608, 16
  %v1705 = vshll.u32 %v1608, 16
  %v1707 = vrot.slane %v1705, 1
  %v1708 = vor.u32 %v1703, %v1707
  %v1710 = vshrl.u32 %v1609, 16
  %v1712 = vshll.u32 %v1609, 16
  %v1714 = vrot.slane %v1712, 1
  %v1715 = vor.u32 %v1710, %v1714
  %v1717 = vshrl.u32 %v1610, 16
  %v1719 = vshll.u32 %v1610, 16
  %v1721 = vrot.slane %v1719, 1
  %v1722 = vor.u32 %v1717, %v1721
  %1723 = vrot.lane.b32.xlu0 %v1617, 20
  %v1724 = vpop.permute.xlu0 %1723
  %1725 = vrot.lane.b32.xlu0 %v1624, 20
  %v1726 = vpop.permute.xlu0 %1725
  %1727 = vrot.lane.b32.xlu0 %v1631, 20
  %v1728 = vpop.permute.xlu0 %1727
  %1729 = vrot.lane.b32.xlu0 %v1638, 20
  %v1730 = vpop.permute.xlu0 %1729
  %1731 = vrot.lane.b32.xlu0 %v1645, 20
  %v1732 = vpop.permute.xlu0 %1731
  %1733 = vrot.lane.b32.xlu0 %v1652, 20
  %v1734 = vpop.permute.xlu0 %1733
  %1735 = vrot.lane.b32.xlu0 %v1659, 20
  %v1736 = vpop.permute.xlu0 %1735
  %1737 = vrot.lane.b32.xlu0 %v1666, 20
  %v1738 = vpop.permute.xlu0 %1737
  %1739 = vrot.lane.b32.xlu0 %v1673, 20
  %v1740 = vpop.permute.xlu0 %1739
  %1741 = vrot.lane.b32.xlu0 %v1680, 20
  %v1742 = vpop.permute.xlu0 %1741
  %1743 = vrot.lane.b32.xlu0 %v1687, 20
  %v1744 = vpop.permute.xlu0 %1743
  %1745 = vrot.lane.b32.xlu0 %v1694, 20
  %v1746 = vpop.permute.xlu0 %1745
  %1747 = vrot.lane.b32.xlu0 %v1701, 20
  %v1748 = vpop.permute.xlu0 %1747
  %1749 = vrot.lane.b32.xlu0 %v1708, 20
  %v1750 = vpop.permute.xlu0 %1749
  %1751 = vrot.lane.b32.xlu0 %v1715, 20
  %v1752 = vpop.permute.xlu0 %1751
  %1753 = vrot.lane.b32.xlu0 %v1722, 20
  %v1754 = vpop.permute.xlu0 %1753
  %v1771 = vunpack.c.l.b16 %v1051
  %v1772 = vunpack.c.l.b16 %v1052
  %v1773 = vunpack.c.l.b16 %v1053
  %v1774 = vunpack.c.l.b16 %v1054
  %v1775 = vunpack.c.l.b16 %v1055
  %v1776 = vunpack.c.l.b16 %v1056
  %v1777 = vunpack.c.l.b16 %v1057
  %v1778 = vunpack.c.l.b16 %v1058
  %v1779 = vunpack.c.l.b16 %v1059
  %v1780 = vunpack.c.l.b16 %v1060
  %v1781 = vunpack.c.l.b16 %v1061
  %v1782 = vunpack.c.l.b16 %v1062
  %v1783 = vunpack.c.l.b16 %v1063
  %v1784 = vunpack.c.l.b16 %v1064
  %v1785 = vunpack.c.l.b16 %v1065
  %v1786 = vunpack.c.l.b16 %v1066
  %v1787 = vpack.c.b16 %v1771, %v1771
  %v1788 = vpack.c.b16 %v1772, %v1772
  %v1789 = vpack.c.b16 %v1773, %v1773
  %v1790 = vpack.c.b16 %v1774, %v1774
  %v1791 = vpack.c.b16 %v1775, %v1775
  %v1792 = vpack.c.b16 %v1776, %v1776
  %v1793 = vpack.c.b16 %v1777, %v1777
  %v1794 = vpack.c.b16 %v1778, %v1778
  %v1795 = vpack.c.b16 %v1779, %v1779
  %v1796 = vpack.c.b16 %v1780, %v1780
  %v1797 = vpack.c.b16 %v1781, %v1781
  %v1798 = vpack.c.b16 %v1782, %v1782
  %v1799 = vpack.c.b16 %v1783, %v1783
  %v1800 = vpack.c.b16 %v1784, %v1784
  %v1801 = vpack.c.b16 %v1785, %v1785
  %v1802 = vpack.c.b16 %v1786, %v1786
  %1803 = vrot.lane.b32.xlu0 %v1787, 24
  %v1804 = vpop.permute.xlu0 %1803
  %1805 = vrot.lane.b32.xlu0 %v1788, 24
  %v1806 = vpop.permute.xlu0 %1805
  %1807 = vrot.lane.b32.xlu0 %v1789, 24
  %v1808 = vpop.permute.xlu0 %1807
  %1809 = vrot.lane.b32.xlu0 %v1790, 24
  %v1810 = vpop.permute.xlu0 %1809
  %1811 = vrot.lane.b32.xlu0 %v1791, 24
  %v1812 = vpop.permute.xlu0 %1811
  %1813 = vrot.lane.b32.xlu0 %v1792, 24
  %v1814 = vpop.permute.xlu0 %1813
  %1815 = vrot.lane.b32.xlu0 %v1793, 24
  %v1816 = vpop.permute.xlu0 %1815
  %1817 = vrot.lane.b32.xlu0 %v1794, 24
  %v1818 = vpop.permute.xlu0 %1817
  %1819 = vrot.lane.b32.xlu0 %v1795, 24
  %v1820 = vpop.permute.xlu0 %1819
  %1821 = vrot.lane.b32.xlu0 %v1796, 24
  %v1822 = vpop.permute.xlu0 %1821
  %1823 = vrot.lane.b32.xlu0 %v1797, 24
  %v1824 = vpop.permute.xlu0 %1823
  %1825 = vrot.lane.b32.xlu0 %v1798, 24
  %v1826 = vpop.permute.xlu0 %1825
  %1827 = vrot.lane.b32.xlu0 %v1799, 24
  %v1828 = vpop.permute.xlu0 %1827
  %1829 = vrot.lane.b32.xlu0 %v1800, 24
  %v1830 = vpop.permute.xlu0 %1829
  %1831 = vrot.lane.b32.xlu0 %v1801, 24
  %v1832 = vpop.permute.xlu0 %1831
  %1833 = vrot.lane.b32.xlu0 %v1802, 24
  %v1834 = vpop.permute.xlu0 %1833
  %v1851 = vunpack.c.l.b16 %v1067
  %v1852 = vunpack.c.l.b16 %v1068
  %v1853 = vunpack.c.l.b16 %v1069
  %v1854 = vunpack.c.l.b16 %v1070
  %v1855 = vunpack.c.l.b16 %v1071
  %v1856 = vunpack.c.l.b16 %v1072
  %v1857 = vunpack.c.l.b16 %v1073
  %v1858 = vunpack.c.l.b16 %v1074
  %v1859 = vunpack.c.l.b16 %v1075
  %v1860 = vunpack.c.l.b16 %v1076
  %v1861 = vunpack.c.l.b16 %v1077
  %v1862 = vunpack.c.l.b16 %v1078
  %v1863 = vunpack.c.l.b16 %v1079
  %v1864 = vunpack.c.l.b16 %v1080
  %v1865 = vunpack.c.l.b16 %v1081
  %v1866 = vunpack.c.l.b16 %v1082
  %v1867 = vpack.c.b16 %v1851, %v1851
  %v1868 = vpack.c.b16 %v1852, %v1852
  %v1869 = vpack.c.b16 %v1853, %v1853
  %v1870 = vpack.c.b16 %v1854, %v1854
  %v1871 = vpack.c.b16 %v1855, %v1855
  %v1872 = vpack.c.b16 %v1856, %v1856
  %v1873 = vpack.c.b16 %v1857, %v1857
  %v1874 = vpack.c.b16 %v1858, %v1858
  %v1875 = vpack.c.b16 %v1859, %v1859
  %v1876 = vpack.c.b16 %v1860, %v1860
  %v1877 = vpack.c.b16 %v1861, %v1861
  %v1878 = vpack.c.b16 %v1862, %v1862
  %v1879 = vpack.c.b16 %v1863, %v1863
  %v1880 = vpack.c.b16 %v1864, %v1864
  %v1881 = vpack.c.b16 %v1865, %v1865
  %v1882 = vpack.c.b16 %v1866, %v1866
  %1883 = vrot.lane.b32.xlu0 %v1867, 28
  %v1884 = vpop.permute.xlu0 %1883
  %1885 = vrot.lane.b32.xlu0 %v1868, 28
  %v1886 = vpop.permute.xlu0 %1885
  %1887 = vrot.lane.b32.xlu0 %v1869, 28
  %v1888 = vpop.permute.xlu0 %1887
  %1889 = vrot.lane.b32.xlu0 %v1870, 28
  %v1890 = vpop.permute.xlu0 %1889
  %1891 = vrot.lane.b32.xlu0 %v1871, 28
  %v1892 = vpop.permute.xlu0 %1891
  %1893 = vrot.lane.b32.xlu0 %v1872, 28
  %v1894 = vpop.permute.xlu0 %1893
  %1895 = vrot.lane.b32.xlu0 %v1873, 28
  %v1896 = vpop.permute.xlu0 %1895
  %1897 = vrot.lane.b32.xlu0 %v1874, 28
  %v1898 = vpop.permute.xlu0 %1897
  %1899 = vrot.lane.b32.xlu0 %v1875, 28
  %v1900 = vpop.permute.xlu0 %1899
  %1901 = vrot.lane.b32.xlu0 %v1876, 28
  %v1902 = vpop.permute.xlu0 %1901
  %1903 = vrot.lane.b32.xlu0 %v1877, 28
  %v1904 = vpop.permute.xlu0 %1903
  %1905 = vrot.lane.b32.xlu0 %v1878, 28
  %v1906 = vpop.permute.xlu0 %1905
  %1907 = vrot.lane.b32.xlu0 %v1879, 28
  %v1908 = vpop.permute.xlu0 %1907
  %1909 = vrot.lane.b32.xlu0 %v1880, 28
  %v1910 = vpop.permute.xlu0 %1909
  %1911 = vrot.lane.b32.xlu0 %v1881, 28
  %v1912 = vpop.permute.xlu0 %1911
  %1913 = vrot.lane.b32.xlu0 %v1882, 28
  %v1914 = vpop.permute.xlu0 %1913
  %v1931 = vunpack.c.l.b16 %v1083
  %v1932 = vunpack.c.l.b16 %v1084
  %v1933 = vunpack.c.l.b16 %v1085
  %v1934 = vunpack.c.l.b16 %v1086
  %v1935 = vunpack.c.l.b16 %v1087
  %v1936 = vunpack.c.l.b16 %v1088
  %v1937 = vunpack.c.l.b16 %v1089
  %v1938 = vunpack.c.l.b16 %v1090
  %v1939 = vunpack.c.l.b16 %v1091
  %v1940 = vunpack.c.l.b16 %v1092
  %v1941 = vunpack.c.l.b16 %v1093
  %v1942 = vunpack.c.l.b16 %v1094
  %v1943 = vunpack.c.l.b16 %v1095
  %v1944 = vunpack.c.l.b16 %v1096
  %v1945 = vunpack.c.l.b16 %v1097
  %v1946 = vunpack.c.l.b16 %v1098
  %v1947 = vpack.c.b16 %v1931, %v1771
  %v1948 = vpack.c.b16 %v1932, %v1772
  %v1949 = vpack.c.b16 %v1933, %v1773
  %v1950 = vpack.c.b16 %v1934, %v1774
  %v1951 = vpack.c.b16 %v1935, %v1775
  %v1952 = vpack.c.b16 %v1936, %v1776
  %v1953 = vpack.c.b16 %v1937, %v1777
  %v1954 = vpack.c.b16 %v1938, %v1778
  %v1955 = vpack.c.b16 %v1939, %v1779
  %v1956 = vpack.c.b16 %v1940, %v1780
  %v1957 = vpack.c.b16 %v1941, %v1781
  %v1958 = vpack.c.b16 %v1942, %v1782
  %v1959 = vpack.c.b16 %v1943, %v1783
  %v1960 = vpack.c.b16 %v1944, %v1784
  %v1961 = vpack.c.b16 %v1945, %v1785
  %v1962 = vpack.c.b16 %v1946, %v1786
  %v1964 = vshrl.u32 %v1947, 16
  %v1966 = vshll.u32 %v1947, 16
  %v1968 = vrot.slane %v1966, 1
  %v1969 = vor.u32 %v1964, %v1968
  %v1971 = vshrl.u32 %v1948, 16
  %v1973 = vshll.u32 %v1948, 16
  %v1975 = vrot.slane %v1973, 1
  %v1976 = vor.u32 %v1971, %v1975
  %v1978 = vshrl.u32 %v1949, 16
  %v1980 = vshll.u32 %v1949, 16
  %v1982 = vrot.slane %v1980, 1
  %v1983 = vor.u32 %v1978, %v1982
  %v1985 = vshrl.u32 %v1950, 16
  %v1987 = vshll.u32 %v1950, 16
  %v1989 = vrot.slane %v1987, 1
  %v1990 = vor.u32 %v1985, %v1989
  %v1992 = vshrl.u32 %v1951, 16
  %v1994 = vshll.u32 %v1951, 16
  %v1996 = vrot.slane %v1994, 1
  %v1997 = vor.u32 %v1992, %v1996
  %v1999 = vshrl.u32 %v1952, 16
  %v2001 = vshll.u32 %v1952, 16
  %v2003 = vrot.slane %v2001, 1
  %v2004 = vor.u32 %v1999, %v2003
  %v2006 = vshrl.u32 %v1953, 16
  %v2008 = vshll.u32 %v1953, 16
  %v2010 = vrot.slane %v2008, 1
  %v2011 = vor.u32 %v2006, %v2010
  %v2013 = vshrl.u32 %v1954, 16
  %v2015 = vshll.u32 %v1954, 16
  %v2017 = vrot.slane %v2015, 1
  %v2018 = vor.u32 %v2013, %v2017
  %v2020 = vshrl.u32 %v1955, 16
  %v2022 = vshll.u32 %v1955, 16
  %v2024 = vrot.slane %v2022, 1
  %v2025 = vor.u32 %v2020, %v2024
  %v2027 = vshrl.u32 %v1956, 16
  %v2029 = vshll.u32 %v1956, 16
  %v2031 = vrot.slane %v2029, 1
  %v2032 = vor.u32 %v2027, %v2031
  %v2034 = vshrl.u32 %v1957, 16
  %v2036 = vshll.u32 %v1957, 16
  %v2038 = vrot.slane %v2036, 1
  %v2039 = vor.u32 %v2034, %v2038
  %v2041 = vshrl.u32 %v1958, 16
  %v2043 = vshll.u32 %v1958, 16
  %v2045 = vrot.slane %v2043, 1
  %v2046 = vor.u32 %v2041, %v2045
  %v2048 = vshrl.u32 %v1959, 16
  %v2050 = vshll.u32 %v1959, 16
  %v2052 = vrot.slane %v2050, 1
  %v2053 = vor.u32 %v2048, %v2052
  %v2055 = vshrl.u32 %v1960, 16
  %v2057 = vshll.u32 %v1960, 16
  %v2059 = vrot.slane %v2057, 1
  %v2060 = vor.u32 %v2055, %v2059
  %v2062 = vshrl.u32 %v1961, 16
  %v2064 = vshll.u32 %v1961, 16
  %v2066 = vrot.slane %v2064, 1
  %v2067 = vor.u32 %v2062, %v2066
  %v2069 = vshrl.u32 %v1962, 16
  %v2071 = vshll.u32 %v1962, 16
  %v2073 = vrot.slane %v2071, 1
  %v2074 = vor.u32 %v2069, %v2073
  %2075 = vrot.lane.b32.xlu0 %v1969, 32
  %v2076 = vpop.permute.xlu0 %2075
  %2077 = vrot.lane.b32.xlu0 %v1976, 32
  %v2078 = vpop.permute.xlu0 %2077
  %2079 = vrot.lane.b32.xlu0 %v1983, 32
  %v2080 = vpop.permute.xlu0 %2079
  %2081 = vrot.lane.b32.xlu0 %v1990, 32
  %v2082 = vpop.permute.xlu0 %2081
  %2083 = vrot.lane.b32.xlu0 %v1997, 32
  %v2084 = vpop.permute.xlu0 %2083
  %2085 = vrot.lane.b32.xlu0 %v2004, 32
  %v2086 = vpop.permute.xlu0 %2085
  %2087 = vrot.lane.b32.xlu0 %v2011, 32
  %v2088 = vpop.permute.xlu0 %2087
  %2089 = vrot.lane.b32.xlu0 %v2018, 32
  %v2090 = vpop.permute.xlu0 %2089
  %2091 = vrot.lane.b32.xlu0 %v2025, 32
  %v2092 = vpop.permute.xlu0 %2091
  %2093 = vrot.lane.b32.xlu0 %v2032, 32
  %v2094 = vpop.permute.xlu0 %2093
  %2095 = vrot.lane.b32.xlu0 %v2039, 32
  %v2096 = vpop.permute.xlu0 %2095
  %2097 = vrot.lane.b32.xlu0 %v2046, 32
  %v2098 = vpop.permute.xlu0 %2097
  %2099 = vrot.lane.b32.xlu0 %v2053, 32
  %v2100 = vpop.permute.xlu0 %2099
  %2101 = vrot.lane.b32.xlu0 %v2060, 32
  %v2102 = vpop.permute.xlu0 %2101
  %2103 = vrot.lane.b32.xlu0 %v2067, 32
  %v2104 = vpop.permute.xlu0 %2103
  %2105 = vrot.lane.b32.xlu0 %v2074, 32
  %v2106 = vpop.permute.xlu0 %2105
  %vm2107 = vcmask 31744
  %v2110 = vsel %vm2107, %v954, %v1148
  %v2113 = vsel %vm2107, %v955, %v1150
  %v2116 = vsel %vm2107, %v956, %v1152
  %v2119 = vsel %vm2107, %v957, %v1154
  %v2122 = vsel %vm2107, %v958, %v1156
  %v2125 = vsel %vm2107, %v959, %v1158
  %v2128 = vsel %vm2107, %v960, %v1160
  %v2131 = vsel %vm2107, %v961, %v1162
  %v2134 = vsel %vm2107, %v962, %v1164
  %v2137 = vsel %vm2107, %v963, %v1166
  %v2140 = vsel %vm2107, %v964, %v1168
  %v2143 = vsel %vm2107, %v965, %v1170
  %v2146 = vsel %vm2107, %v966, %v1172
  %v2149 = vsel %vm2107, %v967, %v1174
  %v2152 = vsel %vm2107, %v968, %v1176
  %v2155 = vsel %vm2107, %v969, %v1178
  %vm2156 = vcmask 64512
  %v2158 = vsel %vm2156, %v2110, %v1372
  %v2160 = vsel %vm2156, %v2113, %v1374
  %v2162 = vsel %vm2156, %v2116, %v1376
  %v2164 = vsel %vm2156, %v2119, %v1378
  %v2166 = vsel %vm2156, %v2122, %v1380
  %v2168 = vsel %vm2156, %v2125, %v1382
  %v2170 = vsel %vm2156, %v2128, %v1384
  %v2172 = vsel %vm2156, %v2131, %v1386
  %v2174 = vsel %vm2156, %v2134, %v1388
  %v2176 = vsel %vm2156, %v2137, %v1390
  %v2178 = vsel %vm2156, %v2140, %v1392
  %v2180 = vsel %vm2156, %v2143, %v1394
  %v2182 = vsel %vm2156, %v2146, %v1396
  %v2184 = vsel %vm2156, %v2149, %v1398
  %v2186 = vsel %vm2156, %v2152, %v1400
  %v2188 = vsel %vm2156, %v2155, %v1402
  %vm2189 = vcmask 97280
  %v2191 = vsel %vm2189, %v2158, %v1452
  %v2193 = vsel %vm2189, %v2160, %v1454
  %v2195 = vsel %vm2189, %v2162, %v1456
  %v2197 = vsel %vm2189, %v2164, %v1458
  %v2199 = vsel %vm2189, %v2166, %v1460
  %v2201 = vsel %vm2189, %v2168, %v1462
  %v2203 = vsel %vm2189, %v2170, %v1464
  %v2205 = vsel %vm2189, %v2172, %v1466
  %v2207 = vsel %vm2189, %v2174, %v1468
  %v2209 = vsel %vm2189, %v2176, %v1470
  %v2211 = vsel %vm2189, %v2178, %v1472
  %v2213 = vsel %vm2189, %v2180, %v1474
  %v2215 = vsel %vm2189, %v2182, %v1476
  %v2217 = vsel %vm2189, %v2184, %v1478
  %v2219 = vsel %vm2189, %v2186, %v1480
  %v2221 = vsel %vm2189, %v2188, %v1482
  %vm2222 = vcmask 130048
  %v2224 = vsel %vm2222, %v2191, %v1532
  %v2226 = vsel %vm2222, %v2193, %v1534
  %v2228 = vsel %vm2222, %v2195, %v1536
  %v2230 = vsel %vm2222, %v2197, %v1538
  %v2232 = vsel %vm2222, %v2199, %v1540
  %v2234 = vsel %vm2222, %v2201, %v1542
  %v2236 = vsel %vm2222, %v2203, %v1544
  %v2238 = vsel %vm2222, %v2205, %v1546
  %v2240 = vsel %vm2222, %v2207, %v1548
  %v2242 = vsel %vm2222, %v2209, %v1550
  %v2244 = vsel %vm2222, %v2211, %v1552
  %v2246 = vsel %vm2222, %v2213, %v1554
  %v2248 = vsel %vm2222, %v2215, %v1556
  %v2250 = vsel %vm2222, %v2217, %v1558
  %v2252 = vsel %vm2222, %v2219, %v1560
  %v2254 = vsel %vm2222, %v2221, %v1562
  %vm2255 = vcmask 162816
  %v2257 = vsel %vm2255, %v2224, %v1724
  %v2259 = vsel %vm2255, %v2226, %v1726
  %v2261 = vsel %vm2255, %v2228, %v1728
  %v2263 = vsel %vm2255, %v2230, %v1730
  %v2265 = vsel %vm2255, %v2232, %v1732
  %v2267 = vsel %vm2255, %v2234, %v1734
  %v2269 = vsel %vm2255, %v2236, %v1736
  %v2271 = vsel %vm2255, %v2238, %v1738
  %v2273 = vsel %vm2255, %v2240, %v1740
  %v2275 = vsel %vm2255, %v2242, %v1742
  %v2277 = vsel %vm2255, %v2244, %v1744
  %v2279 = vsel %vm2255, %v2246, %v1746
  %v2281 = vsel %vm2255, %v2248, %v1748
  %v2283 = vsel %vm2255, %v2250, %v1750
  %v2285 = vsel %vm2255, %v2252, %v1752
  %v2287 = vsel %vm2255, %v2254, %v1754
  %vm2288 = vcmask 195584
  %v2290 = vsel %vm2288, %v2257, %v1804
  %v2292 = vsel %vm2288, %v2259, %v1806
  %v2294 = vsel %vm2288, %v2261, %v1808
  %v2296 = vsel %vm2288, %v2263, %v1810
  %v2298 = vsel %vm2288, %v2265, %v1812
  %v2300 = vsel %vm2288, %v2267, %v1814
  %v2302 = vsel %vm2288, %v2269, %v1816
  %v2304 = vsel %vm2288, %v2271, %v1818
  %v2306 = vsel %vm2288, %v2273, %v1820
  %v2308 = vsel %vm2288, %v2275, %v1822
  %v2310 = vsel %vm2288, %v2277, %v1824
  %v2312 = vsel %vm2288, %v2279, %v1826
  %v2314 = vsel %vm2288, %v2281, %v1828
  %v2316 = vsel %vm2288, %v2283, %v1830
  %v2318 = vsel %vm2288, %v2285, %v1832
  %v2320 = vsel %vm2288, %v2287, %v1834
  %vm2321 = vcmask 228352
  %v2323 = vsel %vm2321, %v2290, %v1884
  %v2325 = vsel %vm2321, %v2292, %v1886
  %v2327 = vsel %vm2321, %v2294, %v1888
  %v2329 = vsel %vm2321, %v2296, %v1890
  %v2331 = vsel %vm2321, %v2298, %v1892
  %v2333 = vsel %vm2321, %v2300, %v1894
  %v2335 = vsel %vm2321, %v2302, %v1896
  %v2337 = vsel %vm2321, %v2304, %v1898
  %v2339 = vsel %vm2321, %v2306, %v1900
  %v2341 = vsel %vm2321, %v2308, %v1902
  %v2343 = vsel %vm2321, %v2310, %v1904
  %v2345 = vsel %vm2321, %v2312, %v1906
  %v2347 = vsel %vm2321, %v2314, %v1908
  %v2349 = vsel %vm2321, %v2316, %v1910
  %v2351 = vsel %vm2321, %v2318, %v1912
  %v2353 = vsel %vm2321, %v2320, %v1914
  %vm2354 = vcmask 261120
  %v2356 = vsel %vm2354, %v2323, %v2076
  %v2358 = vsel %vm2354, %v2325, %v2078
  %v2360 = vsel %vm2354, %v2327, %v2080
  %v2362 = vsel %vm2354, %v2329, %v2082
  %v2364 = vsel %vm2354, %v2331, %v2084
  %v2366 = vsel %vm2354, %v2333, %v2086
  %v2368 = vsel %vm2354, %v2335, %v2088
  %v2370 = vsel %vm2354, %v2337, %v2090
  %v2372 = vsel %vm2354, %v2339, %v2092
  %v2374 = vsel %vm2354, %v2341, %v2094
  %v2376 = vsel %vm2354, %v2343, %v2096
  %v2378 = vsel %vm2354, %v2345, %v2098
  %v2380 = vsel %vm2354, %v2347, %v2100
  %v2382 = vsel %vm2354, %v2349, %v2102
  %v2384 = vsel %vm2354, %v2351, %v2104
  %v2386 = vsel %vm2354, %v2353, %v2106
  %vm2387 = vcmask 293888
  %v2389 = vsel %vm2387, %v2356, 0
  %v2390 = vsel %vm2387, %v2358, 0
  %v2391 = vsel %vm2387, %v2360, 0
  %v2392 = vsel %vm2387, %v2362, 0
  %v2393 = vsel %vm2387, %v2364, 0
  %v2394 = vsel %vm2387, %v2366, 0
  %v2395 = vsel %vm2387, %v2368, 0
  %v2396 = vsel %vm2387, %v2370, 0
  %v2397 = vsel %vm2387, %v2372, 0
  %v2398 = vsel %vm2387, %v2374, 0
  %v2399 = vsel %vm2387, %v2376, 0
  %v2400 = vsel %vm2387, %v2378, 0
  %v2401 = vsel %vm2387, %v2380, 0
  %v2402 = vsel %vm2387, %v2382, 0
  %v2403 = vsel %vm2387, %v2384, 0
  %v2404 = vsel %vm2387, %v2386, 0
  %v2405 = vld [vmem:[%s1] sm:$0xf]
  %v2406 = vld [vmem:[%s1 + $0x4] sm:$0xf]
  %v2407 = vld [vmem:[%s1 + $0x8] sm:$0xf]
  %v2408 = vld [vmem:[%s1 + $0xc] sm:$0xf]
  %v2409 = vld [vmem:[%s1 + $0x10] sm:$0xf]
  %v2410 = vld [vmem:[%s1 + $0x14] sm:$0xf]
  %v2411 = vld [vmem:[%s1 + $0x18] sm:$0xf]
  %v2412 = vld [vmem:[%s1 + $0x1c] sm:$0xf]
  %v2413 = vld [vmem:[%s1 + $0x20] sm:$0xf]
  %v2414 = vld [vmem:[%s1 + $0x24] sm:$0xf]
  %v2415 = vld [vmem:[%s1 + $0x28] sm:$0xf]
  %v2416 = vld [vmem:[%s1 + $0x2c] sm:$0xf]
  %v2417 = vld [vmem:[%s1 + $0x30] sm:$0xf]
  %v2418 = vld [vmem:[%s1 + $0x34] sm:$0xf]
  %v2419 = vld [vmem:[%s1 + $0x38] sm:$0xf]
  %v2420 = vld [vmem:[%s1 + $0x3c] sm:$0xf]
  %v2437 = vunpack.c.l.b16 %v2389
  %v2438 = vunpack.c.l.b16 %v2390
  %v2439 = vunpack.c.l.b16 %v2391
  %v2440 = vunpack.c.l.b16 %v2392
  %v2441 = vunpack.c.l.b16 %v2393
  %v2442 = vunpack.c.l.b16 %v2394
  %v2443 = vunpack.c.l.b16 %v2395
  %v2444 = vunpack.c.l.b16 %v2396
  %v2445 = vunpack.c.l.b16 %v2397
  %v2446 = vunpack.c.l.b16 %v2398
  %v2447 = vunpack.c.l.b16 %v2399
  %v2448 = vunpack.c.l.b16 %v2400
  %v2449 = vunpack.c.l.b16 %v2401
  %v2450 = vunpack.c.l.b16 %v2402
  %v2451 = vunpack.c.l.b16 %v2403
  %v2452 = vunpack.c.l.b16 %v2404
  %v2453 = vpack.c.b16 %v2438, %v2437
  %v2454 = vpack.c.b16 %v2440, %v2439
  %v2455 = vpack.c.b16 %v2442, %v2441
  %v2456 = vpack.c.b16 %v2444, %v2443
  %v2457 = vpack.c.b16 %v2446, %v2445
  %v2458 = vpack.c.b16 %v2448, %v2447
  %v2459 = vpack.c.b16 %v2450, %v2449
  %v2460 = vpack.c.b16 %v2452, %v2451
  %v2485 = vunpack.c.l.b16 %v2405
  %v2486 = vunpack.c.l.b16 %v2406
  %v2487 = vunpack.c.l.b16 %v2407
  %v2488 = vunpack.c.l.b16 %v2408
  %v2489 = vunpack.c.l.b16 %v2409
  %v2490 = vunpack.c.l.b16 %v2410
  %v2491 = vunpack.c.l.b16 %v2411
  %v2492 = vunpack.c.l.b16 %v2412
  %v2493 = vunpack.c.l.b16 %v2413
  %v2494 = vunpack.c.l.b16 %v2414
  %v2495 = vunpack.c.l.b16 %v2415
  %v2496 = vunpack.c.l.b16 %v2416
  %v2497 = vunpack.c.l.b16 %v2417
  %v2498 = vunpack.c.l.b16 %v2418
  %v2499 = vunpack.c.l.b16 %v2419
  %v2500 = vunpack.c.l.b16 %v2420
  %v2501 = vpack.c.b16 %v2486, %v2485
  %v2502 = vpack.c.b16 %v2488, %v2487
  %v2503 = vpack.c.b16 %v2490, %v2489
  %v2504 = vpack.c.b16 %v2492, %v2491
  %v2505 = vpack.c.b16 %v2494, %v2493
  %v2506 = vpack.c.b16 %v2496, %v2495
  %v2507 = vpack.c.b16 %v2498, %v2497
  %v2508 = vpack.c.b16 %v2500, %v2499
  %2517 = vmatprep.subr.bf16.mxu0 0
  %2518 = vmatpush1.bf16.msra.mxu0 %v2508
  %2519 = vmatprep.subr.bf16.mxu0 0
  %2520 = vmatpush1.bf16.msra.mxu0 %v2507
  %2521 = vmatprep.subr.bf16.mxu0 0
  %2522 = vmatpush1.bf16.msra.mxu0 %v2506
  %2523 = vmatprep.subr.bf16.mxu0 0
  %2524 = vmatpush1.bf16.msra.mxu0 %v2505
  %2525 = vmatprep.subr.bf16.mxu0 0
  %2526 = vmatpush1.bf16.msra.mxu0 %v2504
  %2527 = vmatprep.subr.bf16.mxu0 0
  %2528 = vmatpush1.bf16.msra.mxu0 %v2503
  %2529 = vmatprep.subr.bf16.mxu0 0
  %2530 = vmatpush1.bf16.msra.mxu0 %v2502
  %2531 = vmatprep.subr.bf16.mxu0 0
  %2532 = vmatpush1.bf16.msra.mxu0 %v2501
  %2533 = vmatprep.subr.bf16.mxu0 0
  %2534 = vmatpush2.bf16.msra.mxu0 0
  %2535 = vmatprep.subr.bf16.mxu0 0
  %2536 = vmatpush2.bf16.msra.mxu0 0
  %2537 = vmatprep.subr.bf16.mxu0 0
  %2538 = vmatpush2.bf16.msra.mxu0 0
  %2539 = vmatprep.subr.bf16.mxu0 0
  %2540 = vmatpush2.bf16.msra.mxu0 0
  %2541 = vmatprep.subr.bf16.mxu0 0
  %2542 = vmatpush2.bf16.msra.mxu0 0
  %2543 = vmatprep.subr.bf16.mxu0 0
  %2544 = vmatpush2.bf16.msra.mxu0 0
  %2545 = vmatprep.subr.bf16.mxu0 0
  %2546 = vmatpush2.bf16.msra.mxu0 0
  %2547 = vmatprep.subr.bf16.mxu0 0
  %2548 = vmatpush2.bf16.msra.mxu0 0
  %2549 = vmatprep.mubr.bf16.mxu0 0
  %2550 = vmatmul.mubr.bf16.gmra.mxu0 %v2453
  %v2551 = vpop.f32.mrf.mxu0
  %v2552 = vadd.f32 0.0, %v2551
  %v2553 = vpop.f32.mrf.mxu0
  %v2554 = vpop.f32.mrf.mxu0
  %v2555 = vadd.f32 0.0, %v2554
  %v2556 = vpop.f32.mrf.mxu0
  %2557 = vmatprep.mubr.bf16.mxu0 0
  %2558 = vmatmul.mubr.bf16.gmra.mxu0 %v2454
  %v2559 = vpop.f32.mrf.mxu0
  %v2560 = vadd.f32 0.0, %v2559
  %v2561 = vpop.f32.mrf.mxu0
  %v2562 = vpop.f32.mrf.mxu0
  %v2563 = vadd.f32 0.0, %v2562
  %v2564 = vpop.f32.mrf.mxu0
  %2565 = vmatprep.mubr.bf16.mxu0 0
  %2566 = vmatmul.mubr.bf16.gmra.mxu0 %v2455
  %v2567 = vpop.f32.mrf.mxu0
  %v2568 = vadd.f32 0.0, %v2567
  %v2569 = vpop.f32.mrf.mxu0
  %v2570 = vpop.f32.mrf.mxu0
  %v2571 = vadd.f32 0.0, %v2570
  %v2572 = vpop.f32.mrf.mxu0
  %2573 = vmatprep.mubr.bf16.mxu0 0
  %2574 = vmatmul.mubr.bf16.gmra.mxu0 %v2456
  %v2575 = vpop.f32.mrf.mxu0
  %v2576 = vadd.f32 0.0, %v2575
  %v2577 = vpop.f32.mrf.mxu0
  %v2578 = vpop.f32.mrf.mxu0
  %v2579 = vadd.f32 0.0, %v2578
  %v2580 = vpop.f32.mrf.mxu0
  %2581 = vmatprep.mubr.bf16.mxu0 0
  %2582 = vmatmul.mubr.bf16.gmra.mxu0 %v2457
  %v2583 = vpop.f32.mrf.mxu0
  %v2584 = vadd.f32 0.0, %v2583
  %v2585 = vpop.f32.mrf.mxu0
  %v2586 = vpop.f32.mrf.mxu0
  %v2587 = vadd.f32 0.0, %v2586
  %v2588 = vpop.f32.mrf.mxu0
  %2589 = vmatprep.mubr.bf16.mxu0 0
  %2590 = vmatmul.mubr.bf16.gmra.mxu0 %v2458
  %v2591 = vpop.f32.mrf.mxu0
  %v2592 = vadd.f32 0.0, %v2591
  %v2593 = vpop.f32.mrf.mxu0
  %v2594 = vpop.f32.mrf.mxu0
  %v2595 = vadd.f32 0.0, %v2594
  %v2596 = vpop.f32.mrf.mxu0
  %2597 = vmatprep.mubr.bf16.mxu0 0
  %2598 = vmatmul.mubr.bf16.gmra.mxu0 %v2459
  %v2599 = vpop.f32.mrf.mxu0
  %v2600 = vadd.f32 0.0, %v2599
  %v2601 = vpop.f32.mrf.mxu0
  %v2602 = vpop.f32.mrf.mxu0
  %v2603 = vadd.f32 0.0, %v2602
  %v2604 = vpop.f32.mrf.mxu0
  %2605 = vmatprep.mubr.bf16.mxu0 0
  %2606 = vmatmul.mubr.bf16.gmra.mxu0 %v2460
  %v2607 = vpop.f32.mrf.mxu0
  %v2608 = vadd.f32 0.0, %v2607
  %v2609 = vpop.f32.mrf.mxu0
  %v2610 = vpop.f32.mrf.mxu0
  %v2611 = vadd.f32 0.0, %v2610
  %v2612 = vpop.f32.mrf.mxu0
  %2613 = vdwg.mxu0
  %v2614 = vmax.f32 %v2552, 0.0
  %v2615 = vmax.f32 %v2555, 0.0
  %v2616 = vmax.f32 %v2560, 0.0
  %v2617 = vmax.f32 %v2563, 0.0
  %v2618 = vmax.f32 %v2568, 0.0
  %v2619 = vmax.f32 %v2571, 0.0
  %v2620 = vmax.f32 %v2576, 0.0
  %v2621 = vmax.f32 %v2579, 0.0
  %v2622 = vmax.f32 %v2584, 0.0
  %v2623 = vmax.f32 %v2587, 0.0
  %v2624 = vmax.f32 %v2592, 0.0
  %v2625 = vmax.f32 %v2595, 0.0
  %v2626 = vmax.f32 %v2600, 0.0
  %v2627 = vmax.f32 %v2603, 0.0
  %v2628 = vmax.f32 %v2608, 0.0
  %v2629 = vmax.f32 %v2611, 0.0
  %v2630 = vpack.c.bf16 %v2615, %v2614
  %v2631 = vpack.c.bf16 %v2617, %v2616
  %v2632 = vpack.c.bf16 %v2619, %v2618
  %v2633 = vpack.c.bf16 %v2621, %v2620
  %v2634 = vpack.c.bf16 %v2623, %v2622
  %v2635 = vpack.c.bf16 %v2625, %v2624
  %v2636 = vpack.c.bf16 %v2627, %v2626
  %v2637 = vpack.c.bf16 %v2629, %v2628
  %v2646 = vunpack.c.l.b16 %v2630
  %v2647 = vunpack.c.h.b16 %v2630
  %v2648 = vunpack.c.l.b16 %v2631
  %v2649 = vunpack.c.h.b16 %v2631
  %v2650 = vunpack.c.l.b16 %v2632
  %v2651 = vunpack.c.h.b16 %v2632
  %v2652 = vunpack.c.l.b16 %v2633
  %v2653 = vunpack.c.h.b16 %v2633
  %v2654 = vunpack.c.l.b16 %v2634
  %v2655 = vunpack.c.h.b16 %v2634
  %v2656 = vunpack.c.l.b16 %v2635
  %v2657 = vunpack.c.h.b16 %v2635
  %v2658 = vunpack.c.l.b16 %v2636
  %v2659 = vunpack.c.h.b16 %v2636
  %v2660 = vunpack.c.l.b16 %v2637
  %v2661 = vunpack.c.h.b16 %v2637
  %v2662 = vpack.c.b16 %v2646, %v2646
  %v2663 = vpack.c.b16 %v2647, %v2647
  %v2664 = vpack.c.b16 %v2648, %v2648
  %v2665 = vpack.c.b16 %v2649, %v2649
  %v2666 = vpack.c.b16 %v2650, %v2650
  %v2667 = vpack.c.b16 %v2651, %v2651
  %v2668 = vpack.c.b16 %v2652, %v2652
  %v2669 = vpack.c.b16 %v2653, %v2653
  %v2670 = vpack.c.b16 %v2654, %v2654
  %v2671 = vpack.c.b16 %v2655, %v2655
  %v2672 = vpack.c.b16 %v2656, %v2656
  %v2673 = vpack.c.b16 %v2657, %v2657
  %v2674 = vpack.c.b16 %v2658, %v2658
  %v2675 = vpack.c.b16 %v2659, %v2659
  %v2676 = vpack.c.b16 %v2660, %v2660
  %v2677 = vpack.c.b16 %v2661, %v2661
  %v2679 = vshrl.u32 %v2662, 16
  %v2681 = vrot.slane %v2679, 7
  %v2682 = vshll.u32 %v2662, 16
  %v2684 = vor.u32 %v2681, %v2682
  %v2685 = vrot.slane %v2681, 4
  %v2687 = vshrl.u32 %v2663, 16
  %v2689 = vrot.slane %v2687, 7
  %v2690 = vshll.u32 %v2663, 16
  %v2692 = vor.u32 %v2689, %v2690
  %v2693 = vrot.slane %v2689, 4
  %v2695 = vshrl.u32 %v2664, 16
  %v2697 = vrot.slane %v2695, 7
  %v2698 = vshll.u32 %v2664, 16
  %v2700 = vor.u32 %v2697, %v2698
  %v2701 = vrot.slane %v2697, 4
  %v2703 = vshrl.u32 %v2665, 16
  %v2705 = vrot.slane %v2703, 7
  %v2706 = vshll.u32 %v2665, 16
  %v2708 = vor.u32 %v2705, %v2706
  %v2709 = vrot.slane %v2705, 4
  %v2711 = vshrl.u32 %v2666, 16
  %v2713 = vrot.slane %v2711, 7
  %v2714 = vshll.u32 %v2666, 16
  %v2716 = vor.u32 %v2713, %v2714
  %v2717 = vrot.slane %v2713, 4
  %v2719 = vshrl.u32 %v2667, 16
  %v2721 = vrot.slane %v2719, 7
  %v2722 = vshll.u32 %v2667, 16
  %v2724 = vor.u32 %v2721, %v2722
  %v2725 = vrot.slane %v2721, 4
  %v2727 = vshrl.u32 %v2668, 16
  %v2729 = vrot.slane %v2727, 7
  %v2730 = vshll.u32 %v2668, 16
  %v2732 = vor.u32 %v2729, %v2730
  %v2733 = vrot.slane %v2729, 4
  %v2735 = vshrl.u32 %v2669, 16
  %v2737 = vrot.slane %v2735, 7
  %v2738 = vshll.u32 %v2669, 16
  %v2740 = vor.u32 %v2737, %v2738
  %v2741 = vrot.slane %v2737, 4
  %v2743 = vshrl.u32 %v2670, 16
  %v2745 = vrot.slane %v2743, 7
  %v2746 = vshll.u32 %v2670, 16
  %v2748 = vor.u32 %v2745, %v2746
  %v2749 = vrot.slane %v2745, 4
  %v2751 = vshrl.u32 %v2671, 16
  %v2753 = vrot.slane %v2751, 7
  %v2754 = vshll.u32 %v2671, 16
  %v2756 = vor.u32 %v2753, %v2754
  %v2757 = vrot.slane %v2753, 4
  %v2759 = vshrl.u32 %v2672, 16
  %v2761 = vrot.slane %v2759, 7
  %v2762 = vshll.u32 %v2672, 16
  %v2764 = vor.u32 %v2761, %v2762
  %v2765 = vrot.slane %v2761, 4
  %v2767 = vshrl.u32 %v2673, 16
  %v2769 = vrot.slane %v2767, 7
  %v2770 = vshll.u32 %v2673, 16
  %v2772 = vor.u32 %v2769, %v2770
  %v2773 = vrot.slane %v2769, 4
  %v2775 = vshrl.u32 %v2674, 16
  %v2777 = vrot.slane %v2775, 7
  %v2778 = vshll.u32 %v2674, 16
  %v2780 = vor.u32 %v2777, %v2778
  %v2781 = vrot.slane %v2777, 4
  %v2783 = vshrl.u32 %v2675, 16
  %v2785 = vrot.slane %v2783, 7
  %v2786 = vshll.u32 %v2675, 16
  %v2788 = vor.u32 %v2785, %v2786
  %v2789 = vrot.slane %v2785, 4
  %v2791 = vshrl.u32 %v2676, 16
  %v2793 = vrot.slane %v2791, 7
  %v2794 = vshll.u32 %v2676, 16
  %v2796 = vor.u32 %v2793, %v2794
  %v2797 = vrot.slane %v2793, 4
  %v2799 = vshrl.u32 %v2677, 16
  %v2801 = vrot.slane %v2799, 7
  %v2802 = vshll.u32 %v2677, 16
  %v2804 = vor.u32 %v2801, %v2802
  %v2805 = vrot.slane %v2801, 4
  %s2838 = scalar_lea.vmem [#allocation3], 8
  %vm2839 = vcmask 60416
  %vm2840 = vmand %vm2839, %vm450
  %v2841 = vld [vmem:[%s2838] sm:$0xf]
  %v2842 = vsel %vm2840, %v2684, %v2841
  %2843 = vst [vmem:[%s2838] sm:$0xf] %v2842
  %vm2844 = vcmask 57344
  %vm2845 = vmand %vm2844, %vm456
  %v2846 = vld [vmem:[%s2838 + $0x4] sm:$0x1]
  %v2847 = vsel %vm2845, %v2685, %v2846
  %2848 = vst [vmem:[%s2838 + $0x4] sm:$0x1] %v2847
  %v2849 = vld [vmem:[%s2838 + $0x8] sm:$0xf]
  %v2850 = vsel %vm2840, %v2692, %v2849
  %2851 = vst [vmem:[%s2838 + $0x8] sm:$0xf] %v2850
  %v2852 = vld [vmem:[%s2838 + $0xc] sm:$0x1]
  %v2853 = vsel %vm2845, %v2693, %v2852
  %2854 = vst [vmem:[%s2838 + $0xc] sm:$0x1] %v2853
  %v2855 = vld [vmem:[%s2838 + $0x10] sm:$0xf]
  %v2856 = vsel %vm2840, %v2700, %v2855
  %2857 = vst [vmem:[%s2838 + $0x10] sm:$0xf] %v2856
  %v2858 = vld [vmem:[%s2838 + $0x14] sm:$0x1]
  %v2859 = vsel %vm2845, %v2701, %v2858
  %2860 = vst [vmem:[%s2838 + $0x14] sm:$0x1] %v2859
  %v2861 = vld [vmem:[%s2838 + $0x18] sm:$0xf]
  %v2862 = vsel %vm2840, %v2708, %v2861
  %2863 = vst [vmem:[%s2838 + $0x18] sm:$0xf] %v2862
  %v2864 = vld [vmem:[%s2838 + $0x1c] sm:$0x1]
  %v2865 = vsel %vm2845, %v2709, %v2864
  %2866 = vst [vmem:[%s2838 + $0x1c] sm:$0x1] %v2865
  %v2867 = vld [vmem:[%s2838 + $0x20] sm:$0xf]
  %v2868 = vsel %vm2840, %v2716, %v2867
  %2869 = vst [vmem:[%s2838 + $0x20] sm:$0xf] %v2868
  %v2870 = vld [vmem:[%s2838 + $0x24] sm:$0x1]
  %v2871 = vsel %vm2845, %v2717, %v2870
  %2872 = vst [vmem:[%s2838 + $0x24] sm:$0x1] %v2871
  %v2873 = vld [vmem:[%s2838 + $0x28] sm:$0xf]
  %v2874 = vsel %vm2840, %v2724, %v2873
  %2875 = vst [vmem:[%s2838 + $0x28] sm:$0xf] %v2874
  %v2876 = vld [vmem:[%s2838 + $0x2c] sm:$0x1]
  %v2877 = vsel %vm2845, %v2725, %v2876
  %2878 = vst [vmem:[%s2838 + $0x2c] sm:$0x1] %v2877
  %v2879 = vld [vmem:[%s2838 + $0x30] sm:$0xf]
  %v2880 = vsel %vm2840, %v2732, %v2879
  %2881 = vst [vmem:[%s2838 + $0x30] sm:$0xf] %v2880
  %v2882 = vld [vmem:[%s2838 + $0x34] sm:$0x1]
  %v2883 = vsel %vm2845, %v2733, %v2882
  %2884 = vst [vmem:[%s2838 + $0x34] sm:$0x1] %v2883
  %v2885 = vld [vmem:[%s2838 + $0x38] sm:$0xf]
  %v2886 = vsel %vm2840, %v2740, %v2885
  %2887 = vst [vmem:[%s2838 + $0x38] sm:$0xf] %v2886
  %v2888 = vld [vmem:[%s2838 + $0x3c] sm:$0x1]
  %v2889 = vsel %vm2845, %v2741, %v2888
  %2890 = vst [vmem:[%s2838 + $0x3c] sm:$0x1] %v2889
  %v2891 = vld [vmem:[%s2838 + $0x50] sm:$0xf]
  %v2892 = vsel %vm2840, %v2748, %v2891
  %2893 = vst [vmem:[%s2838 + $0x50] sm:$0xf] %v2892
  %v2894 = vld [vmem:[%s2838 + $0x54] sm:$0x1]
  %v2895 = vsel %vm2845, %v2749, %v2894
  %2896 = vst [vmem:[%s2838 + $0x54] sm:$0x1] %v2895
  %v2897 = vld [vmem:[%s2838 + $0x58] sm:$0xf]
  %v2898 = vsel %vm2840, %v2756, %v2897
  %2899 = vst [vmem:[%s2838 + $0x58] sm:$0xf] %v2898
  %v2900 = vld [vmem:[%s2838 + $0x5c] sm:$0x1]
  %v2901 = vsel %vm2845, %v2757, %v2900
  %2902 = vst [vmem:[%s2838 + $0x5c] sm:$0x1] %v2901
  %v2903 = vld [vmem:[%s2838 + $0x60] sm:$0xf]
  %v2904 = vsel %vm2840, %v2764, %v2903
  %2905 = vst [vmem:[%s2838 + $0x60] sm:$0xf] %v2904
  %v2906 = vld [vmem:[%s2838 + $0x64] sm:$0x1]
  %v2907 = vsel %vm2845, %v2765, %v2906
  %2908 = vst [vmem:[%s2838 + $0x64] sm:$0x1] %v2907
  %v2909 = vld [vmem:[%s2838 + $0x68] sm:$0xf]
  %v2910 = vsel %vm2840, %v2772, %v2909
  %2911 = vst [vmem:[%s2838 + $0x68] sm:$0xf] %v2910
  %v2912 = vld [vmem:[%s2838 + $0x6c] sm:$0x1]
  %v2913 = vsel %vm2845, %v2773, %v2912
  %2914 = vst [vmem:[%s2838 + $0x6c] sm:$0x1] %v2913
  %v2915 = vld [vmem:[%s2838 + $0x70] sm:$0xf]
  %v2916 = vsel %vm2840, %v2780, %v2915
  %2917 = vst [vmem:[%s2838 + $0x70] sm:$0xf] %v2916
  %v2918 = vld [vmem:[%s2838 + $0x74] sm:$0x1]
  %v2919 = vsel %vm2845, %v2781, %v2918
  %2920 = vst [vmem:[%s2838 + $0x74] sm:$0x1] %v2919
  %v2921 = vld [vmem:[%s2838 + $0x78] sm:$0xf]
  %v2922 = vsel %vm2840, %v2788, %v2921
  %2923 = vst [vmem:[%s2838 + $0x78] sm:$0xf] %v2922
  %v2924 = vld [vmem:[%s2838 + $0x7c] sm:$0x1]
  %v2925 = vsel %vm2845, %v2789, %v2924
  %2926 = vst [vmem:[%s2838 + $0x7c] sm:$0x1] %v2925
  %v2927 = vld [vmem:[%s2838 + $0x80] sm:$0xf]
  %v2928 = vsel %vm2840, %v2796, %v2927
  %2929 = vst [vmem:[%s2838 + $0x80] sm:$0xf] %v2928
  %v2930 = vld [vmem:[%s2838 + $0x84] sm:$0x1]
  %v2931 = vsel %vm2845, %v2797, %v2930
  %2932 = vst [vmem:[%s2838 + $0x84] sm:$0x1] %v2931
  %v2933 = vld [vmem:[%s2838 + $0x88] sm:$0xf]
  %v2934 = vsel %vm2840, %v2804, %v2933
  %2935 = vst [vmem:[%s2838 + $0x88] sm:$0xf] %v2934
  %v2936 = vld [vmem:[%s2838 + $0x8c] sm:$0x1]
  %v2937 = vsel %vm2845, %v2805, %v2936
  %2938 = vst [vmem:[%s2838 + $0x8c] sm:$0x1] %v2937
  %v2939 = vld [vmem:[#allocation3] sm:$0xf]
  %v2940 = vld [vmem:[#allocation3 + $0x8] sm:$0xf]
  %v2941 = vld [vmem:[#allocation3 + $0x10] sm:$0xf]
  %v2942 = vld [vmem:[#allocation3 + $0x18] sm:$0xf]
  %v2943 = vld [vmem:[#allocation3 + $0x20] sm:$0xf]
  %v2944 = vld [vmem:[#allocation3 + $0x28] sm:$0xf]
  %v2945 = vld [vmem:[#allocation3 + $0x30] sm:$0xf]
  %v2946 = vld [vmem:[#allocation3 + $0x38] sm:$0xf]
  %v2947 = vld [vmem:[#allocation3 + $0x50] sm:$0xf]
  %v2948 = vld [vmem:[#allocation3 + $0x58] sm:$0xf]
  %v2949 = vld [vmem:[#allocation3 + $0x60] sm:$0xf]
  %v2950 = vld [vmem:[#allocation3 + $0x68] sm:$0xf]
  %v2951 = vld [vmem:[#allocation3 + $0x70] sm:$0xf]
  %v2952 = vld [vmem:[#allocation3 + $0x78] sm:$0xf]
  %v2953 = vld [vmem:[#allocation3 + $0x80] sm:$0xf]
  %v2954 = vld [vmem:[#allocation3 + $0x88] sm:$0xf]
  %v2955 = vld [vmem:[#allocation3 + $0x4] sm:$0x1]
  %v2956 = vld [vmem:[#allocation3 + $0xc] sm:$0x1]
  %v2957 = vld [vmem:[#allocation3 + $0x14] sm:$0x1]
  %v2958 = vld [vmem:[#allocation3 + $0x1c] sm:$0x1]
  %v2959 = vld [vmem:[#allocation3 + $0x24] sm:$0x1]
  %v2960 = vld [vmem:[#allocation3 + $0x2c] sm:$0x1]
  %v2961 = vld [vmem:[#allocation3 + $0x34] sm:$0x1]
  %v2962 = vld [vmem:[#allocation3 + $0x3c] sm:$0x1]
  %v2963 = vld [vmem:[#allocation3 + $0x54] sm:$0x1]
  %v2964 = vld [vmem:[#allocation3 + $0x5c] sm:$0x1]
  %v2965 = vld [vmem:[#allocation3 + $0x64] sm:$0x1]
  %v2966 = vld [vmem:[#allocation3 + $0x6c] sm:$0x1]
  %v2967 = vld [vmem:[#allocation3 + $0x74] sm:$0x1]
  %v2968 = vld [vmem:[#allocation3 + $0x7c] sm:$0x1]
  %v2969 = vld [vmem:[#allocation3 + $0x84] sm:$0x1]
  %v2970 = vld [vmem:[#allocation3 + $0x8c] sm:$0x1]
  %v2971 = vld [vmem:[#allocation3] sm:$0xe]
  %v2972 = vld [vmem:[#allocation3 + $0x8] sm:$0xe]
  %v2973 = vld [vmem:[#allocation3 + $0x10] sm:$0xe]
  %v2974 = vld [vmem:[#allocation3 + $0x18] sm:$0xe]
  %v2975 = vld [vmem:[#allocation3 + $0x20] sm:$0xe]
  %v2976 = vld [vmem:[#allocation3 + $0x28] sm:$0xe]
  %v2977 = vld [vmem:[#allocation3 + $0x30] sm:$0xe]
  %v2978 = vld [vmem:[#allocation3 + $0x38] sm:$0xe]
  %v2979 = vld [vmem:[#allocation3 + $0x50] sm:$0xe]
  %v2980 = vld [vmem:[#allocation3 + $0x58] sm:$0xe]
  %v2981 = vld [vmem:[#allocation3 + $0x60] sm:$0xe]
  %v2982 = vld [vmem:[#allocation3 + $0x68] sm:$0xe]
  %v2983 = vld [vmem:[#allocation3 + $0x70] sm:$0xe]
  %v2984 = vld [vmem:[#allocation3 + $0x78] sm:$0xe]
  %v2985 = vld [vmem:[#allocation3 + $0x80] sm:$0xe]
  %v2986 = vld [vmem:[#allocation3 + $0x88] sm:$0xe]
  %v2987 = vld [vmem:[%s2838] sm:$0xf]
  %v2988 = vld [vmem:[%s2838 + $0x8] sm:$0xf]
  %v2989 = vld [vmem:[%s2838 + $0x10] sm:$0xf]
  %v2990 = vld [vmem:[%s2838 + $0x18] sm:$0xf]
  %v2991 = vld [vmem:[%s2838 + $0x20] sm:$0xf]
  %v2992 = vld [vmem:[%s2838 + $0x28] sm:$0xf]
  %v2993 = vld [vmem:[%s2838 + $0x30] sm:$0xf]
  %v2994 = vld [vmem:[%s2838 + $0x38] sm:$0xf]
  %v2995 = vld [vmem:[%s2838 + $0x50] sm:$0xf]
  %v2996 = vld [vmem:[%s2838 + $0x58] sm:$0xf]
  %v2997 = vld [vmem:[%s2838 + $0x60] sm:$0xf]
  %v2998 = vld [vmem:[%s2838 + $0x68] sm:$0xf]
  %v2999 = vld [vmem:[%s2838 + $0x70] sm:$0xf]
  %v3000 = vld [vmem:[%s2838 + $0x78] sm:$0xf]
  %v3001 = vld [vmem:[%s2838 + $0x80] sm:$0xf]
  %v3002 = vld [vmem:[%s2838 + $0x88] sm:$0xf]
  %v3003 = vld [vmem:[%s2838 + $0x4] sm:$0x1]
  %v3004 = vld [vmem:[%s2838 + $0xc] sm:$0x1]
  %v3005 = vld [vmem:[%s2838 + $0x14] sm:$0x1]
  %v3006 = vld [vmem:[%s2838 + $0x1c] sm:$0x1]
  %v3007 = vld [vmem:[%s2838 + $0x24] sm:$0x1]
  %v3008 = vld [vmem:[%s2838 + $0x2c] sm:$0x1]
  %v3009 = vld [vmem:[%s2838 + $0x34] sm:$0x1]
  %v3010 = vld [vmem:[%s2838 + $0x3c] sm:$0x1]
  %v3011 = vld [vmem:[%s2838 + $0x54] sm:$0x1]
  %v3012 = vld [vmem:[%s2838 + $0x5c] sm:$0x1]
  %v3013 = vld [vmem:[%s2838 + $0x64] sm:$0x1]
  %v3014 = vld [vmem:[%s2838 + $0x6c] sm:$0x1]
  %v3015 = vld [vmem:[%s2838 + $0x74] sm:$0x1]
  %v3016 = vld [vmem:[%s2838 + $0x7c] sm:$0x1]
  %v3017 = vld [vmem:[%s2838 + $0x84] sm:$0x1]
  %v3018 = vld [vmem:[%s2838 + $0x8c] sm:$0x1]
  %v3019 = vld [vmem:[%s2838] sm:$0xe]
  %v3020 = vld [vmem:[%s2838 + $0x8] sm:$0xe]
  %v3021 = vld [vmem:[%s2838 + $0x10] sm:$0xe]
  %v3022 = vld [vmem:[%s2838 + $0x18] sm:$0xe]
  %v3023 = vld [vmem:[%s2838 + $0x20] sm:$0xe]
  %v3024 = vld [vmem:[%s2838 + $0x28] sm:$0xe]
  %v3025 = vld [vmem:[%s2838 + $0x30] sm:$0xe]
  %v3026 = vld [vmem:[%s2838 + $0x38] sm:$0xe]
  %v3027 = vld [vmem:[%s2838 + $0x50] sm:$0xe]
  %v3028 = vld [vmem:[%s2838 + $0x58] sm:$0xe]
  %v3029 = vld [vmem:[%s2838 + $0x60] sm:$0xe]
  %v3030 = vld [vmem:[%s2838 + $0x68] sm:$0xe]
  %v3031 = vld [vmem:[%s2838 + $0x70] sm:$0xe]
  %v3032 = vld [vmem:[%s2838 + $0x78] sm:$0xe]
  %v3033 = vld [vmem:[%s2838 + $0x80] sm:$0xe]
  %v3034 = vld [vmem:[%s2838 + $0x88] sm:$0xe]
  %s3035 = scalar_lea.vmem [#allocation3], 16
  %v3036 = vld [vmem:[%s3035] sm:$0xf]
  %v3037 = vld [vmem:[%s3035 + $0x8] sm:$0xf]
  %v3038 = vld [vmem:[%s3035 + $0x10] sm:$0xf]
  %v3039 = vld [vmem:[%s3035 + $0x18] sm:$0xf]
  %v3040 = vld [vmem:[%s3035 + $0x20] sm:$0xf]
  %v3041 = vld [vmem:[%s3035 + $0x28] sm:$0xf]
  %v3042 = vld [vmem:[%s3035 + $0x30] sm:$0xf]
  %v3043 = vld [vmem:[%s3035 + $0x38] sm:$0xf]
  %v3044 = vld [vmem:[%s3035 + $0x50] sm:$0xf]
  %v3045 = vld [vmem:[%s3035 + $0x58] sm:$0xf]
  %v3046 = vld [vmem:[%s3035 + $0x60] sm:$0xf]
  %v3047 = vld [vmem:[%s3035 + $0x68] sm:$0xf]
  %v3048 = vld [vmem:[%s3035 + $0x70] sm:$0xf]
  %v3049 = vld [vmem:[%s3035 + $0x78] sm:$0xf]
  %v3050 = vld [vmem:[%s3035 + $0x80] sm:$0xf]
  %v3051 = vld [vmem:[%s3035 + $0x88] sm:$0xf]
  %v3052 = vld [vmem:[%s3035 + $0x4] sm:$0x1]
  %v3053 = vld [vmem:[%s3035 + $0xc] sm:$0x1]
  %v3054 = vld [vmem:[%s3035 + $0x14] sm:$0x1]
  %v3055 = vld [vmem:[%s3035 + $0x1c] sm:$0x1]
  %v3056 = vld [vmem:[%s3035 + $0x24] sm:$0x1]
  %v3057 = vld [vmem:[%s3035 + $0x2c] sm:$0x1]
  %v3058 = vld [vmem:[%s3035 + $0x34] sm:$0x1]
  %v3059 = vld [vmem:[%s3035 + $0x3c] sm:$0x1]
  %v3060 = vld [vmem:[%s3035 + $0x54] sm:$0x1]
  %v3061 = vld [vmem:[%s3035 + $0x5c] sm:$0x1]
  %v3062 = vld [vmem:[%s3035 + $0x64] sm:$0x1]
  %v3063 = vld [vmem:[%s3035 + $0x6c] sm:$0x1]
  %v3064 = vld [vmem:[%s3035 + $0x74] sm:$0x1]
  %v3065 = vld [vmem:[%s3035 + $0x7c] sm:$0x1]
  %v3066 = vld [vmem:[%s3035 + $0x84] sm:$0x1]
  %v3067 = vld [vmem:[%s3035 + $0x8c] sm:$0x1]
  %v3068 = vld [vmem:[%s3035] sm:$0xe]
  %v3069 = vld [vmem:[%s3035 + $0x8] sm:$0xe]
  %v3070 = vld [vmem:[%s3035 + $0x10] sm:$0xe]
  %v3071 = vld [vmem:[%s3035 + $0x18] sm:$0xe]
  %v3072 = vld [vmem:[%s3035 + $0x20] sm:$0xe]
  %v3073 = vld [vmem:[%s3035 + $0x28] sm:$0xe]
  %v3074 = vld [vmem:[%s3035 + $0x30] sm:$0xe]
  %v3075 = vld [vmem:[%s3035 + $0x38] sm:$0xe]
  %v3076 = vld [vmem:[%s3035 + $0x50] sm:$0xe]
  %v3077 = vld [vmem:[%s3035 + $0x58] sm:$0xe]
  %v3078 = vld [vmem:[%s3035 + $0x60] sm:$0xe]
  %v3079 = vld [vmem:[%s3035 + $0x68] sm:$0xe]
  %v3080 = vld [vmem:[%s3035 + $0x70] sm:$0xe]
  %v3081 = vld [vmem:[%s3035 + $0x78] sm:$0xe]
  %v3082 = vld [vmem:[%s3035 + $0x80] sm:$0xe]
  %v3083 = vld [vmem:[%s3035 + $0x88] sm:$0xe]
  %v3116 = vunpack.c.l.b16 %v2939
  %v3117 = vunpack.c.l.b16 %v2955
  %v3118 = vunpack.c.l.b16 %v2940
  %v3119 = vunpack.c.l.b16 %v2956
  %v3120 = vunpack.c.l.b16 %v2941
  %v3121 = vunpack.c.l.b16 %v2957
  %v3122 = vunpack.c.l.b16 %v2942
  %v3123 = vunpack.c.l.b16 %v2958
  %v3124 = vunpack.c.l.b16 %v2943
  %v3125 = vunpack.c.l.b16 %v2959
  %v3126 = vunpack.c.l.b16 %v2944
  %v3127 = vunpack.c.l.b16 %v2960
  %v3128 = vunpack.c.l.b16 %v2945
  %v3129 = vunpack.c.l.b16 %v2961
  %v3130 = vunpack.c.l.b16 %v2946
  %v3131 = vunpack.c.l.b16 %v2962
  %v3132 = vunpack.c.l.b16 %v2947
  %v3133 = vunpack.c.l.b16 %v2963
  %v3134 = vunpack.c.l.b16 %v2948
  %v3135 = vunpack.c.l.b16 %v2964
  %v3136 = vunpack.c.l.b16 %v2949
  %v3137 = vunpack.c.l.b16 %v2965
  %v3138 = vunpack.c.l.b16 %v2950
  %v3139 = vunpack.c.l.b16 %v2966
  %v3140 = vunpack.c.l.b16 %v2951
  %v3141 = vunpack.c.l.b16 %v2967
  %v3142 = vunpack.c.l.b16 %v2952
  %v3143 = vunpack.c.l.b16 %v2968
  %v3144 = vunpack.c.l.b16 %v2953
  %v3145 = vunpack.c.l.b16 %v2969
  %v3146 = vunpack.c.l.b16 %v2954
  %v3147 = vunpack.c.l.b16 %v2970
  %v3148 = vpack.c.b16 %v3117, %v3116
  %v3149 = vpack.c.b16 %v3119, %v3118
  %v3150 = vpack.c.b16 %v3121, %v3120
  %v3151 = vpack.c.b16 %v3123, %v3122
  %v3152 = vpack.c.b16 %v3125, %v3124
  %v3153 = vpack.c.b16 %v3127, %v3126
  %v3154 = vpack.c.b16 %v3129, %v3128
  %v3155 = vpack.c.b16 %v3131, %v3130
  %v3156 = vpack.c.b16 %v3133, %v3132
  %v3157 = vpack.c.b16 %v3135, %v3134
  %v3158 = vpack.c.b16 %v3137, %v3136
  %v3159 = vpack.c.b16 %v3139, %v3138
  %v3160 = vpack.c.b16 %v3141, %v3140
  %v3161 = vpack.c.b16 %v3143, %v3142
  %v3162 = vpack.c.b16 %v3145, %v3144
  %v3163 = vpack.c.b16 %v3147, %v3146
  %v3165 = vshrl.u32 %v3148, 16
  %v3167 = vshll.u32 %v3148, 16
  %v3169 = vrot.slane %v3167, 1
  %v3170 = vor.u32 %v3165, %v3169
  %v3172 = vshrl.u32 %v3149, 16
  %v3174 = vshll.u32 %v3149, 16
  %v3176 = vrot.slane %v3174, 1
  %v3177 = vor.u32 %v3172, %v3176
  %v3179 = vshrl.u32 %v3150, 16
  %v3181 = vshll.u32 %v3150, 16
  %v3183 = vrot.slane %v3181, 1
  %v3184 = vor.u32 %v3179, %v3183
  %v3186 = vshrl.u32 %v3151, 16
  %v3188 = vshll.u32 %v3151, 16
  %v3190 = vrot.slane %v3188, 1
  %v3191 = vor.u32 %v3186, %v3190
  %v3193 = vshrl.u32 %v3152, 16
  %v3195 = vshll.u32 %v3152, 16
  %v3197 = vrot.slane %v3195, 1
  %v3198 = vor.u32 %v3193, %v3197
  %v3200 = vshrl.u32 %v3153, 16
  %v3202 = vshll.u32 %v3153, 16
  %v3204 = vrot.slane %v3202, 1
  %v3205 = vor.u32 %v3200, %v3204
  %v3207 = vshrl.u32 %v3154, 16
  %v3209 = vshll.u32 %v3154, 16
  %v3211 = vrot.slane %v3209, 1
  %v3212 = vor.u32 %v3207, %v3211
  %v3214 = vshrl.u32 %v3155, 16
  %v3216 = vshll.u32 %v3155, 16
  %v3218 = vrot.slane %v3216, 1
  %v3219 = vor.u32 %v3214, %v3218
  %v3221 = vshrl.u32 %v3156, 16
  %v3223 = vshll.u32 %v3156, 16
  %v3225 = vrot.slane %v3223, 1
  %v3226 = vor.u32 %v3221, %v3225
  %v3228 = vshrl.u32 %v3157, 16
  %v3230 = vshll.u32 %v3157, 16
  %v3232 = vrot.slane %v3230, 1
  %v3233 = vor.u32 %v3228, %v3232
  %v3235 = vshrl.u32 %v3158, 16
  %v3237 = vshll.u32 %v3158, 16
  %v3239 = vrot.slane %v3237, 1
  %v3240 = vor.u32 %v3235, %v3239
  %v3242 = vshrl.u32 %v3159, 16
  %v3244 = vshll.u32 %v3159, 16
  %v3246 = vrot.slane %v3244, 1
  %v3247 = vor.u32 %v3242, %v3246
  %v3249 = vshrl.u32 %v3160, 16
  %v3251 = vshll.u32 %v3160, 16
  %v3253 = vrot.slane %v3251, 1
  %v3254 = vor.u32 %v3249, %v3253
  %v3256 = vshrl.u32 %v3161, 16
  %v3258 = vshll.u32 %v3161, 16
  %v3260 = vrot.slane %v3258, 1
  %v3261 = vor.u32 %v3256, %v3260
  %v3263 = vshrl.u32 %v3162, 16
  %v3265 = vshll.u32 %v3162, 16
  %v3267 = vrot.slane %v3265, 1
  %v3268 = vor.u32 %v3263, %v3267
  %v3270 = vshrl.u32 %v3163, 16
  %v3272 = vshll.u32 %v3163, 16
  %v3274 = vrot.slane %v3272, 1
  %v3275 = vor.u32 %v3270, %v3274
  %3276 = vrot.lane.b32.xlu0 %v3170, 8
  %v3277 = vpop.permute.xlu0 %3276
  %3278 = vrot.lane.b32.xlu0 %v3177, 8
  %v3279 = vpop.permute.xlu0 %3278
  %3280 = vrot.lane.b32.xlu0 %v3184, 8
  %v3281 = vpop.permute.xlu0 %3280
  %3282 = vrot.lane.b32.xlu0 %v3191, 8
  %v3283 = vpop.permute.xlu0 %3282
  %3284 = vrot.lane.b32.xlu0 %v3198, 8
  %v3285 = vpop.permute.xlu0 %3284
  %3286 = vrot.lane.b32.xlu0 %v3205, 8
  %v3287 = vpop.permute.xlu0 %3286
  %3288 = vrot.lane.b32.xlu0 %v3212, 8
  %v3289 = vpop.permute.xlu0 %3288
  %3290 = vrot.lane.b32.xlu0 %v3219, 8
  %v3291 = vpop.permute.xlu0 %3290
  %3292 = vrot.lane.b32.xlu0 %v3226, 8
  %v3293 = vpop.permute.xlu0 %3292
  %3294 = vrot.lane.b32.xlu0 %v3233, 8
  %v3295 = vpop.permute.xlu0 %3294
  %3296 = vrot.lane.b32.xlu0 %v3240, 8
  %v3297 = vpop.permute.xlu0 %3296
  %3298 = vrot.lane.b32.xlu0 %v3247, 8
  %v3299 = vpop.permute.xlu0 %3298
  %3300 = vrot.lane.b32.xlu0 %v3254, 8
  %v3301 = vpop.permute.xlu0 %3300
  %3302 = vrot.lane.b32.xlu0 %v3261, 8
  %v3303 = vpop.permute.xlu0 %3302
  %3304 = vrot.lane.b32.xlu0 %v3268, 8
  %v3305 = vpop.permute.xlu0 %3304
  %3306 = vrot.lane.b32.xlu0 %v3275, 8
  %v3307 = vpop.permute.xlu0 %3306
  %v3324 = vunpack.c.l.b16 %v2971
  %v3325 = vunpack.c.l.b16 %v2972
  %v3326 = vunpack.c.l.b16 %v2973
  %v3327 = vunpack.c.l.b16 %v2974
  %v3328 = vunpack.c.l.b16 %v2975
  %v3329 = vunpack.c.l.b16 %v2976
  %v3330 = vunpack.c.l.b16 %v2977
  %v3331 = vunpack.c.l.b16 %v2978
  %v3332 = vunpack.c.l.b16 %v2979
  %v3333 = vunpack.c.l.b16 %v2980
  %v3334 = vunpack.c.l.b16 %v2981
  %v3335 = vunpack.c.l.b16 %v2982
  %v3336 = vunpack.c.l.b16 %v2983
  %v3337 = vunpack.c.l.b16 %v2984
  %v3338 = vunpack.c.l.b16 %v2985
  %v3339 = vunpack.c.l.b16 %v2986
  %v3340 = vpack.c.b16 %v3117, %v3324
  %v3341 = vpack.c.b16 %v3119, %v3325
  %v3342 = vpack.c.b16 %v3121, %v3326
  %v3343 = vpack.c.b16 %v3123, %v3327
  %v3344 = vpack.c.b16 %v3125, %v3328
  %v3345 = vpack.c.b16 %v3127, %v3329
  %v3346 = vpack.c.b16 %v3129, %v3330
  %v3347 = vpack.c.b16 %v3131, %v3331
  %v3348 = vpack.c.b16 %v3133, %v3332
  %v3349 = vpack.c.b16 %v3135, %v3333
  %v3350 = vpack.c.b16 %v3137, %v3334
  %v3351 = vpack.c.b16 %v3139, %v3335
  %v3352 = vpack.c.b16 %v3141, %v3336
  %v3353 = vpack.c.b16 %v3143, %v3337
  %v3354 = vpack.c.b16 %v3145, %v3338
  %v3355 = vpack.c.b16 %v3147, %v3339
  %v3356 = vrot.slane %v3340, 1
  %v3357 = vrot.slane %v3341, 1
  %v3358 = vrot.slane %v3342, 1
  %v3359 = vrot.slane %v3343, 1
  %v3360 = vrot.slane %v3344, 1
  %v3361 = vrot.slane %v3345, 1
  %v3362 = vrot.slane %v3346, 1
  %v3363 = vrot.slane %v3347, 1
  %v3364 = vrot.slane %v3348, 1
  %v3365 = vrot.slane %v3349, 1
  %v3366 = vrot.slane %v3350, 1
  %v3367 = vrot.slane %v3351, 1
  %v3368 = vrot.slane %v3352, 1
  %v3369 = vrot.slane %v3353, 1
  %v3370 = vrot.slane %v3354, 1
  %v3371 = vrot.slane %v3355, 1
  %3372 = vrot.lane.b32.xlu0 %v3356, 16
  %v3373 = vpop.permute.xlu0 %3372
  %3374 = vrot.lane.b32.xlu0 %v3357, 16
  %v3375 = vpop.permute.xlu0 %3374
  %3376 = vrot.lane.b32.xlu0 %v3358, 16
  %v3377 = vpop.permute.xlu0 %3376
  %3378 = vrot.lane.b32.xlu0 %v3359, 16
  %v3379 = vpop.permute.xlu0 %3378
  %3380 = vrot.lane.b32.xlu0 %v3360, 16
  %v3381 = vpop.permute.xlu0 %3380
  %3382 = vrot.lane.b32.xlu0 %v3361, 16
  %v3383 = vpop.permute.xlu0 %3382
  %3384 = vrot.lane.b32.xlu0 %v3362, 16
  %v3385 = vpop.permute.xlu0 %3384
  %3386 = vrot.lane.b32.xlu0 %v3363, 16
  %v3387 = vpop.permute.xlu0 %3386
  %3388 = vrot.lane.b32.xlu0 %v3364, 16
  %v3389 = vpop.permute.xlu0 %3388
  %3390 = vrot.lane.b32.xlu0 %v3365, 16
  %v3391 = vpop.permute.xlu0 %3390
  %3392 = vrot.lane.b32.xlu0 %v3366, 16
  %v3393 = vpop.permute.xlu0 %3392
  %3394 = vrot.lane.b32.xlu0 %v3367, 16
  %v3395 = vpop.permute.xlu0 %3394
  %3396 = vrot.lane.b32.xlu0 %v3368, 16
  %v3397 = vpop.permute.xlu0 %3396
  %3398 = vrot.lane.b32.xlu0 %v3369, 16
  %v3399 = vpop.permute.xlu0 %3398
  %3400 = vrot.lane.b32.xlu0 %v3370, 16
  %v3401 = vpop.permute.xlu0 %3400
  %3402 = vrot.lane.b32.xlu0 %v3371, 16
  %v3403 = vpop.permute.xlu0 %3402
  %v3420 = vunpack.c.l.b16 %v2987
  %v3421 = vunpack.c.l.b16 %v2988
  %v3422 = vunpack.c.l.b16 %v2989
  %v3423 = vunpack.c.l.b16 %v2990
  %v3424 = vunpack.c.l.b16 %v2991
  %v3425 = vunpack.c.l.b16 %v2992
  %v3426 = vunpack.c.l.b16 %v2993
  %v3427 = vunpack.c.l.b16 %v2994
  %v3428 = vunpack.c.l.b16 %v2995
  %v3429 = vunpack.c.l.b16 %v2996
  %v3430 = vunpack.c.l.b16 %v2997
  %v3431 = vunpack.c.l.b16 %v2998
  %v3432 = vunpack.c.l.b16 %v2999
  %v3433 = vunpack.c.l.b16 %v3000
  %v3434 = vunpack.c.l.b16 %v3001
  %v3435 = vunpack.c.l.b16 %v3002
  %v3436 = vpack.c.b16 %v3420, %v3420
  %v3437 = vpack.c.b16 %v3421, %v3421
  %v3438 = vpack.c.b16 %v3422, %v3422
  %v3439 = vpack.c.b16 %v3423, %v3423
  %v3440 = vpack.c.b16 %v3424, %v3424
  %v3441 = vpack.c.b16 %v3425, %v3425
  %v3442 = vpack.c.b16 %v3426, %v3426
  %v3443 = vpack.c.b16 %v3427, %v3427
  %v3444 = vpack.c.b16 %v3428, %v3428
  %v3445 = vpack.c.b16 %v3429, %v3429
  %v3446 = vpack.c.b16 %v3430, %v3430
  %v3447 = vpack.c.b16 %v3431, %v3431
  %v3448 = vpack.c.b16 %v3432, %v3432
  %v3449 = vpack.c.b16 %v3433, %v3433
  %v3450 = vpack.c.b16 %v3434, %v3434
  %v3451 = vpack.c.b16 %v3435, %v3435
  %3452 = vrot.lane.b32.xlu0 %v3436, 24
  %v3453 = vpop.permute.xlu0 %3452
  %3454 = vrot.lane.b32.xlu0 %v3437, 24
  %v3455 = vpop.permute.xlu0 %3454
  %3456 = vrot.lane.b32.xlu0 %v3438, 24
  %v3457 = vpop.permute.xlu0 %3456
  %3458 = vrot.lane.b32.xlu0 %v3439, 24
  %v3459 = vpop.permute.xlu0 %3458
  %3460 = vrot.lane.b32.xlu0 %v3440, 24
  %v3461 = vpop.permute.xlu0 %3460
  %3462 = vrot.lane.b32.xlu0 %v3441, 24
  %v3463 = vpop.permute.xlu0 %3462
  %3464 = vrot.lane.b32.xlu0 %v3442, 24
  %v3465 = vpop.permute.xlu0 %3464
  %3466 = vrot.lane.b32.xlu0 %v3443, 24
  %v3467 = vpop.permute.xlu0 %3466
  %3468 = vrot.lane.b32.xlu0 %v3444, 24
  %v3469 = vpop.permute.xlu0 %3468
  %3470 = vrot.lane.b32.xlu0 %v3445, 24
  %v3471 = vpop.permute.xlu0 %3470
  %3472 = vrot.lane.b32.xlu0 %v3446, 24
  %v3473 = vpop.permute.xlu0 %3472
  %3474 = vrot.lane.b32.xlu0 %v3447, 24
  %v3475 = vpop.permute.xlu0 %3474
  %3476 = vrot.lane.b32.xlu0 %v3448, 24
  %v3477 = vpop.permute.xlu0 %3476
  %3478 = vrot.lane.b32.xlu0 %v3449, 24
  %v3479 = vpop.permute.xlu0 %3478
  %3480 = vrot.lane.b32.xlu0 %v3450, 24
  %v3481 = vpop.permute.xlu0 %3480
  %3482 = vrot.lane.b32.xlu0 %v3451, 24
  %v3483 = vpop.permute.xlu0 %3482
  %v3500 = vunpack.c.l.b16 %v3003
  %v3501 = vunpack.c.l.b16 %v3004
  %v3502 = vunpack.c.l.b16 %v3005
  %v3503 = vunpack.c.l.b16 %v3006
  %v3504 = vunpack.c.l.b16 %v3007
  %v3505 = vunpack.c.l.b16 %v3008
  %v3506 = vunpack.c.l.b16 %v3009
  %v3507 = vunpack.c.l.b16 %v3010
  %v3508 = vunpack.c.l.b16 %v3011
  %v3509 = vunpack.c.l.b16 %v3012
  %v3510 = vunpack.c.l.b16 %v3013
  %v3511 = vunpack.c.l.b16 %v3014
  %v3512 = vunpack.c.l.b16 %v3015
  %v3513 = vunpack.c.l.b16 %v3016
  %v3514 = vunpack.c.l.b16 %v3017
  %v3515 = vunpack.c.l.b16 %v3018
  %v3516 = vpack.c.b16 %v3500, %v3420
  %v3517 = vpack.c.b16 %v3501, %v3421
  %v3518 = vpack.c.b16 %v3502, %v3422
  %v3519 = vpack.c.b16 %v3503, %v3423
  %v3520 = vpack.c.b16 %v3504, %v3424
  %v3521 = vpack.c.b16 %v3505, %v3425
  %v3522 = vpack.c.b16 %v3506, %v3426
  %v3523 = vpack.c.b16 %v3507, %v3427
  %v3524 = vpack.c.b16 %v3508, %v3428
  %v3525 = vpack.c.b16 %v3509, %v3429
  %v3526 = vpack.c.b16 %v3510, %v3430
  %v3527 = vpack.c.b16 %v3511, %v3431
  %v3528 = vpack.c.b16 %v3512, %v3432
  %v3529 = vpack.c.b16 %v3513, %v3433
  %v3530 = vpack.c.b16 %v3514, %v3434
  %v3531 = vpack.c.b16 %v3515, %v3435
  %v3533 = vshrl.u32 %v3516, 16
  %v3535 = vshll.u32 %v3516, 16
  %v3537 = vrot.slane %v3535, 1
  %v3538 = vor.u32 %v3533, %v3537
  %v3540 = vshrl.u32 %v3517, 16
  %v3542 = vshll.u32 %v3517, 16
  %v3544 = vrot.slane %v3542, 1
  %v3545 = vor.u32 %v3540, %v3544
  %v3547 = vshrl.u32 %v3518, 16
  %v3549 = vshll.u32 %v3518, 16
  %v3551 = vrot.slane %v3549, 1
  %v3552 = vor.u32 %v3547, %v3551
  %v3554 = vshrl.u32 %v3519, 16
  %v3556 = vshll.u32 %v3519, 16
  %v3558 = vrot.slane %v3556, 1
  %v3559 = vor.u32 %v3554, %v3558
  %v3561 = vshrl.u32 %v3520, 16
  %v3563 = vshll.u32 %v3520, 16
  %v3565 = vrot.slane %v3563, 1
  %v3566 = vor.u32 %v3561, %v3565
  %v3568 = vshrl.u32 %v3521, 16
  %v3570 = vshll.u32 %v3521, 16
  %v3572 = vrot.slane %v3570, 1
  %v3573 = vor.u32 %v3568, %v3572
  %v3575 = vshrl.u32 %v3522, 16
  %v3577 = vshll.u32 %v3522, 16
  %v3579 = vrot.slane %v3577, 1
  %v3580 = vor.u32 %v3575, %v3579
  %v3582 = vshrl.u32 %v3523, 16
  %v3584 = vshll.u32 %v3523, 16
  %v3586 = vrot.slane %v3584, 1
  %v3587 = vor.u32 %v3582, %v3586
  %v3589 = vshrl.u32 %v3524, 16
  %v3591 = vshll.u32 %v3524, 16
  %v3593 = vrot.slane %v3591, 1
  %v3594 = vor.u32 %v3589, %v3593
  %v3596 = vshrl.u32 %v3525, 16
  %v3598 = vshll.u32 %v3525, 16
  %v3600 = vrot.slane %v3598, 1
  %v3601 = vor.u32 %v3596, %v3600
  %v3603 = vshrl.u32 %v3526, 16
  %v3605 = vshll.u32 %v3526, 16
  %v3607 = vrot.slane %v3605, 1
  %v3608 = vor.u32 %v3603, %v3607
  %v3610 = vshrl.u32 %v3527, 16
  %v3612 = vshll.u32 %v3527, 16
  %v3614 = vrot.slane %v3612, 1
  %v3615 = vor.u32 %v3610, %v3614
  %v3617 = vshrl.u32 %v3528, 16
  %v3619 = vshll.u32 %v3528, 16
  %v3621 = vrot.slane %v3619, 1
  %v3622 = vor.u32 %v3617, %v3621
  %v3624 = vshrl.u32 %v3529, 16
  %v3626 = vshll.u32 %v3529, 16
  %v3628 = vrot.slane %v3626, 1
  %v3629 = vor.u32 %v3624, %v3628
  %v3631 = vshrl.u32 %v3530, 16
  %v3633 = vshll.u32 %v3530, 16
  %v3635 = vrot.slane %v3633, 1
  %v3636 = vor.u32 %v3631, %v3635
  %v3638 = vshrl.u32 %v3531, 16
  %v3640 = vshll.u32 %v3531, 16
  %v3642 = vrot.slane %v3640, 1
  %v3643 = vor.u32 %v3638, %v3642
  %3644 = vrot.lane.b32.xlu0 %v3538, 32
  %v3645 = vpop.permute.xlu0 %3644
  %3646 = vrot.lane.b32.xlu0 %v3545, 32
  %v3647 = vpop.permute.xlu0 %3646
  %3648 = vrot.lane.b32.xlu0 %v3552, 32
  %v3649 = vpop.permute.xlu0 %3648
  %3650 = vrot.lane.b32.xlu0 %v3559, 32
  %v3651 = vpop.permute.xlu0 %3650
  %3652 = vrot.lane.b32.xlu0 %v3566, 32
  %v3653 = vpop.permute.xlu0 %3652
  %3654 = vrot.lane.b32.xlu0 %v3573, 32
  %v3655 = vpop.permute.xlu0 %3654
  %3656 = vrot.lane.b32.xlu0 %v3580, 32
  %v3657 = vpop.permute.xlu0 %3656
  %3658 = vrot.lane.b32.xlu0 %v3587, 32
  %v3659 = vpop.permute.xlu0 %3658
  %3660 = vrot.lane.b32.xlu0 %v3594, 32
  %v3661 = vpop.permute.xlu0 %3660
  %3662 = vrot.lane.b32.xlu0 %v3601, 32
  %v3663 = vpop.permute.xlu0 %3662
  %3664 = vrot.lane.b32.xlu0 %v3608, 32
  %v3665 = vpop.permute.xlu0 %3664
  %3666 = vrot.lane.b32.xlu0 %v3615, 32
  %v3667 = vpop.permute.xlu0 %3666
  %3668 = vrot.lane.b32.xlu0 %v3622, 32
  %v3669 = vpop.permute.xlu0 %3668
  %3670 = vrot.lane.b32.xlu0 %v3629, 32
  %v3671 = vpop.permute.xlu0 %3670
  %3672 = vrot.lane.b32.xlu0 %v3636, 32
  %v3673 = vpop.permute.xlu0 %3672
  %3674 = vrot.lane.b32.xlu0 %v3643, 32
  %v3675 = vpop.permute.xlu0 %3674
  %v3692 = vunpack.c.l.b16 %v3019
  %v3693 = vunpack.c.l.b16 %v3020
  %v3694 = vunpack.c.l.b16 %v3021
  %v3695 = vunpack.c.l.b16 %v3022
  %v3696 = vunpack.c.l.b16 %v3023
  %v3697 = vunpack.c.l.b16 %v3024
  %v3698 = vunpack.c.l.b16 %v3025
  %v3699 = vunpack.c.l.b16 %v3026
  %v3700 = vunpack.c.l.b16 %v3027
  %v3701 = vunpack.c.l.b16 %v3028
  %v3702 = vunpack.c.l.b16 %v3029
  %v3703 = vunpack.c.l.b16 %v3030
  %v3704 = vunpack.c.l.b16 %v3031
  %v3705 = vunpack.c.l.b16 %v3032
  %v3706 = vunpack.c.l.b16 %v3033
  %v3707 = vunpack.c.l.b16 %v3034
  %v3708 = vpack.c.b16 %v3500, %v3692
  %v3709 = vpack.c.b16 %v3501, %v3693
  %v3710 = vpack.c.b16 %v3502, %v3694
  %v3711 = vpack.c.b16 %v3503, %v3695
  %v3712 = vpack.c.b16 %v3504, %v3696
  %v3713 = vpack.c.b16 %v3505, %v3697
  %v3714 = vpack.c.b16 %v3506, %v3698
  %v3715 = vpack.c.b16 %v3507, %v3699
  %v3716 = vpack.c.b16 %v3508, %v3700
  %v3717 = vpack.c.b16 %v3509, %v3701
  %v3718 = vpack.c.b16 %v3510, %v3702
  %v3719 = vpack.c.b16 %v3511, %v3703
  %v3720 = vpack.c.b16 %v3512, %v3704
  %v3721 = vpack.c.b16 %v3513, %v3705
  %v3722 = vpack.c.b16 %v3514, %v3706
  %v3723 = vpack.c.b16 %v3515, %v3707
  %v3724 = vrot.slane %v3708, 1
  %v3725 = vrot.slane %v3709, 1
  %v3726 = vrot.slane %v3710, 1
  %v3727 = vrot.slane %v3711, 1
  %v3728 = vrot.slane %v3712, 1
  %v3729 = vrot.slane %v3713, 1
  %v3730 = vrot.slane %v3714, 1
  %v3731 = vrot.slane %v3715, 1
  %v3732 = vrot.slane %v3716, 1
  %v3733 = vrot.slane %v3717, 1
  %v3734 = vrot.slane %v3718, 1
  %v3735 = vrot.slane %v3719, 1
  %v3736 = vrot.slane %v3720, 1
  %v3737 = vrot.slane %v3721, 1
  %v3738 = vrot.slane %v3722, 1
  %v3739 = vrot.slane %v3723, 1
  %3740 = vrot.lane.b32.xlu0 %v3724, 40
  %v3741 = vpop.permute.xlu0 %3740
  %3742 = vrot.lane.b32.xlu0 %v3725, 40
  %v3743 = vpop.permute.xlu0 %3742
  %3744 = vrot.lane.b32.xlu0 %v3726, 40
  %v3745 = vpop.permute.xlu0 %3744
  %3746 = vrot.lane.b32.xlu0 %v3727, 40
  %v3747 = vpop.permute.xlu0 %3746
  %3748 = vrot.lane.b32.xlu0 %v3728, 40
  %v3749 = vpop.permute.xlu0 %3748
  %3750 = vrot.lane.b32.xlu0 %v3729, 40
  %v3751 = vpop.permute.xlu0 %3750
  %3752 = vrot.lane.b32.xlu0 %v3730, 40
  %v3753 = vpop.permute.xlu0 %3752
  %3754 = vrot.lane.b32.xlu0 %v3731, 40
  %v3755 = vpop.permute.xlu0 %3754
  %3756 = vrot.lane.b32.xlu0 %v3732, 40
  %v3757 = vpop.permute.xlu0 %3756
  %3758 = vrot.lane.b32.xlu0 %v3733, 40
  %v3759 = vpop.permute.xlu0 %3758
  %3760 = vrot.lane.b32.xlu0 %v3734, 40
  %v3761 = vpop.permute.xlu0 %3760
  %3762 = vrot.lane.b32.xlu0 %v3735, 40
  %v3763 = vpop.permute.xlu0 %3762
  %3764 = vrot.lane.b32.xlu0 %v3736, 40
  %v3765 = vpop.permute.xlu0 %3764
  %3766 = vrot.lane.b32.xlu0 %v3737, 40
  %v3767 = vpop.permute.xlu0 %3766
  %3768 = vrot.lane.b32.xlu0 %v3738, 40
  %v3769 = vpop.permute.xlu0 %3768
  %3770 = vrot.lane.b32.xlu0 %v3739, 40
  %v3771 = vpop.permute.xlu0 %3770
  %v3788 = vunpack.c.l.b16 %v3036
  %v3789 = vunpack.c.l.b16 %v3037
  %v3790 = vunpack.c.l.b16 %v3038
  %v3791 = vunpack.c.l.b16 %v3039
  %v3792 = vunpack.c.l.b16 %v3040
  %v3793 = vunpack.c.l.b16 %v3041
  %v3794 = vunpack.c.l.b16 %v3042
  %v3795 = vunpack.c.l.b16 %v3043
  %v3796 = vunpack.c.l.b16 %v3044
  %v3797 = vunpack.c.l.b16 %v3045
  %v3798 = vunpack.c.l.b16 %v3046
  %v3799 = vunpack.c.l.b16 %v3047
  %v3800 = vunpack.c.l.b16 %v3048
  %v3801 = vunpack.c.l.b16 %v3049
  %v3802 = vunpack.c.l.b16 %v3050
  %v3803 = vunpack.c.l.b16 %v3051
  %v3804 = vpack.c.b16 %v3788, %v3788
  %v3805 = vpack.c.b16 %v3789, %v3789
  %v3806 = vpack.c.b16 %v3790, %v3790
  %v3807 = vpack.c.b16 %v3791, %v3791
  %v3808 = vpack.c.b16 %v3792, %v3792
  %v3809 = vpack.c.b16 %v3793, %v3793
  %v3810 = vpack.c.b16 %v3794, %v3794
  %v3811 = vpack.c.b16 %v3795, %v3795
  %v3812 = vpack.c.b16 %v3796, %v3796
  %v3813 = vpack.c.b16 %v3797, %v3797
  %v3814 = vpack.c.b16 %v3798, %v3798
  %v3815 = vpack.c.b16 %v3799, %v3799
  %v3816 = vpack.c.b16 %v3800, %v3800
  %v3817 = vpack.c.b16 %v3801, %v3801
  %v3818 = vpack.c.b16 %v3802, %v3802
  %v3819 = vpack.c.b16 %v3803, %v3803
  %3820 = vrot.lane.b32.xlu0 %v3804, 48
  %v3821 = vpop.permute.xlu0 %3820
  %3822 = vrot.lane.b32.xlu0 %v3805, 48
  %v3823 = vpop.permute.xlu0 %3822
  %3824 = vrot.lane.b32.xlu0 %v3806, 48
  %v3825 = vpop.permute.xlu0 %3824
  %3826 = vrot.lane.b32.xlu0 %v3807, 48
  %v3827 = vpop.permute.xlu0 %3826
  %3828 = vrot.lane.b32.xlu0 %v3808, 48
  %v3829 = vpop.permute.xlu0 %3828
  %3830 = vrot.lane.b32.xlu0 %v3809, 48
  %v3831 = vpop.permute.xlu0 %3830
  %3832 = vrot.lane.b32.xlu0 %v3810, 48
  %v3833 = vpop.permute.xlu0 %3832
  %3834 = vrot.lane.b32.xlu0 %v3811, 48
  %v3835 = vpop.permute.xlu0 %3834
  %3836 = vrot.lane.b32.xlu0 %v3812, 48
  %v3837 = vpop.permute.xlu0 %3836
  %3838 = vrot.lane.b32.xlu0 %v3813, 48
  %v3839 = vpop.permute.xlu0 %3838
  %3840 = vrot.lane.b32.xlu0 %v3814, 48
  %v3841 = vpop.permute.xlu0 %3840
  %3842 = vrot.lane.b32.xlu0 %v3815, 48
  %v3843 = vpop.permute.xlu0 %3842
  %3844 = vrot.lane.b32.xlu0 %v3816, 48
  %v3845 = vpop.permute.xlu0 %3844
  %3846 = vrot.lane.b32.xlu0 %v3817, 48
  %v3847 = vpop.permute.xlu0 %3846
  %3848 = vrot.lane.b32.xlu0 %v3818, 48
  %v3849 = vpop.permute.xlu0 %3848
  %3850 = vrot.lane.b32.xlu0 %v3819, 48
  %v3851 = vpop.permute.xlu0 %3850
  %v3868 = vunpack.c.l.b16 %v3052
  %v3869 = vunpack.c.l.b16 %v3053
  %v3870 = vunpack.c.l.b16 %v3054
  %v3871 = vunpack.c.l.b16 %v3055
  %v3872 = vunpack.c.l.b16 %v3056
  %v3873 = vunpack.c.l.b16 %v3057
  %v3874 = vunpack.c.l.b16 %v3058
  %v3875 = vunpack.c.l.b16 %v3059
  %v3876 = vunpack.c.l.b16 %v3060
  %v3877 = vunpack.c.l.b16 %v3061
  %v3878 = vunpack.c.l.b16 %v3062
  %v3879 = vunpack.c.l.b16 %v3063
  %v3880 = vunpack.c.l.b16 %v3064
  %v3881 = vunpack.c.l.b16 %v3065
  %v3882 = vunpack.c.l.b16 %v3066
  %v3883 = vunpack.c.l.b16 %v3067
  %v3884 = vpack.c.b16 %v3868, %v3788
  %v3885 = vpack.c.b16 %v3869, %v3789
  %v3886 = vpack.c.b16 %v3870, %v3790
  %v3887 = vpack.c.b16 %v3871, %v3791
  %v3888 = vpack.c.b16 %v3872, %v3792
  %v3889 = vpack.c.b16 %v3873, %v3793
  %v3890 = vpack.c.b16 %v3874, %v3794
  %v3891 = vpack.c.b16 %v3875, %v3795
  %v3892 = vpack.c.b16 %v3876, %v3796
  %v3893 = vpack.c.b16 %v3877, %v3797
  %v3894 = vpack.c.b16 %v3878, %v3798
  %v3895 = vpack.c.b16 %v3879, %v3799
  %v3896 = vpack.c.b16 %v3880, %v3800
  %v3897 = vpack.c.b16 %v3881, %v3801
  %v3898 = vpack.c.b16 %v3882, %v3802
  %v3899 = vpack.c.b16 %v3883, %v3803
  %v3901 = vshrl.u32 %v3884, 16
  %v3903 = vshll.u32 %v3884, 16
  %v3905 = vrot.slane %v3903, 1
  %v3906 = vor.u32 %v3901, %v3905
  %v3908 = vshrl.u32 %v3885, 16
  %v3910 = vshll.u32 %v3885, 16
  %v3912 = vrot.slane %v3910, 1
  %v3913 = vor.u32 %v3908, %v3912
  %v3915 = vshrl.u32 %v3886, 16
  %v3917 = vshll.u32 %v3886, 16
  %v3919 = vrot.slane %v3917, 1
  %v3920 = vor.u32 %v3915, %v3919
  %v3922 = vshrl.u32 %v3887, 16
  %v3924 = vshll.u32 %v3887, 16
  %v3926 = vrot.slane %v3924, 1
  %v3927 = vor.u32 %v3922, %v3926
  %v3929 = vshrl.u32 %v3888, 16
  %v3931 = vshll.u32 %v3888, 16
  %v3933 = vrot.slane %v3931, 1
  %v3934 = vor.u32 %v3929, %v3933
  %v3936 = vshrl.u32 %v3889, 16
  %v3938 = vshll.u32 %v3889, 16
  %v3940 = vrot.slane %v3938, 1
  %v3941 = vor.u32 %v3936, %v3940
  %v3943 = vshrl.u32 %v3890, 16
  %v3945 = vshll.u32 %v3890, 16
  %v3947 = vrot.slane %v3945, 1
  %v3948 = vor.u32 %v3943, %v3947
  %v3950 = vshrl.u32 %v3891, 16
  %v3952 = vshll.u32 %v3891, 16
  %v3954 = vrot.slane %v3952, 1
  %v3955 = vor.u32 %v3950, %v3954
  %v3957 = vshrl.u32 %v3892, 16
  %v3959 = vshll.u32 %v3892, 16
  %v3961 = vrot.slane %v3959, 1
  %v3962 = vor.u32 %v3957, %v3961
  %v3964 = vshrl.u32 %v3893, 16
  %v3966 = vshll.u32 %v3893, 16
  %v3968 = vrot.slane %v3966, 1
  %v3969 = vor.u32 %v3964, %v3968
  %v3971 = vshrl.u32 %v3894, 16
  %v3973 = vshll.u32 %v3894, 16
  %v3975 = vrot.slane %v3973, 1
  %v3976 = vor.u32 %v3971, %v3975
  %v3978 = vshrl.u32 %v3895, 16
  %v3980 = vshll.u32 %v3895, 16
  %v3982 = vrot.slane %v3980, 1
  %v3983 = vor.u32 %v3978, %v3982
  %v3985 = vshrl.u32 %v3896, 16
  %v3987 = vshll.u32 %v3896, 16
  %v3989 = vrot.slane %v3987, 1
  %v3990 = vor.u32 %v3985, %v3989
  %v3992 = vshrl.u32 %v3897, 16
  %v3994 = vshll.u32 %v3897, 16
  %v3996 = vrot.slane %v3994, 1
  %v3997 = vor.u32 %v3992, %v3996
  %v3999 = vshrl.u32 %v3898, 16
  %v4001 = vshll.u32 %v3898, 16
  %v4003 = vrot.slane %v4001, 1
  %v4004 = vor.u32 %v3999, %v4003
  %v4006 = vshrl.u32 %v3899, 16
  %v4008 = vshll.u32 %v3899, 16
  %v4010 = vrot.slane %v4008, 1
  %v4011 = vor.u32 %v4006, %v4010
  %4012 = vrot.lane.b32.xlu0 %v3906, 56
  %v4013 = vpop.permute.xlu0 %4012
  %4014 = vrot.lane.b32.xlu0 %v3913, 56
  %v4015 = vpop.permute.xlu0 %4014
  %4016 = vrot.lane.b32.xlu0 %v3920, 56
  %v4017 = vpop.permute.xlu0 %4016
  %4018 = vrot.lane.b32.xlu0 %v3927, 56
  %v4019 = vpop.permute.xlu0 %4018
  %4020 = vrot.lane.b32.xlu0 %v3934, 56
  %v4021 = vpop.permute.xlu0 %4020
  %4022 = vrot.lane.b32.xlu0 %v3941, 56
  %v4023 = vpop.permute.xlu0 %4022
  %4024 = vrot.lane.b32.xlu0 %v3948, 56
  %v4025 = vpop.permute.xlu0 %4024
  %4026 = vrot.lane.b32.xlu0 %v3955, 56
  %v4027 = vpop.permute.xlu0 %4026
  %4028 = vrot.lane.b32.xlu0 %v3962, 56
  %v4029 = vpop.permute.xlu0 %4028
  %4030 = vrot.lane.b32.xlu0 %v3969, 56
  %v4031 = vpop.permute.xlu0 %4030
  %4032 = vrot.lane.b32.xlu0 %v3976, 56
  %v4033 = vpop.permute.xlu0 %4032
  %4034 = vrot.lane.b32.xlu0 %v3983, 56
  %v4035 = vpop.permute.xlu0 %4034
  %4036 = vrot.lane.b32.xlu0 %v3990, 56
  %v4037 = vpop.permute.xlu0 %4036
  %4038 = vrot.lane.b32.xlu0 %v3997, 56
  %v4039 = vpop.permute.xlu0 %4038
  %4040 = vrot.lane.b32.xlu0 %v4004, 56
  %v4041 = vpop.permute.xlu0 %4040
  %4042 = vrot.lane.b32.xlu0 %v4011, 56
  %v4043 = vpop.permute.xlu0 %4042
  %v4060 = vunpack.c.l.b16 %v3068
  %v4061 = vunpack.c.l.b16 %v3069
  %v4062 = vunpack.c.l.b16 %v3070
  %v4063 = vunpack.c.l.b16 %v3071
  %v4064 = vunpack.c.l.b16 %v3072
  %v4065 = vunpack.c.l.b16 %v3073
  %v4066 = vunpack.c.l.b16 %v3074
  %v4067 = vunpack.c.l.b16 %v3075
  %v4068 = vunpack.c.l.b16 %v3076
  %v4069 = vunpack.c.l.b16 %v3077
  %v4070 = vunpack.c.l.b16 %v3078
  %v4071 = vunpack.c.l.b16 %v3079
  %v4072 = vunpack.c.l.b16 %v3080
  %v4073 = vunpack.c.l.b16 %v3081
  %v4074 = vunpack.c.l.b16 %v3082
  %v4075 = vunpack.c.l.b16 %v3083
  %v4076 = vpack.c.b16 %v3868, %v4060
  %v4077 = vpack.c.b16 %v3869, %v4061
  %v4078 = vpack.c.b16 %v3870, %v4062
  %v4079 = vpack.c.b16 %v3871, %v4063
  %v4080 = vpack.c.b16 %v3872, %v4064
  %v4081 = vpack.c.b16 %v3873, %v4065
  %v4082 = vpack.c.b16 %v3874, %v4066
  %v4083 = vpack.c.b16 %v3875, %v4067
  %v4084 = vpack.c.b16 %v3876, %v4068
  %v4085 = vpack.c.b16 %v3877, %v4069
  %v4086 = vpack.c.b16 %v3878, %v4070
  %v4087 = vpack.c.b16 %v3879, %v4071
  %v4088 = vpack.c.b16 %v3880, %v4072
  %v4089 = vpack.c.b16 %v3881, %v4073
  %v4090 = vpack.c.b16 %v3882, %v4074
  %v4091 = vpack.c.b16 %v3883, %v4075
  %v4092 = vrot.slane %v4076, 1
  %v4093 = vrot.slane %v4077, 1
  %v4094 = vrot.slane %v4078, 1
  %v4095 = vrot.slane %v4079, 1
  %v4096 = vrot.slane %v4080, 1
  %v4097 = vrot.slane %v4081, 1
  %v4098 = vrot.slane %v4082, 1
  %v4099 = vrot.slane %v4083, 1
  %v4100 = vrot.slane %v4084, 1
  %v4101 = vrot.slane %v4085, 1
  %v4102 = vrot.slane %v4086, 1
  %v4103 = vrot.slane %v4087, 1
  %v4104 = vrot.slane %v4088, 1
  %v4105 = vrot.slane %v4089, 1
  %v4106 = vrot.slane %v4090, 1
  %v4107 = vrot.slane %v4091, 1
  %4108 = vrot.lane.b32.xlu0 %v4092, 64
  %v4109 = vpop.permute.xlu0 %4108
  %4110 = vrot.lane.b32.xlu0 %v4093, 64
  %v4111 = vpop.permute.xlu0 %4110
  %4112 = vrot.lane.b32.xlu0 %v4094, 64
  %v4113 = vpop.permute.xlu0 %4112
  %4114 = vrot.lane.b32.xlu0 %v4095, 64
  %v4115 = vpop.permute.xlu0 %4114
  %4116 = vrot.lane.b32.xlu0 %v4096, 64
  %v4117 = vpop.permute.xlu0 %4116
  %4118 = vrot.lane.b32.xlu0 %v4097, 64
  %v4119 = vpop.permute.xlu0 %4118
  %4120 = vrot.lane.b32.xlu0 %v4098, 64
  %v4121 = vpop.permute.xlu0 %4120
  %4122 = vrot.lane.b32.xlu0 %v4099, 64
  %v4123 = vpop.permute.xlu0 %4122
  %4124 = vrot.lane.b32.xlu0 %v4100, 64
  %v4125 = vpop.permute.xlu0 %4124
  %4126 = vrot.lane.b32.xlu0 %v4101, 64
  %v4127 = vpop.permute.xlu0 %4126
  %4128 = vrot.lane.b32.xlu0 %v4102, 64
  %v4129 = vpop.permute.xlu0 %4128
  %4130 = vrot.lane.b32.xlu0 %v4103, 64
  %v4131 = vpop.permute.xlu0 %4130
  %4132 = vrot.lane.b32.xlu0 %v4104, 64
  %v4133 = vpop.permute.xlu0 %4132
  %4134 = vrot.lane.b32.xlu0 %v4105, 64
  %v4135 = vpop.permute.xlu0 %4134
  %4136 = vrot.lane.b32.xlu0 %v4106, 64
  %v4137 = vpop.permute.xlu0 %4136
  %4138 = vrot.lane.b32.xlu0 %v4107, 64
  %v4139 = vpop.permute.xlu0 %4138
  %4140 = vrot.lane.b32.xlu0 %v1515, 72
  %v4141 = vpop.permute.xlu0 %4140
  %4142 = vrot.lane.b32.xlu0 %v1516, 72
  %v4143 = vpop.permute.xlu0 %4142
  %4144 = vrot.lane.b32.xlu0 %v1517, 72
  %v4145 = vpop.permute.xlu0 %4144
  %4146 = vrot.lane.b32.xlu0 %v1518, 72
  %v4147 = vpop.permute.xlu0 %4146
  %4148 = vrot.lane.b32.xlu0 %v1519, 72
  %v4149 = vpop.permute.xlu0 %4148
  %4150 = vrot.lane.b32.xlu0 %v1520, 72
  %v4151 = vpop.permute.xlu0 %4150
  %4152 = vrot.lane.b32.xlu0 %v1521, 72
  %v4153 = vpop.permute.xlu0 %4152
  %4154 = vrot.lane.b32.xlu0 %v1522, 72
  %v4155 = vpop.permute.xlu0 %4154
  %4156 = vrot.lane.b32.xlu0 %v1523, 72
  %v4157 = vpop.permute.xlu0 %4156
  %4158 = vrot.lane.b32.xlu0 %v1524, 72
  %v4159 = vpop.permute.xlu0 %4158
  %4160 = vrot.lane.b32.xlu0 %v1525, 72
  %v4161 = vpop.permute.xlu0 %4160
  %4162 = vrot.lane.b32.xlu0 %v1526, 72
  %v4163 = vpop.permute.xlu0 %4162
  %4164 = vrot.lane.b32.xlu0 %v1527, 72
  %v4165 = vpop.permute.xlu0 %4164
  %4166 = vrot.lane.b32.xlu0 %v1528, 72
  %v4167 = vpop.permute.xlu0 %4166
  %4168 = vrot.lane.b32.xlu0 %v1529, 72
  %v4169 = vpop.permute.xlu0 %4168
  %4170 = vrot.lane.b32.xlu0 %v1530, 72
  %v4171 = vpop.permute.xlu0 %4170
  %v4174 = vsel %vm2156, %v2939, %v3277
  %v4177 = vsel %vm2156, %v2940, %v3279
  %v4180 = vsel %vm2156, %v2941, %v3281
  %v4183 = vsel %vm2156, %v2942, %v3283
  %v4186 = vsel %vm2156, %v2943, %v3285
  %v4189 = vsel %vm2156, %v2944, %v3287
  %v4192 = vsel %vm2156, %v2945, %v3289
  %v4195 = vsel %vm2156, %v2946, %v3291
  %v4198 = vsel %vm2156, %v2947, %v3293
  %v4201 = vsel %vm2156, %v2948, %v3295
  %v4204 = vsel %vm2156, %v2949, %v3297
  %v4207 = vsel %vm2156, %v2950, %v3299
  %v4210 = vsel %vm2156, %v2951, %v3301
  %v4213 = vsel %vm2156, %v2952, %v3303
  %v4216 = vsel %vm2156, %v2953, %v3305
  %v4219 = vsel %vm2156, %v2954, %v3307
  %v4221 = vsel %vm2222, %v4174, %v3373
  %v4223 = vsel %vm2222, %v4177, %v3375
  %v4225 = vsel %vm2222, %v4180, %v3377
  %v4227 = vsel %vm2222, %v4183, %v3379
  %v4229 = vsel %vm2222, %v4186, %v3381
  %v4231 = vsel %vm2222, %v4189, %v3383
  %v4233 = vsel %vm2222, %v4192, %v3385
  %v4235 = vsel %vm2222, %v4195, %v3387
  %v4237 = vsel %vm2222, %v4198, %v3389
  %v4239 = vsel %vm2222, %v4201, %v3391
  %v4241 = vsel %vm2222, %v4204, %v3393
  %v4243 = vsel %vm2222, %v4207, %v3395
  %v4245 = vsel %vm2222, %v4210, %v3397
  %v4247 = vsel %vm2222, %v4213, %v3399
  %v4249 = vsel %vm2222, %v4216, %v3401
  %v4251 = vsel %vm2222, %v4219, %v3403
  %v4253 = vsel %vm2288, %v4221, %v3453
  %v4255 = vsel %vm2288, %v4223, %v3455
  %v4257 = vsel %vm2288, %v4225, %v3457
  %v4259 = vsel %vm2288, %v4227, %v3459
  %v4261 = vsel %vm2288, %v4229, %v3461
  %v4263 = vsel %vm2288, %v4231, %v3463
  %v4265 = vsel %vm2288, %v4233, %v3465
  %v4267 = vsel %vm2288, %v4235, %v3467
  %v4269 = vsel %vm2288, %v4237, %v3469
  %v4271 = vsel %vm2288, %v4239, %v3471
  %v4273 = vsel %vm2288, %v4241, %v3473
  %v4275 = vsel %vm2288, %v4243, %v3475
  %v4277 = vsel %vm2288, %v4245, %v3477
  %v4279 = vsel %vm2288, %v4247, %v3479
  %v4281 = vsel %vm2288, %v4249, %v3481
  %v4283 = vsel %vm2288, %v4251, %v3483
  %v4285 = vsel %vm2354, %v4253, %v3645
  %v4287 = vsel %vm2354, %v4255, %v3647
  %v4289 = vsel %vm2354, %v4257, %v3649
  %v4291 = vsel %vm2354, %v4259, %v3651
  %v4293 = vsel %vm2354, %v4261, %v3653
  %v4295 = vsel %vm2354, %v4263, %v3655
  %v4297 = vsel %vm2354, %v4265, %v3657
  %v4299 = vsel %vm2354, %v4267, %v3659
  %v4301 = vsel %vm2354, %v4269, %v3661
  %v4303 = vsel %vm2354, %v4271, %v3663
  %v4305 = vsel %vm2354, %v4273, %v3665
  %v4307 = vsel %vm2354, %v4275, %v3667
  %v4309 = vsel %vm2354, %v4277, %v3669
  %v4311 = vsel %vm2354, %v4279, %v3671
  %v4313 = vsel %vm2354, %v4281, %v3673
  %v4315 = vsel %vm2354, %v4283, %v3675
  %vm4316 = vcmask 326656
  %v4318 = vsel %vm4316, %v4285, %v3741
  %v4320 = vsel %vm4316, %v4287, %v3743
  %v4322 = vsel %vm4316, %v4289, %v3745
  %v4324 = vsel %vm4316, %v4291, %v3747
  %v4326 = vsel %vm4316, %v4293, %v3749
  %v4328 = vsel %vm4316, %v4295, %v3751
  %v4330 = vsel %vm4316, %v4297, %v3753
  %v4332 = vsel %vm4316, %v4299, %v3755
  %v4334 = vsel %vm4316, %v4301, %v3757
  %v4336 = vsel %vm4316, %v4303, %v3759
  %v4338 = vsel %vm4316, %v4305, %v3761
  %v4340 = vsel %vm4316, %v4307, %v3763
  %v4342 = vsel %vm4316, %v4309, %v3765
  %v4344 = vsel %vm4316, %v4311, %v3767
  %v4346 = vsel %vm4316, %v4313, %v3769
  %v4348 = vsel %vm4316, %v4315, %v3771
  %vm4349 = vcmask 392192
  %v4351 = vsel %vm4349, %v4318, %v3821
  %v4353 = vsel %vm4349, %v4320, %v3823
  %v4355 = vsel %vm4349, %v4322, %v3825
  %v4357 = vsel %vm4349, %v4324, %v3827
  %v4359 = vsel %vm4349, %v4326, %v3829
  %v4361 = vsel %vm4349, %v4328, %v3831
  %v4363 = vsel %vm4349, %v4330, %v3833
  %v4365 = vsel %vm4349, %v4332, %v3835
  %v4367 = vsel %vm4349, %v4334, %v3837
  %v4369 = vsel %vm4349, %v4336, %v3839
  %v4371 = vsel %vm4349, %v4338, %v3841
  %v4373 = vsel %vm4349, %v4340, %v3843
  %v4375 = vsel %vm4349, %v4342, %v3845
  %v4377 = vsel %vm4349, %v4344, %v3847
  %v4379 = vsel %vm4349, %v4346, %v3849
  %v4381 = vsel %vm4349, %v4348, %v3851
  %vm4382 = vcmask 457728
  %v4384 = vsel %vm4382, %v4351, %v4013
  %v4386 = vsel %vm4382, %v4353, %v4015
  %v4388 = vsel %vm4382, %v4355, %v4017
  %v4390 = vsel %vm4382, %v4357, %v4019
  %v4392 = vsel %vm4382, %v4359, %v4021
  %v4394 = vsel %vm4382, %v4361, %v4023
  %v4396 = vsel %vm4382, %v4363, %v4025
  %v4398 = vsel %vm4382, %v4365, %v4027
  %v4400 = vsel %vm4382, %v4367, %v4029
  %v4402 = vsel %vm4382, %v4369, %v4031
  %v4404 = vsel %vm4382, %v4371, %v4033
  %v4406 = vsel %vm4382, %v4373, %v4035
  %v4408 = vsel %vm4382, %v4375, %v4037
  %v4410 = vsel %vm4382, %v4377, %v4039
  %v4412 = vsel %vm4382, %v4379, %v4041
  %v4414 = vsel %vm4382, %v4381, %v4043
  %vm4415 = vcmask 523264
  %v4417 = vsel %vm4415, %v4384, %v4109
  %v4419 = vsel %vm4415, %v4386, %v4111
  %v4421 = vsel %vm4415, %v4388, %v4113
  %v4423 = vsel %vm4415, %v4390, %v4115
  %v4425 = vsel %vm4415, %v4392, %v4117
  %v4427 = vsel %vm4415, %v4394, %v4119
  %v4429 = vsel %vm4415, %v4396, %v4121
  %v4431 = vsel %vm4415, %v4398, %v4123
  %v4433 = vsel %vm4415, %v4400, %v4125
  %v4435 = vsel %vm4415, %v4402, %v4127
  %v4437 = vsel %vm4415, %v4404, %v4129
  %v4439 = vsel %vm4415, %v4406, %v4131
  %v4441 = vsel %vm4415, %v4408, %v4133
  %v4443 = vsel %vm4415, %v4410, %v4135
  %v4445 = vsel %vm4415, %v4412, %v4137
  %v4447 = vsel %vm4415, %v4414, %v4139
  %vm4448 = vcmask 588800
  %v4450 = vsel %vm4448, %v4417, %v4141
  %v4452 = vsel %vm4448, %v4419, %v4143
  %v4454 = vsel %vm4448, %v4421, %v4145
  %v4456 = vsel %vm4448, %v4423, %v4147
  %v4458 = vsel %vm4448, %v4425, %v4149
  %v4460 = vsel %vm4448, %v4427, %v4151
  %v4462 = vsel %vm4448, %v4429, %v4153
  %v4464 = vsel %vm4448, %v4431, %v4155
  %v4466 = vsel %vm4448, %v4433, %v4157
  %v4468 = vsel %vm4448, %v4435, %v4159
  %v4470 = vsel %vm4448, %v4437, %v4161
  %v4472 = vsel %vm4448, %v4439, %v4163
  %v4474 = vsel %vm4448, %v4441, %v4165
  %v4476 = vsel %vm4448, %v4443, %v4167
  %v4478 = vsel %vm4448, %v4445, %v4169
  %v4480 = vsel %vm4448, %v4447, %v4171
  %vm4481 = vcmask 621568
  %v4482 = vsel %vm4481, %v4450, 0
  %v4483 = vsel %vm4481, %v4452, 0
  %v4484 = vsel %vm4481, %v4454, 0
  %v4485 = vsel %vm4481, %v4456, 0
  %v4486 = vsel %vm4481, %v4458, 0
  %v4487 = vsel %vm4481, %v4460, 0
  %v4488 = vsel %vm4481, %v4462, 0
  %v4489 = vsel %vm4481, %v4464, 0
  %v4490 = vsel %vm4481, %v4466, 0
  %v4491 = vsel %vm4481, %v4468, 0
  %v4492 = vsel %vm4481, %v4470, 0
  %v4493 = vsel %vm4481, %v4472, 0
  %v4494 = vsel %vm4481, %v4474, 0
  %v4495 = vsel %vm4481, %v4476, 0
  %v4496 = vsel %vm4481, %v4478, 0
  %v4497 = vsel %vm4481, %v4480, 0
  %v4498 = vld [vmem:[%s2] sm:$0xf]
  %v4499 = vld [vmem:[%s2 + $0x4] sm:$0xf]
  %v4500 = vld [vmem:[%s2 + $0x8] sm:$0xf]
  %v4501 = vld [vmem:[%s2 + $0xc] sm:$0xf]
  %v4502 = vld [vmem:[%s2 + $0x10] sm:$0xf]
  %v4503 = vld [vmem:[%s2 + $0x14] sm:$0xf]
  %v4504 = vld [vmem:[%s2 + $0x18] sm:$0xf]
  %v4505 = vld [vmem:[%s2 + $0x1c] sm:$0xf]
  %v4506 = vld [vmem:[%s2 + $0x20] sm:$0xf]
  %v4507 = vld [vmem:[%s2 + $0x24] sm:$0xf]
  %v4508 = vld [vmem:[%s2 + $0x28] sm:$0xf]
  %v4509 = vld [vmem:[%s2 + $0x2c] sm:$0xf]
  %v4510 = vld [vmem:[%s2 + $0x30] sm:$0xf]
  %v4511 = vld [vmem:[%s2 + $0x34] sm:$0xf]
  %v4512 = vld [vmem:[%s2 + $0x38] sm:$0xf]
  %v4513 = vld [vmem:[%s2 + $0x3c] sm:$0xf]
  %v4530 = vunpack.c.l.b16 %v4482
  %v4531 = vunpack.c.l.b16 %v4483
  %v4532 = vunpack.c.l.b16 %v4484
  %v4533 = vunpack.c.l.b16 %v4485
  %v4534 = vunpack.c.l.b16 %v4486
  %v4535 = vunpack.c.l.b16 %v4487
  %v4536 = vunpack.c.l.b16 %v4488
  %v4537 = vunpack.c.l.b16 %v4489
  %v4538 = vunpack.c.l.b16 %v4490
  %v4539 = vunpack.c.l.b16 %v4491
  %v4540 = vunpack.c.l.b16 %v4492
  %v4541 = vunpack.c.l.b16 %v4493
  %v4542 = vunpack.c.l.b16 %v4494
  %v4543 = vunpack.c.l.b16 %v4495
  %v4544 = vunpack.c.l.b16 %v4496
  %v4545 = vunpack.c.l.b16 %v4497
  %v4546 = vpack.c.b16 %v4531, %v4530
  %v4547 = vpack.c.b16 %v4533, %v4532
  %v4548 = vpack.c.b16 %v4535, %v4534
  %v4549 = vpack.c.b16 %v4537, %v4536
  %v4550 = vpack.c.b16 %v4539, %v4538
  %v4551 = vpack.c.b16 %v4541, %v4540
  %v4552 = vpack.c.b16 %v4543, %v4542
  %v4553 = vpack.c.b16 %v4545, %v4544
  %v4578 = vunpack.c.l.b16 %v4498
  %v4579 = vunpack.c.l.b16 %v4499
  %v4580 = vunpack.c.l.b16 %v4500
  %v4581 = vunpack.c.l.b16 %v4501
  %v4582 = vunpack.c.l.b16 %v4502
  %v4583 = vunpack.c.l.b16 %v4503
  %v4584 = vunpack.c.l.b16 %v4504
  %v4585 = vunpack.c.l.b16 %v4505
  %v4586 = vunpack.c.l.b16 %v4506
  %v4587 = vunpack.c.l.b16 %v4507
  %v4588 = vunpack.c.l.b16 %v4508
  %v4589 = vunpack.c.l.b16 %v4509
  %v4590 = vunpack.c.l.b16 %v4510
  %v4591 = vunpack.c.l.b16 %v4511
  %v4592 = vunpack.c.l.b16 %v4512
  %v4593 = vunpack.c.l.b16 %v4513
  %v4594 = vpack.c.b16 %v4579, %v4578
  %v4595 = vpack.c.b16 %v4581, %v4580
  %v4596 = vpack.c.b16 %v4583, %v4582
  %v4597 = vpack.c.b16 %v4585, %v4584
  %v4598 = vpack.c.b16 %v4587, %v4586
  %v4599 = vpack.c.b16 %v4589, %v4588
  %v4600 = vpack.c.b16 %v4591, %v4590
  %v4601 = vpack.c.b16 %v4593, %v4592
  %4610 = vmatprep.subr.bf16.mxu0 0
  %4611 = vmatpush1.bf16.msra.mxu0 %v4601
  %4612 = vmatprep.subr.bf16.mxu0 0
  %4613 = vmatpush1.bf16.msra.mxu0 %v4600
  %4614 = vmatprep.subr.bf16.mxu0 0
  %4615 = vmatpush1.bf16.msra.mxu0 %v4599
  %4616 = vmatprep.subr.bf16.mxu0 0
  %4617 = vmatpush1.bf16.msra.mxu0 %v4598
  %4618 = vmatprep.subr.bf16.mxu0 0
  %4619 = vmatpush1.bf16.msra.mxu0 %v4597
  %4620 = vmatprep.subr.bf16.mxu0 0
  %4621 = vmatpush1.bf16.msra.mxu0 %v4596
  %4622 = vmatprep.subr.bf16.mxu0 0
  %4623 = vmatpush1.bf16.msra.mxu0 %v4595
  %4624 = vmatprep.subr.bf16.mxu0 0
  %4625 = vmatpush1.bf16.msra.mxu0 %v4594
  %4626 = vmatprep.subr.bf16.mxu0 0
  %4627 = vmatpush2.bf16.msra.mxu0 0
  %4628 = vmatprep.subr.bf16.mxu0 0
  %4629 = vmatpush2.bf16.msra.mxu0 0
  %4630 = vmatprep.subr.bf16.mxu0 0
  %4631 = vmatpush2.bf16.msra.mxu0 0
  %4632 = vmatprep.subr.bf16.mxu0 0
  %4633 = vmatpush2.bf16.msra.mxu0 0
  %4634 = vmatprep.subr.bf16.mxu0 0
  %4635 = vmatpush2.bf16.msra.mxu0 0
  %4636 = vmatprep.subr.bf16.mxu0 0
  %4637 = vmatpush2.bf16.msra.mxu0 0
  %4638 = vmatprep.subr.bf16.mxu0 0
  %4639 = vmatpush2.bf16.msra.mxu0 0
  %4640 = vmatprep.subr.bf16.mxu0 0
  %4641 = vmatpush2.bf16.msra.mxu0 0
  %4642 = vmatprep.mubr.bf16.mxu0 0
  %4643 = vmatmul.mubr.bf16.gmra.mxu0 %v4546
  %v4644 = vpop.f32.mrf.mxu0
  %v4645 = vadd.f32 0.0, %v4644
  %v4646 = vpop.f32.mrf.mxu0
  %v4647 = vpop.f32.mrf.mxu0
  %v4648 = vadd.f32 0.0, %v4647
  %v4649 = vpop.f32.mrf.mxu0
  %4650 = vmatprep.mubr.bf16.mxu0 0
  %4651 = vmatmul.mubr.bf16.gmra.mxu0 %v4547
  %v4652 = vpop.f32.mrf.mxu0
  %v4653 = vadd.f32 0.0, %v4652
  %v4654 = vpop.f32.mrf.mxu0
  %v4655 = vpop.f32.mrf.mxu0
  %v4656 = vadd.f32 0.0, %v4655
  %v4657 = vpop.f32.mrf.mxu0
  %4658 = vmatprep.mubr.bf16.mxu0 0
  %4659 = vmatmul.mubr.bf16.gmra.mxu0 %v4548
  %v4660 = vpop.f32.mrf.mxu0
  %v4661 = vadd.f32 0.0, %v4660
  %v4662 = vpop.f32.mrf.mxu0
  %v4663 = vpop.f32.mrf.mxu0
  %v4664 = vadd.f32 0.0, %v4663
  %v4665 = vpop.f32.mrf.mxu0
  %4666 = vmatprep.mubr.bf16.mxu0 0
  %4667 = vmatmul.mubr.bf16.gmra.mxu0 %v4549
  %v4668 = vpop.f32.mrf.mxu0
  %v4669 = vadd.f32 0.0, %v4668
  %v4670 = vpop.f32.mrf.mxu0
  %v4671 = vpop.f32.mrf.mxu0
  %v4672 = vadd.f32 0.0, %v4671
  %v4673 = vpop.f32.mrf.mxu0
  %4674 = vmatprep.mubr.bf16.mxu0 0
  %4675 = vmatmul.mubr.bf16.gmra.mxu0 %v4550
  %v4676 = vpop.f32.mrf.mxu0
  %v4677 = vadd.f32 0.0, %v4676
  %v4678 = vpop.f32.mrf.mxu0
  %v4679 = vpop.f32.mrf.mxu0
  %v4680 = vadd.f32 0.0, %v4679
  %v4681 = vpop.f32.mrf.mxu0
  %4682 = vmatprep.mubr.bf16.mxu0 0
  %4683 = vmatmul.mubr.bf16.gmra.mxu0 %v4551
  %v4684 = vpop.f32.mrf.mxu0
  %v4685 = vadd.f32 0.0, %v4684
  %v4686 = vpop.f32.mrf.mxu0
  %v4687 = vpop.f32.mrf.mxu0
  %v4688 = vadd.f32 0.0, %v4687
  %v4689 = vpop.f32.mrf.mxu0
  %4690 = vmatprep.mubr.bf16.mxu0 0
  %4691 = vmatmul.mubr.bf16.gmra.mxu0 %v4552
  %v4692 = vpop.f32.mrf.mxu0
  %v4693 = vadd.f32 0.0, %v4692
  %v4694 = vpop.f32.mrf.mxu0
  %v4695 = vpop.f32.mrf.mxu0
  %v4696 = vadd.f32 0.0, %v4695
  %v4697 = vpop.f32.mrf.mxu0
  %4698 = vmatprep.mubr.bf16.mxu0 0
  %4699 = vmatmul.mubr.bf16.gmra.mxu0 %v4553
  %v4700 = vpop.f32.mrf.mxu0
  %v4701 = vadd.f32 0.0, %v4700
  %v4702 = vpop.f32.mrf.mxu0
  %v4703 = vpop.f32.mrf.mxu0
  %v4704 = vadd.f32 0.0, %v4703
  %v4705 = vpop.f32.mrf.mxu0
  %4706 = vdwg.mxu0
  %v4707 = vmax.f32 %v4645, 0.0
  %v4708 = vmax.f32 %v4648, 0.0
  %v4709 = vmax.f32 %v4653, 0.0
  %v4710 = vmax.f32 %v4656, 0.0
  %v4711 = vmax.f32 %v4661, 0.0
  %v4712 = vmax.f32 %v4664, 0.0
  %v4713 = vmax.f32 %v4669, 0.0
  %v4714 = vmax.f32 %v4672, 0.0
  %v4715 = vmax.f32 %v4677, 0.0
  %v4716 = vmax.f32 %v4680, 0.0
  %v4717 = vmax.f32 %v4685, 0.0
  %v4718 = vmax.f32 %v4688, 0.0
  %v4719 = vmax.f32 %v4693, 0.0
  %v4720 = vmax.f32 %v4696, 0.0
  %v4721 = vmax.f32 %v4701, 0.0
  %v4722 = vmax.f32 %v4704, 0.0
  %v4723 = vpack.c.bf16 %v4708, %v4707
  %v4724 = vpack.c.bf16 %v4710, %v4709
  %v4725 = vpack.c.bf16 %v4712, %v4711
  %v4726 = vpack.c.bf16 %v4714, %v4713
  %v4727 = vpack.c.bf16 %v4716, %v4715
  %v4728 = vpack.c.bf16 %v4718, %v4717
  %v4729 = vpack.c.bf16 %v4720, %v4719
  %v4730 = vpack.c.bf16 %v4722, %v4721
  %v4739 = vunpack.c.l.b16 %v4723
  %v4740 = vunpack.c.h.b16 %v4723
  %v4741 = vunpack.c.l.b16 %v4724
  %v4742 = vunpack.c.h.b16 %v4724
  %v4743 = vunpack.c.l.b16 %v4725
  %v4744 = vunpack.c.h.b16 %v4725
  %v4745 = vunpack.c.l.b16 %v4726
  %v4746 = vunpack.c.h.b16 %v4726
  %v4747 = vunpack.c.l.b16 %v4727
  %v4748 = vunpack.c.h.b16 %v4727
  %v4749 = vunpack.c.l.b16 %v4728
  %v4750 = vunpack.c.h.b16 %v4728
  %v4751 = vunpack.c.l.b16 %v4729
  %v4752 = vunpack.c.h.b16 %v4729
  %v4753 = vunpack.c.l.b16 %v4730
  %v4754 = vunpack.c.h.b16 %v4730
  %v4755 = vpack.c.b16 %v4739, %v4739
  %v4756 = vpack.c.b16 %v4740, %v4740
  %v4757 = vpack.c.b16 %v4741, %v4741
  %v4758 = vpack.c.b16 %v4742, %v4742
  %v4759 = vpack.c.b16 %v4743, %v4743
  %v4760 = vpack.c.b16 %v4744, %v4744
  %v4761 = vpack.c.b16 %v4745, %v4745
  %v4762 = vpack.c.b16 %v4746, %v4746
  %v4763 = vpack.c.b16 %v4747, %v4747
  %v4764 = vpack.c.b16 %v4748, %v4748
  %v4765 = vpack.c.b16 %v4749, %v4749
  %v4766 = vpack.c.b16 %v4750, %v4750
  %v4767 = vpack.c.b16 %v4751, %v4751
  %v4768 = vpack.c.b16 %v4752, %v4752
  %v4769 = vpack.c.b16 %v4753, %v4753
  %v4770 = vpack.c.b16 %v4754, %v4754
  %v4772 = vshrl.u32 %v4755, 16
  %v4774 = vrot.slane %v4772, 7
  %v4775 = vshll.u32 %v4755, 16
  %v4777 = vor.u32 %v4774, %v4775
  %v4778 = vrot.slane %v4774, 4
  %v4780 = vshrl.u32 %v4756, 16
  %v4782 = vrot.slane %v4780, 7
  %v4783 = vshll.u32 %v4756, 16
  %v4785 = vor.u32 %v4782, %v4783
  %v4786 = vrot.slane %v4782, 4
  %v4788 = vshrl.u32 %v4757, 16
  %v4790 = vrot.slane %v4788, 7
  %v4791 = vshll.u32 %v4757, 16
  %v4793 = vor.u32 %v4790, %v4791
  %v4794 = vrot.slane %v4790, 4
  %v4796 = vshrl.u32 %v4758, 16
  %v4798 = vrot.slane %v4796, 7
  %v4799 = vshll.u32 %v4758, 16
  %v4801 = vor.u32 %v4798, %v4799
  %v4802 = vrot.slane %v4798, 4
  %v4804 = vshrl.u32 %v4759, 16
  %v4806 = vrot.slane %v4804, 7
  %v4807 = vshll.u32 %v4759, 16
  %v4809 = vor.u32 %v4806, %v4807
  %v4810 = vrot.slane %v4806, 4
  %v4812 = vshrl.u32 %v4760, 16
  %v4814 = vrot.slane %v4812, 7
  %v4815 = vshll.u32 %v4760, 16
  %v4817 = vor.u32 %v4814, %v4815
  %v4818 = vrot.slane %v4814, 4
  %v4820 = vshrl.u32 %v4761, 16
  %v4822 = vrot.slane %v4820, 7
  %v4823 = vshll.u32 %v4761, 16
  %v4825 = vor.u32 %v4822, %v4823
  %v4826 = vrot.slane %v4822, 4
  %v4828 = vshrl.u32 %v4762, 16
  %v4830 = vrot.slane %v4828, 7
  %v4831 = vshll.u32 %v4762, 16
  %v4833 = vor.u32 %v4830, %v4831
  %v4834 = vrot.slane %v4830, 4
  %v4836 = vshrl.u32 %v4763, 16
  %v4838 = vrot.slane %v4836, 7
  %v4839 = vshll.u32 %v4763, 16
  %v4841 = vor.u32 %v4838, %v4839
  %v4842 = vrot.slane %v4838, 4
  %v4844 = vshrl.u32 %v4764, 16
  %v4846 = vrot.slane %v4844, 7
  %v4847 = vshll.u32 %v4764, 16
  %v4849 = vor.u32 %v4846, %v4847
  %v4850 = vrot.slane %v4846, 4
  %v4852 = vshrl.u32 %v4765, 16
  %v4854 = vrot.slane %v4852, 7
  %v4855 = vshll.u32 %v4765, 16
  %v4857 = vor.u32 %v4854, %v4855
  %v4858 = vrot.slane %v4854, 4
  %v4860 = vshrl.u32 %v4766, 16
  %v4862 = vrot.slane %v4860, 7
  %v4863 = vshll.u32 %v4766, 16
  %v4865 = vor.u32 %v4862, %v4863
  %v4866 = vrot.slane %v4862, 4
  %v4868 = vshrl.u32 %v4767, 16
  %v4870 = vrot.slane %v4868, 7
  %v4871 = vshll.u32 %v4767, 16
  %v4873 = vor.u32 %v4870, %v4871
  %v4874 = vrot.slane %v4870, 4
  %v4876 = vshrl.u32 %v4768, 16
  %v4878 = vrot.slane %v4876, 7
  %v4879 = vshll.u32 %v4768, 16
  %v4881 = vor.u32 %v4878, %v4879
  %v4882 = vrot.slane %v4878, 4
  %v4884 = vshrl.u32 %v4769, 16
  %v4886 = vrot.slane %v4884, 7
  %v4887 = vshll.u32 %v4769, 16
  %v4889 = vor.u32 %v4886, %v4887
  %v4890 = vrot.slane %v4886, 4
  %v4892 = vshrl.u32 %v4770, 16
  %v4894 = vrot.slane %v4892, 7
  %v4895 = vshll.u32 %v4770, 16
  %v4897 = vor.u32 %v4894, %v4895
  %v4898 = vrot.slane %v4894, 4
  %v4931 = vsel %vm2840, %v4777, %v2987
  %4932 = vst [vmem:[%s2838] sm:$0xf] %v4931
  %v4933 = vld [vmem:[%s2838 + $0x4] sm:$0x1]
  %v4934 = vsel %vm2845, %v4778, %v4933
  %4935 = vst [vmem:[%s2838 + $0x4] sm:$0x1] %v4934
  %v4936 = vld [vmem:[%s2838 + $0x8] sm:$0xf]
  %v4937 = vsel %vm2840, %v4785, %v4936
  %4938 = vst [vmem:[%s2838 + $0x8] sm:$0xf] %v4937
  %v4939 = vld [vmem:[%s2838 + $0xc] sm:$0x1]
  %v4940 = vsel %vm2845, %v4786, %v4939
  %4941 = vst [vmem:[%s2838 + $0xc] sm:$0x1] %v4940
  %v4942 = vld [vmem:[%s2838 + $0x10] sm:$0xf]
  %v4943 = vsel %vm2840, %v4793, %v4942
  %4944 = vst [vmem:[%s2838 + $0x10] sm:$0xf] %v4943
  %v4945 = vld [vmem:[%s2838 + $0x14] sm:$0x1]
  %v4946 = vsel %vm2845, %v4794, %v4945
  %4947 = vst [vmem:[%s2838 + $0x14] sm:$0x1] %v4946
  %v4948 = vld [vmem:[%s2838 + $0x18] sm:$0xf]
  %v4949 = vsel %vm2840, %v4801, %v4948
  %4950 = vst [vmem:[%s2838 + $0x18] sm:$0xf] %v4949
  %v4951 = vld [vmem:[%s2838 + $0x1c] sm:$0x1]
  %v4952 = vsel %vm2845, %v4802, %v4951
  %4953 = vst [vmem:[%s2838 + $0x1c] sm:$0x1] %v4952
  %v4954 = vld [vmem:[%s2838 + $0x20] sm:$0xf]
  %v4955 = vsel %vm2840, %v4809, %v4954
  %4956 = vst [vmem:[%s2838 + $0x20] sm:$0xf] %v4955
  %v4957 = vld [vmem:[%s2838 + $0x24] sm:$0x1]
  %v4958 = vsel %vm2845, %v4810, %v4957
  %4959 = vst [vmem:[%s2838 + $0x24] sm:$0x1] %v4958
  %v4960 = vld [vmem:[%s2838 + $0x28] sm:$0xf]
  %v4961 = vsel %vm2840, %v4817, %v4960
  %4962 = vst [vmem:[%s2838 + $0x28] sm:$0xf] %v4961
  %v4963 = vld [vmem:[%s2838 + $0x2c] sm:$0x1]
  %v4964 = vsel %vm2845, %v4818, %v4963
  %4965 = vst [vmem:[%s2838 + $0x2c] sm:$0x1] %v4964
  %v4966 = vld [vmem:[%s2838 + $0x30] sm:$0xf]
  %v4967 = vsel %vm2840, %v4825, %v4966
  %4968 = vst [vmem:[%s2838 + $0x30] sm:$0xf] %v4967
  %v4969 = vld [vmem:[%s2838 + $0x34] sm:$0x1]
  %v4970 = vsel %vm2845, %v4826, %v4969
  %4971 = vst [vmem:[%s2838 + $0x34] sm:$0x1] %v4970
  %v4972 = vld [vmem:[%s2838 + $0x38] sm:$0xf]
  %v4973 = vsel %vm2840, %v4833, %v4972
  %4974 = vst [vmem:[%s2838 + $0x38] sm:$0xf] %v4973
  %v4975 = vld [vmem:[%s2838 + $0x3c] sm:$0x1]
  %v4976 = vsel %vm2845, %v4834, %v4975
  %4977 = vst [vmem:[%s2838 + $0x3c] sm:$0x1] %v4976
  %v4978 = vld [vmem:[%s2838 + $0x50] sm:$0xf]
  %v4979 = vsel %vm2840, %v4841, %v4978
  %4980 = vst [vmem:[%s2838 + $0x50] sm:$0xf] %v4979
  %v4981 = vld [vmem:[%s2838 + $0x54] sm:$0x1]
  %v4982 = vsel %vm2845, %v4842, %v4981
  %4983 = vst [vmem:[%s2838 + $0x54] sm:$0x1] %v4982
  %v4984 = vld [vmem:[%s2838 + $0x58] sm:$0xf]
  %v4985 = vsel %vm2840, %v4849, %v4984
  %4986 = vst [vmem:[%s2838 + $0x58] sm:$0xf] %v4985
  %v4987 = vld [vmem:[%s2838 + $0x5c] sm:$0x1]
  %v4988 = vsel %vm2845, %v4850, %v4987
  %4989 = vst [vmem:[%s2838 + $0x5c] sm:$0x1] %v4988
  %v4990 = vld [vmem:[%s2838 + $0x60] sm:$0xf]
  %v4991 = vsel %vm2840, %v4857, %v4990
  %4992 = vst [vmem:[%s2838 + $0x60] sm:$0xf] %v4991
  %v4993 = vld [vmem:[%s2838 + $0x64] sm:$0x1]
  %v4994 = vsel %vm2845, %v4858, %v4993
  %4995 = vst [vmem:[%s2838 + $0x64] sm:$0x1] %v4994
  %v4996 = vld [vmem:[%s2838 + $0x68] sm:$0xf]
  %v4997 = vsel %vm2840, %v4865, %v4996
  %4998 = vst [vmem:[%s2838 + $0x68] sm:$0xf] %v4997
  %v4999 = vld [vmem:[%s2838 + $0x6c] sm:$0x1]
  %v5000 = vsel %vm2845, %v4866, %v4999
  %5001 = vst [vmem:[%s2838 + $0x6c] sm:$0x1] %v5000
  %v5002 = vld [vmem:[%s2838 + $0x70] sm:$0xf]
  %v5003 = vsel %vm2840, %v4873, %v5002
  %5004 = vst [vmem:[%s2838 + $0x70] sm:$0xf] %v5003
  %v5005 = vld [vmem:[%s2838 + $0x74] sm:$0x1]
  %v5006 = vsel %vm2845, %v4874, %v5005
  %5007 = vst [vmem:[%s2838 + $0x74] sm:$0x1] %v5006
  %v5008 = vld [vmem:[%s2838 + $0x78] sm:$0xf]
  %v5009 = vsel %vm2840, %v4881, %v5008
  %5010 = vst [vmem:[%s2838 + $0x78] sm:$0xf] %v5009
  %v5011 = vld [vmem:[%s2838 + $0x7c] sm:$0x1]
  %v5012 = vsel %vm2845, %v4882, %v5011
  %5013 = vst [vmem:[%s2838 + $0x7c] sm:$0x1] %v5012
  %v5014 = vld [vmem:[%s2838 + $0x80] sm:$0xf]
  %v5015 = vsel %vm2840, %v4889, %v5014
  %5016 = vst [vmem:[%s2838 + $0x80] sm:$0xf] %v5015
  %v5017 = vld [vmem:[%s2838 + $0x84] sm:$0x1]
  %v5018 = vsel %vm2845, %v4890, %v5017
  %5019 = vst [vmem:[%s2838 + $0x84] sm:$0x1] %v5018
  %v5020 = vld [vmem:[%s2838 + $0x88] sm:$0xf]
  %v5021 = vsel %vm2840, %v4897, %v5020
  %5022 = vst [vmem:[%s2838 + $0x88] sm:$0xf] %v5021
  %v5023 = vld [vmem:[%s2838 + $0x8c] sm:$0x1]
  %v5024 = vsel %vm2845, %v4898, %v5023
  %5025 = vst [vmem:[%s2838 + $0x8c] sm:$0x1] %v5024
  %v5026 = vld [vmem:[#allocation3] sm:$0xf]
  %v5027 = vld [vmem:[#allocation3 + $0x8] sm:$0xf]
  %v5028 = vld [vmem:[#allocation3 + $0x10] sm:$0xf]
  %v5029 = vld [vmem:[#allocation3 + $0x18] sm:$0xf]
  %v5030 = vld [vmem:[#allocation3 + $0x20] sm:$0xf]
  %v5031 = vld [vmem:[#allocation3 + $0x28] sm:$0xf]
  %v5032 = vld [vmem:[#allocation3 + $0x30] sm:$0xf]
  %v5033 = vld [vmem:[#allocation3 + $0x38] sm:$0xf]
  %v5034 = vld [vmem:[#allocation3 + $0x50] sm:$0xf]
  %v5035 = vld [vmem:[#allocation3 + $0x58] sm:$0xf]
  %v5036 = vld [vmem:[#allocation3 + $0x60] sm:$0xf]
  %v5037 = vld [vmem:[#allocation3 + $0x68] sm:$0xf]
  %v5038 = vld [vmem:[#allocation3 + $0x70] sm:$0xf]
  %v5039 = vld [vmem:[#allocation3 + $0x78] sm:$0xf]
  %v5040 = vld [vmem:[#allocation3 + $0x80] sm:$0xf]
  %v5041 = vld [vmem:[#allocation3 + $0x88] sm:$0xf]
  %v5042 = vld [vmem:[#allocation3 + $0x4] sm:$0x1]
  %v5043 = vld [vmem:[#allocation3 + $0xc] sm:$0x1]
  %v5044 = vld [vmem:[#allocation3 + $0x14] sm:$0x1]
  %v5045 = vld [vmem:[#allocation3 + $0x1c] sm:$0x1]
  %v5046 = vld [vmem:[#allocation3 + $0x24] sm:$0x1]
  %v5047 = vld [vmem:[#allocation3 + $0x2c] sm:$0x1]
  %v5048 = vld [vmem:[#allocation3 + $0x34] sm:$0x1]
  %v5049 = vld [vmem:[#allocation3 + $0x3c] sm:$0x1]
  %v5050 = vld [vmem:[#allocation3 + $0x54] sm:$0x1]
  %v5051 = vld [vmem:[#allocation3 + $0x5c] sm:$0x1]
  %v5052 = vld [vmem:[#allocation3 + $0x64] sm:$0x1]
  %v5053 = vld [vmem:[#allocation3 + $0x6c] sm:$0x1]
  %v5054 = vld [vmem:[#allocation3 + $0x74] sm:$0x1]
  %v5055 = vld [vmem:[#allocation3 + $0x7c] sm:$0x1]
  %v5056 = vld [vmem:[#allocation3 + $0x84] sm:$0x1]
  %v5057 = vld [vmem:[#allocation3 + $0x8c] sm:$0x1]
  %v5058 = vld [vmem:[#allocation3] sm:$0xe]
  %v5059 = vld [vmem:[#allocation3 + $0x8] sm:$0xe]
  %v5060 = vld [vmem:[#allocation3 + $0x10] sm:$0xe]
  %v5061 = vld [vmem:[#allocation3 + $0x18] sm:$0xe]
  %v5062 = vld [vmem:[#allocation3 + $0x20] sm:$0xe]
  %v5063 = vld [vmem:[#allocation3 + $0x28] sm:$0xe]
  %v5064 = vld [vmem:[#allocation3 + $0x30] sm:$0xe]
  %v5065 = vld [vmem:[#allocation3 + $0x38] sm:$0xe]
  %v5066 = vld [vmem:[#allocation3 + $0x50] sm:$0xe]
  %v5067 = vld [vmem:[#allocation3 + $0x58] sm:$0xe]
  %v5068 = vld [vmem:[#allocation3 + $0x60] sm:$0xe]
  %v5069 = vld [vmem:[#allocation3 + $0x68] sm:$0xe]
  %v5070 = vld [vmem:[#allocation3 + $0x70] sm:$0xe]
  %v5071 = vld [vmem:[#allocation3 + $0x78] sm:$0xe]
  %v5072 = vld [vmem:[#allocation3 + $0x80] sm:$0xe]
  %v5073 = vld [vmem:[#allocation3 + $0x88] sm:$0xe]
  %v5074 = vld [vmem:[%s2838] sm:$0xf]
  %v5075 = vld [vmem:[%s2838 + $0x8] sm:$0xf]
  %v5076 = vld [vmem:[%s2838 + $0x10] sm:$0xf]
  %v5077 = vld [vmem:[%s2838 + $0x18] sm:$0xf]
  %v5078 = vld [vmem:[%s2838 + $0x20] sm:$0xf]
  %v5079 = vld [vmem:[%s2838 + $0x28] sm:$0xf]
  %v5080 = vld [vmem:[%s2838 + $0x30] sm:$0xf]
  %v5081 = vld [vmem:[%s2838 + $0x38] sm:$0xf]
  %v5082 = vld [vmem:[%s2838 + $0x50] sm:$0xf]
  %v5083 = vld [vmem:[%s2838 + $0x58] sm:$0xf]
  %v5084 = vld [vmem:[%s2838 + $0x60] sm:$0xf]
  %v5085 = vld [vmem:[%s2838 + $0x68] sm:$0xf]
  %v5086 = vld [vmem:[%s2838 + $0x70] sm:$0xf]
  %v5087 = vld [vmem:[%s2838 + $0x78] sm:$0xf]
  %v5088 = vld [vmem:[%s2838 + $0x80] sm:$0xf]
  %v5089 = vld [vmem:[%s2838 + $0x88] sm:$0xf]
  %v5090 = vld [vmem:[%s2838 + $0x4] sm:$0x1]
  %v5091 = vld [vmem:[%s2838 + $0xc] sm:$0x1]
  %v5092 = vld [vmem:[%s2838 + $0x14] sm:$0x1]
  %v5093 = vld [vmem:[%s2838 + $0x1c] sm:$0x1]
  %v5094 = vld [vmem:[%s2838 + $0x24] sm:$0x1]
  %v5095 = vld [vmem:[%s2838 + $0x2c] sm:$0x1]
  %v5096 = vld [vmem:[%s2838 + $0x34] sm:$0x1]
  %v5097 = vld [vmem:[%s2838 + $0x3c] sm:$0x1]
  %v5098 = vld [vmem:[%s2838 + $0x54] sm:$0x1]
  %v5099 = vld [vmem:[%s2838 + $0x5c] sm:$0x1]
  %v5100 = vld [vmem:[%s2838 + $0x64] sm:$0x1]
  %v5101 = vld [vmem:[%s2838 + $0x6c] sm:$0x1]
  %v5102 = vld [vmem:[%s2838 + $0x74] sm:$0x1]
  %v5103 = vld [vmem:[%s2838 + $0x7c] sm:$0x1]
  %v5104 = vld [vmem:[%s2838 + $0x84] sm:$0x1]
  %v5105 = vld [vmem:[%s2838 + $0x8c] sm:$0x1]
  %v5106 = vld [vmem:[%s2838] sm:$0xe]
  %v5107 = vld [vmem:[%s2838 + $0x8] sm:$0xe]
  %v5108 = vld [vmem:[%s2838 + $0x10] sm:$0xe]
  %v5109 = vld [vmem:[%s2838 + $0x18] sm:$0xe]
  %v5110 = vld [vmem:[%s2838 + $0x20] sm:$0xe]
  %v5111 = vld [vmem:[%s2838 + $0x28] sm:$0xe]
  %v5112 = vld [vmem:[%s2838 + $0x30] sm:$0xe]
  %v5113 = vld [vmem:[%s2838 + $0x38] sm:$0xe]
  %v5114 = vld [vmem:[%s2838 + $0x50] sm:$0xe]
  %v5115 = vld [vmem:[%s2838 + $0x58] sm:$0xe]
  %v5116 = vld [vmem:[%s2838 + $0x60] sm:$0xe]
  %v5117 = vld [vmem:[%s2838 + $0x68] sm:$0xe]
  %v5118 = vld [vmem:[%s2838 + $0x70] sm:$0xe]
  %v5119 = vld [vmem:[%s2838 + $0x78] sm:$0xe]
  %v5120 = vld [vmem:[%s2838 + $0x80] sm:$0xe]
  %v5121 = vld [vmem:[%s2838 + $0x88] sm:$0xe]
  %v5122 = vld [vmem:[%s3035] sm:$0xf]
  %v5123 = vld [vmem:[%s3035 + $0x8] sm:$0xf]
  %v5124 = vld [vmem:[%s3035 + $0x10] sm:$0xf]
  %v5125 = vld [vmem:[%s3035 + $0x18] sm:$0xf]
  %v5126 = vld [vmem:[%s3035 + $0x20] sm:$0xf]
  %v5127 = vld [vmem:[%s3035 + $0x28] sm:$0xf]
  %v5128 = vld [vmem:[%s3035 + $0x30] sm:$0xf]
  %v5129 = vld [vmem:[%s3035 + $0x38] sm:$0xf]
  %v5130 = vld [vmem:[%s3035 + $0x50] sm:$0xf]
  %v5131 = vld [vmem:[%s3035 + $0x58] sm:$0xf]
  %v5132 = vld [vmem:[%s3035 + $0x60] sm:$0xf]
  %v5133 = vld [vmem:[%s3035 + $0x68] sm:$0xf]
  %v5134 = vld [vmem:[%s3035 + $0x70] sm:$0xf]
  %v5135 = vld [vmem:[%s3035 + $0x78] sm:$0xf]
  %v5136 = vld [vmem:[%s3035 + $0x80] sm:$0xf]
  %v5137 = vld [vmem:[%s3035 + $0x88] sm:$0xf]
  %v5138 = vld [vmem:[%s3035 + $0x4] sm:$0x1]
  %v5139 = vld [vmem:[%s3035 + $0xc] sm:$0x1]
  %v5140 = vld [vmem:[%s3035 + $0x14] sm:$0x1]
  %v5141 = vld [vmem:[%s3035 + $0x1c] sm:$0x1]
  %v5142 = vld [vmem:[%s3035 + $0x24] sm:$0x1]
  %v5143 = vld [vmem:[%s3035 + $0x2c] sm:$0x1]
  %v5144 = vld [vmem:[%s3035 + $0x34] sm:$0x1]
  %v5145 = vld [vmem:[%s3035 + $0x3c] sm:$0x1]
  %v5146 = vld [vmem:[%s3035 + $0x54] sm:$0x1]
  %v5147 = vld [vmem:[%s3035 + $0x5c] sm:$0x1]
  %v5148 = vld [vmem:[%s3035 + $0x64] sm:$0x1]
  %v5149 = vld [vmem:[%s3035 + $0x6c] sm:$0x1]
  %v5150 = vld [vmem:[%s3035 + $0x74] sm:$0x1]
  %v5151 = vld [vmem:[%s3035 + $0x7c] sm:$0x1]
  %v5152 = vld [vmem:[%s3035 + $0x84] sm:$0x1]
  %v5153 = vld [vmem:[%s3035 + $0x8c] sm:$0x1]
  %v5154 = vld [vmem:[%s3035] sm:$0xe]
  %v5155 = vld [vmem:[%s3035 + $0x8] sm:$0xe]
  %v5156 = vld [vmem:[%s3035 + $0x10] sm:$0xe]
  %v5157 = vld [vmem:[%s3035 + $0x18] sm:$0xe]
  %v5158 = vld [vmem:[%s3035 + $0x20] sm:$0xe]
  %v5159 = vld [vmem:[%s3035 + $0x28] sm:$0xe]
  %v5160 = vld [vmem:[%s3035 + $0x30] sm:$0xe]
  %v5161 = vld [vmem:[%s3035 + $0x38] sm:$0xe]
  %v5162 = vld [vmem:[%s3035 + $0x50] sm:$0xe]
  %v5163 = vld [vmem:[%s3035 + $0x58] sm:$0xe]
  %v5164 = vld [vmem:[%s3035 + $0x60] sm:$0xe]
  %v5165 = vld [vmem:[%s3035 + $0x68] sm:$0xe]
  %v5166 = vld [vmem:[%s3035 + $0x70] sm:$0xe]
  %v5167 = vld [vmem:[%s3035 + $0x78] sm:$0xe]
  %v5168 = vld [vmem:[%s3035 + $0x80] sm:$0xe]
  %v5169 = vld [vmem:[%s3035 + $0x88] sm:$0xe]
  %v5202 = vunpack.c.l.b16 %v5026
  %v5203 = vunpack.c.l.b16 %v5042
  %v5204 = vunpack.c.l.b16 %v5027
  %v5205 = vunpack.c.l.b16 %v5043
  %v5206 = vunpack.c.l.b16 %v5028
  %v5207 = vunpack.c.l.b16 %v5044
  %v5208 = vunpack.c.l.b16 %v5029
  %v5209 = vunpack.c.l.b16 %v5045
  %v5210 = vunpack.c.l.b16 %v5030
  %v5211 = vunpack.c.l.b16 %v5046
  %v5212 = vunpack.c.l.b16 %v5031
  %v5213 = vunpack.c.l.b16 %v5047
  %v5214 = vunpack.c.l.b16 %v5032
  %v5215 = vunpack.c.l.b16 %v5048
  %v5216 = vunpack.c.l.b16 %v5033
  %v5217 = vunpack.c.l.b16 %v5049
  %v5218 = vunpack.c.l.b16 %v5034
  %v5219 = vunpack.c.l.b16 %v5050
  %v5220 = vunpack.c.l.b16 %v5035
  %v5221 = vunpack.c.l.b16 %v5051
  %v5222 = vunpack.c.l.b16 %v5036
  %v5223 = vunpack.c.l.b16 %v5052
  %v5224 = vunpack.c.l.b16 %v5037
  %v5225 = vunpack.c.l.b16 %v5053
  %v5226 = vunpack.c.l.b16 %v5038
  %v5227 = vunpack.c.l.b16 %v5054
  %v5228 = vunpack.c.l.b16 %v5039
  %v5229 = vunpack.c.l.b16 %v5055
  %v5230 = vunpack.c.l.b16 %v5040
  %v5231 = vunpack.c.l.b16 %v5056
  %v5232 = vunpack.c.l.b16 %v5041
  %v5233 = vunpack.c.l.b16 %v5057
  %v5234 = vpack.c.b16 %v5203, %v5202
  %v5235 = vpack.c.b16 %v5205, %v5204
  %v5236 = vpack.c.b16 %v5207, %v5206
  %v5237 = vpack.c.b16 %v5209, %v5208
  %v5238 = vpack.c.b16 %v5211, %v5210
  %v5239 = vpack.c.b16 %v5213, %v5212
  %v5240 = vpack.c.b16 %v5215, %v5214
  %v5241 = vpack.c.b16 %v5217, %v5216
  %v5242 = vpack.c.b16 %v5219, %v5218
  %v5243 = vpack.c.b16 %v5221, %v5220
  %v5244 = vpack.c.b16 %v5223, %v5222
  %v5245 = vpack.c.b16 %v5225, %v5224
  %v5246 = vpack.c.b16 %v5227, %v5226
  %v5247 = vpack.c.b16 %v5229, %v5228
  %v5248 = vpack.c.b16 %v5231, %v5230
  %v5249 = vpack.c.b16 %v5233, %v5232
  %v5251 = vshrl.u32 %v5234, 16
  %v5253 = vshll.u32 %v5234, 16
  %v5255 = vrot.slane %v5253, 1
  %v5256 = vor.u32 %v5251, %v5255
  %v5258 = vshrl.u32 %v5235, 16
  %v5260 = vshll.u32 %v5235, 16
  %v5262 = vrot.slane %v5260, 1
  %v5263 = vor.u32 %v5258, %v5262
  %v5265 = vshrl.u32 %v5236, 16
  %v5267 = vshll.u32 %v5236, 16
  %v5269 = vrot.slane %v5267, 1
  %v5270 = vor.u32 %v5265, %v5269
  %v5272 = vshrl.u32 %v5237, 16
  %v5274 = vshll.u32 %v5237, 16
  %v5276 = vrot.slane %v5274, 1
  %v5277 = vor.u32 %v5272, %v5276
  %v5279 = vshrl.u32 %v5238, 16
  %v5281 = vshll.u32 %v5238, 16
  %v5283 = vrot.slane %v5281, 1
  %v5284 = vor.u32 %v5279, %v5283
  %v5286 = vshrl.u32 %v5239, 16
  %v5288 = vshll.u32 %v5239, 16
  %v5290 = vrot.slane %v5288, 1
  %v5291 = vor.u32 %v5286, %v5290
  %v5293 = vshrl.u32 %v5240, 16
  %v5295 = vshll.u32 %v5240, 16
  %v5297 = vrot.slane %v5295, 1
  %v5298 = vor.u32 %v5293, %v5297
  %v5300 = vshrl.u32 %v5241, 16
  %v5302 = vshll.u32 %v5241, 16
  %v5304 = vrot.slane %v5302, 1
  %v5305 = vor.u32 %v5300, %v5304
  %v5307 = vshrl.u32 %v5242, 16
  %v5309 = vshll.u32 %v5242, 16
  %v5311 = vrot.slane %v5309, 1
  %v5312 = vor.u32 %v5307, %v5311
  %v5314 = vshrl.u32 %v5243, 16
  %v5316 = vshll.u32 %v5243, 16
  %v5318 = vrot.slane %v5316, 1
  %v5319 = vor.u32 %v5314, %v5318
  %v5321 = vshrl.u32 %v5244, 16
  %v5323 = vshll.u32 %v5244, 16
  %v5325 = vrot.slane %v5323, 1
  %v5326 = vor.u32 %v5321, %v5325
  %v5328 = vshrl.u32 %v5245, 16
  %v5330 = vshll.u32 %v5245, 16
  %v5332 = vrot.slane %v5330, 1
  %v5333 = vor.u32 %v5328, %v5332
  %v5335 = vshrl.u32 %v5246, 16
  %v5337 = vshll.u32 %v5246, 16
  %v5339 = vrot.slane %v5337, 1
  %v5340 = vor.u32 %v5335, %v5339
  %v5342 = vshrl.u32 %v5247, 16
  %v5344 = vshll.u32 %v5247, 16
  %v5346 = vrot.slane %v5344, 1
  %v5347 = vor.u32 %v5342, %v5346
  %v5349 = vshrl.u32 %v5248, 16
  %v5351 = vshll.u32 %v5248, 16
  %v5353 = vrot.slane %v5351, 1
  %v5354 = vor.u32 %v5349, %v5353
  %v5356 = vshrl.u32 %v5249, 16
  %v5358 = vshll.u32 %v5249, 16
  %v5360 = vrot.slane %v5358, 1
  %v5361 = vor.u32 %v5356, %v5360
  %5362 = vrot.lane.b32.xlu0 %v5256, 8
  %v5363 = vpop.permute.xlu0 %5362
  %5364 = vrot.lane.b32.xlu0 %v5263, 8
  %v5365 = vpop.permute.xlu0 %5364
  %5366 = vrot.lane.b32.xlu0 %v5270, 8
  %v5367 = vpop.permute.xlu0 %5366
  %5368 = vrot.lane.b32.xlu0 %v5277, 8
  %v5369 = vpop.permute.xlu0 %5368
  %5370 = vrot.lane.b32.xlu0 %v5284, 8
  %v5371 = vpop.permute.xlu0 %5370
  %5372 = vrot.lane.b32.xlu0 %v5291, 8
  %v5373 = vpop.permute.xlu0 %5372
  %5374 = vrot.lane.b32.xlu0 %v5298, 8
  %v5375 = vpop.permute.xlu0 %5374
  %5376 = vrot.lane.b32.xlu0 %v5305, 8
  %v5377 = vpop.permute.xlu0 %5376
  %5378 = vrot.lane.b32.xlu0 %v5312, 8
  %v5379 = vpop.permute.xlu0 %5378
  %5380 = vrot.lane.b32.xlu0 %v5319, 8
  %v5381 = vpop.permute.xlu0 %5380
  %5382 = vrot.lane.b32.xlu0 %v5326, 8
  %v5383 = vpop.permute.xlu0 %5382
  %5384 = vrot.lane.b32.xlu0 %v5333, 8
  %v5385 = vpop.permute.xlu0 %5384
  %5386 = vrot.lane.b32.xlu0 %v5340, 8
  %v5387 = vpop.permute.xlu0 %5386
  %5388 = vrot.lane.b32.xlu0 %v5347, 8
  %v5389 = vpop.permute.xlu0 %5388
  %5390 = vrot.lane.b32.xlu0 %v5354, 8
  %v5391 = vpop.permute.xlu0 %5390
  %5392 = vrot.lane.b32.xlu0 %v5361, 8
  %v5393 = vpop.permute.xlu0 %5392
  %v5410 = vunpack.c.l.b16 %v5058
  %v5411 = vunpack.c.l.b16 %v5059
  %v5412 = vunpack.c.l.b16 %v5060
  %v5413 = vunpack.c.l.b16 %v5061
  %v5414 = vunpack.c.l.b16 %v5062
  %v5415 = vunpack.c.l.b16 %v5063
  %v5416 = vunpack.c.l.b16 %v5064
  %v5417 = vunpack.c.l.b16 %v5065
  %v5418 = vunpack.c.l.b16 %v5066
  %v5419 = vunpack.c.l.b16 %v5067
  %v5420 = vunpack.c.l.b16 %v5068
  %v5421 = vunpack.c.l.b16 %v5069
  %v5422 = vunpack.c.l.b16 %v5070
  %v5423 = vunpack.c.l.b16 %v5071
  %v5424 = vunpack.c.l.b16 %v5072
  %v5425 = vunpack.c.l.b16 %v5073
  %v5426 = vpack.c.b16 %v5203, %v5410
  %v5427 = vpack.c.b16 %v5205, %v5411
  %v5428 = vpack.c.b16 %v5207, %v5412
  %v5429 = vpack.c.b16 %v5209, %v5413
  %v5430 = vpack.c.b16 %v5211, %v5414
  %v5431 = vpack.c.b16 %v5213, %v5415
  %v5432 = vpack.c.b16 %v5215, %v5416
  %v5433 = vpack.c.b16 %v5217, %v5417
  %v5434 = vpack.c.b16 %v5219, %v5418
  %v5435 = vpack.c.b16 %v5221, %v5419
  %v5436 = vpack.c.b16 %v5223, %v5420
  %v5437 = vpack.c.b16 %v5225, %v5421
  %v5438 = vpack.c.b16 %v5227, %v5422
  %v5439 = vpack.c.b16 %v5229, %v5423
  %v5440 = vpack.c.b16 %v5231, %v5424
  %v5441 = vpack.c.b16 %v5233, %v5425
  %v5442 = vrot.slane %v5426, 1
  %v5443 = vrot.slane %v5427, 1
  %v5444 = vrot.slane %v5428, 1
  %v5445 = vrot.slane %v5429, 1
  %v5446 = vrot.slane %v5430, 1
  %v5447 = vrot.slane %v5431, 1
  %v5448 = vrot.slane %v5432, 1
  %v5449 = vrot.slane %v5433, 1
  %v5450 = vrot.slane %v5434, 1
  %v5451 = vrot.slane %v5435, 1
  %v5452 = vrot.slane %v5436, 1
  %v5453 = vrot.slane %v5437, 1
  %v5454 = vrot.slane %v5438, 1
  %v5455 = vrot.slane %v5439, 1
  %v5456 = vrot.slane %v5440, 1
  %v5457 = vrot.slane %v5441, 1
  %5458 = vrot.lane.b32.xlu0 %v5442, 16
  %v5459 = vpop.permute.xlu0 %5458
  %5460 = vrot.lane.b32.xlu0 %v5443, 16
  %v5461 = vpop.permute.xlu0 %5460
  %5462 = vrot.lane.b32.xlu0 %v5444, 16
  %v5463 = vpop.permute.xlu0 %5462
  %5464 = vrot.lane.b32.xlu0 %v5445, 16
  %v5465 = vpop.permute.xlu0 %5464
  %5466 = vrot.lane.b32.xlu0 %v5446, 16
  %v5467 = vpop.permute.xlu0 %5466
  %5468 = vrot.lane.b32.xlu0 %v5447, 16
  %v5469 = vpop.permute.xlu0 %5468
  %5470 = vrot.lane.b32.xlu0 %v5448, 16
  %v5471 = vpop.permute.xlu0 %5470
  %5472 = vrot.lane.b32.xlu0 %v5449, 16
  %v5473 = vpop.permute.xlu0 %5472
  %5474 = vrot.lane.b32.xlu0 %v5450, 16
  %v5475 = vpop.permute.xlu0 %5474
  %5476 = vrot.lane.b32.xlu0 %v5451, 16
  %v5477 = vpop.permute.xlu0 %5476
  %5478 = vrot.lane.b32.xlu0 %v5452, 16
  %v5479 = vpop.permute.xlu0 %5478
  %5480 = vrot.lane.b32.xlu0 %v5453, 16
  %v5481 = vpop.permute.xlu0 %5480
  %5482 = vrot.lane.b32.xlu0 %v5454, 16
  %v5483 = vpop.permute.xlu0 %5482
  %5484 = vrot.lane.b32.xlu0 %v5455, 16
  %v5485 = vpop.permute.xlu0 %5484
  %5486 = vrot.lane.b32.xlu0 %v5456, 16
  %v5487 = vpop.permute.xlu0 %5486
  %5488 = vrot.lane.b32.xlu0 %v5457, 16
  %v5489 = vpop.permute.xlu0 %5488
  %v5506 = vunpack.c.l.b16 %v5074
  %v5507 = vunpack.c.l.b16 %v5075
  %v5508 = vunpack.c.l.b16 %v5076
  %v5509 = vunpack.c.l.b16 %v5077
  %v5510 = vunpack.c.l.b16 %v5078
  %v5511 = vunpack.c.l.b16 %v5079
  %v5512 = vunpack.c.l.b16 %v5080
  %v5513 = vunpack.c.l.b16 %v5081
  %v5514 = vunpack.c.l.b16 %v5082
  %v5515 = vunpack.c.l.b16 %v5083
  %v5516 = vunpack.c.l.b16 %v5084
  %v5517 = vunpack.c.l.b16 %v5085
  %v5518 = vunpack.c.l.b16 %v5086
  %v5519 = vunpack.c.l.b16 %v5087
  %v5520 = vunpack.c.l.b16 %v5088
  %v5521 = vunpack.c.l.b16 %v5089
  %v5522 = vpack.c.b16 %v5506, %v5506
  %v5523 = vpack.c.b16 %v5507, %v5507
  %v5524 = vpack.c.b16 %v5508, %v5508
  %v5525 = vpack.c.b16 %v5509, %v5509
  %v5526 = vpack.c.b16 %v5510, %v5510
  %v5527 = vpack.c.b16 %v5511, %v5511
  %v5528 = vpack.c.b16 %v5512, %v5512
  %v5529 = vpack.c.b16 %v5513, %v5513
  %v5530 = vpack.c.b16 %v5514, %v5514
  %v5531 = vpack.c.b16 %v5515, %v5515
  %v5532 = vpack.c.b16 %v5516, %v5516
  %v5533 = vpack.c.b16 %v5517, %v5517
  %v5534 = vpack.c.b16 %v5518, %v5518
  %v5535 = vpack.c.b16 %v5519, %v5519
  %v5536 = vpack.c.b16 %v5520, %v5520
  %v5537 = vpack.c.b16 %v5521, %v5521
  %5538 = vrot.lane.b32.xlu0 %v5522, 24
  %v5539 = vpop.permute.xlu0 %5538
  %5540 = vrot.lane.b32.xlu0 %v5523, 24
  %v5541 = vpop.permute.xlu0 %5540
  %5542 = vrot.lane.b32.xlu0 %v5524, 24
  %v5543 = vpop.permute.xlu0 %5542
  %5544 = vrot.lane.b32.xlu0 %v5525, 24
  %v5545 = vpop.permute.xlu0 %5544
  %5546 = vrot.lane.b32.xlu0 %v5526, 24
  %v5547 = vpop.permute.xlu0 %5546
  %5548 = vrot.lane.b32.xlu0 %v5527, 24
  %v5549 = vpop.permute.xlu0 %5548
  %5550 = vrot.lane.b32.xlu0 %v5528, 24
  %v5551 = vpop.permute.xlu0 %5550
  %5552 = vrot.lane.b32.xlu0 %v5529, 24
  %v5553 = vpop.permute.xlu0 %5552
  %5554 = vrot.lane.b32.xlu0 %v5530, 24
  %v5555 = vpop.permute.xlu0 %5554
  %5556 = vrot.lane.b32.xlu0 %v5531, 24
  %v5557 = vpop.permute.xlu0 %5556
  %5558 = vrot.lane.b32.xlu0 %v5532, 24
  %v5559 = vpop.permute.xlu0 %5558
  %5560 = vrot.lane.b32.xlu0 %v5533, 24
  %v5561 = vpop.permute.xlu0 %5560
  %5562 = vrot.lane.b32.xlu0 %v5534, 24
  %v5563 = vpop.permute.xlu0 %5562
  %5564 = vrot.lane.b32.xlu0 %v5535, 24
  %v5565 = vpop.permute.xlu0 %5564
  %5566 = vrot.lane.b32.xlu0 %v5536, 24
  %v5567 = vpop.permute.xlu0 %5566
  %5568 = vrot.lane.b32.xlu0 %v5537, 24
  %v5569 = vpop.permute.xlu0 %5568
  %v5586 = vunpack.c.l.b16 %v5090
  %v5587 = vunpack.c.l.b16 %v5091
  %v5588 = vunpack.c.l.b16 %v5092
  %v5589 = vunpack.c.l.b16 %v5093
  %v5590 = vunpack.c.l.b16 %v5094
  %v5591 = vunpack.c.l.b16 %v5095
  %v5592 = vunpack.c.l.b16 %v5096
  %v5593 = vunpack.c.l.b16 %v5097
  %v5594 = vunpack.c.l.b16 %v5098
  %v5595 = vunpack.c.l.b16 %v5099
  %v5596 = vunpack.c.l.b16 %v5100
  %v5597 = vunpack.c.l.b16 %v5101
  %v5598 = vunpack.c.l.b16 %v5102
  %v5599 = vunpack.c.l.b16 %v5103
  %v5600 = vunpack.c.l.b16 %v5104
  %v5601 = vunpack.c.l.b16 %v5105
  %v5602 = vpack.c.b16 %v5586, %v5506
  %v5603 = vpack.c.b16 %v5587, %v5507
  %v5604 = vpack.c.b16 %v5588, %v5508
  %v5605 = vpack.c.b16 %v5589, %v5509
  %v5606 = vpack.c.b16 %v5590, %v5510
  %v5607 = vpack.c.b16 %v5591, %v5511
  %v5608 = vpack.c.b16 %v5592, %v5512
  %v5609 = vpack.c.b16 %v5593, %v5513
  %v5610 = vpack.c.b16 %v5594, %v5514
  %v5611 = vpack.c.b16 %v5595, %v5515
  %v5612 = vpack.c.b16 %v5596, %v5516
  %v5613 = vpack.c.b16 %v5597, %v5517
  %v5614 = vpack.c.b16 %v5598, %v5518
  %v5615 = vpack.c.b16 %v5599, %v5519
  %v5616 = vpack.c.b16 %v5600, %v5520
  %v5617 = vpack.c.b16 %v5601, %v5521
  %v5619 = vshrl.u32 %v5602, 16
  %v5621 = vshll.u32 %v5602, 16
  %v5623 = vrot.slane %v5621, 1
  %v5624 = vor.u32 %v5619, %v5623
  %v5626 = vshrl.u32 %v5603, 16
  %v5628 = vshll.u32 %v5603, 16
  %v5630 = vrot.slane %v5628, 1
  %v5631 = vor.u32 %v5626, %v5630
  %v5633 = vshrl.u32 %v5604, 16
  %v5635 = vshll.u32 %v5604, 16
  %v5637 = vrot.slane %v5635, 1
  %v5638 = vor.u32 %v5633, %v5637
  %v5640 = vshrl.u32 %v5605, 16
  %v5642 = vshll.u32 %v5605, 16
  %v5644 = vrot.slane %v5642, 1
  %v5645 = vor.u32 %v5640, %v5644
  %v5647 = vshrl.u32 %v5606, 16
  %v5649 = vshll.u32 %v5606, 16
  %v5651 = vrot.slane %v5649, 1
  %v5652 = vor.u32 %v5647, %v5651
  %v5654 = vshrl.u32 %v5607, 16
  %v5656 = vshll.u32 %v5607, 16
  %v5658 = vrot.slane %v5656, 1
  %v5659 = vor.u32 %v5654, %v5658
  %v5661 = vshrl.u32 %v5608, 16
  %v5663 = vshll.u32 %v5608, 16
  %v5665 = vrot.slane %v5663, 1
  %v5666 = vor.u32 %v5661, %v5665
  %v5668 = vshrl.u32 %v5609, 16
  %v5670 = vshll.u32 %v5609, 16
  %v5672 = vrot.slane %v5670, 1
  %v5673 = vor.u32 %v5668, %v5672
  %v5675 = vshrl.u32 %v5610, 16
  %v5677 = vshll.u32 %v5610, 16
  %v5679 = vrot.slane %v5677, 1
  %v5680 = vor.u32 %v5675, %v5679
  %v5682 = vshrl.u32 %v5611, 16
  %v5684 = vshll.u32 %v5611, 16
  %v5686 = vrot.slane %v5684, 1
  %v5687 = vor.u32 %v5682, %v5686
  %v5689 = vshrl.u32 %v5612, 16
  %v5691 = vshll.u32 %v5612, 16
  %v5693 = vrot.slane %v5691, 1
  %v5694 = vor.u32 %v5689, %v5693
  %v5696 = vshrl.u32 %v5613, 16
  %v5698 = vshll.u32 %v5613, 16
  %v5700 = vrot.slane %v5698, 1
  %v5701 = vor.u32 %v5696, %v5700
  %v5703 = vshrl.u32 %v5614, 16
  %v5705 = vshll.u32 %v5614, 16
  %v5707 = vrot.slane %v5705, 1
  %v5708 = vor.u32 %v5703, %v5707
  %v5710 = vshrl.u32 %v5615, 16
  %v5712 = vshll.u32 %v5615, 16
  %v5714 = vrot.slane %v5712, 1
  %v5715 = vor.u32 %v5710, %v5714
  %v5717 = vshrl.u32 %v5616, 16
  %v5719 = vshll.u32 %v5616, 16
  %v5721 = vrot.slane %v5719, 1
  %v5722 = vor.u32 %v5717, %v5721
  %v5724 = vshrl.u32 %v5617, 16
  %v5726 = vshll.u32 %v5617, 16
  %v5728 = vrot.slane %v5726, 1
  %v5729 = vor.u32 %v5724, %v5728
  %5730 = vrot.lane.b32.xlu0 %v5624, 32
  %v5731 = vpop.permute.xlu0 %5730
  %5732 = vrot.lane.b32.xlu0 %v5631, 32
  %v5733 = vpop.permute.xlu0 %5732
  %5734 = vrot.lane.b32.xlu0 %v5638, 32
  %v5735 = vpop.permute.xlu0 %5734
  %5736 = vrot.lane.b32.xlu0 %v5645, 32
  %v5737 = vpop.permute.xlu0 %5736
  %5738 = vrot.lane.b32.xlu0 %v5652, 32
  %v5739 = vpop.permute.xlu0 %5738
  %5740 = vrot.lane.b32.xlu0 %v5659, 32
  %v5741 = vpop.permute.xlu0 %5740
  %5742 = vrot.lane.b32.xlu0 %v5666, 32
  %v5743 = vpop.permute.xlu0 %5742
  %5744 = vrot.lane.b32.xlu0 %v5673, 32
  %v5745 = vpop.permute.xlu0 %5744
  %5746 = vrot.lane.b32.xlu0 %v5680, 32
  %v5747 = vpop.permute.xlu0 %5746
  %5748 = vrot.lane.b32.xlu0 %v5687, 32
  %v5749 = vpop.permute.xlu0 %5748
  %5750 = vrot.lane.b32.xlu0 %v5694, 32
  %v5751 = vpop.permute.xlu0 %5750
  %5752 = vrot.lane.b32.xlu0 %v5701, 32
  %v5753 = vpop.permute.xlu0 %5752
  %5754 = vrot.lane.b32.xlu0 %v5708, 32
  %v5755 = vpop.permute.xlu0 %5754
  %5756 = vrot.lane.b32.xlu0 %v5715, 32
  %v5757 = vpop.permute.xlu0 %5756
  %5758 = vrot.lane.b32.xlu0 %v5722, 32
  %v5759 = vpop.permute.xlu0 %5758
  %5760 = vrot.lane.b32.xlu0 %v5729, 32
  %v5761 = vpop.permute.xlu0 %5760
  %v5778 = vunpack.c.l.b16 %v5106
  %v5779 = vunpack.c.l.b16 %v5107
  %v5780 = vunpack.c.l.b16 %v5108
  %v5781 = vunpack.c.l.b16 %v5109
  %v5782 = vunpack.c.l.b16 %v5110
  %v5783 = vunpack.c.l.b16 %v5111
  %v5784 = vunpack.c.l.b16 %v5112
  %v5785 = vunpack.c.l.b16 %v5113
  %v5786 = vunpack.c.l.b16 %v5114
  %v5787 = vunpack.c.l.b16 %v5115
  %v5788 = vunpack.c.l.b16 %v5116
  %v5789 = vunpack.c.l.b16 %v5117
  %v5790 = vunpack.c.l.b16 %v5118
  %v5791 = vunpack.c.l.b16 %v5119
  %v5792 = vunpack.c.l.b16 %v5120
  %v5793 = vunpack.c.l.b16 %v5121
  %v5794 = vpack.c.b16 %v5586, %v5778
  %v5795 = vpack.c.b16 %v5587, %v5779
  %v5796 = vpack.c.b16 %v5588, %v5780
  %v5797 = vpack.c.b16 %v5589, %v5781
  %v5798 = vpack.c.b16 %v5590, %v5782
  %v5799 = vpack.c.b16 %v5591, %v5783
  %v5800 = vpack.c.b16 %v5592, %v5784
  %v5801 = vpack.c.b16 %v5593, %v5785
  %v5802 = vpack.c.b16 %v5594, %v5786
  %v5803 = vpack.c.b16 %v5595, %v5787
  %v5804 = vpack.c.b16 %v5596, %v5788
  %v5805 = vpack.c.b16 %v5597, %v5789
  %v5806 = vpack.c.b16 %v5598, %v5790
  %v5807 = vpack.c.b16 %v5599, %v5791
  %v5808 = vpack.c.b16 %v5600, %v5792
  %v5809 = vpack.c.b16 %v5601, %v5793
  %v5810 = vrot.slane %v5794, 1
  %v5811 = vrot.slane %v5795, 1
  %v5812 = vrot.slane %v5796, 1
  %v5813 = vrot.slane %v5797, 1
  %v5814 = vrot.slane %v5798, 1
  %v5815 = vrot.slane %v5799, 1
  %v5816 = vrot.slane %v5800, 1
  %v5817 = vrot.slane %v5801, 1
  %v5818 = vrot.slane %v5802, 1
  %v5819 = vrot.slane %v5803, 1
  %v5820 = vrot.slane %v5804, 1
  %v5821 = vrot.slane %v5805, 1
  %v5822 = vrot.slane %v5806, 1
  %v5823 = vrot.slane %v5807, 1
  %v5824 = vrot.slane %v5808, 1
  %v5825 = vrot.slane %v5809, 1
  %5826 = vrot.lane.b32.xlu0 %v5810, 40
  %v5827 = vpop.permute.xlu0 %5826
  %5828 = vrot.lane.b32.xlu0 %v5811, 40
  %v5829 = vpop.permute.xlu0 %5828
  %5830 = vrot.lane.b32.xlu0 %v5812, 40
  %v5831 = vpop.permute.xlu0 %5830
  %5832 = vrot.lane.b32.xlu0 %v5813, 40
  %v5833 = vpop.permute.xlu0 %5832
  %5834 = vrot.lane.b32.xlu0 %v5814, 40
  %v5835 = vpop.permute.xlu0 %5834
  %5836 = vrot.lane.b32.xlu0 %v5815, 40
  %v5837 = vpop.permute.xlu0 %5836
  %5838 = vrot.lane.b32.xlu0 %v5816, 40
  %v5839 = vpop.permute.xlu0 %5838
  %5840 = vrot.lane.b32.xlu0 %v5817, 40
  %v5841 = vpop.permute.xlu0 %5840
  %5842 = vrot.lane.b32.xlu0 %v5818, 40
  %v5843 = vpop.permute.xlu0 %5842
  %5844 = vrot.lane.b32.xlu0 %v5819, 40
  %v5845 = vpop.permute.xlu0 %5844
  %5846 = vrot.lane.b32.xlu0 %v5820, 40
  %v5847 = vpop.permute.xlu0 %5846
  %5848 = vrot.lane.b32.xlu0 %v5821, 40
  %v5849 = vpop.permute.xlu0 %5848
  %5850 = vrot.lane.b32.xlu0 %v5822, 40
  %v5851 = vpop.permute.xlu0 %5850
  %5852 = vrot.lane.b32.xlu0 %v5823, 40
  %v5853 = vpop.permute.xlu0 %5852
  %5854 = vrot.lane.b32.xlu0 %v5824, 40
  %v5855 = vpop.permute.xlu0 %5854
  %5856 = vrot.lane.b32.xlu0 %v5825, 40
  %v5857 = vpop.permute.xlu0 %5856
  %v5874 = vunpack.c.l.b16 %v5122
  %v5875 = vunpack.c.l.b16 %v5123
  %v5876 = vunpack.c.l.b16 %v5124
  %v5877 = vunpack.c.l.b16 %v5125
  %v5878 = vunpack.c.l.b16 %v5126
  %v5879 = vunpack.c.l.b16 %v5127
  %v5880 = vunpack.c.l.b16 %v5128
  %v5881 = vunpack.c.l.b16 %v5129
  %v5882 = vunpack.c.l.b16 %v5130
  %v5883 = vunpack.c.l.b16 %v5131
  %v5884 = vunpack.c.l.b16 %v5132
  %v5885 = vunpack.c.l.b16 %v5133
  %v5886 = vunpack.c.l.b16 %v5134
  %v5887 = vunpack.c.l.b16 %v5135
  %v5888 = vunpack.c.l.b16 %v5136
  %v5889 = vunpack.c.l.b16 %v5137
  %v5890 = vpack.c.b16 %v5874, %v5874
  %v5891 = vpack.c.b16 %v5875, %v5875
  %v5892 = vpack.c.b16 %v5876, %v5876
  %v5893 = vpack.c.b16 %v5877, %v5877
  %v5894 = vpack.c.b16 %v5878, %v5878
  %v5895 = vpack.c.b16 %v5879, %v5879
  %v5896 = vpack.c.b16 %v5880, %v5880
  %v5897 = vpack.c.b16 %v5881, %v5881
  %v5898 = vpack.c.b16 %v5882, %v5882
  %v5899 = vpack.c.b16 %v5883, %v5883
  %v5900 = vpack.c.b16 %v5884, %v5884
  %v5901 = vpack.c.b16 %v5885, %v5885
  %v5902 = vpack.c.b16 %v5886, %v5886
  %v5903 = vpack.c.b16 %v5887, %v5887
  %v5904 = vpack.c.b16 %v5888, %v5888
  %v5905 = vpack.c.b16 %v5889, %v5889
  %5906 = vrot.lane.b32.xlu0 %v5890, 48
  %v5907 = vpop.permute.xlu0 %5906
  %5908 = vrot.lane.b32.xlu0 %v5891, 48
  %v5909 = vpop.permute.xlu0 %5908
  %5910 = vrot.lane.b32.xlu0 %v5892, 48
  %v5911 = vpop.permute.xlu0 %5910
  %5912 = vrot.lane.b32.xlu0 %v5893, 48
  %v5913 = vpop.permute.xlu0 %5912
  %5914 = vrot.lane.b32.xlu0 %v5894, 48
  %v5915 = vpop.permute.xlu0 %5914
  %5916 = vrot.lane.b32.xlu0 %v5895, 48
  %v5917 = vpop.permute.xlu0 %5916
  %5918 = vrot.lane.b32.xlu0 %v5896, 48
  %v5919 = vpop.permute.xlu0 %5918
  %5920 = vrot.lane.b32.xlu0 %v5897, 48
  %v5921 = vpop.permute.xlu0 %5920
  %5922 = vrot.lane.b32.xlu0 %v5898, 48
  %v5923 = vpop.permute.xlu0 %5922
  %5924 = vrot.lane.b32.xlu0 %v5899, 48
  %v5925 = vpop.permute.xlu0 %5924
  %5926 = vrot.lane.b32.xlu0 %v5900, 48
  %v5927 = vpop.permute.xlu0 %5926
  %5928 = vrot.lane.b32.xlu0 %v5901, 48
  %v5929 = vpop.permute.xlu0 %5928
  %5930 = vrot.lane.b32.xlu0 %v5902, 48
  %v5931 = vpop.permute.xlu0 %5930
  %5932 = vrot.lane.b32.xlu0 %v5903, 48
  %v5933 = vpop.permute.xlu0 %5932
  %5934 = vrot.lane.b32.xlu0 %v5904, 48
  %v5935 = vpop.permute.xlu0 %5934
  %5936 = vrot.lane.b32.xlu0 %v5905, 48
  %v5937 = vpop.permute.xlu0 %5936
  %v5954 = vunpack.c.l.b16 %v5138
  %v5955 = vunpack.c.l.b16 %v5139
  %v5956 = vunpack.c.l.b16 %v5140
  %v5957 = vunpack.c.l.b16 %v5141
  %v5958 = vunpack.c.l.b16 %v5142
  %v5959 = vunpack.c.l.b16 %v5143
  %v5960 = vunpack.c.l.b16 %v5144
  %v5961 = vunpack.c.l.b16 %v5145
  %v5962 = vunpack.c.l.b16 %v5146
  %v5963 = vunpack.c.l.b16 %v5147
  %v5964 = vunpack.c.l.b16 %v5148
  %v5965 = vunpack.c.l.b16 %v5149
  %v5966 = vunpack.c.l.b16 %v5150
  %v5967 = vunpack.c.l.b16 %v5151
  %v5968 = vunpack.c.l.b16 %v5152
  %v5969 = vunpack.c.l.b16 %v5153
  %v5970 = vpack.c.b16 %v5954, %v5874
  %v5971 = vpack.c.b16 %v5955, %v5875
  %v5972 = vpack.c.b16 %v5956, %v5876
  %v5973 = vpack.c.b16 %v5957, %v5877
  %v5974 = vpack.c.b16 %v5958, %v5878
  %v5975 = vpack.c.b16 %v5959, %v5879
  %v5976 = vpack.c.b16 %v5960, %v5880
  %v5977 = vpack.c.b16 %v5961, %v5881
  %v5978 = vpack.c.b16 %v5962, %v5882
  %v5979 = vpack.c.b16 %v5963, %v5883
  %v5980 = vpack.c.b16 %v5964, %v5884
  %v5981 = vpack.c.b16 %v5965, %v5885
  %v5982 = vpack.c.b16 %v5966, %v5886
  %v5983 = vpack.c.b16 %v5967, %v5887
  %v5984 = vpack.c.b16 %v5968, %v5888
  %v5985 = vpack.c.b16 %v5969, %v5889
  %v5987 = vshrl.u32 %v5970, 16
  %v5989 = vshll.u32 %v5970, 16
  %v5991 = vrot.slane %v5989, 1
  %v5992 = vor.u32 %v5987, %v5991
  %v5994 = vshrl.u32 %v5971, 16
  %v5996 = vshll.u32 %v5971, 16
  %v5998 = vrot.slane %v5996, 1
  %v5999 = vor.u32 %v5994, %v5998
  %v6001 = vshrl.u32 %v5972, 16
  %v6003 = vshll.u32 %v5972, 16
  %v6005 = vrot.slane %v6003, 1
  %v6006 = vor.u32 %v6001, %v6005
  %v6008 = vshrl.u32 %v5973, 16
  %v6010 = vshll.u32 %v5973, 16
  %v6012 = vrot.slane %v6010, 1
  %v6013 = vor.u32 %v6008, %v6012
  %v6015 = vshrl.u32 %v5974, 16
  %v6017 = vshll.u32 %v5974, 16
  %v6019 = vrot.slane %v6017, 1
  %v6020 = vor.u32 %v6015, %v6019
  %v6022 = vshrl.u32 %v5975, 16
  %v6024 = vshll.u32 %v5975, 16
  %v6026 = vrot.slane %v6024, 1
  %v6027 = vor.u32 %v6022, %v6026
  %v6029 = vshrl.u32 %v5976, 16
  %v6031 = vshll.u32 %v5976, 16
  %v6033 = vrot.slane %v6031, 1
  %v6034 = vor.u32 %v6029, %v6033
  %v6036 = vshrl.u32 %v5977, 16
  %v6038 = vshll.u32 %v5977, 16
  %v6040 = vrot.slane %v6038, 1
  %v6041 = vor.u32 %v6036, %v6040
  %v6043 = vshrl.u32 %v5978, 16
  %v6045 = vshll.u32 %v5978, 16
  %v6047 = vrot.slane %v6045, 1
  %v6048 = vor.u32 %v6043, %v6047
  %v6050 = vshrl.u32 %v5979, 16
  %v6052 = vshll.u32 %v5979, 16
  %v6054 = vrot.slane %v6052, 1
  %v6055 = vor.u32 %v6050, %v6054
  %v6057 = vshrl.u32 %v5980, 16
  %v6059 = vshll.u32 %v5980, 16
  %v6061 = vrot.slane %v6059, 1
  %v6062 = vor.u32 %v6057, %v6061
  %v6064 = vshrl.u32 %v5981, 16
  %v6066 = vshll.u32 %v5981, 16
  %v6068 = vrot.slane %v6066, 1
  %v6069 = vor.u32 %v6064, %v6068
  %v6071 = vshrl.u32 %v5982, 16
  %v6073 = vshll.u32 %v5982, 16
  %v6075 = vrot.slane %v6073, 1
  %v6076 = vor.u32 %v6071, %v6075
  %v6078 = vshrl.u32 %v5983, 16
  %v6080 = vshll.u32 %v5983, 16
  %v6082 = vrot.slane %v6080, 1
  %v6083 = vor.u32 %v6078, %v6082
  %v6085 = vshrl.u32 %v5984, 16
  %v6087 = vshll.u32 %v5984, 16
  %v6089 = vrot.slane %v6087, 1
  %v6090 = vor.u32 %v6085, %v6089
  %v6092 = vshrl.u32 %v5985, 16
  %v6094 = vshll.u32 %v5985, 16
  %v6096 = vrot.slane %v6094, 1
  %v6097 = vor.u32 %v6092, %v6096
  %6098 = vrot.lane.b32.xlu0 %v5992, 56
  %v6099 = vpop.permute.xlu0 %6098
  %6100 = vrot.lane.b32.xlu0 %v5999, 56
  %v6101 = vpop.permute.xlu0 %6100
  %6102 = vrot.lane.b32.xlu0 %v6006, 56
  %v6103 = vpop.permute.xlu0 %6102
  %6104 = vrot.lane.b32.xlu0 %v6013, 56
  %v6105 = vpop.permute.xlu0 %6104
  %6106 = vrot.lane.b32.xlu0 %v6020, 56
  %v6107 = vpop.permute.xlu0 %6106
  %6108 = vrot.lane.b32.xlu0 %v6027, 56
  %v6109 = vpop.permute.xlu0 %6108
  %6110 = vrot.lane.b32.xlu0 %v6034, 56
  %v6111 = vpop.permute.xlu0 %6110
  %6112 = vrot.lane.b32.xlu0 %v6041, 56
  %v6113 = vpop.permute.xlu0 %6112
  %6114 = vrot.lane.b32.xlu0 %v6048, 56
  %v6115 = vpop.permute.xlu0 %6114
  %6116 = vrot.lane.b32.xlu0 %v6055, 56
  %v6117 = vpop.permute.xlu0 %6116
  %6118 = vrot.lane.b32.xlu0 %v6062, 56
  %v6119 = vpop.permute.xlu0 %6118
  %6120 = vrot.lane.b32.xlu0 %v6069, 56
  %v6121 = vpop.permute.xlu0 %6120
  %6122 = vrot.lane.b32.xlu0 %v6076, 56
  %v6123 = vpop.permute.xlu0 %6122
  %6124 = vrot.lane.b32.xlu0 %v6083, 56
  %v6125 = vpop.permute.xlu0 %6124
  %6126 = vrot.lane.b32.xlu0 %v6090, 56
  %v6127 = vpop.permute.xlu0 %6126
  %6128 = vrot.lane.b32.xlu0 %v6097, 56
  %v6129 = vpop.permute.xlu0 %6128
  %v6146 = vunpack.c.l.b16 %v5154
  %v6147 = vunpack.c.l.b16 %v5155
  %v6148 = vunpack.c.l.b16 %v5156
  %v6149 = vunpack.c.l.b16 %v5157
  %v6150 = vunpack.c.l.b16 %v5158
  %v6151 = vunpack.c.l.b16 %v5159
  %v6152 = vunpack.c.l.b16 %v5160
  %v6153 = vunpack.c.l.b16 %v5161
  %v6154 = vunpack.c.l.b16 %v5162
  %v6155 = vunpack.c.l.b16 %v5163
  %v6156 = vunpack.c.l.b16 %v5164
  %v6157 = vunpack.c.l.b16 %v5165
  %v6158 = vunpack.c.l.b16 %v5166
  %v6159 = vunpack.c.l.b16 %v5167
  %v6160 = vunpack.c.l.b16 %v5168
  %v6161 = vunpack.c.l.b16 %v5169
  %v6162 = vpack.c.b16 %v5954, %v6146
  %v6163 = vpack.c.b16 %v5955, %v6147
  %v6164 = vpack.c.b16 %v5956, %v6148
  %v6165 = vpack.c.b16 %v5957, %v6149
  %v6166 = vpack.c.b16 %v5958, %v6150
  %v6167 = vpack.c.b16 %v5959, %v6151
  %v6168 = vpack.c.b16 %v5960, %v6152
  %v6169 = vpack.c.b16 %v5961, %v6153
  %v6170 = vpack.c.b16 %v5962, %v6154
  %v6171 = vpack.c.b16 %v5963, %v6155
  %v6172 = vpack.c.b16 %v5964, %v6156
  %v6173 = vpack.c.b16 %v5965, %v6157
  %v6174 = vpack.c.b16 %v5966, %v6158
  %v6175 = vpack.c.b16 %v5967, %v6159
  %v6176 = vpack.c.b16 %v5968, %v6160
  %v6177 = vpack.c.b16 %v5969, %v6161
  %v6178 = vrot.slane %v6162, 1
  %v6179 = vrot.slane %v6163, 1
  %v6180 = vrot.slane %v6164, 1
  %v6181 = vrot.slane %v6165, 1
  %v6182 = vrot.slane %v6166, 1
  %v6183 = vrot.slane %v6167, 1
  %v6184 = vrot.slane %v6168, 1
  %v6185 = vrot.slane %v6169, 1
  %v6186 = vrot.slane %v6170, 1
  %v6187 = vrot.slane %v6171, 1
  %v6188 = vrot.slane %v6172, 1
  %v6189 = vrot.slane %v6173, 1
  %v6190 = vrot.slane %v6174, 1
  %v6191 = vrot.slane %v6175, 1
  %v6192 = vrot.slane %v6176, 1
  %v6193 = vrot.slane %v6177, 1
  %6194 = vrot.lane.b32.xlu0 %v6178, 64
  %v6195 = vpop.permute.xlu0 %6194
  %6196 = vrot.lane.b32.xlu0 %v6179, 64
  %v6197 = vpop.permute.xlu0 %6196
  %6198 = vrot.lane.b32.xlu0 %v6180, 64
  %v6199 = vpop.permute.xlu0 %6198
  %6200 = vrot.lane.b32.xlu0 %v6181, 64
  %v6201 = vpop.permute.xlu0 %6200
  %6202 = vrot.lane.b32.xlu0 %v6182, 64
  %v6203 = vpop.permute.xlu0 %6202
  %6204 = vrot.lane.b32.xlu0 %v6183, 64
  %v6205 = vpop.permute.xlu0 %6204
  %6206 = vrot.lane.b32.xlu0 %v6184, 64
  %v6207 = vpop.permute.xlu0 %6206
  %6208 = vrot.lane.b32.xlu0 %v6185, 64
  %v6209 = vpop.permute.xlu0 %6208
  %6210 = vrot.lane.b32.xlu0 %v6186, 64
  %v6211 = vpop.permute.xlu0 %6210
  %6212 = vrot.lane.b32.xlu0 %v6187, 64
  %v6213 = vpop.permute.xlu0 %6212
  %6214 = vrot.lane.b32.xlu0 %v6188, 64
  %v6215 = vpop.permute.xlu0 %6214
  %6216 = vrot.lane.b32.xlu0 %v6189, 64
  %v6217 = vpop.permute.xlu0 %6216
  %6218 = vrot.lane.b32.xlu0 %v6190, 64
  %v6219 = vpop.permute.xlu0 %6218
  %6220 = vrot.lane.b32.xlu0 %v6191, 64
  %v6221 = vpop.permute.xlu0 %6220
  %6222 = vrot.lane.b32.xlu0 %v6192, 64
  %v6223 = vpop.permute.xlu0 %6222
  %6224 = vrot.lane.b32.xlu0 %v6193, 64
  %v6225 = vpop.permute.xlu0 %6224
  %v6228 = vsel %vm2156, %v5026, %v5363
  %v6231 = vsel %vm2156, %v5027, %v5365
  %v6234 = vsel %vm2156, %v5028, %v5367
  %v6237 = vsel %vm2156, %v5029, %v5369
  %v6240 = vsel %vm2156, %v5030, %v5371
  %v6243 = vsel %vm2156, %v5031, %v5373
  %v6246 = vsel %vm2156, %v5032, %v5375
  %v6249 = vsel %vm2156, %v5033, %v5377
  %v6252 = vsel %vm2156, %v5034, %v5379
  %v6255 = vsel %vm2156, %v5035, %v5381
  %v6258 = vsel %vm2156, %v5036, %v5383
  %v6261 = vsel %vm2156, %v5037, %v5385
  %v6264 = vsel %vm2156, %v5038, %v5387
  %v6267 = vsel %vm2156, %v5039, %v5389
  %v6270 = vsel %vm2156, %v5040, %v5391
  %v6273 = vsel %vm2156, %v5041, %v5393
  %v6275 = vsel %vm2222, %v6228, %v5459
  %v6277 = vsel %vm2222, %v6231, %v5461
  %v6279 = vsel %vm2222, %v6234, %v5463
  %v6281 = vsel %vm2222, %v6237, %v5465
  %v6283 = vsel %vm2222, %v6240, %v5467
  %v6285 = vsel %vm2222, %v6243, %v5469
  %v6287 = vsel %vm2222, %v6246, %v5471
  %v6289 = vsel %vm2222, %v6249, %v5473
  %v6291 = vsel %vm2222, %v6252, %v5475
  %v6293 = vsel %vm2222, %v6255, %v5477
  %v6295 = vsel %vm2222, %v6258, %v5479
  %v6297 = vsel %vm2222, %v6261, %v5481
  %v6299 = vsel %vm2222, %v6264, %v5483
  %v6301 = vsel %vm2222, %v6267, %v5485
  %v6303 = vsel %vm2222, %v6270, %v5487
  %v6305 = vsel %vm2222, %v6273, %v5489
  %v6307 = vsel %vm2288, %v6275, %v5539
  %v6309 = vsel %vm2288, %v6277, %v5541
  %v6311 = vsel %vm2288, %v6279, %v5543
  %v6313 = vsel %vm2288, %v6281, %v5545
  %v6315 = vsel %vm2288, %v6283, %v5547
  %v6317 = vsel %vm2288, %v6285, %v5549
  %v6319 = vsel %vm2288, %v6287, %v5551
  %v6321 = vsel %vm2288, %v6289, %v5553
  %v6323 = vsel %vm2288, %v6291, %v5555
  %v6325 = vsel %vm2288, %v6293, %v5557
  %v6327 = vsel %vm2288, %v6295, %v5559
  %v6329 = vsel %vm2288, %v6297, %v5561
  %v6331 = vsel %vm2288, %v6299, %v5563
  %v6333 = vsel %vm2288, %v6301, %v5565
  %v6335 = vsel %vm2288, %v6303, %v5567
  %v6337 = vsel %vm2288, %v6305, %v5569
  %v6339 = vsel %vm2354, %v6307, %v5731
  %v6341 = vsel %vm2354, %v6309, %v5733
  %v6343 = vsel %vm2354, %v6311, %v5735
  %v6345 = vsel %vm2354, %v6313, %v5737
  %v6347 = vsel %vm2354, %v6315, %v5739
  %v6349 = vsel %vm2354, %v6317, %v5741
  %v6351 = vsel %vm2354, %v6319, %v5743
  %v6353 = vsel %vm2354, %v6321, %v5745
  %v6355 = vsel %vm2354, %v6323, %v5747
  %v6357 = vsel %vm2354, %v6325, %v5749
  %v6359 = vsel %vm2354, %v6327, %v5751
  %v6361 = vsel %vm2354, %v6329, %v5753
  %v6363 = vsel %vm2354, %v6331, %v5755
  %v6365 = vsel %vm2354, %v6333, %v5757
  %v6367 = vsel %vm2354, %v6335, %v5759
  %v6369 = vsel %vm2354, %v6337, %v5761
  %v6371 = vsel %vm4316, %v6339, %v5827
  %v6373 = vsel %vm4316, %v6341, %v5829
  %v6375 = vsel %vm4316, %v6343, %v5831
  %v6377 = vsel %vm4316, %v6345, %v5833
  %v6379 = vsel %vm4316, %v6347, %v5835
  %v6381 = vsel %vm4316, %v6349, %v5837
  %v6383 = vsel %vm4316, %v6351, %v5839
  %v6385 = vsel %vm4316, %v6353, %v5841
  %v6387 = vsel %vm4316, %v6355, %v5843
  %v6389 = vsel %vm4316, %v6357, %v5845
  %v6391 = vsel %vm4316, %v6359, %v5847
  %v6393 = vsel %vm4316, %v6361, %v5849
  %v6395 = vsel %vm4316, %v6363, %v5851
  %v6397 = vsel %vm4316, %v6365, %v5853
  %v6399 = vsel %vm4316, %v6367, %v5855
  %v6401 = vsel %vm4316, %v6369, %v5857
  %v6403 = vsel %vm4349, %v6371, %v5907
  %v6405 = vsel %vm4349, %v6373, %v5909
  %v6407 = vsel %vm4349, %v6375, %v5911
  %v6409 = vsel %vm4349, %v6377, %v5913
  %v6411 = vsel %vm4349, %v6379, %v5915
  %v6413 = vsel %vm4349, %v6381, %v5917
  %v6415 = vsel %vm4349, %v6383, %v5919
  %v6417 = vsel %vm4349, %v6385, %v5921
  %v6419 = vsel %vm4349, %v6387, %v5923
  %v6421 = vsel %vm4349, %v6389, %v5925
  %v6423 = vsel %vm4349, %v6391, %v5927
  %v6425 = vsel %vm4349, %v6393, %v5929
  %v6427 = vsel %vm4349, %v6395, %v5931
  %v6429 = vsel %vm4349, %v6397, %v5933
  %v6431 = vsel %vm4349, %v6399, %v5935
  %v6433 = vsel %vm4349, %v6401, %v5937
  %v6435 = vsel %vm4382, %v6403, %v6099
  %v6437 = vsel %vm4382, %v6405, %v6101
  %v6439 = vsel %vm4382, %v6407, %v6103
  %v6441 = vsel %vm4382, %v6409, %v6105
  %v6443 = vsel %vm4382, %v6411, %v6107
  %v6445 = vsel %vm4382, %v6413, %v6109
  %v6447 = vsel %vm4382, %v6415, %v6111
  %v6449 = vsel %vm4382, %v6417, %v6113
  %v6451 = vsel %vm4382, %v6419, %v6115
  %v6453 = vsel %vm4382, %v6421, %v6117
  %v6455 = vsel %vm4382, %v6423, %v6119
  %v6457 = vsel %vm4382, %v6425, %v6121
  %v6459 = vsel %vm4382, %v6427, %v6123
  %v6461 = vsel %vm4382, %v6429, %v6125
  %v6463 = vsel %vm4382, %v6431, %v6127
  %v6465 = vsel %vm4382, %v6433, %v6129
  %v6467 = vsel %vm4415, %v6435, %v6195
  %v6469 = vsel %vm4415, %v6437, %v6197
  %v6471 = vsel %vm4415, %v6439, %v6199
  %v6473 = vsel %vm4415, %v6441, %v6201
  %v6475 = vsel %vm4415, %v6443, %v6203
  %v6477 = vsel %vm4415, %v6445, %v6205
  %v6479 = vsel %vm4415, %v6447, %v6207
  %v6481 = vsel %vm4415, %v6449, %v6209
  %v6483 = vsel %vm4415, %v6451, %v6211
  %v6485 = vsel %vm4415, %v6453, %v6213
  %v6487 = vsel %vm4415, %v6455, %v6215
  %v6489 = vsel %vm4415, %v6457, %v6217
  %v6491 = vsel %vm4415, %v6459, %v6219
  %v6493 = vsel %vm4415, %v6461, %v6221
  %v6495 = vsel %vm4415, %v6463, %v6223
  %v6497 = vsel %vm4415, %v6465, %v6225
  %v6498 = vsel %vm4448, %v6467, 0
  %v6499 = vsel %vm4448, %v6469, 0
  %v6500 = vsel %vm4448, %v6471, 0
  %v6501 = vsel %vm4448, %v6473, 0
  %v6502 = vsel %vm4448, %v6475, 0
  %v6503 = vsel %vm4448, %v6477, 0
  %v6504 = vsel %vm4448, %v6479, 0
  %v6505 = vsel %vm4448, %v6481, 0
  %v6506 = vsel %vm4448, %v6483, 0
  %v6507 = vsel %vm4448, %v6485, 0
  %v6508 = vsel %vm4448, %v6487, 0
  %v6509 = vsel %vm4448, %v6489, 0
  %v6510 = vsel %vm4448, %v6491, 0
  %v6511 = vsel %vm4448, %v6493, 0
  %v6512 = vsel %vm4448, %v6495, 0
  %v6513 = vsel %vm4448, %v6497, 0
  %v6514 = vld [vmem:[%s3] sm:$0xf]
  %v6515 = vld [vmem:[%s3 + $0x4] sm:$0xf]
  %v6516 = vld [vmem:[%s3 + $0x8] sm:$0xf]
  %v6517 = vld [vmem:[%s3 + $0xc] sm:$0xf]
  %v6518 = vld [vmem:[%s3 + $0x10] sm:$0xf]
  %v6519 = vld [vmem:[%s3 + $0x14] sm:$0xf]
  %v6520 = vld [vmem:[%s3 + $0x18] sm:$0xf]
  %v6521 = vld [vmem:[%s3 + $0x1c] sm:$0xf]
  %v6522 = vld [vmem:[%s3 + $0x20] sm:$0xf]
  %v6523 = vld [vmem:[%s3 + $0x24] sm:$0xf]
  %v6524 = vld [vmem:[%s3 + $0x28] sm:$0xf]
  %v6525 = vld [vmem:[%s3 + $0x2c] sm:$0xf]
  %v6526 = vld [vmem:[%s3 + $0x30] sm:$0xf]
  %v6527 = vld [vmem:[%s3 + $0x34] sm:$0xf]
  %v6528 = vld [vmem:[%s3 + $0x38] sm:$0xf]
  %v6529 = vld [vmem:[%s3 + $0x3c] sm:$0xf]
  %v6546 = vunpack.c.l.b16 %v6498
  %v6547 = vunpack.c.l.b16 %v6499
  %v6548 = vunpack.c.l.b16 %v6500
  %v6549 = vunpack.c.l.b16 %v6501
  %v6550 = vunpack.c.l.b16 %v6502
  %v6551 = vunpack.c.l.b16 %v6503
  %v6552 = vunpack.c.l.b16 %v6504
  %v6553 = vunpack.c.l.b16 %v6505
  %v6554 = vunpack.c.l.b16 %v6506
  %v6555 = vunpack.c.l.b16 %v6507
  %v6556 = vunpack.c.l.b16 %v6508
  %v6557 = vunpack.c.l.b16 %v6509
  %v6558 = vunpack.c.l.b16 %v6510
  %v6559 = vunpack.c.l.b16 %v6511
  %v6560 = vunpack.c.l.b16 %v6512
  %v6561 = vunpack.c.l.b16 %v6513
  %v6562 = vpack.c.b16 %v6547, %v6546
  %v6563 = vpack.c.b16 %v6549, %v6548
  %v6564 = vpack.c.b16 %v6551, %v6550
  %v6565 = vpack.c.b16 %v6553, %v6552
  %v6566 = vpack.c.b16 %v6555, %v6554
  %v6567 = vpack.c.b16 %v6557, %v6556
  %v6568 = vpack.c.b16 %v6559, %v6558
  %v6569 = vpack.c.b16 %v6561, %v6560
  %v6594 = vunpack.c.l.b16 %v6514
  %v6595 = vunpack.c.l.b16 %v6515
  %v6596 = vunpack.c.l.b16 %v6516
  %v6597 = vunpack.c.l.b16 %v6517
  %v6598 = vunpack.c.l.b16 %v6518
  %v6599 = vunpack.c.l.b16 %v6519
  %v6600 = vunpack.c.l.b16 %v6520
  %v6601 = vunpack.c.l.b16 %v6521
  %v6602 = vunpack.c.l.b16 %v6522
  %v6603 = vunpack.c.l.b16 %v6523
  %v6604 = vunpack.c.l.b16 %v6524
  %v6605 = vunpack.c.l.b16 %v6525
  %v6606 = vunpack.c.l.b16 %v6526
  %v6607 = vunpack.c.l.b16 %v6527
  %v6608 = vunpack.c.l.b16 %v6528
  %v6609 = vunpack.c.l.b16 %v6529
  %v6610 = vpack.c.b16 %v6595, %v6594
  %v6611 = vpack.c.b16 %v6597, %v6596
  %v6612 = vpack.c.b16 %v6599, %v6598
  %v6613 = vpack.c.b16 %v6601, %v6600
  %v6614 = vpack.c.b16 %v6603, %v6602
  %v6615 = vpack.c.b16 %v6605, %v6604
  %v6616 = vpack.c.b16 %v6607, %v6606
  %v6617 = vpack.c.b16 %v6609, %v6608
  %6626 = vmatprep.subr.bf16.mxu0 0
  %6627 = vmatpush1.bf16.msra.mxu0 %v6617
  %6628 = vmatprep.subr.bf16.mxu0 0
  %6629 = vmatpush1.bf16.msra.mxu0 %v6616
  %6630 = vmatprep.subr.bf16.mxu0 0
  %6631 = vmatpush1.bf16.msra.mxu0 %v6615
  %6632 = vmatprep.subr.bf16.mxu0 0
  %6633 = vmatpush1.bf16.msra.mxu0 %v6614
  %6634 = vmatprep.subr.bf16.mxu0 0
  %6635 = vmatpush1.bf16.msra.mxu0 %v6613
  %6636 = vmatprep.subr.bf16.mxu0 0
  %6637 = vmatpush1.bf16.msra.mxu0 %v6612
  %6638 = vmatprep.subr.bf16.mxu0 0
  %6639 = vmatpush1.bf16.msra.mxu0 %v6611
  %6640 = vmatprep.subr.bf16.mxu0 0
  %6641 = vmatpush1.bf16.msra.mxu0 %v6610
  %6642 = vmatprep.subr.bf16.mxu0 0
  %6643 = vmatpush2.bf16.msra.mxu0 0
  %6644 = vmatprep.subr.bf16.mxu0 0
  %6645 = vmatpush2.bf16.msra.mxu0 0
  %6646 = vmatprep.subr.bf16.mxu0 0
  %6647 = vmatpush2.bf16.msra.mxu0 0
  %6648 = vmatprep.subr.bf16.mxu0 0
  %6649 = vmatpush2.bf16.msra.mxu0 0
  %6650 = vmatprep.subr.bf16.mxu0 0
  %6651 = vmatpush2.bf16.msra.mxu0 0
  %6652 = vmatprep.subr.bf16.mxu0 0
  %6653 = vmatpush2.bf16.msra.mxu0 0
  %6654 = vmatprep.subr.bf16.mxu0 0
  %6655 = vmatpush2.bf16.msra.mxu0 0
  %6656 = vmatprep.subr.bf16.mxu0 0
  %6657 = vmatpush2.bf16.msra.mxu0 0
  %6658 = vmatprep.mubr.bf16.mxu0 0
  %6659 = vmatmul.mubr.bf16.gmra.mxu0 %v6562
  %v6660 = vpop.f32.mrf.mxu0
  %v6661 = vadd.f32 0.0, %v6660
  %v6662 = vpop.f32.mrf.mxu0
  %v6663 = vpop.f32.mrf.mxu0
  %v6664 = vadd.f32 0.0, %v6663
  %v6665 = vpop.f32.mrf.mxu0
  %6666 = vmatprep.mubr.bf16.mxu0 0
  %6667 = vmatmul.mubr.bf16.gmra.mxu0 %v6563
  %v6668 = vpop.f32.mrf.mxu0
  %v6669 = vadd.f32 0.0, %v6668
  %v6670 = vpop.f32.mrf.mxu0
  %v6671 = vpop.f32.mrf.mxu0
  %v6672 = vadd.f32 0.0, %v6671
  %v6673 = vpop.f32.mrf.mxu0
  %6674 = vmatprep.mubr.bf16.mxu0 0
  %6675 = vmatmul.mubr.bf16.gmra.mxu0 %v6564
  %v6676 = vpop.f32.mrf.mxu0
  %v6677 = vadd.f32 0.0, %v6676
  %v6678 = vpop.f32.mrf.mxu0
  %v6679 = vpop.f32.mrf.mxu0
  %v6680 = vadd.f32 0.0, %v6679
  %v6681 = vpop.f32.mrf.mxu0
  %6682 = vmatprep.mubr.bf16.mxu0 0
  %6683 = vmatmul.mubr.bf16.gmra.mxu0 %v6565
  %v6684 = vpop.f32.mrf.mxu0
  %v6685 = vadd.f32 0.0, %v6684
  %v6686 = vpop.f32.mrf.mxu0
  %v6687 = vpop.f32.mrf.mxu0
  %v6688 = vadd.f32 0.0, %v6687
  %v6689 = vpop.f32.mrf.mxu0
  %6690 = vmatprep.mubr.bf16.mxu0 0
  %6691 = vmatmul.mubr.bf16.gmra.mxu0 %v6566
  %v6692 = vpop.f32.mrf.mxu0
  %v6693 = vadd.f32 0.0, %v6692
  %v6694 = vpop.f32.mrf.mxu0
  %v6695 = vpop.f32.mrf.mxu0
  %v6696 = vadd.f32 0.0, %v6695
  %v6697 = vpop.f32.mrf.mxu0
  %6698 = vmatprep.mubr.bf16.mxu0 0
  %6699 = vmatmul.mubr.bf16.gmra.mxu0 %v6567
  %v6700 = vpop.f32.mrf.mxu0
  %v6701 = vadd.f32 0.0, %v6700
  %v6702 = vpop.f32.mrf.mxu0
  %v6703 = vpop.f32.mrf.mxu0
  %v6704 = vadd.f32 0.0, %v6703
  %v6705 = vpop.f32.mrf.mxu0
  %6706 = vmatprep.mubr.bf16.mxu0 0
  %6707 = vmatmul.mubr.bf16.gmra.mxu0 %v6568
  %v6708 = vpop.f32.mrf.mxu0
  %v6709 = vadd.f32 0.0, %v6708
  %v6710 = vpop.f32.mrf.mxu0
  %v6711 = vpop.f32.mrf.mxu0
  %v6712 = vadd.f32 0.0, %v6711
  %v6713 = vpop.f32.mrf.mxu0
  %6714 = vmatprep.mubr.bf16.mxu0 0
  %6715 = vmatmul.mubr.bf16.gmra.mxu0 %v6569
  %v6716 = vpop.f32.mrf.mxu0
  %v6717 = vadd.f32 0.0, %v6716
  %v6718 = vpop.f32.mrf.mxu0
  %v6719 = vpop.f32.mrf.mxu0
  %v6720 = vadd.f32 0.0, %v6719
  %v6721 = vpop.f32.mrf.mxu0
  %6722 = vdwg.mxu0
  %v6723 = vmax.f32 %v6661, 0.0
  %v6724 = vmax.f32 %v6664, 0.0
  %v6725 = vmax.f32 %v6669, 0.0
  %v6726 = vmax.f32 %v6672, 0.0
  %v6727 = vmax.f32 %v6677, 0.0
  %v6728 = vmax.f32 %v6680, 0.0
  %v6729 = vmax.f32 %v6685, 0.0
  %v6730 = vmax.f32 %v6688, 0.0
  %v6731 = vmax.f32 %v6693, 0.0
  %v6732 = vmax.f32 %v6696, 0.0
  %v6733 = vmax.f32 %v6701, 0.0
  %v6734 = vmax.f32 %v6704, 0.0
  %v6735 = vmax.f32 %v6709, 0.0
  %v6736 = vmax.f32 %v6712, 0.0
  %v6737 = vmax.f32 %v6717, 0.0
  %v6738 = vmax.f32 %v6720, 0.0
  %v6739 = vpack.c.bf16 %v6724, %v6723
  %v6740 = vpack.c.bf16 %v6726, %v6725
  %v6741 = vpack.c.bf16 %v6728, %v6727
  %v6742 = vpack.c.bf16 %v6730, %v6729
  %v6743 = vpack.c.bf16 %v6732, %v6731
  %v6744 = vpack.c.bf16 %v6734, %v6733
  %v6745 = vpack.c.bf16 %v6736, %v6735
  %v6746 = vpack.c.bf16 %v6738, %v6737
  %v6755 = vunpack.c.l.b16 %v6739
  %v6756 = vunpack.c.h.b16 %v6739
  %v6757 = vunpack.c.l.b16 %v6740
  %v6758 = vunpack.c.h.b16 %v6740
  %v6759 = vunpack.c.l.b16 %v6741
  %v6760 = vunpack.c.h.b16 %v6741
  %v6761 = vunpack.c.l.b16 %v6742
  %v6762 = vunpack.c.h.b16 %v6742
  %v6763 = vunpack.c.l.b16 %v6743
  %v6764 = vunpack.c.h.b16 %v6743
  %v6765 = vunpack.c.l.b16 %v6744
  %v6766 = vunpack.c.h.b16 %v6744
  %v6767 = vunpack.c.l.b16 %v6745
  %v6768 = vunpack.c.h.b16 %v6745
  %v6769 = vunpack.c.l.b16 %v6746
  %v6770 = vunpack.c.h.b16 %v6746
  %v6771 = vpack.c.b16 %v6755, %v6755
  %v6772 = vpack.c.b16 %v6756, %v6756
  %v6773 = vpack.c.b16 %v6757, %v6757
  %v6774 = vpack.c.b16 %v6758, %v6758
  %v6775 = vpack.c.b16 %v6759, %v6759
  %v6776 = vpack.c.b16 %v6760, %v6760
  %v6777 = vpack.c.b16 %v6761, %v6761
  %v6778 = vpack.c.b16 %v6762, %v6762
  %v6779 = vpack.c.b16 %v6763, %v6763
  %v6780 = vpack.c.b16 %v6764, %v6764
  %v6781 = vpack.c.b16 %v6765, %v6765
  %v6782 = vpack.c.b16 %v6766, %v6766
  %v6783 = vpack.c.b16 %v6767, %v6767
  %v6784 = vpack.c.b16 %v6768, %v6768
  %v6785 = vpack.c.b16 %v6769, %v6769
  %v6786 = vpack.c.b16 %v6770, %v6770
  %v6788 = vshrl.u32 %v6771, 16
  %v6790 = vrot.slane %v6788, 7
  %v6791 = vshll.u32 %v6771, 16
  %v6793 = vor.u32 %v6790, %v6791
  %v6794 = vrot.slane %v6790, 4
  %v6796 = vshrl.u32 %v6772, 16
  %v6798 = vrot.slane %v6796, 7
  %v6799 = vshll.u32 %v6772, 16
  %v6801 = vor.u32 %v6798, %v6799
  %v6802 = vrot.slane %v6798, 4
  %v6804 = vshrl.u32 %v6773, 16
  %v6806 = vrot.slane %v6804, 7
  %v6807 = vshll.u32 %v6773, 16
  %v6809 = vor.u32 %v6806, %v6807
  %v6810 = vrot.slane %v6806, 4
  %v6812 = vshrl.u32 %v6774, 16
  %v6814 = vrot.slane %v6812, 7
  %v6815 = vshll.u32 %v6774, 16
  %v6817 = vor.u32 %v6814, %v6815
  %v6818 = vrot.slane %v6814, 4
  %v6820 = vshrl.u32 %v6775, 16
  %v6822 = vrot.slane %v6820, 7
  %v6823 = vshll.u32 %v6775, 16
  %v6825 = vor.u32 %v6822, %v6823
  %v6826 = vrot.slane %v6822, 4
  %v6828 = vshrl.u32 %v6776, 16
  %v6830 = vrot.slane %v6828, 7
  %v6831 = vshll.u32 %v6776, 16
  %v6833 = vor.u32 %v6830, %v6831
  %v6834 = vrot.slane %v6830, 4
  %v6836 = vshrl.u32 %v6777, 16
  %v6838 = vrot.slane %v6836, 7
  %v6839 = vshll.u32 %v6777, 16
  %v6841 = vor.u32 %v6838, %v6839
  %v6842 = vrot.slane %v6838, 4
  %v6844 = vshrl.u32 %v6778, 16
  %v6846 = vrot.slane %v6844, 7
  %v6847 = vshll.u32 %v6778, 16
  %v6849 = vor.u32 %v6846, %v6847
  %v6850 = vrot.slane %v6846, 4
  %v6852 = vshrl.u32 %v6779, 16
  %v6854 = vrot.slane %v6852, 7
  %v6855 = vshll.u32 %v6779, 16
  %v6857 = vor.u32 %v6854, %v6855
  %v6858 = vrot.slane %v6854, 4
  %v6860 = vshrl.u32 %v6780, 16
  %v6862 = vrot.slane %v6860, 7
  %v6863 = vshll.u32 %v6780, 16
  %v6865 = vor.u32 %v6862, %v6863
  %v6866 = vrot.slane %v6862, 4
  %v6868 = vshrl.u32 %v6781, 16
  %v6870 = vrot.slane %v6868, 7
  %v6871 = vshll.u32 %v6781, 16
  %v6873 = vor.u32 %v6870, %v6871
  %v6874 = vrot.slane %v6870, 4
  %v6876 = vshrl.u32 %v6782, 16
  %v6878 = vrot.slane %v6876, 7
  %v6879 = vshll.u32 %v6782, 16
  %v6881 = vor.u32 %v6878, %v6879
  %v6882 = vrot.slane %v6878, 4
  %v6884 = vshrl.u32 %v6783, 16
  %v6886 = vrot.slane %v6884, 7
  %v6887 = vshll.u32 %v6783, 16
  %v6889 = vor.u32 %v6886, %v6887
  %v6890 = vrot.slane %v6886, 4
  %v6892 = vshrl.u32 %v6784, 16
  %v6894 = vrot.slane %v6892, 7
  %v6895 = vshll.u32 %v6784, 16
  %v6897 = vor.u32 %v6894, %v6895
  %v6898 = vrot.slane %v6894, 4
  %v6900 = vshrl.u32 %v6785, 16
  %v6902 = vrot.slane %v6900, 7
  %v6903 = vshll.u32 %v6785, 16
  %v6905 = vor.u32 %v6902, %v6903
  %v6906 = vrot.slane %v6902, 4
  %v6908 = vshrl.u32 %v6786, 16
  %v6910 = vrot.slane %v6908, 7
  %v6911 = vshll.u32 %v6786, 16
  %v6913 = vor.u32 %v6910, %v6911
  %v6914 = vrot.slane %v6910, 4
  %v6947 = vsel %vm2840, %v6793, %v5074
  %6948 = vst [vmem:[%s2838] sm:$0xf] %v6947
  %v6949 = vld [vmem:[%s2838 + $0x4] sm:$0x1]
  %v6950 = vsel %vm2845, %v6794, %v6949
  %6951 = vst [vmem:[%s2838 + $0x4] sm:$0x1] %v6950
  %v6952 = vld [vmem:[%s2838 + $0x8] sm:$0xf]
  %v6953 = vsel %vm2840, %v6801, %v6952
  %6954 = vst [vmem:[%s2838 + $0x8] sm:$0xf] %v6953
  %v6955 = vld [vmem:[%s2838 + $0xc] sm:$0x1]
  %v6956 = vsel %vm2845, %v6802, %v6955
  %6957 = vst [vmem:[%s2838 + $0xc] sm:$0x1] %v6956
  %v6958 = vld [vmem:[%s2838 + $0x10] sm:$0xf]
  %v6959 = vsel %vm2840, %v6809, %v6958
  %6960 = vst [vmem:[%s2838 + $0x10] sm:$0xf] %v6959
  %v6961 = vld [vmem:[%s2838 + $0x14] sm:$0x1]
  %v6962 = vsel %vm2845, %v6810, %v6961
  %6963 = vst [vmem:[%s2838 + $0x14] sm:$0x1] %v6962
  %v6964 = vld [vmem:[%s2838 + $0x18] sm:$0xf]
  %v6965 = vsel %vm2840, %v6817, %v6964
  %6966 = vst [vmem:[%s2838 + $0x18] sm:$0xf] %v6965
  %v6967 = vld [vmem:[%s2838 + $0x1c] sm:$0x1]
  %v6968 = vsel %vm2845, %v6818, %v6967
  %6969 = vst [vmem:[%s2838 + $0x1c] sm:$0x1] %v6968
  %v6970 = vld [vmem:[%s2838 + $0x20] sm:$0xf]
  %v6971 = vsel %vm2840, %v6825, %v6970
  %6972 = vst [vmem:[%s2838 + $0x20] sm:$0xf] %v6971
  %v6973 = vld [vmem:[%s2838 + $0x24] sm:$0x1]
  %v6974 = vsel %vm2845, %v6826, %v6973
  %6975 = vst [vmem:[%s2838 + $0x24] sm:$0x1] %v6974
  %v6976 = vld [vmem:[%s2838 + $0x28] sm:$0xf]
  %v6977 = vsel %vm2840, %v6833, %v6976
  %6978 = vst [vmem:[%s2838 + $0x28] sm:$0xf] %v6977
  %v6979 = vld [vmem:[%s2838 + $0x2c] sm:$0x1]
  %v6980 = vsel %vm2845, %v6834, %v6979
  %6981 = vst [vmem:[%s2838 + $0x2c] sm:$0x1] %v6980
  %v6982 = vld [vmem:[%s2838 + $0x30] sm:$0xf]
  %v6983 = vsel %vm2840, %v6841, %v6982
  %6984 = vst [vmem:[%s2838 + $0x30] sm:$0xf] %v6983
  %v6985 = vld [vmem:[%s2838 + $0x34] sm:$0x1]
  %v6986 = vsel %vm2845, %v6842, %v6985
  %6987 = vst [vmem:[%s2838 + $0x34] sm:$0x1] %v6986
  %v6988 = vld [vmem:[%s2838 + $0x38] sm:$0xf]
  %v6989 = vsel %vm2840, %v6849, %v6988
  %6990 = vst [vmem:[%s2838 + $0x38] sm:$0xf] %v6989
  %v6991 = vld [vmem:[%s2838 + $0x3c] sm:$0x1]
  %v6992 = vsel %vm2845, %v6850, %v6991
  %6993 = vst [vmem:[%s2838 + $0x3c] sm:$0x1] %v6992
  %v6994 = vld [vmem:[%s2838 + $0x50] sm:$0xf]
  %v6995 = vsel %vm2840, %v6857, %v6994
  %6996 = vst [vmem:[%s2838 + $0x50] sm:$0xf] %v6995
  %v6997 = vld [vmem:[%s2838 + $0x54] sm:$0x1]
  %v6998 = vsel %vm2845, %v6858, %v6997
  %6999 = vst [vmem:[%s2838 + $0x54] sm:$0x1] %v6998
  %v7000 = vld [vmem:[%s2838 + $0x58] sm:$0xf]
  %v7001 = vsel %vm2840, %v6865, %v7000
  %7002 = vst [vmem:[%s2838 + $0x58] sm:$0xf] %v7001
  %v7003 = vld [vmem:[%s2838 + $0x5c] sm:$0x1]
  %v7004 = vsel %vm2845, %v6866, %v7003
  %7005 = vst [vmem:[%s2838 + $0x5c] sm:$0x1] %v7004
  %v7006 = vld [vmem:[%s2838 + $0x60] sm:$0xf]
  %v7007 = vsel %vm2840, %v6873, %v7006
  %7008 = vst [vmem:[%s2838 + $0x60] sm:$0xf] %v7007
  %v7009 = vld [vmem:[%s2838 + $0x64] sm:$0x1]
  %v7010 = vsel %vm2845, %v6874, %v7009
  %7011 = vst [vmem:[%s2838 + $0x64] sm:$0x1] %v7010
  %v7012 = vld [vmem:[%s2838 + $0x68] sm:$0xf]
  %v7013 = vsel %vm2840, %v6881, %v7012
  %7014 = vst [vmem:[%s2838 + $0x68] sm:$0xf] %v7013
  %v7015 = vld [vmem:[%s2838 + $0x6c] sm:$0x1]
  %v7016 = vsel %vm2845, %v6882, %v7015
  %7017 = vst [vmem:[%s2838 + $0x6c] sm:$0x1] %v7016
  %v7018 = vld [vmem:[%s2838 + $0x70] sm:$0xf]
  %v7019 = vsel %vm2840, %v6889, %v7018
  %7020 = vst [vmem:[%s2838 + $0x70] sm:$0xf] %v7019
  %v7021 = vld [vmem:[%s2838 + $0x74] sm:$0x1]
  %v7022 = vsel %vm2845, %v6890, %v7021
  %7023 = vst [vmem:[%s2838 + $0x74] sm:$0x1] %v7022
  %v7024 = vld [vmem:[%s2838 + $0x78] sm:$0xf]
  %v7025 = vsel %vm2840, %v6897, %v7024
  %7026 = vst [vmem:[%s2838 + $0x78] sm:$0xf] %v7025
  %v7027 = vld [vmem:[%s2838 + $0x7c] sm:$0x1]
  %v7028 = vsel %vm2845, %v6898, %v7027
  %7029 = vst [vmem:[%s2838 + $0x7c] sm:$0x1] %v7028
  %v7030 = vld [vmem:[%s2838 + $0x80] sm:$0xf]
  %v7031 = vsel %vm2840, %v6905, %v7030
  %7032 = vst [vmem:[%s2838 + $0x80] sm:$0xf] %v7031
  %v7033 = vld [vmem:[%s2838 + $0x84] sm:$0x1]
  %v7034 = vsel %vm2845, %v6906, %v7033
  %7035 = vst [vmem:[%s2838 + $0x84] sm:$0x1] %v7034
  %v7036 = vld [vmem:[%s2838 + $0x88] sm:$0xf]
  %v7037 = vsel %vm2840, %v6913, %v7036
  %7038 = vst [vmem:[%s2838 + $0x88] sm:$0xf] %v7037
  %v7039 = vld [vmem:[%s2838 + $0x8c] sm:$0x1]
  %v7040 = vsel %vm2845, %v6914, %v7039
  %7041 = vst [vmem:[%s2838 + $0x8c] sm:$0x1] %v7040
  %v7042 = vld [vmem:[#allocation3] sm:$0xf]
  %v7043 = vld [vmem:[#allocation3 + $0x8] sm:$0xf]
  %v7044 = vld [vmem:[#allocation3 + $0x10] sm:$0xf]
  %v7045 = vld [vmem:[#allocation3 + $0x18] sm:$0xf]
  %v7046 = vld [vmem:[#allocation3 + $0x20] sm:$0xf]
  %v7047 = vld [vmem:[#allocation3 + $0x28] sm:$0xf]
  %v7048 = vld [vmem:[#allocation3 + $0x30] sm:$0xf]
  %v7049 = vld [vmem:[#allocation3 + $0x38] sm:$0xf]
  %v7050 = vld [vmem:[#allocation3 + $0x50] sm:$0xf]
  %v7051 = vld [vmem:[#allocation3 + $0x58] sm:$0xf]
  %v7052 = vld [vmem:[#allocation3 + $0x60] sm:$0xf]
  %v7053 = vld [vmem:[#allocation3 + $0x68] sm:$0xf]
  %v7054 = vld [vmem:[#allocation3 + $0x70] sm:$0xf]
  %v7055 = vld [vmem:[#allocation3 + $0x78] sm:$0xf]
  %v7056 = vld [vmem:[#allocation3 + $0x80] sm:$0xf]
  %v7057 = vld [vmem:[#allocation3 + $0x88] sm:$0xf]
  %v7058 = vld [vmem:[#allocation3 + $0x4] sm:$0x1]
  %v7059 = vld [vmem:[#allocation3 + $0xc] sm:$0x1]
  %v7060 = vld [vmem:[#allocation3 + $0x14] sm:$0x1]
  %v7061 = vld [vmem:[#allocation3 + $0x1c] sm:$0x1]
  %v7062 = vld [vmem:[#allocation3 + $0x24] sm:$0x1]
  %v7063 = vld [vmem:[#allocation3 + $0x2c] sm:$0x1]
  %v7064 = vld [vmem:[#allocation3 + $0x34] sm:$0x1]
  %v7065 = vld [vmem:[#allocation3 + $0x3c] sm:$0x1]
  %v7066 = vld [vmem:[#allocation3 + $0x54] sm:$0x1]
  %v7067 = vld [vmem:[#allocation3 + $0x5c] sm:$0x1]
  %v7068 = vld [vmem:[#allocation3 + $0x64] sm:$0x1]
  %v7069 = vld [vmem:[#allocation3 + $0x6c] sm:$0x1]
  %v7070 = vld [vmem:[#allocation3 + $0x74] sm:$0x1]
  %v7071 = vld [vmem:[#allocation3 + $0x7c] sm:$0x1]
  %v7072 = vld [vmem:[#allocation3 + $0x84] sm:$0x1]
  %v7073 = vld [vmem:[#allocation3 + $0x8c] sm:$0x1]
  %v7074 = vld [vmem:[#allocation3] sm:$0xe]
  %v7075 = vld [vmem:[#allocation3 + $0x8] sm:$0xe]
  %v7076 = vld [vmem:[#allocation3 + $0x10] sm:$0xe]
  %v7077 = vld [vmem:[#allocation3 + $0x18] sm:$0xe]
  %v7078 = vld [vmem:[#allocation3 + $0x20] sm:$0xe]
  %v7079 = vld [vmem:[#allocation3 + $0x28] sm:$0xe]
  %v7080 = vld [vmem:[#allocation3 + $0x30] sm:$0xe]
  %v7081 = vld [vmem:[#allocation3 + $0x38] sm:$0xe]
  %v7082 = vld [vmem:[#allocation3 + $0x50] sm:$0xe]
  %v7083 = vld [vmem:[#allocation3 + $0x58] sm:$0xe]
  %v7084 = vld [vmem:[#allocation3 + $0x60] sm:$0xe]
  %v7085 = vld [vmem:[#allocation3 + $0x68] sm:$0xe]
  %v7086 = vld [vmem:[#allocation3 + $0x70] sm:$0xe]
  %v7087 = vld [vmem:[#allocation3 + $0x78] sm:$0xe]
  %v7088 = vld [vmem:[#allocation3 + $0x80] sm:$0xe]
  %v7089 = vld [vmem:[#allocation3 + $0x88] sm:$0xe]
  %v7090 = vld [vmem:[%s2838] sm:$0xf]
  %v7091 = vld [vmem:[%s2838 + $0x8] sm:$0xf]
  %v7092 = vld [vmem:[%s2838 + $0x10] sm:$0xf]
  %v7093 = vld [vmem:[%s2838 + $0x18] sm:$0xf]
  %v7094 = vld [vmem:[%s2838 + $0x20] sm:$0xf]
  %v7095 = vld [vmem:[%s2838 + $0x28] sm:$0xf]
  %v7096 = vld [vmem:[%s2838 + $0x30] sm:$0xf]
  %v7097 = vld [vmem:[%s2838 + $0x38] sm:$0xf]
  %v7098 = vld [vmem:[%s2838 + $0x50] sm:$0xf]
  %v7099 = vld [vmem:[%s2838 + $0x58] sm:$0xf]
  %v7100 = vld [vmem:[%s2838 + $0x60] sm:$0xf]
  %v7101 = vld [vmem:[%s2838 + $0x68] sm:$0xf]
  %v7102 = vld [vmem:[%s2838 + $0x70] sm:$0xf]
  %v7103 = vld [vmem:[%s2838 + $0x78] sm:$0xf]
  %v7104 = vld [vmem:[%s2838 + $0x80] sm:$0xf]
  %v7105 = vld [vmem:[%s2838 + $0x88] sm:$0xf]
  %v7106 = vld [vmem:[%s2838 + $0x4] sm:$0x1]
  %v7107 = vld [vmem:[%s2838 + $0xc] sm:$0x1]
  %v7108 = vld [vmem:[%s2838 + $0x14] sm:$0x1]
  %v7109 = vld [vmem:[%s2838 + $0x1c] sm:$0x1]
  %v7110 = vld [vmem:[%s2838 + $0x24] sm:$0x1]
  %v7111 = vld [vmem:[%s2838 + $0x2c] sm:$0x1]
  %v7112 = vld [vmem:[%s2838 + $0x34] sm:$0x1]
  %v7113 = vld [vmem:[%s2838 + $0x3c] sm:$0x1]
  %v7114 = vld [vmem:[%s2838 + $0x54] sm:$0x1]
  %v7115 = vld [vmem:[%s2838 + $0x5c] sm:$0x1]
  %v7116 = vld [vmem:[%s2838 + $0x64] sm:$0x1]
  %v7117 = vld [vmem:[%s2838 + $0x6c] sm:$0x1]
  %v7118 = vld [vmem:[%s2838 + $0x74] sm:$0x1]
  %v7119 = vld [vmem:[%s2838 + $0x7c] sm:$0x1]
  %v7120 = vld [vmem:[%s2838 + $0x84] sm:$0x1]
  %v7121 = vld [vmem:[%s2838 + $0x8c] sm:$0x1]
  %v7122 = vld [vmem:[%s2838] sm:$0xe]
  %v7123 = vld [vmem:[%s2838 + $0x8] sm:$0xe]
  %v7124 = vld [vmem:[%s2838 + $0x10] sm:$0xe]
  %v7125 = vld [vmem:[%s2838 + $0x18] sm:$0xe]
  %v7126 = vld [vmem:[%s2838 + $0x20] sm:$0xe]
  %v7127 = vld [vmem:[%s2838 + $0x28] sm:$0xe]
  %v7128 = vld [vmem:[%s2838 + $0x30] sm:$0xe]
  %v7129 = vld [vmem:[%s2838 + $0x38] sm:$0xe]
  %v7130 = vld [vmem:[%s2838 + $0x50] sm:$0xe]
  %v7131 = vld [vmem:[%s2838 + $0x58] sm:$0xe]
  %v7132 = vld [vmem:[%s2838 + $0x60] sm:$0xe]
  %v7133 = vld [vmem:[%s2838 + $0x68] sm:$0xe]
  %v7134 = vld [vmem:[%s2838 + $0x70] sm:$0xe]
  %v7135 = vld [vmem:[%s2838 + $0x78] sm:$0xe]
  %v7136 = vld [vmem:[%s2838 + $0x80] sm:$0xe]
  %v7137 = vld [vmem:[%s2838 + $0x88] sm:$0xe]
  %v7138 = vld [vmem:[%s3035] sm:$0xf]
  %v7139 = vld [vmem:[%s3035 + $0x8] sm:$0xf]
  %v7140 = vld [vmem:[%s3035 + $0x10] sm:$0xf]
  %v7141 = vld [vmem:[%s3035 + $0x18] sm:$0xf]
  %v7142 = vld [vmem:[%s3035 + $0x20] sm:$0xf]
  %v7143 = vld [vmem:[%s3035 + $0x28] sm:$0xf]
  %v7144 = vld [vmem:[%s3035 + $0x30] sm:$0xf]
  %v7145 = vld [vmem:[%s3035 + $0x38] sm:$0xf]
  %v7146 = vld [vmem:[%s3035 + $0x50] sm:$0xf]
  %v7147 = vld [vmem:[%s3035 + $0x58] sm:$0xf]
  %v7148 = vld [vmem:[%s3035 + $0x60] sm:$0xf]
  %v7149 = vld [vmem:[%s3035 + $0x68] sm:$0xf]
  %v7150 = vld [vmem:[%s3035 + $0x70] sm:$0xf]
  %v7151 = vld [vmem:[%s3035 + $0x78] sm:$0xf]
  %v7152 = vld [vmem:[%s3035 + $0x80] sm:$0xf]
  %v7153 = vld [vmem:[%s3035 + $0x88] sm:$0xf]
  %v7154 = vld [vmem:[%s3035 + $0x4] sm:$0x1]
  %v7155 = vld [vmem:[%s3035 + $0xc] sm:$0x1]
  %v7156 = vld [vmem:[%s3035 + $0x14] sm:$0x1]
  %v7157 = vld [vmem:[%s3035 + $0x1c] sm:$0x1]
  %v7158 = vld [vmem:[%s3035 + $0x24] sm:$0x1]
  %v7159 = vld [vmem:[%s3035 + $0x2c] sm:$0x1]
  %v7160 = vld [vmem:[%s3035 + $0x34] sm:$0x1]
  %v7161 = vld [vmem:[%s3035 + $0x3c] sm:$0x1]
  %v7162 = vld [vmem:[%s3035 + $0x54] sm:$0x1]
  %v7163 = vld [vmem:[%s3035 + $0x5c] sm:$0x1]
  %v7164 = vld [vmem:[%s3035 + $0x64] sm:$0x1]
  %v7165 = vld [vmem:[%s3035 + $0x6c] sm:$0x1]
  %v7166 = vld [vmem:[%s3035 + $0x74] sm:$0x1]
  %v7167 = vld [vmem:[%s3035 + $0x7c] sm:$0x1]
  %v7168 = vld [vmem:[%s3035 + $0x84] sm:$0x1]
  %v7169 = vld [vmem:[%s3035 + $0x8c] sm:$0x1]
  %v7170 = vld [vmem:[%s3035] sm:$0xe]
  %v7171 = vld [vmem:[%s3035 + $0x8] sm:$0xe]
  %v7172 = vld [vmem:[%s3035 + $0x10] sm:$0xe]
  %v7173 = vld [vmem:[%s3035 + $0x18] sm:$0xe]
  %v7174 = vld [vmem:[%s3035 + $0x20] sm:$0xe]
  %v7175 = vld [vmem:[%s3035 + $0x28] sm:$0xe]
  %v7176 = vld [vmem:[%s3035 + $0x30] sm:$0xe]
  %v7177 = vld [vmem:[%s3035 + $0x38] sm:$0xe]
  %v7178 = vld [vmem:[%s3035 + $0x50] sm:$0xe]
  %v7179 = vld [vmem:[%s3035 + $0x58] sm:$0xe]
  %v7180 = vld [vmem:[%s3035 + $0x60] sm:$0xe]
  %v7181 = vld [vmem:[%s3035 + $0x68] sm:$0xe]
  %v7182 = vld [vmem:[%s3035 + $0x70] sm:$0xe]
  %v7183 = vld [vmem:[%s3035 + $0x78] sm:$0xe]
  %v7184 = vld [vmem:[%s3035 + $0x80] sm:$0xe]
  %v7185 = vld [vmem:[%s3035 + $0x88] sm:$0xe]
  %v7218 = vunpack.c.l.b16 %v7042
  %v7219 = vunpack.c.l.b16 %v7058
  %v7220 = vunpack.c.l.b16 %v7043
  %v7221 = vunpack.c.l.b16 %v7059
  %v7222 = vunpack.c.l.b16 %v7044
  %v7223 = vunpack.c.l.b16 %v7060
  %v7224 = vunpack.c.l.b16 %v7045
  %v7225 = vunpack.c.l.b16 %v7061
  %v7226 = vunpack.c.l.b16 %v7046
  %v7227 = vunpack.c.l.b16 %v7062
  %v7228 = vunpack.c.l.b16 %v7047
  %v7229 = vunpack.c.l.b16 %v7063
  %v7230 = vunpack.c.l.b16 %v7048
  %v7231 = vunpack.c.l.b16 %v7064
  %v7232 = vunpack.c.l.b16 %v7049
  %v7233 = vunpack.c.l.b16 %v7065
  %v7234 = vunpack.c.l.b16 %v7050
  %v7235 = vunpack.c.l.b16 %v7066
  %v7236 = vunpack.c.l.b16 %v7051
  %v7237 = vunpack.c.l.b16 %v7067
  %v7238 = vunpack.c.l.b16 %v7052
  %v7239 = vunpack.c.l.b16 %v7068
  %v7240 = vunpack.c.l.b16 %v7053
  %v7241 = vunpack.c.l.b16 %v7069
  %v7242 = vunpack.c.l.b16 %v7054
  %v7243 = vunpack.c.l.b16 %v7070
  %v7244 = vunpack.c.l.b16 %v7055
  %v7245 = vunpack.c.l.b16 %v7071
  %v7246 = vunpack.c.l.b16 %v7056
  %v7247 = vunpack.c.l.b16 %v7072
  %v7248 = vunpack.c.l.b16 %v7057
  %v7249 = vunpack.c.l.b16 %v7073
  %v7250 = vpack.c.b16 %v7219, %v7218
  %v7251 = vpack.c.b16 %v7221, %v7220
  %v7252 = vpack.c.b16 %v7223, %v7222
  %v7253 = vpack.c.b16 %v7225, %v7224
  %v7254 = vpack.c.b16 %v7227, %v7226
  %v7255 = vpack.c.b16 %v7229, %v7228
  %v7256 = vpack.c.b16 %v7231, %v7230
  %v7257 = vpack.c.b16 %v7233, %v7232
  %v7258 = vpack.c.b16 %v7235, %v7234
  %v7259 = vpack.c.b16 %v7237, %v7236
  %v7260 = vpack.c.b16 %v7239, %v7238
  %v7261 = vpack.c.b16 %v7241, %v7240
  %v7262 = vpack.c.b16 %v7243, %v7242
  %v7263 = vpack.c.b16 %v7245, %v7244
  %v7264 = vpack.c.b16 %v7247, %v7246
  %v7265 = vpack.c.b16 %v7249, %v7248
  %v7267 = vshrl.u32 %v7250, 16
  %v7269 = vshll.u32 %v7250, 16
  %v7271 = vrot.slane %v7269, 1
  %v7272 = vor.u32 %v7267, %v7271
  %v7274 = vshrl.u32 %v7251, 16
  %v7276 = vshll.u32 %v7251, 16
  %v7278 = vrot.slane %v7276, 1
  %v7279 = vor.u32 %v7274, %v7278
  %v7281 = vshrl.u32 %v7252, 16
  %v7283 = vshll.u32 %v7252, 16
  %v7285 = vrot.slane %v7283, 1
  %v7286 = vor.u32 %v7281, %v7285
  %v7288 = vshrl.u32 %v7253, 16
  %v7290 = vshll.u32 %v7253, 16
  %v7292 = vrot.slane %v7290, 1
  %v7293 = vor.u32 %v7288, %v7292
  %v7295 = vshrl.u32 %v7254, 16
  %v7297 = vshll.u32 %v7254, 16
  %v7299 = vrot.slane %v7297, 1
  %v7300 = vor.u32 %v7295, %v7299
  %v7302 = vshrl.u32 %v7255, 16
  %v7304 = vshll.u32 %v7255, 16
  %v7306 = vrot.slane %v7304, 1
  %v7307 = vor.u32 %v7302, %v7306
  %v7309 = vshrl.u32 %v7256, 16
  %v7311 = vshll.u32 %v7256, 16
  %v7313 = vrot.slane %v7311, 1
  %v7314 = vor.u32 %v7309, %v7313
  %v7316 = vshrl.u32 %v7257, 16
  %v7318 = vshll.u32 %v7257, 16
  %v7320 = vrot.slane %v7318, 1
  %v7321 = vor.u32 %v7316, %v7320
  %v7323 = vshrl.u32 %v7258, 16
  %v7325 = vshll.u32 %v7258, 16
  %v7327 = vrot.slane %v7325, 1
  %v7328 = vor.u32 %v7323, %v7327
  %v7330 = vshrl.u32 %v7259, 16
  %v7332 = vshll.u32 %v7259, 16
  %v7334 = vrot.slane %v7332, 1
  %v7335 = vor.u32 %v7330, %v7334
  %v7337 = vshrl.u32 %v7260, 16
  %v7339 = vshll.u32 %v7260, 16
  %v7341 = vrot.slane %v7339, 1
  %v7342 = vor.u32 %v7337, %v7341
  %v7344 = vshrl.u32 %v7261, 16
  %v7346 = vshll.u32 %v7261, 16
  %v7348 = vrot.slane %v7346, 1
  %v7349 = vor.u32 %v7344, %v7348
  %v7351 = vshrl.u32 %v7262, 16
  %v7353 = vshll.u32 %v7262, 16
  %v7355 = vrot.slane %v7353, 1
  %v7356 = vor.u32 %v7351, %v7355
  %v7358 = vshrl.u32 %v7263, 16
  %v7360 = vshll.u32 %v7263, 16
  %v7362 = vrot.slane %v7360, 1
  %v7363 = vor.u32 %v7358, %v7362
  %v7365 = vshrl.u32 %v7264, 16
  %v7367 = vshll.u32 %v7264, 16
  %v7369 = vrot.slane %v7367, 1
  %v7370 = vor.u32 %v7365, %v7369
  %v7372 = vshrl.u32 %v7265, 16
  %v7374 = vshll.u32 %v7265, 16
  %v7376 = vrot.slane %v7374, 1
  %v7377 = vor.u32 %v7372, %v7376
  %7378 = vrot.lane.b32.xlu0 %v7272, 8
  %v7379 = vpop.permute.xlu0 %7378
  %7380 = vrot.lane.b32.xlu0 %v7279, 8
  %v7381 = vpop.permute.xlu0 %7380
  %7382 = vrot.lane.b32.xlu0 %v7286, 8
  %v7383 = vpop.permute.xlu0 %7382
  %7384 = vrot.lane.b32.xlu0 %v7293, 8
  %v7385 = vpop.permute.xlu0 %7384
  %7386 = vrot.lane.b32.xlu0 %v7300, 8
  %v7387 = vpop.permute.xlu0 %7386
  %7388 = vrot.lane.b32.xlu0 %v7307, 8
  %v7389 = vpop.permute.xlu0 %7388
  %7390 = vrot.lane.b32.xlu0 %v7314, 8
  %v7391 = vpop.permute.xlu0 %7390
  %7392 = vrot.lane.b32.xlu0 %v7321, 8
  %v7393 = vpop.permute.xlu0 %7392
  %7394 = vrot.lane.b32.xlu0 %v7328, 8
  %v7395 = vpop.permute.xlu0 %7394
  %7396 = vrot.lane.b32.xlu0 %v7335, 8
  %v7397 = vpop.permute.xlu0 %7396
  %7398 = vrot.lane.b32.xlu0 %v7342, 8
  %v7399 = vpop.permute.xlu0 %7398
  %7400 = vrot.lane.b32.xlu0 %v7349, 8
  %v7401 = vpop.permute.xlu0 %7400
  %7402 = vrot.lane.b32.xlu0 %v7356, 8
  %v7403 = vpop.permute.xlu0 %7402
  %7404 = vrot.lane.b32.xlu0 %v7363, 8
  %v7405 = vpop.permute.xlu0 %7404
  %7406 = vrot.lane.b32.xlu0 %v7370, 8
  %v7407 = vpop.permute.xlu0 %7406
  %7408 = vrot.lane.b32.xlu0 %v7377, 8
  %v7409 = vpop.permute.xlu0 %7408
  %v7426 = vunpack.c.l.b16 %v7074
  %v7427 = vunpack.c.l.b16 %v7075
  %v7428 = vunpack.c.l.b16 %v7076
  %v7429 = vunpack.c.l.b16 %v7077
  %v7430 = vunpack.c.l.b16 %v7078
  %v7431 = vunpack.c.l.b16 %v7079
  %v7432 = vunpack.c.l.b16 %v7080
  %v7433 = vunpack.c.l.b16 %v7081
  %v7434 = vunpack.c.l.b16 %v7082
  %v7435 = vunpack.c.l.b16 %v7083
  %v7436 = vunpack.c.l.b16 %v7084
  %v7437 = vunpack.c.l.b16 %v7085
  %v7438 = vunpack.c.l.b16 %v7086
  %v7439 = vunpack.c.l.b16 %v7087
  %v7440 = vunpack.c.l.b16 %v7088
  %v7441 = vunpack.c.l.b16 %v7089
  %v7442 = vpack.c.b16 %v7219, %v7426
  %v7443 = vpack.c.b16 %v7221, %v7427
  %v7444 = vpack.c.b16 %v7223, %v7428
  %v7445 = vpack.c.b16 %v7225, %v7429
  %v7446 = vpack.c.b16 %v7227, %v7430
  %v7447 = vpack.c.b16 %v7229, %v7431
  %v7448 = vpack.c.b16 %v7231, %v7432
  %v7449 = vpack.c.b16 %v7233, %v7433
  %v7450 = vpack.c.b16 %v7235, %v7434
  %v7451 = vpack.c.b16 %v7237, %v7435
  %v7452 = vpack.c.b16 %v7239, %v7436
  %v7453 = vpack.c.b16 %v7241, %v7437
  %v7454 = vpack.c.b16 %v7243, %v7438
  %v7455 = vpack.c.b16 %v7245, %v7439
  %v7456 = vpack.c.b16 %v7247, %v7440
  %v7457 = vpack.c.b16 %v7249, %v7441
  %v7458 = vrot.slane %v7442, 1
  %v7459 = vrot.slane %v7443, 1
  %v7460 = vrot.slane %v7444, 1
  %v7461 = vrot.slane %v7445, 1
  %v7462 = vrot.slane %v7446, 1
  %v7463 = vrot.slane %v7447, 1
  %v7464 = vrot.slane %v7448, 1
  %v7465 = vrot.slane %v7449, 1
  %v7466 = vrot.slane %v7450, 1
  %v7467 = vrot.slane %v7451, 1
  %v7468 = vrot.slane %v7452, 1
  %v7469 = vrot.slane %v7453, 1
  %v7470 = vrot.slane %v7454, 1
  %v7471 = vrot.slane %v7455, 1
  %v7472 = vrot.slane %v7456, 1
  %v7473 = vrot.slane %v7457, 1
  %7474 = vrot.lane.b32.xlu0 %v7458, 16
  %v7475 = vpop.permute.xlu0 %7474
  %7476 = vrot.lane.b32.xlu0 %v7459, 16
  %v7477 = vpop.permute.xlu0 %7476
  %7478 = vrot.lane.b32.xlu0 %v7460, 16
  %v7479 = vpop.permute.xlu0 %7478
  %7480 = vrot.lane.b32.xlu0 %v7461, 16
  %v7481 = vpop.permute.xlu0 %7480
  %7482 = vrot.lane.b32.xlu0 %v7462, 16
  %v7483 = vpop.permute.xlu0 %7482
  %7484 = vrot.lane.b32.xlu0 %v7463, 16
  %v7485 = vpop.permute.xlu0 %7484
  %7486 = vrot.lane.b32.xlu0 %v7464, 16
  %v7487 = vpop.permute.xlu0 %7486
  %7488 = vrot.lane.b32.xlu0 %v7465, 16
  %v7489 = vpop.permute.xlu0 %7488
  %7490 = vrot.lane.b32.xlu0 %v7466, 16
  %v7491 = vpop.permute.xlu0 %7490
  %7492 = vrot.lane.b32.xlu0 %v7467, 16
  %v7493 = vpop.permute.xlu0 %7492
  %7494 = vrot.lane.b32.xlu0 %v7468, 16
  %v7495 = vpop.permute.xlu0 %7494
  %7496 = vrot.lane.b32.xlu0 %v7469, 16
  %v7497 = vpop.permute.xlu0 %7496
  %7498 = vrot.lane.b32.xlu0 %v7470, 16
  %v7499 = vpop.permute.xlu0 %7498
  %7500 = vrot.lane.b32.xlu0 %v7471, 16
  %v7501 = vpop.permute.xlu0 %7500
  %7502 = vrot.lane.b32.xlu0 %v7472, 16
  %v7503 = vpop.permute.xlu0 %7502
  %7504 = vrot.lane.b32.xlu0 %v7473, 16
  %v7505 = vpop.permute.xlu0 %7504
  %v7522 = vunpack.c.l.b16 %v7090
  %v7523 = vunpack.c.l.b16 %v7091
  %v7524 = vunpack.c.l.b16 %v7092
  %v7525 = vunpack.c.l.b16 %v7093
  %v7526 = vunpack.c.l.b16 %v7094
  %v7527 = vunpack.c.l.b16 %v7095
  %v7528 = vunpack.c.l.b16 %v7096
  %v7529 = vunpack.c.l.b16 %v7097
  %v7530 = vunpack.c.l.b16 %v7098
  %v7531 = vunpack.c.l.b16 %v7099
  %v7532 = vunpack.c.l.b16 %v7100
  %v7533 = vunpack.c.l.b16 %v7101
  %v7534 = vunpack.c.l.b16 %v7102
  %v7535 = vunpack.c.l.b16 %v7103
  %v7536 = vunpack.c.l.b16 %v7104
  %v7537 = vunpack.c.l.b16 %v7105
  %v7538 = vpack.c.b16 %v7522, %v7522
  %v7539 = vpack.c.b16 %v7523, %v7523
  %v7540 = vpack.c.b16 %v7524, %v7524
  %v7541 = vpack.c.b16 %v7525, %v7525
  %v7542 = vpack.c.b16 %v7526, %v7526
  %v7543 = vpack.c.b16 %v7527, %v7527
  %v7544 = vpack.c.b16 %v7528, %v7528
  %v7545 = vpack.c.b16 %v7529, %v7529
  %v7546 = vpack.c.b16 %v7530, %v7530
  %v7547 = vpack.c.b16 %v7531, %v7531
  %v7548 = vpack.c.b16 %v7532, %v7532
  %v7549 = vpack.c.b16 %v7533, %v7533
  %v7550 = vpack.c.b16 %v7534, %v7534
  %v7551 = vpack.c.b16 %v7535, %v7535
  %v7552 = vpack.c.b16 %v7536, %v7536
  %v7553 = vpack.c.b16 %v7537, %v7537
  %7554 = vrot.lane.b32.xlu0 %v7538, 24
  %v7555 = vpop.permute.xlu0 %7554
  %7556 = vrot.lane.b32.xlu0 %v7539, 24
  %v7557 = vpop.permute.xlu0 %7556
  %7558 = vrot.lane.b32.xlu0 %v7540, 24
  %v7559 = vpop.permute.xlu0 %7558
  %7560 = vrot.lane.b32.xlu0 %v7541, 24
  %v7561 = vpop.permute.xlu0 %7560
  %7562 = vrot.lane.b32.xlu0 %v7542, 24
  %v7563 = vpop.permute.xlu0 %7562
  %7564 = vrot.lane.b32.xlu0 %v7543, 24
  %v7565 = vpop.permute.xlu0 %7564
  %7566 = vrot.lane.b32.xlu0 %v7544, 24
  %v7567 = vpop.permute.xlu0 %7566
  %7568 = vrot.lane.b32.xlu0 %v7545, 24
  %v7569 = vpop.permute.xlu0 %7568
  %7570 = vrot.lane.b32.xlu0 %v7546, 24
  %v7571 = vpop.permute.xlu0 %7570
  %7572 = vrot.lane.b32.xlu0 %v7547, 24
  %v7573 = vpop.permute.xlu0 %7572
  %7574 = vrot.lane.b32.xlu0 %v7548, 24
  %v7575 = vpop.permute.xlu0 %7574
  %7576 = vrot.lane.b32.xlu0 %v7549, 24
  %v7577 = vpop.permute.xlu0 %7576
  %7578 = vrot.lane.b32.xlu0 %v7550, 24
  %v7579 = vpop.permute.xlu0 %7578
  %7580 = vrot.lane.b32.xlu0 %v7551, 24
  %v7581 = vpop.permute.xlu0 %7580
  %7582 = vrot.lane.b32.xlu0 %v7552, 24
  %v7583 = vpop.permute.xlu0 %7582
  %7584 = vrot.lane.b32.xlu0 %v7553, 24
  %v7585 = vpop.permute.xlu0 %7584
  %v7602 = vunpack.c.l.b16 %v7106
  %v7603 = vunpack.c.l.b16 %v7107
  %v7604 = vunpack.c.l.b16 %v7108
  %v7605 = vunpack.c.l.b16 %v7109
  %v7606 = vunpack.c.l.b16 %v7110
  %v7607 = vunpack.c.l.b16 %v7111
  %v7608 = vunpack.c.l.b16 %v7112
  %v7609 = vunpack.c.l.b16 %v7113
  %v7610 = vunpack.c.l.b16 %v7114
  %v7611 = vunpack.c.l.b16 %v7115
  %v7612 = vunpack.c.l.b16 %v7116
  %v7613 = vunpack.c.l.b16 %v7117
  %v7614 = vunpack.c.l.b16 %v7118
  %v7615 = vunpack.c.l.b16 %v7119
  %v7616 = vunpack.c.l.b16 %v7120
  %v7617 = vunpack.c.l.b16 %v7121
  %v7618 = vpack.c.b16 %v7602, %v7522
  %v7619 = vpack.c.b16 %v7603, %v7523
  %v7620 = vpack.c.b16 %v7604, %v7524
  %v7621 = vpack.c.b16 %v7605, %v7525
  %v7622 = vpack.c.b16 %v7606, %v7526
  %v7623 = vpack.c.b16 %v7607, %v7527
  %v7624 = vpack.c.b16 %v7608, %v7528
  %v7625 = vpack.c.b16 %v7609, %v7529
  %v7626 = vpack.c.b16 %v7610, %v7530
  %v7627 = vpack.c.b16 %v7611, %v7531
  %v7628 = vpack.c.b16 %v7612, %v7532
  %v7629 = vpack.c.b16 %v7613, %v7533
  %v7630 = vpack.c.b16 %v7614, %v7534
  %v7631 = vpack.c.b16 %v7615, %v7535
  %v7632 = vpack.c.b16 %v7616, %v7536
  %v7633 = vpack.c.b16 %v7617, %v7537
  %v7635 = vshrl.u32 %v7618, 16
  %v7637 = vshll.u32 %v7618, 16
  %v7639 = vrot.slane %v7637, 1
  %v7640 = vor.u32 %v7635, %v7639
  %v7642 = vshrl.u32 %v7619, 16
  %v7644 = vshll.u32 %v7619, 16
  %v7646 = vrot.slane %v7644, 1
  %v7647 = vor.u32 %v7642, %v7646
  %v7649 = vshrl.u32 %v7620, 16
  %v7651 = vshll.u32 %v7620, 16
  %v7653 = vrot.slane %v7651, 1
  %v7654 = vor.u32 %v7649, %v7653
  %v7656 = vshrl.u32 %v7621, 16
  %v7658 = vshll.u32 %v7621, 16
  %v7660 = vrot.slane %v7658, 1
  %v7661 = vor.u32 %v7656, %v7660
  %v7663 = vshrl.u32 %v7622, 16
  %v7665 = vshll.u32 %v7622, 16
  %v7667 = vrot.slane %v7665, 1
  %v7668 = vor.u32 %v7663, %v7667
  %v7670 = vshrl.u32 %v7623, 16
  %v7672 = vshll.u32 %v7623, 16
  %v7674 = vrot.slane %v7672, 1
  %v7675 = vor.u32 %v7670, %v7674
  %v7677 = vshrl.u32 %v7624, 16
  %v7679 = vshll.u32 %v7624, 16
  %v7681 = vrot.slane %v7679, 1
  %v7682 = vor.u32 %v7677, %v7681
  %v7684 = vshrl.u32 %v7625, 16
  %v7686 = vshll.u32 %v7625, 16
  %v7688 = vrot.slane %v7686, 1
  %v7689 = vor.u32 %v7684, %v7688
  %v7691 = vshrl.u32 %v7626, 16
  %v7693 = vshll.u32 %v7626, 16
  %v7695 = vrot.slane %v7693, 1
  %v7696 = vor.u32 %v7691, %v7695
  %v7698 = vshrl.u32 %v7627, 16
  %v7700 = vshll.u32 %v7627, 16
  %v7702 = vrot.slane %v7700, 1
  %v7703 = vor.u32 %v7698, %v7702
  %v7705 = vshrl.u32 %v7628, 16
  %v7707 = vshll.u32 %v7628, 16
  %v7709 = vrot.slane %v7707, 1
  %v7710 = vor.u32 %v7705, %v7709
  %v7712 = vshrl.u32 %v7629, 16
  %v7714 = vshll.u32 %v7629, 16
  %v7716 = vrot.slane %v7714, 1
  %v7717 = vor.u32 %v7712, %v7716
  %v7719 = vshrl.u32 %v7630, 16
  %v7721 = vshll.u32 %v7630, 16
  %v7723 = vrot.slane %v7721, 1
  %v7724 = vor.u32 %v7719, %v7723
  %v7726 = vshrl.u32 %v7631, 16
  %v7728 = vshll.u32 %v7631, 16
  %v7730 = vrot.slane %v7728, 1
  %v7731 = vor.u32 %v7726, %v7730
  %v7733 = vshrl.u32 %v7632, 16
  %v7735 = vshll.u32 %v7632, 16
  %v7737 = vrot.slane %v7735, 1
  %v7738 = vor.u32 %v7733, %v7737
  %v7740 = vshrl.u32 %v7633, 16
  %v7742 = vshll.u32 %v7633, 16
  %v7744 = vrot.slane %v7742, 1
  %v7745 = vor.u32 %v7740, %v7744
  %7746 = vrot.lane.b32.xlu0 %v7640, 32
  %v7747 = vpop.permute.xlu0 %7746
  %7748 = vrot.lane.b32.xlu0 %v7647, 32
  %v7749 = vpop.permute.xlu0 %7748
  %7750 = vrot.lane.b32.xlu0 %v7654, 32
  %v7751 = vpop.permute.xlu0 %7750
  %7752 = vrot.lane.b32.xlu0 %v7661, 32
  %v7753 = vpop.permute.xlu0 %7752
  %7754 = vrot.lane.b32.xlu0 %v7668, 32
  %v7755 = vpop.permute.xlu0 %7754
  %7756 = vrot.lane.b32.xlu0 %v7675, 32
  %v7757 = vpop.permute.xlu0 %7756
  %7758 = vrot.lane.b32.xlu0 %v7682, 32
  %v7759 = vpop.permute.xlu0 %7758
  %7760 = vrot.lane.b32.xlu0 %v7689, 32
  %v7761 = vpop.permute.xlu0 %7760
  %7762 = vrot.lane.b32.xlu0 %v7696, 32
  %v7763 = vpop.permute.xlu0 %7762
  %7764 = vrot.lane.b32.xlu0 %v7703, 32
  %v7765 = vpop.permute.xlu0 %7764
  %7766 = vrot.lane.b32.xlu0 %v7710, 32
  %v7767 = vpop.permute.xlu0 %7766
  %7768 = vrot.lane.b32.xlu0 %v7717, 32
  %v7769 = vpop.permute.xlu0 %7768
  %7770 = vrot.lane.b32.xlu0 %v7724, 32
  %v7771 = vpop.permute.xlu0 %7770
  %7772 = vrot.lane.b32.xlu0 %v7731, 32
  %v7773 = vpop.permute.xlu0 %7772
  %7774 = vrot.lane.b32.xlu0 %v7738, 32
  %v7775 = vpop.permute.xlu0 %7774
  %7776 = vrot.lane.b32.xlu0 %v7745, 32
  %v7777 = vpop.permute.xlu0 %7776
  %v7794 = vunpack.c.l.b16 %v7122
  %v7795 = vunpack.c.l.b16 %v7123
  %v7796 = vunpack.c.l.b16 %v7124
  %v7797 = vunpack.c.l.b16 %v7125
  %v7798 = vunpack.c.l.b16 %v7126
  %v7799 = vunpack.c.l.b16 %v7127
  %v7800 = vunpack.c.l.b16 %v7128
  %v7801 = vunpack.c.l.b16 %v7129
  %v7802 = vunpack.c.l.b16 %v7130
  %v7803 = vunpack.c.l.b16 %v7131
  %v7804 = vunpack.c.l.b16 %v7132
  %v7805 = vunpack.c.l.b16 %v7133
  %v7806 = vunpack.c.l.b16 %v7134
  %v7807 = vunpack.c.l.b16 %v7135
  %v7808 = vunpack.c.l.b16 %v7136
  %v7809 = vunpack.c.l.b16 %v7137
  %v7810 = vpack.c.b16 %v7602, %v7794
  %v7811 = vpack.c.b16 %v7603, %v7795
  %v7812 = vpack.c.b16 %v7604, %v7796
  %v7813 = vpack.c.b16 %v7605, %v7797
  %v7814 = vpack.c.b16 %v7606, %v7798
  %v7815 = vpack.c.b16 %v7607, %v7799
  %v7816 = vpack.c.b16 %v7608, %v7800
  %v7817 = vpack.c.b16 %v7609, %v7801
  %v7818 = vpack.c.b16 %v7610, %v7802
  %v7819 = vpack.c.b16 %v7611, %v7803
  %v7820 = vpack.c.b16 %v7612, %v7804
  %v7821 = vpack.c.b16 %v7613, %v7805
  %v7822 = vpack.c.b16 %v7614, %v7806
  %v7823 = vpack.c.b16 %v7615, %v7807
  %v7824 = vpack.c.b16 %v7616, %v7808
  %v7825 = vpack.c.b16 %v7617, %v7809
  %v7826 = vrot.slane %v7810, 1
  %v7827 = vrot.slane %v7811, 1
  %v7828 = vrot.slane %v7812, 1
  %v7829 = vrot.slane %v7813, 1
  %v7830 = vrot.slane %v7814, 1
  %v7831 = vrot.slane %v7815, 1
  %v7832 = vrot.slane %v7816, 1
  %v7833 = vrot.slane %v7817, 1
  %v7834 = vrot.slane %v7818, 1
  %v7835 = vrot.slane %v7819, 1
  %v7836 = vrot.slane %v7820, 1
  %v7837 = vrot.slane %v7821, 1
  %v7838 = vrot.slane %v7822, 1
  %v7839 = vrot.slane %v7823, 1
  %v7840 = vrot.slane %v7824, 1
  %v7841 = vrot.slane %v7825, 1
  %7842 = vrot.lane.b32.xlu0 %v7826, 40
  %v7843 = vpop.permute.xlu0 %7842
  %7844 = vrot.lane.b32.xlu0 %v7827, 40
  %v7845 = vpop.permute.xlu0 %7844
  %7846 = vrot.lane.b32.xlu0 %v7828, 40
  %v7847 = vpop.permute.xlu0 %7846
  %7848 = vrot.lane.b32.xlu0 %v7829, 40
  %v7849 = vpop.permute.xlu0 %7848
  %7850 = vrot.lane.b32.xlu0 %v7830, 40
  %v7851 = vpop.permute.xlu0 %7850
  %7852 = vrot.lane.b32.xlu0 %v7831, 40
  %v7853 = vpop.permute.xlu0 %7852
  %7854 = vrot.lane.b32.xlu0 %v7832, 40
  %v7855 = vpop.permute.xlu0 %7854
  %7856 = vrot.lane.b32.xlu0 %v7833, 40
  %v7857 = vpop.permute.xlu0 %7856
  %7858 = vrot.lane.b32.xlu0 %v7834, 40
  %v7859 = vpop.permute.xlu0 %7858
  %7860 = vrot.lane.b32.xlu0 %v7835, 40
  %v7861 = vpop.permute.xlu0 %7860
  %7862 = vrot.lane.b32.xlu0 %v7836, 40
  %v7863 = vpop.permute.xlu0 %7862
  %7864 = vrot.lane.b32.xlu0 %v7837, 40
  %v7865 = vpop.permute.xlu0 %7864
  %7866 = vrot.lane.b32.xlu0 %v7838, 40
  %v7867 = vpop.permute.xlu0 %7866
  %7868 = vrot.lane.b32.xlu0 %v7839, 40
  %v7869 = vpop.permute.xlu0 %7868
  %7870 = vrot.lane.b32.xlu0 %v7840, 40
  %v7871 = vpop.permute.xlu0 %7870
  %7872 = vrot.lane.b32.xlu0 %v7841, 40
  %v7873 = vpop.permute.xlu0 %7872
  %v7890 = vunpack.c.l.b16 %v7138
  %v7891 = vunpack.c.l.b16 %v7139
  %v7892 = vunpack.c.l.b16 %v7140
  %v7893 = vunpack.c.l.b16 %v7141
  %v7894 = vunpack.c.l.b16 %v7142
  %v7895 = vunpack.c.l.b16 %v7143
  %v7896 = vunpack.c.l.b16 %v7144
  %v7897 = vunpack.c.l.b16 %v7145
  %v7898 = vunpack.c.l.b16 %v7146
  %v7899 = vunpack.c.l.b16 %v7147
  %v7900 = vunpack.c.l.b16 %v7148
  %v7901 = vunpack.c.l.b16 %v7149
  %v7902 = vunpack.c.l.b16 %v7150
  %v7903 = vunpack.c.l.b16 %v7151
  %v7904 = vunpack.c.l.b16 %v7152
  %v7905 = vunpack.c.l.b16 %v7153
  %v7906 = vpack.c.b16 %v7890, %v7890
  %v7907 = vpack.c.b16 %v7891, %v7891
  %v7908 = vpack.c.b16 %v7892, %v7892
  %v7909 = vpack.c.b16 %v7893, %v7893
  %v7910 = vpack.c.b16 %v7894, %v7894
  %v7911 = vpack.c.b16 %v7895, %v7895
  %v7912 = vpack.c.b16 %v7896, %v7896
  %v7913 = vpack.c.b16 %v7897, %v7897
  %v7914 = vpack.c.b16 %v7898, %v7898
  %v7915 = vpack.c.b16 %v7899, %v7899
  %v7916 = vpack.c.b16 %v7900, %v7900
  %v7917 = vpack.c.b16 %v7901, %v7901
  %v7918 = vpack.c.b16 %v7902, %v7902
  %v7919 = vpack.c.b16 %v7903, %v7903
  %v7920 = vpack.c.b16 %v7904, %v7904
  %v7921 = vpack.c.b16 %v7905, %v7905
  %7922 = vrot.lane.b32.xlu0 %v7906, 48
  %v7923 = vpop.permute.xlu0 %7922
  %7924 = vrot.lane.b32.xlu0 %v7907, 48
  %v7925 = vpop.permute.xlu0 %7924
  %7926 = vrot.lane.b32.xlu0 %v7908, 48
  %v7927 = vpop.permute.xlu0 %7926
  %7928 = vrot.lane.b32.xlu0 %v7909, 48
  %v7929 = vpop.permute.xlu0 %7928
  %7930 = vrot.lane.b32.xlu0 %v7910, 48
  %v7931 = vpop.permute.xlu0 %7930
  %7932 = vrot.lane.b32.xlu0 %v7911, 48
  %v7933 = vpop.permute.xlu0 %7932
  %7934 = vrot.lane.b32.xlu0 %v7912, 48
  %v7935 = vpop.permute.xlu0 %7934
  %7936 = vrot.lane.b32.xlu0 %v7913, 48
  %v7937 = vpop.permute.xlu0 %7936
  %7938 = vrot.lane.b32.xlu0 %v7914, 48
  %v7939 = vpop.permute.xlu0 %7938
  %7940 = vrot.lane.b32.xlu0 %v7915, 48
  %v7941 = vpop.permute.xlu0 %7940
  %7942 = vrot.lane.b32.xlu0 %v7916, 48
  %v7943 = vpop.permute.xlu0 %7942
  %7944 = vrot.lane.b32.xlu0 %v7917, 48
  %v7945 = vpop.permute.xlu0 %7944
  %7946 = vrot.lane.b32.xlu0 %v7918, 48
  %v7947 = vpop.permute.xlu0 %7946
  %7948 = vrot.lane.b32.xlu0 %v7919, 48
  %v7949 = vpop.permute.xlu0 %7948
  %7950 = vrot.lane.b32.xlu0 %v7920, 48
  %v7951 = vpop.permute.xlu0 %7950
  %7952 = vrot.lane.b32.xlu0 %v7921, 48
  %v7953 = vpop.permute.xlu0 %7952
  %v7970 = vunpack.c.l.b16 %v7154
  %v7971 = vunpack.c.l.b16 %v7155
  %v7972 = vunpack.c.l.b16 %v7156
  %v7973 = vunpack.c.l.b16 %v7157
  %v7974 = vunpack.c.l.b16 %v7158
  %v7975 = vunpack.c.l.b16 %v7159
  %v7976 = vunpack.c.l.b16 %v7160
  %v7977 = vunpack.c.l.b16 %v7161
  %v7978 = vunpack.c.l.b16 %v7162
  %v7979 = vunpack.c.l.b16 %v7163
  %v7980 = vunpack.c.l.b16 %v7164
  %v7981 = vunpack.c.l.b16 %v7165
  %v7982 = vunpack.c.l.b16 %v7166
  %v7983 = vunpack.c.l.b16 %v7167
  %v7984 = vunpack.c.l.b16 %v7168
  %v7985 = vunpack.c.l.b16 %v7169
  %v7986 = vpack.c.b16 %v7970, %v7890
  %v7987 = vpack.c.b16 %v7971, %v7891
  %v7988 = vpack.c.b16 %v7972, %v7892
  %v7989 = vpack.c.b16 %v7973, %v7893
  %v7990 = vpack.c.b16 %v7974, %v7894
  %v7991 = vpack.c.b16 %v7975, %v7895
  %v7992 = vpack.c.b16 %v7976, %v7896
  %v7993 = vpack.c.b16 %v7977, %v7897
  %v7994 = vpack.c.b16 %v7978, %v7898
  %v7995 = vpack.c.b16 %v7979, %v7899
  %v7996 = vpack.c.b16 %v7980, %v7900
  %v7997 = vpack.c.b16 %v7981, %v7901
  %v7998 = vpack.c.b16 %v7982, %v7902
  %v7999 = vpack.c.b16 %v7983, %v7903
  %v8000 = vpack.c.b16 %v7984, %v7904
  %v8001 = vpack.c.b16 %v7985, %v7905
  %v8003 = vshrl.u32 %v7986, 16
  %v8005 = vshll.u32 %v7986, 16
  %v8007 = vrot.slane %v8005, 1
  %v8008 = vor.u32 %v8003, %v8007
  %v8010 = vshrl.u32 %v7987, 16
  %v8012 = vshll.u32 %v7987, 16
  %v8014 = vrot.slane %v8012, 1
  %v8015 = vor.u32 %v8010, %v8014
  %v8017 = vshrl.u32 %v7988, 16
  %v8019 = vshll.u32 %v7988, 16
  %v8021 = vrot.slane %v8019, 1
  %v8022 = vor.u32 %v8017, %v8021
  %v8024 = vshrl.u32 %v7989, 16
  %v8026 = vshll.u32 %v7989, 16
  %v8028 = vrot.slane %v8026, 1
  %v8029 = vor.u32 %v8024, %v8028
  %v8031 = vshrl.u32 %v7990, 16
  %v8033 = vshll.u32 %v7990, 16
  %v8035 = vrot.slane %v8033, 1
  %v8036 = vor.u32 %v8031, %v8035
  %v8038 = vshrl.u32 %v7991, 16
  %v8040 = vshll.u32 %v7991, 16
  %v8042 = vrot.slane %v8040, 1
  %v8043 = vor.u32 %v8038, %v8042
  %v8045 = vshrl.u32 %v7992, 16
  %v8047 = vshll.u32 %v7992, 16
  %v8049 = vrot.slane %v8047, 1
  %v8050 = vor.u32 %v8045, %v8049
  %v8052 = vshrl.u32 %v7993, 16
  %v8054 = vshll.u32 %v7993, 16
  %v8056 = vrot.slane %v8054, 1
  %v8057 = vor.u32 %v8052, %v8056
  %v8059 = vshrl.u32 %v7994, 16
  %v8061 = vshll.u32 %v7994, 16
  %v8063 = vrot.slane %v8061, 1
  %v8064 = vor.u32 %v8059, %v8063
  %v8066 = vshrl.u32 %v7995, 16
  %v8068 = vshll.u32 %v7995, 16
  %v8070 = vrot.slane %v8068, 1
  %v8071 = vor.u32 %v8066, %v8070
  %v8073 = vshrl.u32 %v7996, 16
  %v8075 = vshll.u32 %v7996, 16
  %v8077 = vrot.slane %v8075, 1
  %v8078 = vor.u32 %v8073, %v8077
  %v8080 = vshrl.u32 %v7997, 16
  %v8082 = vshll.u32 %v7997, 16
  %v8084 = vrot.slane %v8082, 1
  %v8085 = vor.u32 %v8080, %v8084
  %v8087 = vshrl.u32 %v7998, 16
  %v8089 = vshll.u32 %v7998, 16
  %v8091 = vrot.slane %v8089, 1
  %v8092 = vor.u32 %v8087, %v8091
  %v8094 = vshrl.u32 %v7999, 16
  %v8096 = vshll.u32 %v7999, 16
  %v8098 = vrot.slane %v8096, 1
  %v8099 = vor.u32 %v8094, %v8098
  %v8101 = vshrl.u32 %v8000, 16
  %v8103 = vshll.u32 %v8000, 16
  %v8105 = vrot.slane %v8103, 1
  %v8106 = vor.u32 %v8101, %v8105
  %v8108 = vshrl.u32 %v8001, 16
  %v8110 = vshll.u32 %v8001, 16
  %v8112 = vrot.slane %v8110, 1
  %v8113 = vor.u32 %v8108, %v8112
  %8114 = vrot.lane.b32.xlu0 %v8008, 56
  %v8115 = vpop.permute.xlu0 %8114
  %8116 = vrot.lane.b32.xlu0 %v8015, 56
  %v8117 = vpop.permute.xlu0 %8116
  %8118 = vrot.lane.b32.xlu0 %v8022, 56
  %v8119 = vpop.permute.xlu0 %8118
  %8120 = vrot.lane.b32.xlu0 %v8029, 56
  %v8121 = vpop.permute.xlu0 %8120
  %8122 = vrot.lane.b32.xlu0 %v8036, 56
  %v8123 = vpop.permute.xlu0 %8122
  %8124 = vrot.lane.b32.xlu0 %v8043, 56
  %v8125 = vpop.permute.xlu0 %8124
  %8126 = vrot.lane.b32.xlu0 %v8050, 56
  %v8127 = vpop.permute.xlu0 %8126
  %8128 = vrot.lane.b32.xlu0 %v8057, 56
  %v8129 = vpop.permute.xlu0 %8128
  %8130 = vrot.lane.b32.xlu0 %v8064, 56
  %v8131 = vpop.permute.xlu0 %8130
  %8132 = vrot.lane.b32.xlu0 %v8071, 56
  %v8133 = vpop.permute.xlu0 %8132
  %8134 = vrot.lane.b32.xlu0 %v8078, 56
  %v8135 = vpop.permute.xlu0 %8134
  %8136 = vrot.lane.b32.xlu0 %v8085, 56
  %v8137 = vpop.permute.xlu0 %8136
  %8138 = vrot.lane.b32.xlu0 %v8092, 56
  %v8139 = vpop.permute.xlu0 %8138
  %8140 = vrot.lane.b32.xlu0 %v8099, 56
  %v8141 = vpop.permute.xlu0 %8140
  %8142 = vrot.lane.b32.xlu0 %v8106, 56
  %v8143 = vpop.permute.xlu0 %8142
  %8144 = vrot.lane.b32.xlu0 %v8113, 56
  %v8145 = vpop.permute.xlu0 %8144
  %v8162 = vunpack.c.l.b16 %v7170
  %v8163 = vunpack.c.l.b16 %v7171
  %v8164 = vunpack.c.l.b16 %v7172
  %v8165 = vunpack.c.l.b16 %v7173
  %v8166 = vunpack.c.l.b16 %v7174
  %v8167 = vunpack.c.l.b16 %v7175
  %v8168 = vunpack.c.l.b16 %v7176
  %v8169 = vunpack.c.l.b16 %v7177
  %v8170 = vunpack.c.l.b16 %v7178
  %v8171 = vunpack.c.l.b16 %v7179
  %v8172 = vunpack.c.l.b16 %v7180
  %v8173 = vunpack.c.l.b16 %v7181
  %v8174 = vunpack.c.l.b16 %v7182
  %v8175 = vunpack.c.l.b16 %v7183
  %v8176 = vunpack.c.l.b16 %v7184
  %v8177 = vunpack.c.l.b16 %v7185
  %v8178 = vpack.c.b16 %v7970, %v8162
  %v8179 = vpack.c.b16 %v7971, %v8163
  %v8180 = vpack.c.b16 %v7972, %v8164
  %v8181 = vpack.c.b16 %v7973, %v8165
  %v8182 = vpack.c.b16 %v7974, %v8166
  %v8183 = vpack.c.b16 %v7975, %v8167
  %v8184 = vpack.c.b16 %v7976, %v8168
  %v8185 = vpack.c.b16 %v7977, %v8169
  %v8186 = vpack.c.b16 %v7978, %v8170
  %v8187 = vpack.c.b16 %v7979, %v8171
  %v8188 = vpack.c.b16 %v7980, %v8172
  %v8189 = vpack.c.b16 %v7981, %v8173
  %v8190 = vpack.c.b16 %v7982, %v8174
  %v8191 = vpack.c.b16 %v7983, %v8175
  %v8192 = vpack.c.b16 %v7984, %v8176
  %v8193 = vpack.c.b16 %v7985, %v8177
  %v8194 = vrot.slane %v8178, 1
  %v8195 = vrot.slane %v8179, 1
  %v8196 = vrot.slane %v8180, 1
  %v8197 = vrot.slane %v8181, 1
  %v8198 = vrot.slane %v8182, 1
  %v8199 = vrot.slane %v8183, 1
  %v8200 = vrot.slane %v8184, 1
  %v8201 = vrot.slane %v8185, 1
  %v8202 = vrot.slane %v8186, 1
  %v8203 = vrot.slane %v8187, 1
  %v8204 = vrot.slane %v8188, 1
  %v8205 = vrot.slane %v8189, 1
  %v8206 = vrot.slane %v8190, 1
  %v8207 = vrot.slane %v8191, 1
  %v8208 = vrot.slane %v8192, 1
  %v8209 = vrot.slane %v8193, 1
  %8210 = vrot.lane.b32.xlu0 %v8194, 64
  %v8211 = vpop.permute.xlu0 %8210
  %8212 = vrot.lane.b32.xlu0 %v8195, 64
  %v8213 = vpop.permute.xlu0 %8212
  %8214 = vrot.lane.b32.xlu0 %v8196, 64
  %v8215 = vpop.permute.xlu0 %8214
  %8216 = vrot.lane.b32.xlu0 %v8197, 64
  %v8217 = vpop.permute.xlu0 %8216
  %8218 = vrot.lane.b32.xlu0 %v8198, 64
  %v8219 = vpop.permute.xlu0 %8218
  %8220 = vrot.lane.b32.xlu0 %v8199, 64
  %v8221 = vpop.permute.xlu0 %8220
  %8222 = vrot.lane.b32.xlu0 %v8200, 64
  %v8223 = vpop.permute.xlu0 %8222
  %8224 = vrot.lane.b32.xlu0 %v8201, 64
  %v8225 = vpop.permute.xlu0 %8224
  %8226 = vrot.lane.b32.xlu0 %v8202, 64
  %v8227 = vpop.permute.xlu0 %8226
  %8228 = vrot.lane.b32.xlu0 %v8203, 64
  %v8229 = vpop.permute.xlu0 %8228
  %8230 = vrot.lane.b32.xlu0 %v8204, 64
  %v8231 = vpop.permute.xlu0 %8230
  %8232 = vrot.lane.b32.xlu0 %v8205, 64
  %v8233 = vpop.permute.xlu0 %8232
  %8234 = vrot.lane.b32.xlu0 %v8206, 64
  %v8235 = vpop.permute.xlu0 %8234
  %8236 = vrot.lane.b32.xlu0 %v8207, 64
  %v8237 = vpop.permute.xlu0 %8236
  %8238 = vrot.lane.b32.xlu0 %v8208, 64
  %v8239 = vpop.permute.xlu0 %8238
  %8240 = vrot.lane.b32.xlu0 %v8209, 64
  %v8241 = vpop.permute.xlu0 %8240
  %v8244 = vsel %vm2156, %v7042, %v7379
  %v8247 = vsel %vm2156, %v7043, %v7381
  %v8250 = vsel %vm2156, %v7044, %v7383
  %v8253 = vsel %vm2156, %v7045, %v7385
  %v8256 = vsel %vm2156, %v7046, %v7387
  %v8259 = vsel %vm2156, %v7047, %v7389
  %v8262 = vsel %vm2156, %v7048, %v7391
  %v8265 = vsel %vm2156, %v7049, %v7393
  %v8268 = vsel %vm2156, %v7050, %v7395
  %v8271 = vsel %vm2156, %v7051, %v7397
  %v8274 = vsel %vm2156, %v7052, %v7399
  %v8277 = vsel %vm2156, %v7053, %v7401
  %v8280 = vsel %vm2156, %v7054, %v7403
  %v8283 = vsel %vm2156, %v7055, %v7405
  %v8286 = vsel %vm2156, %v7056, %v7407
  %v8289 = vsel %vm2156, %v7057, %v7409
  %v8291 = vsel %vm2222, %v8244, %v7475
  %v8293 = vsel %vm2222, %v8247, %v7477
  %v8295 = vsel %vm2222, %v8250, %v7479
  %v8297 = vsel %vm2222, %v8253, %v7481
  %v8299 = vsel %vm2222, %v8256, %v7483
  %v8301 = vsel %vm2222, %v8259, %v7485
  %v8303 = vsel %vm2222, %v8262, %v7487
  %v8305 = vsel %vm2222, %v8265, %v7489
  %v8307 = vsel %vm2222, %v8268, %v7491
  %v8309 = vsel %vm2222, %v8271, %v7493
  %v8311 = vsel %vm2222, %v8274, %v7495
  %v8313 = vsel %vm2222, %v8277, %v7497
  %v8315 = vsel %vm2222, %v8280, %v7499
  %v8317 = vsel %vm2222, %v8283, %v7501
  %v8319 = vsel %vm2222, %v8286, %v7503
  %v8321 = vsel %vm2222, %v8289, %v7505
  %v8323 = vsel %vm2288, %v8291, %v7555
  %v8325 = vsel %vm2288, %v8293, %v7557
  %v8327 = vsel %vm2288, %v8295, %v7559
  %v8329 = vsel %vm2288, %v8297, %v7561
  %v8331 = vsel %vm2288, %v8299, %v7563
  %v8333 = vsel %vm2288, %v8301, %v7565
  %v8335 = vsel %vm2288, %v8303, %v7567
  %v8337 = vsel %vm2288, %v8305, %v7569
  %v8339 = vsel %vm2288, %v8307, %v7571
  %v8341 = vsel %vm2288, %v8309, %v7573
  %v8343 = vsel %vm2288, %v8311, %v7575
  %v8345 = vsel %vm2288, %v8313, %v7577
  %v8347 = vsel %vm2288, %v8315, %v7579
  %v8349 = vsel %vm2288, %v8317, %v7581
  %v8351 = vsel %vm2288, %v8319, %v7583
  %v8353 = vsel %vm2288, %v8321, %v7585
  %v8355 = vsel %vm2354, %v8323, %v7747
  %v8357 = vsel %vm2354, %v8325, %v7749
  %v8359 = vsel %vm2354, %v8327, %v7751
  %v8361 = vsel %vm2354, %v8329, %v7753
  %v8363 = vsel %vm2354, %v8331, %v7755
  %v8365 = vsel %vm2354, %v8333, %v7757
  %v8367 = vsel %vm2354, %v8335, %v7759
  %v8369 = vsel %vm2354, %v8337, %v7761
  %v8371 = vsel %vm2354, %v8339, %v7763
  %v8373 = vsel %vm2354, %v8341, %v7765
  %v8375 = vsel %vm2354, %v8343, %v7767
  %v8377 = vsel %vm2354, %v8345, %v7769
  %v8379 = vsel %vm2354, %v8347, %v7771
  %v8381 = vsel %vm2354, %v8349, %v7773
  %v8383 = vsel %vm2354, %v8351, %v7775
  %v8385 = vsel %vm2354, %v8353, %v7777
  %v8387 = vsel %vm4316, %v8355, %v7843
  %v8389 = vsel %vm4316, %v8357, %v7845
  %v8391 = vsel %vm4316, %v8359, %v7847
  %v8393 = vsel %vm4316, %v8361, %v7849
  %v8395 = vsel %vm4316, %v8363, %v7851
  %v8397 = vsel %vm4316, %v8365, %v7853
  %v8399 = vsel %vm4316, %v8367, %v7855
  %v8401 = vsel %vm4316, %v8369, %v7857
  %v8403 = vsel %vm4316, %v8371, %v7859
  %v8405 = vsel %vm4316, %v8373, %v7861
  %v8407 = vsel %vm4316, %v8375, %v7863
  %v8409 = vsel %vm4316, %v8377, %v7865
  %v8411 = vsel %vm4316, %v8379, %v7867
  %v8413 = vsel %vm4316, %v8381, %v7869
  %v8415 = vsel %vm4316, %v8383, %v7871
  %v8417 = vsel %vm4316, %v8385, %v7873
  %v8419 = vsel %vm4349, %v8387, %v7923
  %v8421 = vsel %vm4349, %v8389, %v7925
  %v8423 = vsel %vm4349, %v8391, %v7927
  %v8425 = vsel %vm4349, %v8393, %v7929
  %v8427 = vsel %vm4349, %v8395, %v7931
  %v8429 = vsel %vm4349, %v8397, %v7933
  %v8431 = vsel %vm4349, %v8399, %v7935
  %v8433 = vsel %vm4349, %v8401, %v7937
  %v8435 = vsel %vm4349, %v8403, %v7939
  %v8437 = vsel %vm4349, %v8405, %v7941
  %v8439 = vsel %vm4349, %v8407, %v7943
  %v8441 = vsel %vm4349, %v8409, %v7945
  %v8443 = vsel %vm4349, %v8411, %v7947
  %v8445 = vsel %vm4349, %v8413, %v7949
  %v8447 = vsel %vm4349, %v8415, %v7951
  %v8449 = vsel %vm4349, %v8417, %v7953
  %v8451 = vsel %vm4382, %v8419, %v8115
  %v8453 = vsel %vm4382, %v8421, %v8117
  %v8455 = vsel %vm4382, %v8423, %v8119
  %v8457 = vsel %vm4382, %v8425, %v8121
  %v8459 = vsel %vm4382, %v8427, %v8123
  %v8461 = vsel %vm4382, %v8429, %v8125
  %v8463 = vsel %vm4382, %v8431, %v8127
  %v8465 = vsel %vm4382, %v8433, %v8129
  %v8467 = vsel %vm4382, %v8435, %v8131
  %v8469 = vsel %vm4382, %v8437, %v8133
  %v8471 = vsel %vm4382, %v8439, %v8135
  %v8473 = vsel %vm4382, %v8441, %v8137
  %v8475 = vsel %vm4382, %v8443, %v8139
  %v8477 = vsel %vm4382, %v8445, %v8141
  %v8479 = vsel %vm4382, %v8447, %v8143
  %v8481 = vsel %vm4382, %v8449, %v8145
  %v8483 = vsel %vm4415, %v8451, %v8211
  %v8485 = vsel %vm4415, %v8453, %v8213
  %v8487 = vsel %vm4415, %v8455, %v8215
  %v8489 = vsel %vm4415, %v8457, %v8217
  %v8491 = vsel %vm4415, %v8459, %v8219
  %v8493 = vsel %vm4415, %v8461, %v8221
  %v8495 = vsel %vm4415, %v8463, %v8223
  %v8497 = vsel %vm4415, %v8465, %v8225
  %v8499 = vsel %vm4415, %v8467, %v8227
  %v8501 = vsel %vm4415, %v8469, %v8229
  %v8503 = vsel %vm4415, %v8471, %v8231
  %v8505 = vsel %vm4415, %v8473, %v8233
  %v8507 = vsel %vm4415, %v8475, %v8235
  %v8509 = vsel %vm4415, %v8477, %v8237
  %v8511 = vsel %vm4415, %v8479, %v8239
  %v8513 = vsel %vm4415, %v8481, %v8241
  %v8514 = vsel %vm4448, %v8483, 0
  %v8515 = vsel %vm4448, %v8485, 0
  %v8516 = vsel %vm4448, %v8487, 0
  %v8517 = vsel %vm4448, %v8489, 0
  %v8518 = vsel %vm4448, %v8491, 0
  %v8519 = vsel %vm4448, %v8493, 0
  %v8520 = vsel %vm4448, %v8495, 0
  %v8521 = vsel %vm4448, %v8497, 0
  %v8522 = vsel %vm4448, %v8499, 0
  %v8523 = vsel %vm4448, %v8501, 0
  %v8524 = vsel %vm4448, %v8503, 0
  %v8525 = vsel %vm4448, %v8505, 0
  %v8526 = vsel %vm4448, %v8507, 0
  %v8527 = vsel %vm4448, %v8509, 0
  %v8528 = vsel %vm4448, %v8511, 0
  %v8529 = vsel %vm4448, %v8513, 0
  %v8530 = vld [vmem:[%s4] sm:$0xf]
  %v8531 = vld [vmem:[%s4 + $0x4] sm:$0xf]
  %v8532 = vld [vmem:[%s4 + $0x8] sm:$0xf]
  %v8533 = vld [vmem:[%s4 + $0xc] sm:$0xf]
  %v8534 = vld [vmem:[%s4 + $0x10] sm:$0xf]
  %v8535 = vld [vmem:[%s4 + $0x14] sm:$0xf]
  %v8536 = vld [vmem:[%s4 + $0x18] sm:$0xf]
  %v8537 = vld [vmem:[%s4 + $0x1c] sm:$0xf]
  %v8538 = vld [vmem:[%s4 + $0x20] sm:$0xf]
  %v8539 = vld [vmem:[%s4 + $0x24] sm:$0xf]
  %v8540 = vld [vmem:[%s4 + $0x28] sm:$0xf]
  %v8541 = vld [vmem:[%s4 + $0x2c] sm:$0xf]
  %v8542 = vld [vmem:[%s4 + $0x30] sm:$0xf]
  %v8543 = vld [vmem:[%s4 + $0x34] sm:$0xf]
  %v8544 = vld [vmem:[%s4 + $0x38] sm:$0xf]
  %v8545 = vld [vmem:[%s4 + $0x3c] sm:$0xf]
  %v8562 = vunpack.c.l.b16 %v8514
  %v8563 = vunpack.c.l.b16 %v8515
  %v8564 = vunpack.c.l.b16 %v8516
  %v8565 = vunpack.c.l.b16 %v8517
  %v8566 = vunpack.c.l.b16 %v8518
  %v8567 = vunpack.c.l.b16 %v8519
  %v8568 = vunpack.c.l.b16 %v8520
  %v8569 = vunpack.c.l.b16 %v8521
  %v8570 = vunpack.c.l.b16 %v8522
  %v8571 = vunpack.c.l.b16 %v8523
  %v8572 = vunpack.c.l.b16 %v8524
  %v8573 = vunpack.c.l.b16 %v8525
  %v8574 = vunpack.c.l.b16 %v8526
  %v8575 = vunpack.c.l.b16 %v8527
  %v8576 = vunpack.c.l.b16 %v8528
  %v8577 = vunpack.c.l.b16 %v8529
  %v8578 = vpack.c.b16 %v8563, %v8562
  %v8579 = vpack.c.b16 %v8565, %v8564
  %v8580 = vpack.c.b16 %v8567, %v8566
  %v8581 = vpack.c.b16 %v8569, %v8568
  %v8582 = vpack.c.b16 %v8571, %v8570
  %v8583 = vpack.c.b16 %v8573, %v8572
  %v8584 = vpack.c.b16 %v8575, %v8574
  %v8585 = vpack.c.b16 %v8577, %v8576
  %v8610 = vunpack.c.l.b16 %v8530
  %v8611 = vunpack.c.l.b16 %v8531
  %v8612 = vunpack.c.l.b16 %v8532
  %v8613 = vunpack.c.l.b16 %v8533
  %v8614 = vunpack.c.l.b16 %v8534
  %v8615 = vunpack.c.l.b16 %v8535
  %v8616 = vunpack.c.l.b16 %v8536
  %v8617 = vunpack.c.l.b16 %v8537
  %v8618 = vunpack.c.l.b16 %v8538
  %v8619 = vunpack.c.l.b16 %v8539
  %v8620 = vunpack.c.l.b16 %v8540
  %v8621 = vunpack.c.l.b16 %v8541
  %v8622 = vunpack.c.l.b16 %v8542
  %v8623 = vunpack.c.l.b16 %v8543
  %v8624 = vunpack.c.l.b16 %v8544
  %v8625 = vunpack.c.l.b16 %v8545
  %v8626 = vpack.c.b16 %v8611, %v8610
  %v8627 = vpack.c.b16 %v8613, %v8612
  %v8628 = vpack.c.b16 %v8615, %v8614
  %v8629 = vpack.c.b16 %v8617, %v8616
  %v8630 = vpack.c.b16 %v8619, %v8618
  %v8631 = vpack.c.b16 %v8621, %v8620
  %v8632 = vpack.c.b16 %v8623, %v8622
  %v8633 = vpack.c.b16 %v8625, %v8624
  %8642 = vmatprep.subr.bf16.mxu0 0
  %8643 = vmatpush1.bf16.msra.mxu0 %v8633
  %8644 = vmatprep.subr.bf16.mxu0 0
  %8645 = vmatpush1.bf16.msra.mxu0 %v8632
  %8646 = vmatprep.subr.bf16.mxu0 0
  %8647 = vmatpush1.bf16.msra.mxu0 %v8631
  %8648 = vmatprep.subr.bf16.mxu0 0
  %8649 = vmatpush1.bf16.msra.mxu0 %v8630
  %8650 = vmatprep.subr.bf16.mxu0 0
  %8651 = vmatpush1.bf16.msra.mxu0 %v8629
  %8652 = vmatprep.subr.bf16.mxu0 0
  %8653 = vmatpush1.bf16.msra.mxu0 %v8628
  %8654 = vmatprep.subr.bf16.mxu0 0
  %8655 = vmatpush1.bf16.msra.mxu0 %v8627
  %8656 = vmatprep.subr.bf16.mxu0 0
  %8657 = vmatpush1.bf16.msra.mxu0 %v8626
  %8658 = vmatprep.subr.bf16.mxu0 0
  %8659 = vmatpush2.bf16.msra.mxu0 0
  %8660 = vmatprep.subr.bf16.mxu0 0
  %8661 = vmatpush2.bf16.msra.mxu0 0
  %8662 = vmatprep.subr.bf16.mxu0 0
  %8663 = vmatpush2.bf16.msra.mxu0 0
  %8664 = vmatprep.subr.bf16.mxu0 0
  %8665 = vmatpush2.bf16.msra.mxu0 0
  %8666 = vmatprep.subr.bf16.mxu0 0
  %8667 = vmatpush2.bf16.msra.mxu0 0
  %8668 = vmatprep.subr.bf16.mxu0 0
  %8669 = vmatpush2.bf16.msra.mxu0 0
  %8670 = vmatprep.subr.bf16.mxu0 0
  %8671 = vmatpush2.bf16.msra.mxu0 0
  %8672 = vmatprep.subr.bf16.mxu0 0
  %8673 = vmatpush2.bf16.msra.mxu0 0
  %8674 = vmatprep.mubr.bf16.mxu0 0
  %8675 = vmatmul.mubr.bf16.gmra.mxu0 %v8578
  %v8676 = vpop.f32.mrf.mxu0
  %v8677 = vadd.f32 %v4707, %v8676
  %v8678 = vpop.f32.mrf.mxu0
  %v8679 = vpop.f32.mrf.mxu0
  %v8680 = vadd.f32 %v4708, %v8679
  %v8681 = vpop.f32.mrf.mxu0
  %8682 = vmatprep.mubr.bf16.mxu0 0
  %8683 = vmatmul.mubr.bf16.gmra.mxu0 %v8579
  %v8684 = vpop.f32.mrf.mxu0
  %v8685 = vadd.f32 %v4709, %v8684
  %v8686 = vpop.f32.mrf.mxu0
  %v8687 = vpop.f32.mrf.mxu0
  %v8688 = vadd.f32 %v4710, %v8687
  %v8689 = vpop.f32.mrf.mxu0
  %8690 = vmatprep.mubr.bf16.mxu0 0
  %8691 = vmatmul.mubr.bf16.gmra.mxu0 %v8580
  %v8692 = vpop.f32.mrf.mxu0
  %v8693 = vadd.f32 %v4711, %v8692
  %v8694 = vpop.f32.mrf.mxu0
  %v8695 = vpop.f32.mrf.mxu0
  %v8696 = vadd.f32 %v4712, %v8695
  %v8697 = vpop.f32.mrf.mxu0
  %8698 = vmatprep.mubr.bf16.mxu0 0
  %8699 = vmatmul.mubr.bf16.gmra.mxu0 %v8581
  %v8700 = vpop.f32.mrf.mxu0
  %v8701 = vadd.f32 %v4713, %v8700
  %v8702 = vpop.f32.mrf.mxu0
  %v8703 = vpop.f32.mrf.mxu0
  %v8704 = vadd.f32 %v4714, %v8703
  %v8705 = vpop.f32.mrf.mxu0
  %8706 = vmatprep.mubr.bf16.mxu0 0
  %8707 = vmatmul.mubr.bf16.gmra.mxu0 %v8582
  %v8708 = vpop.f32.mrf.mxu0
  %v8709 = vadd.f32 %v4715, %v8708
  %v8710 = vpop.f32.mrf.mxu0
  %v8711 = vpop.f32.mrf.mxu0
  %v8712 = vadd.f32 %v4716, %v8711
  %v8713 = vpop.f32.mrf.mxu0
  %8714 = vmatprep.mubr.bf16.mxu0 0
  %8715 = vmatmul.mubr.bf16.gmra.mxu0 %v8583
  %v8716 = vpop.f32.mrf.mxu0
  %v8717 = vadd.f32 %v4717, %v8716
  %v8718 = vpop.f32.mrf.mxu0
  %v8719 = vpop.f32.mrf.mxu0
  %v8720 = vadd.f32 %v4718, %v8719
  %v8721 = vpop.f32.mrf.mxu0
  %8722 = vmatprep.mubr.bf16.mxu0 0
  %8723 = vmatmul.mubr.bf16.gmra.mxu0 %v8584
  %v8724 = vpop.f32.mrf.mxu0
  %v8725 = vadd.f32 %v4719, %v8724
  %v8726 = vpop.f32.mrf.mxu0
  %v8727 = vpop.f32.mrf.mxu0
  %v8728 = vadd.f32 %v4720, %v8727
  %v8729 = vpop.f32.mrf.mxu0
  %8730 = vmatprep.mubr.bf16.mxu0 0
  %8731 = vmatmul.mubr.bf16.gmra.mxu0 %v8585
  %v8732 = vpop.f32.mrf.mxu0
  %v8733 = vadd.f32 %v4721, %v8732
  %v8734 = vpop.f32.mrf.mxu0
  %v8735 = vpop.f32.mrf.mxu0
  %v8736 = vadd.f32 %v4722, %v8735
  %v8737 = vpop.f32.mrf.mxu0
  %8738 = vdwg.mxu0
  %v8739 = vmax.f32 %v8677, 0.0
  %v8740 = vmax.f32 %v8680, 0.0
  %v8741 = vmax.f32 %v8685, 0.0
  %v8742 = vmax.f32 %v8688, 0.0
  %v8743 = vmax.f32 %v8693, 0.0
  %v8744 = vmax.f32 %v8696, 0.0
  %v8745 = vmax.f32 %v8701, 0.0
  %v8746 = vmax.f32 %v8704, 0.0
  %v8747 = vmax.f32 %v8709, 0.0
  %v8748 = vmax.f32 %v8712, 0.0
  %v8749 = vmax.f32 %v8717, 0.0
  %v8750 = vmax.f32 %v8720, 0.0
  %v8751 = vmax.f32 %v8725, 0.0
  %v8752 = vmax.f32 %v8728, 0.0
  %v8753 = vmax.f32 %v8733, 0.0
  %v8754 = vmax.f32 %v8736, 0.0
  %v8755 = vpack.c.bf16 %v8739, %v8739
  %v8756 = vpack.c.bf16 %v8740, %v8740
  %v8757 = vpack.c.bf16 %v8741, %v8741
  %v8758 = vpack.c.bf16 %v8742, %v8742
  %v8759 = vpack.c.bf16 %v8743, %v8743
  %v8760 = vpack.c.bf16 %v8744, %v8744
  %v8761 = vpack.c.bf16 %v8745, %v8745
  %v8762 = vpack.c.bf16 %v8746, %v8746
  %v8763 = vpack.c.bf16 %v8747, %v8747
  %v8764 = vpack.c.bf16 %v8748, %v8748
  %v8765 = vpack.c.bf16 %v8749, %v8749
  %v8766 = vpack.c.bf16 %v8750, %v8750
  %v8767 = vpack.c.bf16 %v8751, %v8751
  %v8768 = vpack.c.bf16 %v8752, %v8752
  %v8769 = vpack.c.bf16 %v8753, %v8753
  %v8770 = vpack.c.bf16 %v8754, %v8754
  %8771 = vst.msk [vmem:[%s5] sm:$0xf] %vm166, %v8755
  %8772 = vst.msk [vmem:[%s5 + $0x4] sm:$0xf] %vm166, %v8756
  %8773 = vst.msk [vmem:[%s5 + $0x8] sm:$0xf] %vm166, %v8757
  %8774 = vst.msk [vmem:[%s5 + $0xc] sm:$0xf] %vm166, %v8758
  %8775 = vst.msk [vmem:[%s5 + $0x10] sm:$0xf] %vm166, %v8759
  %8776 = vst.msk [vmem:[%s5 + $0x14] sm:$0xf] %vm166, %v8760
  %8777 = vst.msk [vmem:[%s5 + $0x18] sm:$0xf] %vm166, %v8761
  %8778 = vst.msk [vmem:[%s5 + $0x1c] sm:$0xf] %vm166, %v8762
  %8779 = vst.msk [vmem:[%s5 + $0x20] sm:$0xf] %vm166, %v8763
  %8780 = vst.msk [vmem:[%s5 + $0x24] sm:$0xf] %vm166, %v8764
  %8781 = vst.msk [vmem:[%s5 + $0x28] sm:$0xf] %vm166, %v8765
  %8782 = vst.msk [vmem:[%s5 + $0x2c] sm:$0xf] %vm166, %v8766
  %8783 = vst.msk [vmem:[%s5 + $0x30] sm:$0xf] %vm166, %v8767
  %8784 = vst.msk [vmem:[%s5 + $0x34] sm:$0xf] %vm166, %v8768
  %8785 = vst.msk [vmem:[%s5 + $0x38] sm:$0xf] %vm166, %v8769
  %8786 = vst.msk [vmem:[%s5 + $0x3c] sm:$0xf] %vm166, %v8770
  // Predicated region
  $region22: #{_lambda_.1} parent=0 // pred_check
    _
  $region23: #{_lambda_.1} parent=0 // pred_check_branch
    %8788 = sbr.rel (0) target = $region25
  $region24: #{_lambda_.1} parent=0 // pred_region
    _
  $region25: #{_lambda_.1} parent=0 // pred_fallthru
    _
  // Predicated region
  $region26: #{_lambda_.1} parent=0 // pred_check
    _
  $region27: #{_lambda_.1} parent=0 // pred_check_branch
    %8790 = sbr.rel (0) target = $region29
  $region28: #{_lambda_.1} parent=0 // pred_region
    _
  $region29: #{_lambda_.1} parent=0 // pred_fallthru
    _

</llo_original>
